<compile_context>
chip_gen: v6e
topology: v6e:2x2x1
jax: 0.10.0
libtpu: 0.0.40
codegen_flags: <defaults>
</compile_context>

<pallas_src>
import functools

import jax
import jax.numpy as jnp
from jax.experimental import pallas as pl
from jax.experimental.pallas import tpu as pltpu


NUM_CLASSES = 2
LANE = 128


# ----------------------------------------------------------------------------
# Per-generation tiling helpers
# ----------------------------------------------------------------------------
def _vmem_capacity_bytes():
    try:
        return int(pltpu.get_tpu_info().vmem_capacity_bytes)
    except Exception:
        return 64 * 1024 * 1024          # conservative fallback (v7x per-TC VMEM)


def _dw_scratch_dtype():
    """bf16 depthwise-tap scratch on chips with native bf16 VPUs (v6e/v7x); f32 on v5e."""
    try:
        kind = jax.devices()[0].device_kind.lower()
    except Exception:
        return jnp.float32
    return jnp.bfloat16 if ("v6" in kind or "v7" in kind) else jnp.float32


def _round_up(x, m):
    return ((x + m - 1) // m) * m


def _nbytes(*arrays):
    return sum(int(a.size) * a.dtype.itemsize for a in arrays)


def _mosaic_params(n_parallel_axes, working_set_bytes):
    """Scoped-VMEM request sized from the actual working set (+25% headroom and a fixed
    allowance for Mosaic internal scratch / spills), clamped to 3/4 of the chip's VMEM."""
    cap = _vmem_capacity_bytes()
    limit = int(working_set_bytes * 1.25) + (4 << 20)
    limit = max(limit, 16 << 20)
    limit = min(limit, (cap * 3) // 4)
    return pltpu.CompilerParams(
        dimension_semantics=("parallel",) * n_parallel_axes,
        vmem_limit_bytes=limit,
    )


def _pick_tm(M, K, N, out_bytes):
    """Largest M-tile whose double-buffered working set fits the VMEM budget, then capped
    so the grid keeps >= 2 steps (megacore sharding on 2-TC parts + pipeline overlap)."""
    budget = _vmem_capacity_bytes() // 4

    def need(tm):
        # 2x (bf16 input tile + output tile) + (double-buffered) bf16 weights + f32 bias
        return 2 * (tm * K * 2 + tm * N * out_bytes) + 2 * (K * N * 2 + N * 4)

    tm = 1024
    while tm > 128 and need(tm) > budget:
        tm //= 2
    if need(tm) > budget:
        raise ValueError(
            f"matmul tile working set {need(tm)} B exceeds VMEM budget {budget} B even at "
            f"tm=128 (K={K}, N={N}); shrink the resident weight panel.")
    target_steps = max(2, min(8, M // 128))
    tm = min(tm, max(8, _round_up(pl.cdiv(M, target_steps), 8)))
    return tm


def _full_spec(a):
    nd = a.ndim
    return pl.BlockSpec(a.shape, lambda *_: (0,) * nd)


# ----------------------------------------------------------------------------
# Kernel 1: matmul + folded-BN bias + optional swish (stem conv via im2col)
# ----------------------------------------------------------------------------
def _matmul_bias_act_kernel(x_ref, w_ref, b_ref, o_ref, *, act):
    y = jnp.dot(x_ref[...], w_ref[...], preferred_element_type=jnp.float32)
    y = y + b_ref[...]
    if act == "swish":
        y = y * jax.nn.sigmoid(y)
    o_ref[...] = y.astype(o_ref.dtype)


def matmul_bias_act(x, w, b, act="swish", out_dtype=jnp.float32):
    """x: [M, K] bf16, w: [K, N] bf16 (BN scale folded), b: [1, N] f32 -> [M, N]."""
    M, K = x.shape
    N = w.shape[1]
    out_bytes = 2 if out_dtype == jnp.bfloat16 else 4
    tm = _pick_tm(M, K, N, out_bytes)
    Mp = _round_up(M, tm)
    if Mp != M:
        x = jnp.pad(x, ((0, Mp - M), (0, 0)))
    ws = 2 * (tm * K * x.dtype.itemsize + tm * N * out_bytes) + 2 * (_nbytes(w, b))
    out = pl.pallas_call(
        functools.partial(_matmul_bias_act_kernel, act=act),
        out_shape=jax.ShapeDtypeStruct((Mp, N), out_dtype),
        grid=(Mp // tm,),
        in_specs=[
            pl.BlockSpec((tm, K), lambda i: (i, 0)),
            pl.BlockSpec((K, N), lambda i: (0, 0)),
            pl.BlockSpec((1, N), lambda i: (0, 0)),
        ],
        out_specs=pl.BlockSpec((tm, N), lambda i: (i, 0)),
        compiler_params=_mosaic_params(1, ws),
    )(x, w, b)
    return out[:M] if Mp != M else out


# ----------------------------------------------------------------------------
# Kernel 2: fused MBConv (expand -> dw3x3 -> SE -> project -> residual), per image
# ----------------------------------------------------------------------------
def _mbconv_kernel(x_ref, exp_w_ref, exp_b_ref, dw_w_ref, dw_b_ref,
                   se_w1_ref, se_b1_ref, se_w2_ref, se_b2_ref,
                   proj_w_ref, proj_b_ref, o_ref, pad_ref, *, H, W):
    C_in = x_ref.shape[-1]
    C_exp = exp_w_ref.shape[-1]
    HW = H * W
    OFF = _round_up(W, 8)                     # zero rows above/below the flat image
    sdt = pad_ref.dtype

    xm = x_ref[0].reshape(HW, C_in)           # [H*W, C_in] bf16 (also residual source)

    # --- expand 1x1 (BN folded) + swish: MXU, f32 accumulation -------------------
    h = jnp.dot(xm, exp_w_ref[...], preferred_element_type=jnp.float32)
    h = h + exp_b_ref[...]
    h = h * jax.nn.sigmoid(h)                 # [HW, C_exp] f32

    # --- depthwise 3x3, stride 1, zero padding 1 (BN scale folded into taps) -----
    # Zero ONLY the 2*OFF pad rows, not the whole scratch.  Re-zeroed every grid step:
    # the scratch is per-TensorCore, and under megacore sharding of the batch axis a
    # core's first grid index need not be 0, so a program_id(0)==0 guard is unsafe.
    zpad = jnp.zeros((OFF, C_exp), sdt)
    pad_ref[0:OFF, :] = zpad
    pad_ref[OFF + HW:2 * OFF + HW, :] = zpad
    pad_ref[OFF:OFF + HW, :] = h.astype(sdt)  # aligned store (OFF and HW multiples of 8)

    # Only the three 8-aligned center-column taps are read (base = OFF+(dy-1)*W, W%8==0).
    # The dx=+-1 columns are sublane rolls (XLU slot, otherwise idle here) of the
    # per-channel-weighted center reads: the [1, C_exp] weights broadcast along the rolled
    # axis, so the roll commutes with the weighting, and the hoisted border-column masks
    # zero exactly the circularly wrapped elements -> identical to nine padded tap reads.
    dw_w = dw_w_ref[...]                      # [9, C_exp] f32
    left = mid = right = None
    for dy in range(3):
        base = OFF + (dy - 1) * W
        tap = pad_ref[base:base + HW, :]      # vertical padding comes from the zero rows
        l = tap * dw_w[3 * dy + 0:3 * dy + 1, :]
        m = tap * dw_w[3 * dy + 1:3 * dy + 2, :]
        r = tap * dw_w[3 * dy + 2:3 * dy + 3, :]
        left = l if left is None else left + l
        mid = m if mid is None else mid + m
        right = r if right is None else right + r

    colx = jax.lax.broadcasted_iota(jnp.int32, (HW, C_exp), 0) % W
    not_first_col = colx >= 1                 # output x == 0   -> left tap is padding
    not_last_col = colx <= W - 2              # output x == W-1 -> right tap is padding
    y = mid
    y = y + jnp.where(not_first_col, pltpu.roll(left, shift=1, axis=0), 0.0)
    y = y + jnp.where(not_last_col, pltpu.roll(right, shift=HW - 1, axis=0), 0.0)
    y = y + dw_b_ref[...]
    y = y * jax.nn.sigmoid(y)                 # [HW, C_exp] f32

    # --- squeeze-excite gate (pool -> FC -> swish -> FC -> sigmoid), all f32 ------
    pooled = jnp.mean(y, axis=0, keepdims=True)                        # [1, C_exp]
    g = jnp.dot(pooled, se_w1_ref[...], preferred_element_type=jnp.float32) + se_b1_ref[...]
    g = g * jax.nn.sigmoid(g)
    gate = jax.nn.sigmoid(
        jnp.dot(g, se_w2_ref[...], preferred_element_type=jnp.float32) + se_b2_ref[...])

    # --- gated project 1x1 (BN folded, linear) + fused residual add --------------
    hg = (y * gate).astype(jnp.bfloat16)
    proj = jnp.dot(hg, proj_w_ref[...], preferred_element_type=jnp.float32)
    proj = proj + proj_b_ref[...]             # [HW, C_in]
    out = proj + xm.astype(jnp.float32)
    o_ref[0] = out.reshape(H, W, C_in).astype(o_ref.dtype)


def mbconv_block(x, p):
    N, H, W, C = x.shape
    C_exp = p["exp_w"].shape[1]
    off = _round_up(W, 8)
    sdt = _dw_scratch_dtype()
    sdt_bytes = 2 if sdt == jnp.bfloat16 else 4
    weights = (p["exp_w"], p["exp_b"], p["dw_w"], p["dw_b"],
               p["se_w1"], p["se_b1"], p["se_w2"], p["se_b2"],
               p["proj_w"], p["proj_b"])
    # working set: double-buffered in/out tiles + (double-buffered) weights + scratch
    # + an allowance for the f32 whole-image intermediates / spills.
    ws = (4 * H * W * C * x.dtype.itemsize
          + 2 * _nbytes(*weights)
          + (2 * off + H * W) * C_exp * sdt_bytes
          + 8 * H * W * C_exp * 4)
    return pl.pallas_call(
        functools.partial(_mbconv_kernel, H=H, W=W),
        out_shape=jax.ShapeDtypeStruct((N, H, W, C), x.dtype),
        grid=(N,),
        in_specs=[pl.BlockSpec((1, H, W, C), lambda b: (b, 0, 0, 0))]
                 + [_full_spec(w) for w in weights],
        out_specs=pl.BlockSpec((1, H, W, C), lambda b: (b, 0, 0, 0)),
        scratch_shapes=[pltpu.VMEM((2 * off + H * W, C_exp), sdt)],
        compiler_params=_mosaic_params(1, ws),
    )(x, *weights)


# ----------------------------------------------------------------------------
# Kernel 3: fused head 1x1 + swish + global average pool + final FC (lane-padded)
# ----------------------------------------------------------------------------
def _head_pool_fc_kernel(x_ref, hw_ref, hb_ref, fw_ref, fb_ref, o_ref):
    _, H, W, C = x_ref.shape
    x = x_ref[0].reshape(H * W, C)                                    # bf16
    h = jnp.dot(x, hw_ref[...], preferred_element_type=jnp.float32) + hb_ref[...]
    h = h * jax.nn.sigmoid(h)                                         # [H*W, C_head]
    pooled = jnp.mean(h, axis=0, keepdims=True)                       # [1, C_head] f32
    logits = jnp.dot(pooled.astype(jnp.bfloat16), fw_ref[...],
                     preferred_element_type=jnp.float32) + fb_ref[...]
    o_ref[0] = logits.astype(o_ref.dtype)                             # [1, LANE]


def head_pool_fc(x, head_w, head_b, fc_w, fc_b):
    N, H, W, C = x.shape
    ncol = fc_w.shape[1]                      # lane-padded class dim (128)
    ws = (4 * H * W * C * x.dtype.itemsize
          + 2 * _nbytes(head_w, head_b, fc_w, fc_b)
          + 3 * H * W * head_w.shape[1] * 4)
    out = pl.pallas_call(
        _head_pool_fc_kernel,
        out_shape=jax.ShapeDtypeStruct((N, 1, ncol), jnp.float32),
        grid=(N,),
        in_specs=[pl.BlockSpec((1, H, W, C), lambda b: (b, 0, 0, 0)),
                  _full_spec(head_w), _full_spec(head_b),
                  _full_spec(fc_w), _full_spec(fc_b)],
        out_specs=pl.BlockSpec((1, 1, ncol), lambda b: (b, 0, 0)),
        compiler_params=_mosaic_params(1, ws),
    )(x, head_w, head_b, fc_w, fc_b)
    return out.reshape(N, ncol)


# ----------------------------------------------------------------------------
# Plain-JAX glue (stem im2col on the tiny 3-channel input, param setup)
# ----------------------------------------------------------------------------
def extract_patches(x, kh, kw, stride, pad):
    """x: [N, H, W, C] -> ([N*Ho*Wo, kh*kw*C], Ho, Wo)."""
    N, H, W, C = x.shape
    xp = jnp.pad(x, ((0, 0), (pad, pad), (pad, pad), (0, 0)))
    Ho = (H + 2 * pad - kh) // stride + 1
    Wo = (W + 2 * pad - kw) // stride + 1
    taps = []
    for i in range(kh):
        for j in range(kw):
            taps.append(xp[:, i:i + stride * Ho:stride, j:j + stride * Wo:stride, :])
    p = jnp.stack(taps, axis=3)               # [N, Ho, Wo, T, C]
    return p.reshape(N * Ho * Wo, kh * kw * C), Ho, Wo


def _bn_fold(key, c, eps=1e-3):
    k1, k2, k3 = jax.random.split(key, 3)
    gamma = 1.0 + 0.05 * jax.random.normal(k1, (c,), jnp.float32)
    beta = 0.05 * jax.random.normal(k2, (c,), jnp.float32)
    mean = 0.05 * jax.random.normal(k3, (c,), jnp.float32)
    var = jnp.ones((c,), jnp.float32)
    scale = gamma * jax.lax.rsqrt(var + eps)
    bias = beta - mean * scale
    return scale, bias


def init_params(key):
    # lane-dense channel widths (multiples of 128 where activations hit HBM)
    C_IN, C_STEM, C_EXP, C_SE, C_HEAD = 3, 128, 256, 128, 128
    ks = jax.random.split(key, 12)
    p = {}
    # stem conv3x3 s2 + BN (scale folded into weights) + swish
    w = jax.random.normal(ks[0], (9 * C_IN, C_STEM), jnp.float32) * (2.0 / (9 * C_IN)) ** 0.5
    s, b = _bn_fold(ks[1], C_STEM)
    p["stem_w"], p["stem_b"] = (w * s[None, :]).astype(jnp.bfloat16), b.reshape(1, C_STEM)
    # MBConv expand 1x1 + BN
    w = jax.random.normal(ks[2], (C_STEM, C_EXP), jnp.float32) * (2.0 / C_STEM) ** 0.5
    s, b = _bn_fold(ks[3], C_EXP)
    p["exp_w"], p["exp_b"] = (w * s[None, :]).astype(jnp.bfloat16), b.reshape(1, C_EXP)
    # depthwise 3x3 + BN (scale folded into per-channel taps; stays f32 for the VPU)
    w = jax.random.normal(ks[4], (9, C_EXP), jnp.float32) * (2.0 / 9.0) ** 0.5
    s, b = _bn_fold(ks[5], C_EXP)
    p["dw_w"], p["dw_b"] = (w * s[None, :]).astype(jnp.float32), b.reshape(1, C_EXP)
    # squeeze-excite (kept f32 end-to-end; C_SE lane-padded to 128)
    p["se_w1"] = (jax.random.normal(ks[6], (C_EXP, C_SE), jnp.float32)
                  * (1.0 / C_EXP) ** 0.5).astype(jnp.float32)
    p["se_b1"] = jnp.zeros((1, C_SE), jnp.float32)
    p["se_w2"] = (jax.random.normal(ks[7], (C_SE, C_EXP), jnp.float32)
                  * (1.0 / C_SE) ** 0.5).astype(jnp.float32)
    p["se_b2"] = jnp.zeros((1, C_EXP), jnp.float32)
    # project 1x1 + BN (no activation)
    w = jax.random.normal(ks[8], (C_EXP, C_STEM), jnp.float32) * (1.0 / C_EXP) ** 0.5
    s, b = _bn_fold(ks[9], C_STEM)
    p["proj_w"], p["proj_b"] = (w * s[None, :]).astype(jnp.bfloat16), b.reshape(1, C_STEM)
    # head 1x1 + BN
    w = jax.random.normal(ks[10], (C_STEM, C_HEAD), jnp.float32) * (2.0 / C_STEM) ** 0.5
    s, b = _bn_fold(ks[11], C_HEAD)
    p["head_w"], p["head_b"] = (w * s[None, :]).astype(jnp.bfloat16), b.reshape(1, C_HEAD)
    # classifier (num_classes=2), lane-padded to 128 columns; real logits = cols [0, 2)
    fc = jnp.zeros((C_HEAD, LANE), jnp.float32).at[:, 0].set(0.01).at[:, 1].set(-0.01)
    p["fc_w"] = fc.astype(jnp.bfloat16)
    p["fc_b"] = jnp.zeros((1, LANE), jnp.float32)
    return p


# ----------------------------------------------------------------------------
# Detector.forward
# ----------------------------------------------------------------------------
def detector_forward(x_nchw, params):
    x = jnp.transpose(x_nchw, (0, 2, 3, 1)).astype(jnp.float32)       # NCHW -> NHWC
    N = x.shape[0]

    # stem: conv3x3 s2 + BN + swish (im2col of the tiny 3-channel input is cheap)
    patches, Ho, Wo = extract_patches(x, 3, 3, 2, 1)
    stem = matmul_bias_act(patches.astype(jnp.bfloat16), params["stem_w"],
                           params["stem_b"], act="swish", out_dtype=jnp.bfloat16)
    stem = stem.reshape(N, Ho, Wo, -1)                                # bf16 NHWC

    # fused MBConv: expand -> dw3x3 -> SE -> project -> residual (one kernel / image)
    feat = mbconv_block(stem, params)                                 # bf16 NHWC

    # fused head 1x1 + swish + global average pool + FC (lane-padded logits)
    logits = head_pool_fc(feat, params["head_w"], params["head_b"],
                          params["fc_w"], params["fc_b"])
    return logits[:, :NUM_CLASSES]


if __name__ == "__main__":
    key = jax.random.PRNGKey(0)
    k_in, k_param = jax.random.split(key)
    x = jax.random.normal(k_in, (2, 3, 32, 32), jnp.float32)          # NCHW, like PyTorch
    params = init_params(k_param)

    logits = jax.jit(detector_forward)(x, params)
    logits = jax.block_until_ready(logits)

    assert logits.shape == (2, NUM_CLASSES) and logits.dtype == jnp.float32
    assert bool(jnp.all(jnp.isfinite(logits)))
    print("KERNEL_OK")
</pallas_src>

<mosaic_0001>
module attributes {stable_mosaic.version = 11 : i64} {
  func.func @_matmul_bias_act_kernel(%arg0: i32, %arg1: memref<128x27xbf16, #tpu.memory_space<vmem>>, %arg2: memref<27x128xbf16, #tpu.memory_space<vmem>>, %arg3: memref<1x128xf32, #tpu.memory_space<vmem>>, %arg4: memref<128x128xbf16, #tpu.memory_space<vmem>>) attributes {dimension_semantics = [#tpu.dimension_semantics<parallel>], iteration_bounds = array<i64: 4>, scalar_prefetch = 0 : i64, scratch_operands = 0 : i64, tpu.core_type = #tpu.core_type<tc>, window_params = [{transform_indices = @transform_0, window_bounds = array<i64: 128, 27>}, {pipeline_mode = #tpu.pipeline_mode<synchronous>, transform_indices = @transform_1, window_bounds = array<i64: 27, 128>}, {pipeline_mode = #tpu.pipeline_mode<synchronous>, transform_indices = @transform_2, window_bounds = array<i64: 1, 128>}, {transform_indices = @transform_3, window_bounds = array<i64: 128, 128>}]} {
    %c0 = arith.constant 0 : index
    %c0_0 = arith.constant 0 : index
    %0 = vector.load %arg1[%c0, %c0_0] : memref<128x27xbf16, #tpu.memory_space<vmem>>, vector<128x27xbf16>
    %c0_1 = arith.constant 0 : index
    %c0_2 = arith.constant 0 : index
    %1 = vector.load %arg2[%c0_1, %c0_2] : memref<27x128xbf16, #tpu.memory_space<vmem>>, vector<27x128xbf16>
    %cst = arith.constant dense<0.000000e+00> : vector<128x128xf32>
    %2 = tpu.matmul %0, %1, %cst {dimension_numbers = #tpu.dot_dimension_numbers<[1], [0], [0], [1], [0, 0, 1, 1], [], []>} : vector<128x27xbf16>, vector<27x128xbf16>, vector<128x128xf32> -> vector<128x128xf32>
    %c0_3 = arith.constant 0 : index
    %c0_4 = arith.constant 0 : index
    %3 = vector.load %arg3[%c0_3, %c0_4] : memref<1x128xf32, #tpu.memory_space<vmem>>, vector<1x128xf32>
    %4 = vector.broadcast %3 : vector<1x128xf32> to vector<128x128xf32>
    %5 = arith.addf %2, %4 : vector<128x128xf32>
    %6 = arith.negf %5 : vector<128x128xf32>
    %7 = math.exp %6 : vector<128x128xf32>
    %cst_5 = arith.constant 1.000000e+00 : f32
    %8 = vector.broadcast %cst_5 : f32 to vector<128x128xf32>
    %9 = arith.addf %8, %7 : vector<128x128xf32>
    %10 = arith.divf %8, %9 : vector<128x128xf32>
    %11 = arith.mulf %5, %10 : vector<128x128xf32>
    %12 = arith.truncf %11 : vector<128x128xf32> to vector<128x128xbf16>
    %c0_6 = arith.constant 0 : index
    %c0_7 = arith.constant 0 : index
    %13 = vector.load %arg4[%c0_6, %c0_7] : memref<128x128xbf16, #tpu.memory_space<vmem>>, vector<128x128xbf16>
    tpu.vector_store %arg4[%c0_6, %c0_7], %12 {strides = array<i32>} : memref<128x128xbf16, #tpu.memory_space<vmem>>, vector<128x128xbf16>,
    return
  }
  func.func @transform_0(%arg0: i32) -> (i32, i32) {
    %c0_i32 = arith.constant 0 : i32
    %c0_i32_0 = arith.constant 0 : i32
    return %arg0, %c0_i32 : i32, i32
  }
  func.func @transform_1(%arg0: i32) -> (i32, i32) {
    %c0_i32 = arith.constant 0 : i32
    %c0_i32_0 = arith.constant 0 : i32
    %c0_i32_1 = arith.constant 0 : i32
    return %c0_i32, %c0_i32_0 : i32, i32
  }
  func.func @transform_2(%arg0: i32) -> (i32, i32) {
    %c0_i32 = arith.constant 0 : i32
    %c0_i32_0 = arith.constant 0 : i32
    %c0_i32_1 = arith.constant 0 : i32
    return %c0_i32, %c0_i32_0 : i32, i32
  }
  func.func @transform_3(%arg0: i32) -> (i32, i32) {
    %c0_i32 = arith.constant 0 : i32
    %c0_i32_0 = arith.constant 0 : i32
    return %arg0, %c0_i32 : i32, i32
  }
}

module attributes {stable_mosaic.version = 11 : i64} {
  func.func @_mbconv_kernel(%arg0: i32, %arg1: memref<1x16x16x128xbf16, #tpu.memory_space<vmem>>, %arg2: memref<128x256xbf16, #tpu.memory_space<vmem>>, %arg3: memref<1x256xf32, #tpu.memory_space<vmem>>, %arg4: memref<9x256xf32, #tpu.memory_space<vmem>>, %arg5: memref<1x256xf32, #tpu.memory_space<vmem>>, %arg6: memref<256x128xf32, #tpu.memory_space<vmem>>, %arg7: memref<1x128xf32, #tpu.memory_space<vmem>>, %arg8: memref<128x256xf32, #tpu.memory_space<vmem>>, %arg9: memref<1x256xf32, #tpu.memory_space<vmem>>, %arg10: memref<256x128xbf16, #tpu.memory_space<vmem>>, %arg11: memref<1x128xf32, #tpu.memory_space<vmem>>, %arg12: memref<1x16x16x128xbf16, #tpu.memory_space<vmem>>, %arg13: memref<288x256xf32, #tpu.memory_space<vmem>>) attributes {dimension_semantics = [#tpu.dimension_semantics<parallel>], iteration_bounds = array<i64: 2>, scalar_prefetch = 0 : i64, scratch_operands = 1 : i64, tpu.core_type = #tpu.core_type<tc>, window_params = [{transform_indices = @transform_0, window_bounds = array<i64: 1, 16, 16, 128>}, {pipeline_mode = #tpu.pipeline_mode<synchronous>, transform_indices = @transform_1, window_bounds = array<i64: 128, 256>}, {pipeline_mode = #tpu.pipeline_mode<synchronous>, transform_indices = @transform_2, window_bounds = array<i64: 1, 256>}, {pipeline_mode = #tpu.pipeline_mode<synchronous>, transform_indices = @transform_3, window_bounds = array<i64: 9, 256>}, {pipeline_mode = #tpu.pipeline_mode<synchronous>, transform_indices = @transform_4, window_bounds = array<i64: 1, 256>}, {pipeline_mode = #tpu.pipeline_mode<synchronous>, transform_indices = @transform_5, window_bounds = array<i64: 256, 128>}, {pipeline_mode = #tpu.pipeline_mode<synchronous>, transform_indices = @transform_6, window_bounds = array<i64: 1, 128>}, {pipeline_mode = #tpu.pipeline_mode<synchronous>, transform_indices = @transform_7, window_bounds = array<i64: 128, 256>}, {pipeline_mode = #tpu.pipeline_mode<synchronous>, transform_indices = @transform_8, window_bounds = array<i64: 1, 256>}, {pipeline_mode = #tpu.pipeline_mode<synchronous>, transform_indices = @transform_9, window_bounds = array<i64: 256, 128>}, {pipeline_mode = #tpu.pipeline_mode<synchronous>, transform_indices = @transform_10, window_bounds = array<i64: 1, 128>}, {transform_indices = @transform_11, window_bounds = array<i64: 1, 16, 16, 128>}]} {
    %c0 = arith.constant 0 : index
    %c0_0 = arith.constant 0 : index
    %c0_1 = arith.constant 0 : index
    %c0_2 = arith.constant 0 : index
    %0 = vector.load %arg1[%c0, %c0_0, %c0_1, %c0_2] : memref<1x16x16x128xbf16, #tpu.memory_space<vmem>>, vector<1x16x16x128xbf16>
    %1 = vector.shape_cast %0 : vector<1x16x16x128xbf16> to vector<16x16x128xbf16>
    %2 = vector.shape_cast %1 : vector<16x16x128xbf16> to vector<256x128xbf16>
    %c0_3 = arith.constant 0 : index
    %c0_4 = arith.constant 0 : index
    %3 = vector.load %arg2[%c0_3, %c0_4] : memref<128x256xbf16, #tpu.memory_space<vmem>>, vector<128x256xbf16>
    %cst = arith.constant dense<0.000000e+00> : vector<256x256xf32>
    %4 = tpu.matmul %2, %3, %cst {dimension_numbers = #tpu.dot_dimension_numbers<[1], [0], [0], [1], [0, 0, 1, 1], [], []>} : vector<256x128xbf16>, vector<128x256xbf16>, vector<256x256xf32> -> vector<256x256xf32>
    %c0_5 = arith.constant 0 : index
    %c0_6 = arith.constant 0 : index
    %5 = vector.load %arg3[%c0_5, %c0_6] : memref<1x256xf32, #tpu.memory_space<vmem>>, vector<1x256xf32>
    %6 = vector.broadcast %5 : vector<1x256xf32> to vector<256x256xf32>
    %7 = arith.addf %4, %6 : vector<256x256xf32>
    %8 = arith.negf %7 : vector<256x256xf32>
    %9 = math.exp %8 : vector<256x256xf32>
    %cst_7 = arith.constant 1.000000e+00 : f32
    %10 = vector.broadcast %cst_7 : f32 to vector<256x256xf32>
    %11 = arith.addf %10, %9 : vector<256x256xf32>
    %12 = arith.divf %10, %11 : vector<256x256xf32>
    %13 = arith.mulf %7, %12 : vector<256x256xf32>
    %cst_8 = arith.constant 0.000000e+00 : f32
    %14 = vector.broadcast %cst_8 : f32 to vector<16x256xf32>
    %c0_9 = arith.constant 0 : index
    %c0_10 = arith.constant 0 : index
    %15 = vector.load %arg13[%c0_9, %c0_10] : memref<288x256xf32, #tpu.memory_space<vmem>>, vector<16x256xf32>
    tpu.vector_store %arg13[%c0_9, %c0_10], %14 {strides = array<i32>} : memref<288x256xf32, #tpu.memory_space<vmem>>, vector<16x256xf32>,
    %c272 = arith.constant 272 : index
    %c0_11 = arith.constant 0 : index
    %16 = vector.load %arg13[%c272, %c0_11] : memref<288x256xf32, #tpu.memory_space<vmem>>, vector<16x256xf32>
    tpu.vector_store %arg13[%c272, %c0_11], %14 {strides = array<i32>} : memref<288x256xf32, #tpu.memory_space<vmem>>, vector<16x256xf32>,
    %c16 = arith.constant 16 : index
    %c0_12 = arith.constant 0 : index
    %17 = vector.load %arg13[%c16, %c0_12] : memref<288x256xf32, #tpu.memory_space<vmem>>, vector<256x256xf32>
    tpu.vector_store %arg13[%c16, %c0_12], %13 {strides = array<i32>} : memref<288x256xf32, #tpu.memory_space<vmem>>, vector<256x256xf32>,
    %c0_13 = arith.constant 0 : index
    %c0_14 = arith.constant 0 : index
    %18 = vector.load %arg4[%c0_13, %c0_14] : memref<9x256xf32, #tpu.memory_space<vmem>>, vector<9x256xf32>
    %c0_15 = arith.constant 0 : index
    %c0_16 = arith.constant 0 : index
    %19 = vector.load %arg13[%c0_15, %c0_16] : memref<288x256xf32, #tpu.memory_space<vmem>>, vector<256x256xf32>
    %20 = vector.extract_strided_slice %18 {offsets = [0, 0], sizes = [1, 256], strides = [1, 1]} : vector<9x256xf32> to vector<1x256xf32>
    %21 = vector.broadcast %20 : vector<1x256xf32> to vector<256x256xf32>
    %22 = arith.mulf %19, %21 : vector<256x256xf32>
    %23 = vector.extract_strided_slice %18 {offsets = [1, 0], sizes = [1, 256], strides = [1, 1]} : vector<9x256xf32> to vector<1x256xf32>
    %24 = vector.broadcast %23 : vector<1x256xf32> to vector<256x256xf32>
    %25 = arith.mulf %19, %24 : vector<256x256xf32>
    %26 = vector.extract_strided_slice %18 {offsets = [2, 0], sizes = [1, 256], strides = [1, 1]} : vector<9x256xf32> to vector<1x256xf32>
    %27 = vector.broadcast %26 : vector<1x256xf32> to vector<256x256xf32>
    %28 = arith.mulf %19, %27 : vector<256x256xf32>
    %c16_17 = arith.constant 16 : index
    %c0_18 = arith.constant 0 : index
    %29 = vector.load %arg13[%c16_17, %c0_18] : memref<288x256xf32, #tpu.memory_space<vmem>>, vector<256x256xf32>
    %30 = vector.extract_strided_slice %18 {offsets = [3, 0], sizes = [1, 256], strides = [1, 1]} : vector<9x256xf32> to vector<1x256xf32>
    %31 = vector.broadcast %30 : vector<1x256xf32> to vector<256x256xf32>
    %32 = arith.mulf %29, %31 : vector<256x256xf32>
    %33 = vector.extract_strided_slice %18 {offsets = [4, 0], sizes = [1, 256], strides = [1, 1]} : vector<9x256xf32> to vector<1x256xf32>
    %34 = vector.broadcast %33 : vector<1x256xf32> to vector<256x256xf32>
    %35 = arith.mulf %29, %34 : vector<256x256xf32>
    %36 = vector.extract_strided_slice %18 {offsets = [5, 0], sizes = [1, 256], strides = [1, 1]} : vector<9x256xf32> to vector<1x256xf32>
    %37 = vector.broadcast %36 : vector<1x256xf32> to vector<256x256xf32>
    %38 = arith.mulf %29, %37 : vector<256x256xf32>
    %39 = arith.addf %22, %32 : vector<256x256xf32>
    %40 = arith.addf %25, %35 : vector<256x256xf32>
    %41 = arith.addf %28, %38 : vector<256x256xf32>
    %c32 = arith.constant 32 : index
    %c0_19 = arith.constant 0 : index
    %42 = vector.load %arg13[%c32, %c0_19] : memref<288x256xf32, #tpu.memory_space<vmem>>, vector<256x256xf32>
    %43 = vector.extract_strided_slice %18 {offsets = [6, 0], sizes = [1, 256], strides = [1, 1]} : vector<9x256xf32> to vector<1x256xf32>
    %44 = vector.broadcast %43 : vector<1x256xf32> to vector<256x256xf32>
    %45 = arith.mulf %42, %44 : vector<256x256xf32>
    %46 = vector.extract_strided_slice %18 {offsets = [7, 0], sizes = [1, 256], strides = [1, 1]} : vector<9x256xf32> to vector<1x256xf32>
    %47 = vector.broadcast %46 : vector<1x256xf32> to vector<256x256xf32>
    %48 = arith.mulf %42, %47 : vector<256x256xf32>
    %49 = vector.extract_strided_slice %18 {offsets = [8, 0], sizes = [1, 256], strides = [1, 1]} : vector<9x256xf32> to vector<1x256xf32>
    %50 = vector.broadcast %49 : vector<1x256xf32> to vector<256x256xf32>
    %51 = arith.mulf %42, %50 : vector<256x256xf32>
    %52 = arith.addf %39, %45 : vector<256x256xf32>
    %53 = arith.addf %40, %48 : vector<256x256xf32>
    %54 = arith.addf %41, %51 : vector<256x256xf32>
    %55 = tpu.iota {dimensions = array<i32: 0>} : vector<256x256xi32>
    %c16_i32 = arith.constant 16 : i32
    %c0_i32 = arith.constant 0 : i32
    %56 = arith.cmpi eq, %c16_i32, %c0_i32 : i32
    %c1_i32 = arith.constant 1 : i32
    %57 = arith.select %56, %c1_i32, %c16_i32 : i32
    %58 = vector.broadcast %57 : i32 to vector<256x256xi32>
    %59 = arith.remsi %55, %58 : vector<256x256xi32>
    %c0_i32_20 = arith.constant 0 : i32
    %60 = vector.broadcast %c0_i32_20 : i32 to vector<256x256xi32>
    %61 = arith.cmpi ne, %59, %60 : vector<256x256xi32>
    %c0_i32_21 = arith.constant 0 : i32
    %62 = vector.broadcast %c0_i32_21 : i32 to vector<256x256xi32>
    %63 = arith.cmpi slt, %59, %62 : vector<256x256xi32>
    %c0_i32_22 = arith.constant 0 : i32
    %64 = arith.cmpi slt, %57, %c0_i32_22 : i32
    %65 = vector.broadcast %64 : i1 to vector<256x256xi1>
    %66 = vector.broadcast %65 : vector<256x256xi1> to vector<256x256xi1>
    %67 = arith.xori %63, %66 : vector<256x256xi1>
    %68 = arith.andi %67, %61 : vector<256x256xi1>
    %69 = vector.broadcast %57 : i32 to vector<256x256xi32>
    %70 = arith.addi %59, %69 : vector<256x256xi32>
    %71 = arith.select %68, %70, %59 : vector<256x256xi1>, vector<256x256xi32>
    %c1_i32_23 = arith.constant 1 : i32
    %72 = vector.broadcast %c1_i32_23 : i32 to vector<256x256xi32>
    %73 = arith.cmpi sge, %71, %72 : vector<256x256xi32>
    %c14_i32 = arith.constant 14 : i32
    %74 = vector.broadcast %c14_i32 : i32 to vector<256x256xi32>
    %75 = arith.cmpi sle, %71, %74 : vector<256x256xi32>
    %c1_i32_24 = arith.constant 1 : i32
    %76 = tpu.dynamic_rotate %52 by %c1_i32_24 dim 0 : vector<256x256xf32>, i32 -> vector<256x256xf32>
    %cst_25 = arith.constant 0.000000e+00 : f32
    %77 = vector.broadcast %cst_25 : f32 to vector<256x256xf32>
    %78 = arith.select %73, %76, %77 : vector<256x256xi1>, vector<256x256xf32>
    %79 = arith.addf %53, %78 : vector<256x256xf32>
    %c255_i32 = arith.constant 255 : i32
    %80 = tpu.dynamic_rotate %54 by %c255_i32 dim 0 : vector<256x256xf32>, i32 -> vector<256x256xf32>
    %cst_26 = arith.constant 0.000000e+00 : f32
    %81 = vector.broadcast %cst_26 : f32 to vector<256x256xf32>
    %82 = arith.select %75, %80, %81 : vector<256x256xi1>, vector<256x256xf32>
    %83 = arith.addf %79, %82 : vector<256x256xf32>
    %c0_27 = arith.constant 0 : index
    %c0_28 = arith.constant 0 : index
    %84 = vector.load %arg5[%c0_27, %c0_28] : memref<1x256xf32, #tpu.memory_space<vmem>>, vector<1x256xf32>
    %85 = vector.broadcast %84 : vector<1x256xf32> to vector<256x256xf32>
    %86 = arith.addf %83, %85 : vector<256x256xf32>
    %87 = arith.negf %86 : vector<256x256xf32>
    %88 = math.exp %87 : vector<256x256xf32>
    %cst_29 = arith.constant 1.000000e+00 : f32
    %89 = vector.broadcast %cst_29 : f32 to vector<256x256xf32>
    %90 = arith.addf %89, %88 : vector<256x256xf32>
    %91 = arith.divf %89, %90 : vector<256x256xf32>
    %92 = arith.mulf %86, %91 : vector<256x256xf32>
    %cst_30 = arith.constant dense<0.000000e+00> : vector<256xf32>
    %93 = vector.multi_reduction <add>, %92, %cst_30 [0] : vector<256x256xf32> to vector<256xf32>
    %94 = vector.shape_cast %93 : vector<256xf32> to vector<1x256xf32>
    %cst_31 = arith.constant 2.560000e+02 : f32
    %95 = vector.broadcast %cst_31 : f32 to vector<1x256xf32>
    %96 = arith.divf %94, %95 : vector<1x256xf32>
    %c0_32 = arith.constant 0 : index
    %c0_33 = arith.constant 0 : index
    %97 = vector.load %arg6[%c0_32, %c0_33] : memref<256x128xf32, #tpu.memory_space<vmem>>, vector<256x128xf32>
    %cst_34 = arith.constant dense<0.000000e+00> : vector<1x128xf32>
    %98 = tpu.matmul %96, %97, %cst_34 {dimension_numbers = #tpu.dot_dimension_numbers<[1], [0], [0], [1], [0, 0, 1, 1], [], []>} : vector<1x256xf32>, vector<256x128xf32>, vector<1x128xf32> -> vector<1x128xf32>
    %c0_35 = arith.constant 0 : index
    %c0_36 = arith.constant 0 : index
    %99 = vector.load %arg7[%c0_35, %c0_36] : memref<1x128xf32, #tpu.memory_space<vmem>>, vector<1x128xf32>
    %100 = arith.addf %98, %99 : vector<1x128xf32>
    %101 = arith.negf %100 : vector<1x128xf32>
    %102 = math.exp %101 : vector<1x128xf32>
    %cst_37 = arith.constant 1.000000e+00 : f32
    %103 = vector.broadcast %cst_37 : f32 to vector<1x128xf32>
    %104 = arith.addf %103, %102 : vector<1x128xf32>
    %105 = arith.divf %103, %104 : vector<1x128xf32>
    %106 = arith.mulf %100, %105 : vector<1x128xf32>
    %c0_38 = arith.constant 0 : index
    %c0_39 = arith.constant 0 : index
    %107 = vector.load %arg8[%c0_38, %c0_39] : memref<128x256xf32, #tpu.memory_space<vmem>>, vector<128x256xf32>
    %cst_40 = arith.constant dense<0.000000e+00> : vector<1x256xf32>
    %108 = tpu.matmul %106, %107, %cst_40 {dimension_numbers = #tpu.dot_dimension_numbers<[1], [0], [0], [1], [0, 0, 1, 1], [], []>} : vector<1x128xf32>, vector<128x256xf32>, vector<1x256xf32> -> vector<1x256xf32>
    %c0_41 = arith.constant 0 : index
    %c0_42 = arith.constant 0 : index
    %109 = vector.load %arg9[%c0_41, %c0_42] : memref<1x256xf32, #tpu.memory_space<vmem>>, vector<1x256xf32>
    %110 = arith.addf %108, %109 : vector<1x256xf32>
    %111 = arith.negf %110 : vector<1x256xf32>
    %112 = math.exp %111 : vector<1x256xf32>
    %cst_43 = arith.constant 1.000000e+00 : f32
    %113 = vector.broadcast %cst_43 : f32 to vector<1x256xf32>
    %114 = arith.addf %113, %112 : vector<1x256xf32>
    %115 = arith.divf %113, %114 : vector<1x256xf32>
    %116 = vector.broadcast %115 : vector<1x256xf32> to vector<256x256xf32>
    %117 = arith.mulf %92, %116 : vector<256x256xf32>
    %118 = arith.truncf %117 : vector<256x256xf32> to vector<256x256xbf16>
    %c0_44 = arith.constant 0 : index
    %c0_45 = arith.constant 0 : index
    %119 = vector.load %arg10[%c0_44, %c0_45] : memref<256x128xbf16, #tpu.memory_space<vmem>>, vector<256x128xbf16>
    %cst_46 = arith.constant dense<0.000000e+00> : vector<256x128xf32>
    %120 = tpu.matmul %118, %119, %cst_46 {dimension_numbers = #tpu.dot_dimension_numbers<[1], [0], [0], [1], [0, 0, 1, 1], [], []>} : vector<256x256xbf16>, vector<256x128xbf16>, vector<256x128xf32> -> vector<256x128xf32>
    %c0_47 = arith.constant 0 : index
    %c0_48 = arith.constant 0 : index
    %121 = vector.load %arg11[%c0_47, %c0_48] : memref<1x128xf32, #tpu.memory_space<vmem>>, vector<1x128xf32>
    %122 = vector.broadcast %121 : vector<1x128xf32> to vector<256x128xf32>
    %123 = arith.addf %120, %122 : vector<256x128xf32>
    %124 = arith.extf %2 : vector<256x128xbf16> to vector<256x128xf32>
    %125 = arith.addf %123, %124 : vector<256x128xf32>
    %126 = vector.shape_cast %125 : vector<256x128xf32> to vector<16x16x128xf32>
    %127 = arith.truncf %126 : vector<16x16x128xf32> to vector<16x16x128xbf16>
    %c0_49 = arith.constant 0 : index
    %c0_50 = arith.constant 0 : index
    %c0_51 = arith.constant 0 : index
    %c0_52 = arith.constant 0 : index
    %128 = vector.load %arg12[%c0_49, %c0_50, %c0_51, %c0_52] : memref<1x16x16x128xbf16, #tpu.memory_space<vmem>>, vector<1x16x16x128xbf16>
    %129 = vector.shape_cast %128 : vector<1x16x16x128xbf16> to vector<16x16x128xbf16>
    %130 = vector.shape_cast %127 : vector<16x16x128xbf16> to vector<1x16x16x128xbf16>
    tpu.vector_store %arg12[%c0_49, %c0_50, %c0_51, %c0_52], %130 {strides = array<i32>} : memref<1x16x16x128xbf16, #tpu.memory_space<vmem>>, vector<1x16x16x128xbf16>,
    return
  }
  func.func @transform_0(%arg0: i32) -> (i32, i32, i32, i32) {
    %c0_i32 = arith.constant 0 : i32
    %c0_i32_0 = arith.constant 0 : i32
    %c0_i32_1 = arith.constant 0 : i32
    %c0_i32_2 = arith.constant 0 : i32
    return %arg0, %c0_i32, %c0_i32_0, %c0_i32_1 : i32, i32, i32, i32
  }
  func.func @transform_1(%arg0: i32) -> (i32, i32) {
    %c0_i32 = arith.constant 0 : i32
    %c0_i32_0 = arith.constant 0 : i32
    %c0_i32_1 = arith.constant 0 : i32
    return %c0_i32, %c0_i32_0 : i32, i32
  }
  func.func @transform_2(%arg0: i32) -> (i32, i32) {
    %c0_i32 = arith.constant 0 : i32
    %c0_i32_0 = arith.constant 0 : i32
    %c0_i32_1 = arith.constant 0 : i32
    return %c0_i32, %c0_i32_0 : i32, i32
  }
  func.func @transform_3(%arg0: i32) -> (i32, i32) {
    %c0_i32 = arith.constant 0 : i32
    %c0_i32_0 = arith.constant 0 : i32
    %c0_i32_1 = arith.constant 0 : i32
    return %c0_i32, %c0_i32_0 : i32, i32
  }
  func.func @transform_4(%arg0: i32) -> (i32, i32) {
    %c0_i32 = arith.constant 0 : i32
    %c0_i32_0 = arith.constant 0 : i32
    %c0_i32_1 = arith.constant 0 : i32
    return %c0_i32, %c0_i32_0 : i32, i32
  }
  func.func @transform_5(%arg0: i32) -> (i32, i32) {
    %c0_i32 = arith.constant 0 : i32
    %c0_i32_0 = arith.constant 0 : i32
    %c0_i32_1 = arith.constant 0 : i32
    return %c0_i32, %c0_i32_0 : i32, i32
  }
  func.func @transform_6(%arg0: i32) -> (i32, i32) {
    %c0_i32 = arith.constant 0 : i32
    %c0_i32_0 = arith.constant 0 : i32
    %c0_i32_1 = arith.constant 0 : i32
    return %c0_i32, %c0_i32_0 : i32, i32
  }
  func.func @transform_7(%arg0: i32) -> (i32, i32) {
    %c0_i32 = arith.constant 0 : i32
    %c0_i32_0 = arith.constant 0 : i32
    %c0_i32_1 = arith.constant 0 : i32
    return %c0_i32, %c0_i32_0 : i32, i32
  }
  func.func @transform_8(%arg0: i32) -> (i32, i32) {
    %c0_i32 = arith.constant 0 : i32
    %c0_i32_0 = arith.constant 0 : i32
    %c0_i32_1 = arith.constant 0 : i32
    return %c0_i32, %c0_i32_0 : i32, i32
  }
  func.func @transform_9(%arg0: i32) -> (i32, i32) {
    %c0_i32 = arith.constant 0 : i32
    %c0_i32_0 = arith.constant 0 : i32
    %c0_i32_1 = arith.constant 0 : i32
    return %c0_i32, %c0_i32_0 : i32, i32
  }
  func.func @transform_10(%arg0: i32) -> (i32, i32) {
    %c0_i32 = arith.constant 0 : i32
    %c0_i32_0 = arith.constant 0 : i32
    %c0_i32_1 = arith.constant 0 : i32
    return %c0_i32, %c0_i32_0 : i32, i32
  }
  func.func @transform_11(%arg0: i32) -> (i32, i32, i32, i32) {
    %c0_i32 = arith.constant 0 : i32
    %c0_i32_0 = arith.constant 0 : i32
    %c0_i32_1 = arith.constant 0 : i32
    %c0_i32_2 = arith.constant 0 : i32
    return %arg0, %c0_i32, %c0_i32_0, %c0_i32_1 : i32, i32, i32, i32
  }
}

module attributes {stable_mosaic.version = 11 : i64} {
  func.func @_head_pool_fc_kernel(%arg0: i32, %arg1: memref<1x16x16x128xbf16, #tpu.memory_space<vmem>>, %arg2: memref<128x128xbf16, #tpu.memory_space<vmem>>, %arg3: memref<1x128xf32, #tpu.memory_space<vmem>>, %arg4: memref<128x128xbf16, #tpu.memory_space<vmem>>, %arg5: memref<1x128xf32, #tpu.memory_space<vmem>>, %arg6: memref<1x1x128xf32, #tpu.memory_space<vmem>>) attributes {dimension_semantics = [#tpu.dimension_semantics<parallel>], iteration_bounds = array<i64: 2>, scalar_prefetch = 0 : i64, scratch_operands = 0 : i64, tpu.core_type = #tpu.core_type<tc>, window_params = [{transform_indices = @transform_0, window_bounds = array<i64: 1, 16, 16, 128>}, {pipeline_mode = #tpu.pipeline_mode<synchronous>, transform_indices = @transform_1, window_bounds = array<i64: 128, 128>}, {pipeline_mode = #tpu.pipeline_mode<synchronous>, transform_indices = @transform_2, window_bounds = array<i64: 1, 128>}, {pipeline_mode = #tpu.pipeline_mode<synchronous>, transform_indices = @transform_3, window_bounds = array<i64: 128, 128>}, {pipeline_mode = #tpu.pipeline_mode<synchronous>, transform_indices = @transform_4, window_bounds = array<i64: 1, 128>}, {transform_indices = @transform_5, window_bounds = array<i64: 1, 1, 128>}]} {
    %c0 = arith.constant 0 : index
    %c0_0 = arith.constant 0 : index
    %c0_1 = arith.constant 0 : index
    %c0_2 = arith.constant 0 : index
    %0 = vector.load %arg1[%c0, %c0_0, %c0_1, %c0_2] : memref<1x16x16x128xbf16, #tpu.memory_space<vmem>>, vector<1x16x16x128xbf16>
    %1 = vector.shape_cast %0 : vector<1x16x16x128xbf16> to vector<16x16x128xbf16>
    %2 = vector.shape_cast %1 : vector<16x16x128xbf16> to vector<256x128xbf16>
    %c0_3 = arith.constant 0 : index
    %c0_4 = arith.constant 0 : index
    %3 = vector.load %arg2[%c0_3, %c0_4] : memref<128x128xbf16, #tpu.memory_space<vmem>>, vector<128x128xbf16>
    %cst = arith.constant dense<0.000000e+00> : vector<256x128xf32>
    %4 = tpu.matmul %2, %3, %cst {dimension_numbers = #tpu.dot_dimension_numbers<[1], [0], [0], [1], [0, 0, 1, 1], [], []>} : vector<256x128xbf16>, vector<128x128xbf16>, vector<256x128xf32> -> vector<256x128xf32>
    %c0_5 = arith.constant 0 : index
    %c0_6 = arith.constant 0 : index
    %5 = vector.load %arg3[%c0_5, %c0_6] : memref<1x128xf32, #tpu.memory_space<vmem>>, vector<1x128xf32>
    %6 = vector.broadcast %5 : vector<1x128xf32> to vector<256x128xf32>
    %7 = arith.addf %4, %6 : vector<256x128xf32>
    %8 = arith.negf %7 : vector<256x128xf32>
    %9 = math.exp %8 : vector<256x128xf32>
    %cst_7 = arith.constant 1.000000e+00 : f32
    %10 = vector.broadcast %cst_7 : f32 to vector<256x128xf32>
    %11 = arith.addf %10, %9 : vector<256x128xf32>
    %12 = arith.divf %10, %11 : vector<256x128xf32>
    %13 = arith.mulf %7, %12 : vector<256x128xf32>
    %cst_8 = arith.constant dense<0.000000e+00> : vector<128xf32>
    %14 = vector.multi_reduction <add>, %13, %cst_8 [0] : vector<256x128xf32> to vector<128xf32>
    %15 = vector.shape_cast %14 : vector<128xf32> to vector<1x128xf32>
    %cst_9 = arith.constant 2.560000e+02 : f32
    %16 = vector.broadcast %cst_9 : f32 to vector<1x128xf32>
    %17 = arith.divf %15, %16 : vector<1x128xf32>
    %18 = arith.truncf %17 : vector<1x128xf32> to vector<1x128xbf16>
    %c0_10 = arith.constant 0 : index
    %c0_11 = arith.constant 0 : index
    %19 = vector.load %arg4[%c0_10, %c0_11] : memref<128x128xbf16, #tpu.memory_space<vmem>>, vector<128x128xbf16>
    %cst_12 = arith.constant dense<0.000000e+00> : vector<1x128xf32>
    %20 = tpu.matmul %18, %19, %cst_12 {dimension_numbers = #tpu.dot_dimension_numbers<[1], [0], [0], [1], [0, 0, 1, 1], [], []>} : vector<1x128xbf16>, vector<128x128xbf16>, vector<1x128xf32> -> vector<1x128xf32>
    %c0_13 = arith.constant 0 : index
    %c0_14 = arith.constant 0 : index
    %21 = vector.load %arg5[%c0_13, %c0_14] : memref<1x128xf32, #tpu.memory_space<vmem>>, vector<1x128xf32>
    %22 = arith.addf %20, %21 : vector<1x128xf32>
    %c0_15 = arith.constant 0 : index
    %c0_16 = arith.constant 0 : index
    %c0_17 = arith.constant 0 : index
    %23 = vector.load %arg6[%c0_15, %c0_16, %c0_17] : memref<1x1x128xf32, #tpu.memory_space<vmem>>, vector<1x1x128xf32>
    %24 = vector.shape_cast %23 : vector<1x1x128xf32> to vector<1x128xf32>
    %25 = vector.shape_cast %22 : vector<1x128xf32> to vector<1x1x128xf32>
    tpu.vector_store %arg6[%c0_15, %c0_16, %c0_17], %25 {strides = array<i32>} : memref<1x1x128xf32, #tpu.memory_space<vmem>>, vector<1x1x128xf32>,
    return
  }
  func.func @transform_0(%arg0: i32) -> (i32, i32, i32, i32) {
    %c0_i32 = arith.constant 0 : i32
    %c0_i32_0 = arith.constant 0 : i32
    %c0_i32_1 = arith.constant 0 : i32
    %c0_i32_2 = arith.constant 0 : i32
    return %arg0, %c0_i32, %c0_i32_0, %c0_i32_1 : i32, i32, i32, i32
  }
  func.func @transform_1(%arg0: i32) -> (i32, i32) {
    %c0_i32 = arith.constant 0 : i32
    %c0_i32_0 = arith.constant 0 : i32
    %c0_i32_1 = arith.constant 0 : i32
    return %c0_i32, %c0_i32_0 : i32, i32
  }
  func.func @transform_2(%arg0: i32) -> (i32, i32) {
    %c0_i32 = arith.constant 0 : i32
    %c0_i32_0 = arith.constant 0 : i32
    %c0_i32_1 = arith.constant 0 : i32
    return %c0_i32, %c0_i32_0 : i32, i32
  }
  func.func @transform_3(%arg0: i32) -> (i32, i32) {
    %c0_i32 = arith.constant 0 : i32
    %c0_i32_0 = arith.constant 0 : i32
    %c0_i32_1 = arith.constant 0 : i32
    return %c0_i32, %c0_i32_0 : i32, i32
  }
  func.func @transform_4(%arg0: i32) -> (i32, i32) {
    %c0_i32 = arith.constant 0 : i32
    %c0_i32_0 = arith.constant 0 : i32
    %c0_i32_1 = arith.constant 0 : i32
    return %c0_i32, %c0_i32_0 : i32, i32
  }
  func.func @transform_5(%arg0: i32) -> (i32, i32, i32) {
    %c0_i32 = arith.constant 0 : i32
    %c0_i32_0 = arith.constant 0 : i32
    %c0_i32_1 = arith.constant 0 : i32
    return %arg0, %c0_i32, %c0_i32_0 : i32, i32, i32
  }
}

</mosaic_0001>

<llo_original>
// kernel: detector_forward.3
$region0: #{detector_forward.3}
  #allocation0 [shape = 'u32[]', space=smem, size = 0x4, offset = 0x4, fixed_abs, tag = 'smem constant byte address 0x4 - core index']
  #allocation1 [shape = 'u32[144,128]{1,0:T(1,128)}', space=vmem, size = 0x12000, scoped, tag = 'internal scratch']
  %s0 = inlined_call_operand.vmem [shape: bf16[512,27], index: 0, kind: input, shape index: {}]
  %s1 = inlined_call_operand.vmem [shape: bf16[27,128], index: 1, kind: input, shape index: {}]
  %s2 = inlined_call_operand.vmem [shape: f32[1,128], index: 2, kind: input, shape index: {}]
  %s3 = inlined_call_operand.vmem [shape: bf16[512,128], index: 3, kind: output, shape index: {}]
  %s4 = sld [smem:[#allocation0]]
  $region45: #{detector_forward.3} parent=0
    _
  %s6 = ssub.s32 1, %s4
  %s7 = scalar_select 0, %s6, %s4
  loop: start=0, step=1, limit=6
  $region2: #{detector_forward.3} parent=0 // loop_pre_header
    _
  $region3: #{detector_forward.3} parent=0 // loop_header
    %s9 = sphi 0, %s13
    %p10 = scmp.ge.s32.totalorder %s9, 6
    %s19 = sphi 0, %s21
    %s22 = sphi 0, %s19
    %s23 = sphi 0, %s22
    %s39 = sphi 0, %s23
    %s43 = sphi 0, %s43
    %s45 = sphi 0, %s43
    %s46 = sphi 0, %s45
    %s60 = sphi 0, %s46
    %s64 = sphi 0, %s64
    %s66 = sphi 0, %s64
    %s67 = sphi 0, %s66
    %s81 = sphi 0, %s67
    %s87 = sphi 0, %s89
    %s90 = sphi 0, %s87
    %s91 = sphi 0, %s90
    %s107 = sphi 0, %s91
  $region4: #{detector_forward.3} parent=0 // loop_header_branch
    %12 = sbr.rel (%p10) target = $region8
  $region5: #{detector_forward.3} parent=0 // loop_body
    %s14 = ssub.s32 %s9, 1
    %s15 = ssub.s32 %s9, 2
    %s16 = sadd.s32 %s9, 1
    %s17 = ssub.s32 %s9, %s16
    %p18 = scmp.eq.s32.totalorder %s17, 0
    %s20 = sadd.s32 %s19, 1
    %s21 = scalar_select %p18, %s19, %s20
    %p24 = pneg %p18
    %p25 = scmp.eq.s32.totalorder %s9, 3
    %p26 = por %p24, %p25
    %p27 = scmp.ne.s32.totalorder %s19, %s22
    %p28 = scmp.eq.s32.totalorder %s9, 0
    %p29 = por %p27, %p28
    %p30 = scmp.ne.s32.totalorder %s19, %s22
    %p31 = scmp.eq.s32.totalorder %s14, 3
    %p32 = por %p30, %p31
    %p33 = scmp.ne.s32.totalorder %s22, %s23
    %p34 = scmp.eq.s32.totalorder %s14, 0
    %p35 = por %p33, %p34
    %p36 = scmp.ne.s32.totalorder %s22, %s23
    %p37 = scmp.eq.s32.totalorder %s15, 3
    %p38 = por %p36, %p37
    %p40 = scmp.ne.s32.totalorder %s23, %s39
    %p41 = scmp.eq.s32.totalorder %s15, 0
    %p42 = por %p40, %p41
    %s44 = sadd.s32 %s43, 1
    %p47 = scmp.eq.s32.totalorder %s9, 3
    %p48 = scmp.ne.s32.totalorder %s43, %s45
    %p49 = scmp.eq.s32.totalorder %s9, 0
    %p50 = por %p48, %p49
    %p51 = scmp.ne.s32.totalorder %s43, %s45
    %p52 = scmp.eq.s32.totalorder %s14, 3
    %p53 = por %p51, %p52
    %p54 = scmp.ne.s32.totalorder %s45, %s46
    %p55 = scmp.eq.s32.totalorder %s14, 0
    %p56 = por %p54, %p55
    %p57 = scmp.ne.s32.totalorder %s45, %s46
    %p58 = scmp.eq.s32.totalorder %s15, 3
    %p59 = por %p57, %p58
    %p61 = scmp.ne.s32.totalorder %s46, %s60
    %p62 = scmp.eq.s32.totalorder %s15, 0
    %p63 = por %p61, %p62
    %s65 = sadd.s32 %s64, 1
    %p68 = scmp.eq.s32.totalorder %s9, 3
    %p69 = scmp.ne.s32.totalorder %s64, %s66
    %p70 = scmp.eq.s32.totalorder %s9, 0
    %p71 = por %p69, %p70
    %p72 = scmp.ne.s32.totalorder %s64, %s66
    %p73 = scmp.eq.s32.totalorder %s14, 3
    %p74 = por %p72, %p73
    %p75 = scmp.ne.s32.totalorder %s66, %s67
    %p76 = scmp.eq.s32.totalorder %s14, 0
    %p77 = por %p75, %p76
    %p78 = scmp.ne.s32.totalorder %s66, %s67
    %p79 = scmp.eq.s32.totalorder %s15, 3
    %p80 = por %p78, %p79
    %p82 = scmp.ne.s32.totalorder %s67, %s81
    %p83 = scmp.eq.s32.totalorder %s15, 0
    %p84 = por %p82, %p83
    %s85 = ssub.s32 %s9, %s16
    %p86 = scmp.eq.s32.totalorder %s85, 0
    %s88 = sadd.s32 %s87, 1
    %s89 = scalar_select %p86, %s87, %s88
    %p92 = pneg %p86
    %p93 = scmp.eq.s32.totalorder %s9, 3
    %p94 = por %p92, %p93
    %p95 = scmp.ne.s32.totalorder %s87, %s90
    %p96 = scmp.eq.s32.totalorder %s9, 0
    %p97 = por %p95, %p96
    %p98 = scmp.ne.s32.totalorder %s87, %s90
    %p99 = scmp.eq.s32.totalorder %s14, 3
    %p100 = por %p98, %p99
    %p101 = scmp.ne.s32.totalorder %s90, %s91
    %p102 = scmp.eq.s32.totalorder %s14, 0
    %p103 = por %p101, %p102
    %p104 = scmp.ne.s32.totalorder %s90, %s91
    %p105 = scmp.eq.s32.totalorder %s15, 3
    %p106 = por %p104, %p105
    %p108 = scmp.ne.s32.totalorder %s91, %s107
    %p109 = scmp.eq.s32.totalorder %s15, 0
    %p110 = por %p108, %p109
    %p111 = scmp.le.s32.totalorder 1, %s9
    %p112 = scmp.lt.s32.totalorder %s9, 5
    %p113 = pnand %p111, %p112
    %p114 = pneg %p113
    // Predicated region
    $region9: #{detector_forward.3} parent=5 // pred_check
      _
    $region10: #{detector_forward.3} parent=5 // pred_check_branch
      %116 = sbr.rel (%p113) target = $region12
    $region11: #{detector_forward.3} parent=5 // pred_region
      %s117 = ssub.s32 %s9, 1
      // Predicated region
      $region13: #{detector_forward.3} parent=11 // pred_check
        %p118 = pneg %p56
      $region14: #{detector_forward.3} parent=11 // pred_check_branch
        %120 = sbr.rel (%p118) target = $region16
      $region15: #{detector_forward.3} parent=11 // pred_region
        _
      $region16: #{detector_forward.3} parent=11 // pred_fallthru
        _
      // Predicated region
      $region17: #{detector_forward.3} parent=11 // pred_check
        %p121 = pneg %p77
      $region18: #{detector_forward.3} parent=11 // pred_check_branch
        %123 = sbr.rel (%p121) target = $region20
      $region19: #{detector_forward.3} parent=11 // pred_region
        _
      $region20: #{detector_forward.3} parent=11 // pred_fallthru
        _
    $region12: #{detector_forward.3} parent=5 // pred_fallthru
      _
    %p124 = scmp.lt.s32.totalorder %s9, 4
    // Predicated region
    $region21: #{detector_forward.3} parent=5 // pred_check
      %p125 = pneg %p124
    $region22: #{detector_forward.3} parent=5 // pred_check_branch
      %127 = sbr.rel (%p125) target = $region24
    $region23: #{detector_forward.3} parent=5 // pred_region
      // Predicated region
      $region25: #{detector_forward.3} parent=23 // pred_check
        %p128 = pneg %p29
      $region26: #{detector_forward.3} parent=23 // pred_check_branch
        %130 = sbr.rel (%p128) target = $region28
      $region27: #{detector_forward.3} parent=23 // pred_region
        %s131 = smul.u32 16, %s9
        %p132 = scmp.lt.s32.totalorder %s131, 63
        %s133 = scalar_select %p132, %s131, 63
        %s134 = smul.addr %s133, 4
        %s135 = scalar_lea.vmem %s0, %s134
        %s136 = smul.u32 16, %s9
      $region28: #{detector_forward.3} parent=23 // pred_fallthru
        _
    $region24: #{detector_forward.3} parent=5 // pred_fallthru
      _
    %p137 = scmp.le.s32.totalorder 1, %s9
    %p138 = scmp.lt.s32.totalorder %s9, 5
    %p139 = pnand %p137, %p138
    %p140 = pneg %p139
    // Predicated region
    $region29: #{detector_forward.3} parent=5 // pred_check
      _
    $region30: #{detector_forward.3} parent=5 // pred_check_branch
      %142 = sbr.rel (%p139) target = $region32
    $region31: #{detector_forward.3} parent=5 // pred_region
      %s143 = ssub.s32 %s9, 1
      %s144 = smul.u32 16, %s14
      %p145 = scmp.lt.s32.totalorder %s144, 63
      %s146 = scalar_select %p145, %s144, 63
      %s147 = smul.addr %s146, 4
      %s148 = scalar_lea.vmem %s0, %s147
      %p149 = pneg %p35
      %p150 = pneg %p32
      %p151 = pneg %p56
      %p152 = pneg %p53
      %p153 = pneg %p77
      %p154 = pneg %p74
      %p155 = pneg %p103
      %p156 = pneg %p100
      %s157 = smul.u32 16, %s14
      %p158 = scmp.lt.s32.totalorder %s157, 63
      %s159 = scalar_select %p158, %s157, 63
      %s160 = smul.addr %s159, 4
      %s161 = scalar_lea.vmem %s3, %s160
      %s162 = smul.u32 16, %s14
      %p163 = scmp.lt.s32.totalorder %s162, 63
      %s164 = scalar_select %p163, %s162, 63
      %s165 = smul.addr %s164, 4
      %s166 = scalar_lea.vmem %s0, %s165
      %s167 = smul.u32 16, %s14
      %s168 = smul.u32 16, %s14
      %p169 = scmp.lt.s32.totalorder %s168, 63
      %s170 = scalar_select %p169, %s168, 63
      %s171 = smul.addr %s170, 4
      %s172 = scalar_lea.vmem %s3, %s171
      %s173 = smul.u32 16, %s14
      %v175 = vld [vmem:[%s166] sm:$0xf]
      %v176 = vld [vmem:[%s166 + $0x4] sm:$0xf]
      %v177 = vld [vmem:[%s166 + $0x8] sm:$0xf]
      %v178 = vld [vmem:[%s166 + $0xc] sm:$0xf]
      %v179 = vld [vmem:[%s166 + $0x10] sm:$0xf]
      %v180 = vld [vmem:[%s166 + $0x14] sm:$0xf]
      %v181 = vld [vmem:[%s166 + $0x18] sm:$0xf]
      %v182 = vld [vmem:[%s166 + $0x1c] sm:$0xf]
      %v183 = vld [vmem:[%s166 + $0x20] sm:$0xf]
      %v184 = vld [vmem:[%s166 + $0x24] sm:$0xf]
      %v185 = vld [vmem:[%s166 + $0x28] sm:$0xf]
      %v186 = vld [vmem:[%s166 + $0x2c] sm:$0xf]
      %v187 = vld [vmem:[%s166 + $0x30] sm:$0xf]
      %v188 = vld [vmem:[%s166 + $0x34] sm:$0xf]
      %v189 = vld [vmem:[%s166 + $0x38] sm:$0xf]
      %v190 = vld [vmem:[%s166 + $0x3c] sm:$0xf]
      %v191 = vld [vmem:[%s1] sm:$0xf]
      %v192 = vld [vmem:[%s1 + $0x4] sm:$0xf]
      %v193 = vld [vmem:[%s1 + $0x8] sm:$0xf]
      %v194 = vld [vmem:[%s1 + $0xc] sm:$0x3]
      %v195 = vld [vmem:[%s2] sm:$0x1]
      %v197 = vlaneseq
      %v198 = vshrl.u32 %v197, 7
      %v199 = vsub.s32 0, %v198
      %v200 = vrot.slane %v195, %v199
      %v218 = vunpack.c.l.b16 %v175
      %v219 = vunpack.c.l.b16 %v176
      %v220 = vunpack.c.l.b16 %v177
      %v221 = vunpack.c.l.b16 %v178
      %v222 = vunpack.c.l.b16 %v179
      %v223 = vunpack.c.l.b16 %v180
      %v224 = vunpack.c.l.b16 %v181
      %v225 = vunpack.c.l.b16 %v182
      %v226 = vunpack.c.l.b16 %v183
      %v227 = vunpack.c.l.b16 %v184
      %v228 = vunpack.c.l.b16 %v185
      %v229 = vunpack.c.l.b16 %v186
      %v230 = vunpack.c.l.b16 %v187
      %v231 = vunpack.c.l.b16 %v188
      %v232 = vunpack.c.l.b16 %v189
      %v233 = vunpack.c.l.b16 %v190
      %v234 = vpack.c.b16 %v219, %v218
      %v235 = vpack.c.b16 %v221, %v220
      %v236 = vpack.c.b16 %v223, %v222
      %v237 = vpack.c.b16 %v225, %v224
      %v238 = vpack.c.b16 %v227, %v226
      %v239 = vpack.c.b16 %v229, %v228
      %v240 = vpack.c.b16 %v231, %v230
      %v241 = vpack.c.b16 %v233, %v232
      %v246 = vunpack.c.l.b16 %v191
      %v247 = vunpack.c.l.b16 %v192
      %v248 = vunpack.c.l.b16 %v193
      %v249 = vunpack.c.l.b16 %v194
      %v250 = vpack.c.b16 %v247, %v246
      %v251 = vpack.c.b16 %v249, %v248
      %vm253 = vcmask 220160
      %v255 = vsel %vm253, %v234, 0
      %v258 = vsel %vm253, %v235, 0
      %v261 = vsel %vm253, %v236, 0
      %v264 = vsel %vm253, %v237, 0
      %v267 = vsel %vm253, %v238, 0
      %v270 = vsel %vm253, %v239, 0
      %v273 = vsel %vm253, %v240, 0
      %v276 = vsel %vm253, %v241, 0
      %vm278 = vcmask 1044480
      %vm279 = vcmask 1045504
      %v280 = vsel %vm278, 4294967295, 65535
      %v281 = vsel %vm279, %v280, 0
      %v283 = vand.u32 %v251, %v281
      %285 = vmatprep.subr.bf16.mxu0 0
      %286 = vmatpush1.bf16.msra.mxu0 0
      %287 = vmatprep.subr.bf16.mxu0 0
      %288 = vmatpush1.bf16.msra.mxu0 0
      %289 = vmatprep.subr.bf16.mxu0 0
      %290 = vmatpush1.bf16.msra.mxu0 0
      %291 = vmatprep.subr.bf16.mxu0 0
      %292 = vmatpush1.bf16.msra.mxu0 0
      %293 = vmatprep.subr.bf16.mxu0 0
      %294 = vmatpush1.bf16.msra.mxu0 0
      %295 = vmatprep.subr.bf16.mxu0 0
      %296 = vmatpush1.bf16.msra.mxu0 0
      %297 = vmatprep.subr.bf16.mxu0 0
      %298 = vmatpush1.bf16.msra.mxu0 %v283
      %299 = vmatprep.subr.bf16.mxu0 0
      %300 = vmatpush1.bf16.msra.mxu0 %v250
      %301 = vmatprep.subr.bf16.mxu0 0
      %302 = vmatpush2.bf16.msra.mxu0 0
      %303 = vmatprep.subr.bf16.mxu0 0
      %304 = vmatpush2.bf16.msra.mxu0 0
      %305 = vmatprep.subr.bf16.mxu0 0
      %306 = vmatpush2.bf16.msra.mxu0 0
      %307 = vmatprep.subr.bf16.mxu0 0
      %308 = vmatpush2.bf16.msra.mxu0 0
      %309 = vmatprep.subr.bf16.mxu0 0
      %310 = vmatpush2.bf16.msra.mxu0 0
      %311 = vmatprep.subr.bf16.mxu0 0
      %312 = vmatpush2.bf16.msra.mxu0 0
      %313 = vmatprep.subr.bf16.mxu0 0
      %314 = vmatpush2.bf16.msra.mxu0 0
      %315 = vmatprep.subr.bf16.mxu0 0
      %316 = vmatpush2.bf16.msra.mxu0 0
      %317 = vmatprep.mubr.bf16.mxu0 0
      %318 = vmatmul.mubr.bf16.gmra.mxu0 %v255
      %v319 = vpop.f32.mrf.mxu0
      %v320 = vadd.f32 %v200, %v319
      %v321 = vpop.f32.mrf.mxu0
      %v322 = vpop.f32.mrf.mxu0
      %v323 = vadd.f32 %v200, %v322
      %v324 = vpop.f32.mrf.mxu0
      %325 = vmatprep.mubr.bf16.mxu0 0
      %326 = vmatmul.mubr.bf16.gmra.mxu0 %v258
      %v327 = vpop.f32.mrf.mxu0
      %v328 = vadd.f32 %v200, %v327
      %v329 = vpop.f32.mrf.mxu0
      %v330 = vpop.f32.mrf.mxu0
      %v331 = vadd.f32 %v200, %v330
      %v332 = vpop.f32.mrf.mxu0
      %333 = vmatprep.mubr.bf16.mxu0 0
      %334 = vmatmul.mubr.bf16.gmra.mxu0 %v261
      %v335 = vpop.f32.mrf.mxu0
      %v336 = vadd.f32 %v200, %v335
      %v337 = vpop.f32.mrf.mxu0
      %v338 = vpop.f32.mrf.mxu0
      %v339 = vadd.f32 %v200, %v338
      %v340 = vpop.f32.mrf.mxu0
      %341 = vmatprep.mubr.bf16.mxu0 0
      %342 = vmatmul.mubr.bf16.gmra.mxu0 %v264
      %v343 = vpop.f32.mrf.mxu0
      %v344 = vadd.f32 %v200, %v343
      %v345 = vpop.f32.mrf.mxu0
      %v346 = vpop.f32.mrf.mxu0
      %v347 = vadd.f32 %v200, %v346
      %v348 = vpop.f32.mrf.mxu0
      %349 = vmatprep.mubr.bf16.mxu0 0
      %350 = vmatmul.mubr.bf16.gmra.mxu0 %v267
      %v351 = vpop.f32.mrf.mxu0
      %v352 = vadd.f32 %v200, %v351
      %v353 = vpop.f32.mrf.mxu0
      %v354 = vpop.f32.mrf.mxu0
      %v355 = vadd.f32 %v200, %v354
      %v356 = vpop.f32.mrf.mxu0
      %357 = vmatprep.mubr.bf16.mxu0 0
      %358 = vmatmul.mubr.bf16.gmra.mxu0 %v270
      %v359 = vpop.f32.mrf.mxu0
      %v360 = vadd.f32 %v200, %v359
      %v361 = vpop.f32.mrf.mxu0
      %v362 = vpop.f32.mrf.mxu0
      %v363 = vadd.f32 %v200, %v362
      %v364 = vpop.f32.mrf.mxu0
      %365 = vmatprep.mubr.bf16.mxu0 0
      %366 = vmatmul.mubr.bf16.gmra.mxu0 %v273
      %v367 = vpop.f32.mrf.mxu0
      %v368 = vadd.f32 %v200, %v367
      %v369 = vpop.f32.mrf.mxu0
      %v370 = vpop.f32.mrf.mxu0
      %v371 = vadd.f32 %v200, %v370
      %v372 = vpop.f32.mrf.mxu0
      %373 = vmatprep.mubr.bf16.mxu0 0
      %374 = vmatmul.mubr.bf16.gmra.mxu0 %v276
      %v375 = vpop.f32.mrf.mxu0
      %v376 = vadd.f32 %v200, %v375
      %v377 = vpop.f32.mrf.mxu0
      %v378 = vpop.f32.mrf.mxu0
      %v379 = vadd.f32 %v200, %v378
      %v380 = vpop.f32.mrf.mxu0
      %381 = vdwg.mxu0
      %v382 = vxor.u32 %v320, 2147483648
      %v383 = vxor.u32 %v323, 2147483648
      %v384 = vxor.u32 %v328, 2147483648
      %v385 = vxor.u32 %v331, 2147483648
      %v386 = vxor.u32 %v336, 2147483648
      %v387 = vxor.u32 %v339, 2147483648
      %v388 = vxor.u32 %v344, 2147483648
      %v389 = vxor.u32 %v347, 2147483648
      %v390 = vxor.u32 %v352, 2147483648
      %v391 = vxor.u32 %v355, 2147483648
      %v392 = vxor.u32 %v360, 2147483648
      %v393 = vxor.u32 %v363, 2147483648
      %v394 = vxor.u32 %v368, 2147483648
      %v395 = vxor.u32 %v371, 2147483648
      %v396 = vxor.u32 %v376, 2147483648
      %v397 = vxor.u32 %v379, 2147483648
      %v398 = vmul.f32 %v382, 1.442695
      %v399 = vpow.pop %v398
      %v400 = vmul.f32 %v383, 1.442695
      %v401 = vpow.pop %v400
      %v402 = vmul.f32 %v384, 1.442695
      %v403 = vpow.pop %v402
      %v404 = vmul.f32 %v385, 1.442695
      %v405 = vpow.pop %v404
      %v406 = vmul.f32 %v386, 1.442695
      %v407 = vpow.pop %v406
      %v408 = vmul.f32 %v387, 1.442695
      %v409 = vpow.pop %v408
      %v410 = vmul.f32 %v388, 1.442695
      %v411 = vpow.pop %v410
      %v412 = vmul.f32 %v389, 1.442695
      %v413 = vpow.pop %v412
      %v414 = vmul.f32 %v390, 1.442695
      %v415 = vpow.pop %v414
      %v416 = vmul.f32 %v391, 1.442695
      %v417 = vpow.pop %v416
      %v418 = vmul.f32 %v392, 1.442695
      %v419 = vpow.pop %v418
      %v420 = vmul.f32 %v393, 1.442695
      %v421 = vpow.pop %v420
      %v422 = vmul.f32 %v394, 1.442695
      %v423 = vpow.pop %v422
      %v424 = vmul.f32 %v395, 1.442695
      %v425 = vpow.pop %v424
      %v426 = vmul.f32 %v396, 1.442695
      %v427 = vpow.pop %v426
      %v428 = vmul.f32 %v397, 1.442695
      %v429 = vpow.pop %v428
      %v430 = vadd.f32 %v399, 1.0
      %v431 = vadd.f32 %v401, 1.0
      %v432 = vadd.f32 %v403, 1.0
      %v433 = vadd.f32 %v405, 1.0
      %v434 = vadd.f32 %v407, 1.0
      %v435 = vadd.f32 %v409, 1.0
      %v436 = vadd.f32 %v411, 1.0
      %v437 = vadd.f32 %v413, 1.0
      %v438 = vadd.f32 %v415, 1.0
      %v439 = vadd.f32 %v417, 1.0
      %v440 = vadd.f32 %v419, 1.0
      %v441 = vadd.f32 %v421, 1.0
      %v442 = vadd.f32 %v423, 1.0
      %v443 = vadd.f32 %v425, 1.0
      %v444 = vadd.f32 %v427, 1.0
      %v445 = vadd.f32 %v429, 1.0
      %v446 = vrcp.pop %v430
      %v447 = vmul.f32 1.0, %v446
      %v448 = vrcp.pop %v431
      %v449 = vmul.f32 1.0, %v448
      %v450 = vrcp.pop %v432
      %v451 = vmul.f32 1.0, %v450
      %v452 = vrcp.pop %v433
      %v453 = vmul.f32 1.0, %v452
      %v454 = vrcp.pop %v434
      %v455 = vmul.f32 1.0, %v454
      %v456 = vrcp.pop %v435
      %v457 = vmul.f32 1.0, %v456
      %v458 = vrcp.pop %v436
      %v459 = vmul.f32 1.0, %v458
      %v460 = vrcp.pop %v437
      %v461 = vmul.f32 1.0, %v460
      %v462 = vrcp.pop %v438
      %v463 = vmul.f32 1.0, %v462
      %v464 = vrcp.pop %v439
      %v465 = vmul.f32 1.0, %v464
      %v466 = vrcp.pop %v440
      %v467 = vmul.f32 1.0, %v466
      %v468 = vrcp.pop %v441
      %v469 = vmul.f32 1.0, %v468
      %v470 = vrcp.pop %v442
      %v471 = vmul.f32 1.0, %v470
      %v472 = vrcp.pop %v443
      %v473 = vmul.f32 1.0, %v472
      %v474 = vrcp.pop %v444
      %v475 = vmul.f32 1.0, %v474
      %v476 = vrcp.pop %v445
      %v477 = vmul.f32 1.0, %v476
      %v478 = vmul.f32 %v320, %v447
      %v479 = vmul.f32 %v323, %v449
      %v480 = vmul.f32 %v328, %v451
      %v481 = vmul.f32 %v331, %v453
      %v482 = vmul.f32 %v336, %v455
      %v483 = vmul.f32 %v339, %v457
      %v484 = vmul.f32 %v344, %v459
      %v485 = vmul.f32 %v347, %v461
      %v486 = vmul.f32 %v352, %v463
      %v487 = vmul.f32 %v355, %v465
      %v488 = vmul.f32 %v360, %v467
      %v489 = vmul.f32 %v363, %v469
      %v490 = vmul.f32 %v368, %v471
      %v491 = vmul.f32 %v371, %v473
      %v492 = vmul.f32 %v376, %v475
      %v493 = vmul.f32 %v379, %v477
      %v494 = vpack.c.bf16 %v479, %v478
      %v495 = vpack.c.bf16 %v481, %v480
      %v496 = vpack.c.bf16 %v483, %v482
      %v497 = vpack.c.bf16 %v485, %v484
      %v498 = vpack.c.bf16 %v487, %v486
      %v499 = vpack.c.bf16 %v489, %v488
      %v500 = vpack.c.bf16 %v491, %v490
      %v501 = vpack.c.bf16 %v493, %v492
      %v510 = vunpack.c.l.b16 %v494
      %v511 = vunpack.c.h.b16 %v494
      %v512 = vunpack.c.l.b16 %v495
      %v513 = vunpack.c.h.b16 %v495
      %v514 = vunpack.c.l.b16 %v496
      %v515 = vunpack.c.h.b16 %v496
      %v516 = vunpack.c.l.b16 %v497
      %v517 = vunpack.c.h.b16 %v497
      %v518 = vunpack.c.l.b16 %v498
      %v519 = vunpack.c.h.b16 %v498
      %v520 = vunpack.c.l.b16 %v499
      %v521 = vunpack.c.h.b16 %v499
      %v522 = vunpack.c.l.b16 %v500
      %v523 = vunpack.c.h.b16 %v500
      %v524 = vunpack.c.l.b16 %v501
      %v525 = vunpack.c.h.b16 %v501
      %v526 = vpack.c.b16 %v510, %v510
      %v527 = vpack.c.b16 %v511, %v511
      %v528 = vpack.c.b16 %v512, %v512
      %v529 = vpack.c.b16 %v513, %v513
      %v530 = vpack.c.b16 %v514, %v514
      %v531 = vpack.c.b16 %v515, %v515
      %v532 = vpack.c.b16 %v516, %v516
      %v533 = vpack.c.b16 %v517, %v517
      %v534 = vpack.c.b16 %v518, %v518
      %v535 = vpack.c.b16 %v519, %v519
      %v536 = vpack.c.b16 %v520, %v520
      %v537 = vpack.c.b16 %v521, %v521
      %v538 = vpack.c.b16 %v522, %v522
      %v539 = vpack.c.b16 %v523, %v523
      %v540 = vpack.c.b16 %v524, %v524
      %v541 = vpack.c.b16 %v525, %v525
      %558 = vst [vmem:[%s172] sm:$0xf] %v526
      %559 = vst [vmem:[%s172 + $0x4] sm:$0xf] %v527
      %560 = vst [vmem:[%s172 + $0x8] sm:$0xf] %v528
      %561 = vst [vmem:[%s172 + $0xc] sm:$0xf] %v529
      %562 = vst [vmem:[%s172 + $0x10] sm:$0xf] %v530
      %563 = vst [vmem:[%s172 + $0x14] sm:$0xf] %v531
      %564 = vst [vmem:[%s172 + $0x18] sm:$0xf] %v532
      %565 = vst [vmem:[%s172 + $0x1c] sm:$0xf] %v533
      %566 = vst [vmem:[%s172 + $0x20] sm:$0xf] %v534
      %567 = vst [vmem:[%s172 + $0x24] sm:$0xf] %v535
      %568 = vst [vmem:[%s172 + $0x28] sm:$0xf] %v536
      %569 = vst [vmem:[%s172 + $0x2c] sm:$0xf] %v537
      %570 = vst [vmem:[%s172 + $0x30] sm:$0xf] %v538
      %571 = vst [vmem:[%s172 + $0x34] sm:$0xf] %v539
      %572 = vst [vmem:[%s172 + $0x38] sm:$0xf] %v540
      %573 = vst [vmem:[%s172 + $0x3c] sm:$0xf] %v541
      %s574 = smul.u32 16, %s14
      %p575 = scmp.lt.s32.totalorder %s574, 63
      %s576 = scalar_select %p575, %s574, 63
      %s577 = smul.addr %s576, 4
      %s578 = scalar_lea.vmem %s3, %s577
      // Predicated region
      $region33: #{detector_forward.3} parent=31 // pred_check
        %p579 = pneg %p100
      $region34: #{detector_forward.3} parent=31 // pred_check_branch
        %581 = sbr.rel (%p579) target = $region36
      $region35: #{detector_forward.3} parent=31 // pred_region
        %s582 = smul.u32 16, %s14
      $region36: #{detector_forward.3} parent=31 // pred_fallthru
        _
    $region32: #{detector_forward.3} parent=5 // pred_fallthru
      _
    %p583 = scmp.le.s32.totalorder 2, %s9
    // Predicated region
    $region37: #{detector_forward.3} parent=5 // pred_check
      %p584 = pneg %p583
    $region38: #{detector_forward.3} parent=5 // pred_check_branch
      %586 = sbr.rel (%p584) target = $region40
    $region39: #{detector_forward.3} parent=5 // pred_region
      %s587 = ssub.s32 %s9, 2
      // Predicated region
      $region41: #{detector_forward.3} parent=39 // pred_check
        %p588 = pneg %p106
      $region42: #{detector_forward.3} parent=39 // pred_check_branch
        %590 = sbr.rel (%p588) target = $region44
      $region43: #{detector_forward.3} parent=39 // pred_region
        %s591 = smul.u32 16, %s15
        %p592 = scmp.lt.s32.totalorder %s591, 63
        %s593 = scalar_select %p592, %s591, 63
        %s594 = smul.addr %s593, 4
        %s595 = scalar_lea.vmem %s3, %s594
      $region44: #{detector_forward.3} parent=39 // pred_fallthru
        _
    $region40: #{detector_forward.3} parent=5 // pred_fallthru
      _
  $region6: #{detector_forward.3} parent=0 // loop_footer
    %s13 = sadd.s32 1, %s9
  $region7: #{detector_forward.3} parent=0 // loop_footer_branch
    %8 = sbr.rel target = $region3
  $region8: #{detector_forward.3} parent=0 // loop_exit
    _

// kernel: detector_forward.5
$region0: #{detector_forward.5}
  #allocation0 [shape = 'u32[]', space=smem, size = 0x4, offset = 0x4, fixed_abs, tag = 'smem constant byte address 0x4 - core index']
  #allocation1 [shape = 'u32[144,128]{1,0:T(1,128)}', space=vmem, size = 0x12000, scoped, tag = 'internal scratch']
  %s0 = inlined_call_operand.vmem [shape: bf16[2,16,16,128], index: 0, kind: input, shape index: {}]
  %s1 = inlined_call_operand.vmem [shape: bf16[128,128], index: 1, kind: input, shape index: {}]
  %s2 = inlined_call_operand.vmem [shape: f32[1,128], index: 2, kind: input, shape index: {}]
  %s3 = inlined_call_operand.vmem [shape: bf16[128,128], index: 3, kind: input, shape index: {}]
  %s4 = inlined_call_operand.vmem [shape: f32[1,128], index: 4, kind: input, shape index: {}]
  %s5 = inlined_call_operand.hbm [shape: f32[2,1,128], index: 5, kind: output, shape index: {}]
  %s6 = sld [smem:[#allocation0]]
  $region53: #{detector_forward.5} parent=0
    _
  %s8 = ssub.s32 1, %s6
  %s9 = scalar_select 0, %s8, %s6
  $region1: #{detector_forward.5} parent=0
    #allocation2 [shape = 'u8[1024]{0}', space=vmem, size = 0x400, scoped, tag = 'output window, operand 0']
    #allocation3 [shape = 's32[2]{0}', space=sflag, size = 0x8, scoped, tag = 'scoped memory for detector_forward.5']
    %10 = vsyncpa [#allocation3], 0
    %s11 = scalar_lea.sflag [#allocation3], 1
    %12 = vsyncpa %s11, 0
    loop: start=0, step=1, limit=4
    $region2: #{detector_forward.5} parent=1 // loop_pre_header
      _
    $region3: #{detector_forward.5} parent=1 // loop_header
      %s14 = sphi 0, %s18
      %p15 = scmp.ge.s32.totalorder %s14, 4
      %s24 = sphi 0, %s26
      %s27 = sphi 0, %s24
      %s28 = sphi 0, %s27
      %s44 = sphi 0, %s28
      %s48 = sphi 0, %s48
      %s50 = sphi 0, %s48
      %s51 = sphi 0, %s50
      %s65 = sphi 0, %s51
      %s69 = sphi 0, %s69
      %s71 = sphi 0, %s69
      %s72 = sphi 0, %s71
      %s86 = sphi 0, %s72
      %s90 = sphi 0, %s90
      %s92 = sphi 0, %s90
      %s93 = sphi 0, %s92
      %s107 = sphi 0, %s93
      %s111 = sphi 0, %s111
      %s113 = sphi 0, %s111
      %s114 = sphi 0, %s113
      %s128 = sphi 0, %s114
      %s134 = sphi 0, %s136
      %s137 = sphi 0, %s134
      %s138 = sphi 0, %s137
      %s154 = sphi 0, %s138
    $region4: #{detector_forward.5} parent=1 // loop_header_branch
      %17 = sbr.rel (%p15) target = $region8
    $region5: #{detector_forward.5} parent=1 // loop_body
      %s19 = ssub.s32 %s14, 1
      %s20 = ssub.s32 %s14, 2
      %s21 = sadd.s32 %s14, 1
      %s22 = ssub.s32 %s14, %s21
      %p23 = scmp.eq.s32.totalorder %s22, 0
      %s25 = sadd.s32 %s24, 1
      %s26 = scalar_select %p23, %s24, %s25
      %p29 = pneg %p23
      %p30 = scmp.eq.s32.totalorder %s14, 1
      %p31 = por %p29, %p30
      %p32 = scmp.ne.s32.totalorder %s24, %s27
      %p33 = scmp.eq.s32.totalorder %s14, 0
      %p34 = por %p32, %p33
      %p35 = scmp.ne.s32.totalorder %s24, %s27
      %p36 = scmp.eq.s32.totalorder %s19, 1
      %p37 = por %p35, %p36
      %p38 = scmp.ne.s32.totalorder %s27, %s28
      %p39 = scmp.eq.s32.totalorder %s19, 0
      %p40 = por %p38, %p39
      %p41 = scmp.ne.s32.totalorder %s27, %s28
      %p42 = scmp.eq.s32.totalorder %s20, 1
      %p43 = por %p41, %p42
      %p45 = scmp.ne.s32.totalorder %s28, %s44
      %p46 = scmp.eq.s32.totalorder %s20, 0
      %p47 = por %p45, %p46
      %s49 = sadd.s32 %s48, 1
      %p52 = scmp.eq.s32.totalorder %s14, 1
      %p53 = scmp.ne.s32.totalorder %s48, %s50
      %p54 = scmp.eq.s32.totalorder %s14, 0
      %p55 = por %p53, %p54
      %p56 = scmp.ne.s32.totalorder %s48, %s50
      %p57 = scmp.eq.s32.totalorder %s19, 1
      %p58 = por %p56, %p57
      %p59 = scmp.ne.s32.totalorder %s50, %s51
      %p60 = scmp.eq.s32.totalorder %s19, 0
      %p61 = por %p59, %p60
      %p62 = scmp.ne.s32.totalorder %s50, %s51
      %p63 = scmp.eq.s32.totalorder %s20, 1
      %p64 = por %p62, %p63
      %p66 = scmp.ne.s32.totalorder %s51, %s65
      %p67 = scmp.eq.s32.totalorder %s20, 0
      %p68 = por %p66, %p67
      %s70 = sadd.s32 %s69, 1
      %p73 = scmp.eq.s32.totalorder %s14, 1
      %p74 = scmp.ne.s32.totalorder %s69, %s71
      %p75 = scmp.eq.s32.totalorder %s14, 0
      %p76 = por %p74, %p75
      %p77 = scmp.ne.s32.totalorder %s69, %s71
      %p78 = scmp.eq.s32.totalorder %s19, 1
      %p79 = por %p77, %p78
      %p80 = scmp.ne.s32.totalorder %s71, %s72
      %p81 = scmp.eq.s32.totalorder %s19, 0
      %p82 = por %p80, %p81
      %p83 = scmp.ne.s32.totalorder %s71, %s72
      %p84 = scmp.eq.s32.totalorder %s20, 1
      %p85 = por %p83, %p84
      %p87 = scmp.ne.s32.totalorder %s72, %s86
      %p88 = scmp.eq.s32.totalorder %s20, 0
      %p89 = por %p87, %p88
      %s91 = sadd.s32 %s90, 1
      %p94 = scmp.eq.s32.totalorder %s14, 1
      %p95 = scmp.ne.s32.totalorder %s90, %s92
      %p96 = scmp.eq.s32.totalorder %s14, 0
      %p97 = por %p95, %p96
      %p98 = scmp.ne.s32.totalorder %s90, %s92
      %p99 = scmp.eq.s32.totalorder %s19, 1
      %p100 = por %p98, %p99
      %p101 = scmp.ne.s32.totalorder %s92, %s93
      %p102 = scmp.eq.s32.totalorder %s19, 0
      %p103 = por %p101, %p102
      %p104 = scmp.ne.s32.totalorder %s92, %s93
      %p105 = scmp.eq.s32.totalorder %s20, 1
      %p106 = por %p104, %p105
      %p108 = scmp.ne.s32.totalorder %s93, %s107
      %p109 = scmp.eq.s32.totalorder %s20, 0
      %p110 = por %p108, %p109
      %s112 = sadd.s32 %s111, 1
      %p115 = scmp.eq.s32.totalorder %s14, 1
      %p116 = scmp.ne.s32.totalorder %s111, %s113
      %p117 = scmp.eq.s32.totalorder %s14, 0
      %p118 = por %p116, %p117
      %p119 = scmp.ne.s32.totalorder %s111, %s113
      %p120 = scmp.eq.s32.totalorder %s19, 1
      %p121 = por %p119, %p120
      %p122 = scmp.ne.s32.totalorder %s113, %s114
      %p123 = scmp.eq.s32.totalorder %s19, 0
      %p124 = por %p122, %p123
      %p125 = scmp.ne.s32.totalorder %s113, %s114
      %p126 = scmp.eq.s32.totalorder %s20, 1
      %p127 = por %p125, %p126
      %p129 = scmp.ne.s32.totalorder %s114, %s128
      %p130 = scmp.eq.s32.totalorder %s20, 0
      %p131 = por %p129, %p130
      %s132 = ssub.s32 %s14, %s21
      %p133 = scmp.eq.s32.totalorder %s132, 0
      %s135 = sadd.s32 %s134, 1
      %s136 = scalar_select %p133, %s134, %s135
      %p139 = pneg %p133
      %p140 = scmp.eq.s32.totalorder %s14, 1
      %p141 = por %p139, %p140
      %p142 = scmp.ne.s32.totalorder %s134, %s137
      %p143 = scmp.eq.s32.totalorder %s14, 0
      %p144 = por %p142, %p143
      %p145 = scmp.ne.s32.totalorder %s134, %s137
      %p146 = scmp.eq.s32.totalorder %s19, 1
      %p147 = por %p145, %p146
      %p148 = scmp.ne.s32.totalorder %s137, %s138
      %p149 = scmp.eq.s32.totalorder %s19, 0
      %p150 = por %p148, %p149
      %p151 = scmp.ne.s32.totalorder %s137, %s138
      %p152 = scmp.eq.s32.totalorder %s20, 1
      %p153 = por %p151, %p152
      %p155 = scmp.ne.s32.totalorder %s138, %s154
      %p156 = scmp.eq.s32.totalorder %s20, 0
      %p157 = por %p155, %p156
      %p158 = scmp.le.s32.totalorder 1, %s14
      %p159 = scmp.lt.s32.totalorder %s14, 3
      %p160 = pnand %p158, %p159
      %p161 = pneg %p160
      // Predicated region
      $region9: #{detector_forward.5} parent=5 // pred_check
        _
      $region10: #{detector_forward.5} parent=5 // pred_check_branch
        %163 = sbr.rel (%p160) target = $region12
      $region11: #{detector_forward.5} parent=5 // pred_region
        %s164 = ssub.s32 %s14, 1
        // Predicated region
        $region13: #{detector_forward.5} parent=11 // pred_check
          %p165 = pneg %p61
        $region14: #{detector_forward.5} parent=11 // pred_check_branch
          %167 = sbr.rel (%p165) target = $region16
        $region15: #{detector_forward.5} parent=11 // pred_region
          _
        $region16: #{detector_forward.5} parent=11 // pred_fallthru
          _
        // Predicated region
        $region17: #{detector_forward.5} parent=11 // pred_check
          %p168 = pneg %p82
        $region18: #{detector_forward.5} parent=11 // pred_check_branch
          %170 = sbr.rel (%p168) target = $region20
        $region19: #{detector_forward.5} parent=11 // pred_region
          _
        $region20: #{detector_forward.5} parent=11 // pred_fallthru
          _
        // Predicated region
        $region21: #{detector_forward.5} parent=11 // pred_check
          %p171 = pneg %p103
        $region22: #{detector_forward.5} parent=11 // pred_check_branch
          %173 = sbr.rel (%p171) target = $region24
        $region23: #{detector_forward.5} parent=11 // pred_region
          _
        $region24: #{detector_forward.5} parent=11 // pred_fallthru
          _
        // Predicated region
        $region25: #{detector_forward.5} parent=11 // pred_check
          %p174 = pneg %p124
        $region26: #{detector_forward.5} parent=11 // pred_check_branch
          %176 = sbr.rel (%p174) target = $region28
        $region27: #{detector_forward.5} parent=11 // pred_region
          _
        $region28: #{detector_forward.5} parent=11 // pred_fallthru
          _
      $region12: #{detector_forward.5} parent=5 // pred_fallthru
        _
      %p177 = scmp.lt.s32.totalorder %s14, 2
      // Predicated region
      $region29: #{detector_forward.5} parent=5 // pred_check
        %p178 = pneg %p177
      $region30: #{detector_forward.5} parent=5 // pred_check_branch
        %180 = sbr.rel (%p178) target = $region32
      $region31: #{detector_forward.5} parent=5 // pred_region
        // Predicated region
        $region33: #{detector_forward.5} parent=31 // pred_check
          %p181 = pneg %p34
        $region34: #{detector_forward.5} parent=31 // pred_check_branch
          %183 = sbr.rel (%p181) target = $region36
        $region35: #{detector_forward.5} parent=31 // pred_region
          %p184 = scmp.lt.s32.totalorder %s14, 1
          %s185 = scalar_select %p184, %s14, 1
          %s186 = smul.addr %s185, 32
          %s187 = smul.addr %s186, 4
          %s188 = scalar_lea.vmem %s0, %s187
        $region36: #{detector_forward.5} parent=31 // pred_fallthru
          _
      $region32: #{detector_forward.5} parent=5 // pred_fallthru
        _
      %p189 = scmp.le.s32.totalorder 1, %s14
      %p190 = scmp.lt.s32.totalorder %s14, 3
      %p191 = pnand %p189, %p190
      %p192 = pneg %p191
      // Predicated region
      $region37: #{detector_forward.5} parent=5 // pred_check
        _
      $region38: #{detector_forward.5} parent=5 // pred_check_branch
        %194 = sbr.rel (%p191) target = $region40
      $region39: #{detector_forward.5} parent=5 // pred_region
        %s195 = ssub.s32 %s14, 1
        %p196 = scmp.lt.s32.totalorder %s19, 1
        %s197 = scalar_select %p196, %s19, 1
        %s198 = smul.addr %s197, 32
        %s199 = smul.addr %s198, 4
        %s200 = scalar_lea.vmem %s0, %s199
        %p201 = pneg %p40
        %p202 = pneg %p37
        %p203 = pneg %p61
        %p204 = pneg %p58
        %p205 = pneg %p82
        %p206 = pneg %p79
        %p207 = pneg %p103
        %p208 = pneg %p100
        %p209 = pneg %p124
        %p210 = pneg %p121
        %p211 = pneg %p150
        %p212 = pneg %p147
        %s213 = sand.u32 %s137, 1
        %s214 = scalar_lea.sflag [#allocation3], %s213
        %s215 = sand.u32 %s137, 1
        %s216 = scalar_lea.vmem [#allocation2], %s215
        %p217 = scmp.lt.s32.totalorder %s19, 1
        %s218 = scalar_select %p217, %s19, 1
        %s219 = smul.addr %s218, 32
        %s220 = smul.addr %s219, 4
        %s221 = scalar_lea.vmem %s0, %s220
        %v223 = vld [vmem:[%s221] sm:$0xf]
        %v224 = vld [vmem:[%s221 + $0x4] sm:$0xf]
        %v225 = vld [vmem:[%s221 + $0x8] sm:$0xf]
        %v226 = vld [vmem:[%s221 + $0xc] sm:$0xf]
        %v227 = vld [vmem:[%s221 + $0x10] sm:$0xf]
        %v228 = vld [vmem:[%s221 + $0x14] sm:$0xf]
        %v229 = vld [vmem:[%s221 + $0x18] sm:$0xf]
        %v230 = vld [vmem:[%s221 + $0x1c] sm:$0xf]
        %v231 = vld [vmem:[%s221 + $0x20] sm:$0xf]
        %v232 = vld [vmem:[%s221 + $0x24] sm:$0xf]
        %v233 = vld [vmem:[%s221 + $0x28] sm:$0xf]
        %v234 = vld [vmem:[%s221 + $0x2c] sm:$0xf]
        %v235 = vld [vmem:[%s221 + $0x30] sm:$0xf]
        %v236 = vld [vmem:[%s221 + $0x34] sm:$0xf]
        %v237 = vld [vmem:[%s221 + $0x38] sm:$0xf]
        %v238 = vld [vmem:[%s221 + $0x3c] sm:$0xf]
        %v239 = vld [vmem:[%s221 + $0x40] sm:$0xf]
        %v240 = vld [vmem:[%s221 + $0x44] sm:$0xf]
        %v241 = vld [vmem:[%s221 + $0x48] sm:$0xf]
        %v242 = vld [vmem:[%s221 + $0x4c] sm:$0xf]
        %v243 = vld [vmem:[%s221 + $0x50] sm:$0xf]
        %v244 = vld [vmem:[%s221 + $0x54] sm:$0xf]
        %v245 = vld [vmem:[%s221 + $0x58] sm:$0xf]
        %v246 = vld [vmem:[%s221 + $0x5c] sm:$0xf]
        %v247 = vld [vmem:[%s221 + $0x60] sm:$0xf]
        %v248 = vld [vmem:[%s221 + $0x64] sm:$0xf]
        %v249 = vld [vmem:[%s221 + $0x68] sm:$0xf]
        %v250 = vld [vmem:[%s221 + $0x6c] sm:$0xf]
        %v251 = vld [vmem:[%s221 + $0x70] sm:$0xf]
        %v252 = vld [vmem:[%s221 + $0x74] sm:$0xf]
        %v253 = vld [vmem:[%s221 + $0x78] sm:$0xf]
        %v254 = vld [vmem:[%s221 + $0x7c] sm:$0xf]
        %v255 = vld [vmem:[%s1] sm:$0xf]
        %v256 = vld [vmem:[%s1 + $0x4] sm:$0xf]
        %v257 = vld [vmem:[%s1 + $0x8] sm:$0xf]
        %v258 = vld [vmem:[%s1 + $0xc] sm:$0xf]
        %v259 = vld [vmem:[%s1 + $0x10] sm:$0xf]
        %v260 = vld [vmem:[%s1 + $0x14] sm:$0xf]
        %v261 = vld [vmem:[%s1 + $0x18] sm:$0xf]
        %v262 = vld [vmem:[%s1 + $0x1c] sm:$0xf]
        %v263 = vld [vmem:[%s1 + $0x20] sm:$0xf]
        %v264 = vld [vmem:[%s1 + $0x24] sm:$0xf]
        %v265 = vld [vmem:[%s1 + $0x28] sm:$0xf]
        %v266 = vld [vmem:[%s1 + $0x2c] sm:$0xf]
        %v267 = vld [vmem:[%s1 + $0x30] sm:$0xf]
        %v268 = vld [vmem:[%s1 + $0x34] sm:$0xf]
        %v269 = vld [vmem:[%s1 + $0x38] sm:$0xf]
        %v270 = vld [vmem:[%s1 + $0x3c] sm:$0xf]
        %v271 = vld [vmem:[%s2] sm:$0x1]
        %v273 = vlaneseq
        %v274 = vshrl.u32 %v273, 7
        %v275 = vsub.s32 0, %v274
        %v276 = vrot.slane %v271, %v275
        %v310 = vunpack.c.l.b16 %v223
        %v311 = vunpack.c.l.b16 %v224
        %v312 = vunpack.c.l.b16 %v225
        %v313 = vunpack.c.l.b16 %v226
        %v314 = vunpack.c.l.b16 %v227
        %v315 = vunpack.c.l.b16 %v228
        %v316 = vunpack.c.l.b16 %v229
        %v317 = vunpack.c.l.b16 %v230
        %v318 = vunpack.c.l.b16 %v231
        %v319 = vunpack.c.l.b16 %v232
        %v320 = vunpack.c.l.b16 %v233
        %v321 = vunpack.c.l.b16 %v234
        %v322 = vunpack.c.l.b16 %v235
        %v323 = vunpack.c.l.b16 %v236
        %v324 = vunpack.c.l.b16 %v237
        %v325 = vunpack.c.l.b16 %v238
        %v326 = vunpack.c.l.b16 %v239
        %v327 = vunpack.c.l.b16 %v240
        %v328 = vunpack.c.l.b16 %v241
        %v329 = vunpack.c.l.b16 %v242
        %v330 = vunpack.c.l.b16 %v243
        %v331 = vunpack.c.l.b16 %v244
        %v332 = vunpack.c.l.b16 %v245
        %v333 = vunpack.c.l.b16 %v246
        %v334 = vunpack.c.l.b16 %v247
        %v335 = vunpack.c.l.b16 %v248
        %v336 = vunpack.c.l.b16 %v249
        %v337 = vunpack.c.l.b16 %v250
        %v338 = vunpack.c.l.b16 %v251
        %v339 = vunpack.c.l.b16 %v252
        %v340 = vunpack.c.l.b16 %v253
        %v341 = vunpack.c.l.b16 %v254
        %v342 = vpack.c.b16 %v311, %v310
        %v343 = vpack.c.b16 %v313, %v312
        %v344 = vpack.c.b16 %v315, %v314
        %v345 = vpack.c.b16 %v317, %v316
        %v346 = vpack.c.b16 %v319, %v318
        %v347 = vpack.c.b16 %v321, %v320
        %v348 = vpack.c.b16 %v323, %v322
        %v349 = vpack.c.b16 %v325, %v324
        %v350 = vpack.c.b16 %v327, %v326
        %v351 = vpack.c.b16 %v329, %v328
        %v352 = vpack.c.b16 %v331, %v330
        %v353 = vpack.c.b16 %v333, %v332
        %v354 = vpack.c.b16 %v335, %v334
        %v355 = vpack.c.b16 %v337, %v336
        %v356 = vpack.c.b16 %v339, %v338
        %v357 = vpack.c.b16 %v341, %v340
        %v390 = vunpack.c.l.b16 %v255
        %v391 = vunpack.c.l.b16 %v256
        %v392 = vunpack.c.l.b16 %v257
        %v393 = vunpack.c.l.b16 %v258
        %v394 = vunpack.c.l.b16 %v259
        %v395 = vunpack.c.l.b16 %v260
        %v396 = vunpack.c.l.b16 %v261
        %v397 = vunpack.c.l.b16 %v262
        %v398 = vunpack.c.l.b16 %v263
        %v399 = vunpack.c.l.b16 %v264
        %v400 = vunpack.c.l.b16 %v265
        %v401 = vunpack.c.l.b16 %v266
        %v402 = vunpack.c.l.b16 %v267
        %v403 = vunpack.c.l.b16 %v268
        %v404 = vunpack.c.l.b16 %v269
        %v405 = vunpack.c.l.b16 %v270
        %v406 = vpack.c.b16 %v391, %v390
        %v407 = vpack.c.b16 %v393, %v392
        %v408 = vpack.c.b16 %v395, %v394
        %v409 = vpack.c.b16 %v397, %v396
        %v410 = vpack.c.b16 %v399, %v398
        %v411 = vpack.c.b16 %v401, %v400
        %v412 = vpack.c.b16 %v403, %v402
        %v413 = vpack.c.b16 %v405, %v404
        %422 = vmatprep.subr.bf16.mxu0 0
        %423 = vmatpush1.bf16.msra.mxu0 %v413
        %424 = vmatprep.subr.bf16.mxu0 0
        %425 = vmatpush1.bf16.msra.mxu0 %v412
        %426 = vmatprep.subr.bf16.mxu0 0
        %427 = vmatpush1.bf16.msra.mxu0 %v411
        %428 = vmatprep.subr.bf16.mxu0 0
        %429 = vmatpush1.bf16.msra.mxu0 %v410
        %430 = vmatprep.subr.bf16.mxu0 0
        %431 = vmatpush1.bf16.msra.mxu0 %v409
        %432 = vmatprep.subr.bf16.mxu0 0
        %433 = vmatpush1.bf16.msra.mxu0 %v408
        %434 = vmatprep.subr.bf16.mxu0 0
        %435 = vmatpush1.bf16.msra.mxu0 %v407
        %436 = vmatprep.subr.bf16.mxu0 0
        %437 = vmatpush1.bf16.msra.mxu0 %v406
        %438 = vmatprep.subr.bf16.mxu0 0
        %439 = vmatpush2.bf16.msra.mxu0 0
        %440 = vmatprep.subr.bf16.mxu0 0
        %441 = vmatpush2.bf16.msra.mxu0 0
        %442 = vmatprep.subr.bf16.mxu0 0
        %443 = vmatpush2.bf16.msra.mxu0 0
        %444 = vmatprep.subr.bf16.mxu0 0
        %445 = vmatpush2.bf16.msra.mxu0 0
        %446 = vmatprep.subr.bf16.mxu0 0
        %447 = vmatpush2.bf16.msra.mxu0 0
        %448 = vmatprep.subr.bf16.mxu0 0
        %449 = vmatpush2.bf16.msra.mxu0 0
        %450 = vmatprep.subr.bf16.mxu0 0
        %451 = vmatpush2.bf16.msra.mxu0 0
        %452 = vmatprep.subr.bf16.mxu0 0
        %453 = vmatpush2.bf16.msra.mxu0 0
        %454 = vmatprep.mubr.bf16.mxu0 0
        %455 = vmatmul.mubr.bf16.gmra.mxu0 %v342
        %v456 = vpop.f32.mrf.mxu0
        %v457 = vadd.f32 %v276, %v456
        %v458 = vpop.f32.mrf.mxu0
        %v459 = vpop.f32.mrf.mxu0
        %v460 = vadd.f32 %v276, %v459
        %v461 = vpop.f32.mrf.mxu0
        %462 = vmatprep.mubr.bf16.mxu0 0
        %463 = vmatmul.mubr.bf16.gmra.mxu0 %v343
        %v464 = vpop.f32.mrf.mxu0
        %v465 = vadd.f32 %v276, %v464
        %v466 = vpop.f32.mrf.mxu0
        %v467 = vpop.f32.mrf.mxu0
        %v468 = vadd.f32 %v276, %v467
        %v469 = vpop.f32.mrf.mxu0
        %470 = vmatprep.mubr.bf16.mxu0 0
        %471 = vmatmul.mubr.bf16.gmra.mxu0 %v344
        %v472 = vpop.f32.mrf.mxu0
        %v473 = vadd.f32 %v276, %v472
        %v474 = vpop.f32.mrf.mxu0
        %v475 = vpop.f32.mrf.mxu0
        %v476 = vadd.f32 %v276, %v475
        %v477 = vpop.f32.mrf.mxu0
        %478 = vmatprep.mubr.bf16.mxu0 0
        %479 = vmatmul.mubr.bf16.gmra.mxu0 %v345
        %v480 = vpop.f32.mrf.mxu0
        %v481 = vadd.f32 %v276, %v480
        %v482 = vpop.f32.mrf.mxu0
        %v483 = vpop.f32.mrf.mxu0
        %v484 = vadd.f32 %v276, %v483
        %v485 = vpop.f32.mrf.mxu0
        %486 = vmatprep.mubr.bf16.mxu0 0
        %487 = vmatmul.mubr.bf16.gmra.mxu0 %v346
        %v488 = vpop.f32.mrf.mxu0
        %v489 = vadd.f32 %v276, %v488
        %v490 = vpop.f32.mrf.mxu0
        %v491 = vpop.f32.mrf.mxu0
        %v492 = vadd.f32 %v276, %v491
        %v493 = vpop.f32.mrf.mxu0
        %494 = vmatprep.mubr.bf16.mxu0 0
        %495 = vmatmul.mubr.bf16.gmra.mxu0 %v347
        %v496 = vpop.f32.mrf.mxu0
        %v497 = vadd.f32 %v276, %v496
        %v498 = vpop.f32.mrf.mxu0
        %v499 = vpop.f32.mrf.mxu0
        %v500 = vadd.f32 %v276, %v499
        %v501 = vpop.f32.mrf.mxu0
        %502 = vmatprep.mubr.bf16.mxu0 0
        %503 = vmatmul.mubr.bf16.gmra.mxu0 %v348
        %v504 = vpop.f32.mrf.mxu0
        %v505 = vadd.f32 %v276, %v504
        %v506 = vpop.f32.mrf.mxu0
        %v507 = vpop.f32.mrf.mxu0
        %v508 = vadd.f32 %v276, %v507
        %v509 = vpop.f32.mrf.mxu0
        %510 = vmatprep.mubr.bf16.mxu0 0
        %511 = vmatmul.mubr.bf16.gmra.mxu0 %v349
        %v512 = vpop.f32.mrf.mxu0
        %v513 = vadd.f32 %v276, %v512
        %v514 = vpop.f32.mrf.mxu0
        %v515 = vpop.f32.mrf.mxu0
        %v516 = vadd.f32 %v276, %v515
        %v517 = vpop.f32.mrf.mxu0
        %518 = vmatprep.mubr.bf16.mxu0 0
        %519 = vmatmul.mubr.bf16.gmra.mxu0 %v350
        %v520 = vpop.f32.mrf.mxu0
        %v521 = vadd.f32 %v276, %v520
        %v522 = vpop.f32.mrf.mxu0
        %v523 = vpop.f32.mrf.mxu0
        %v524 = vadd.f32 %v276, %v523
        %v525 = vpop.f32.mrf.mxu0
        %526 = vmatprep.mubr.bf16.mxu0 0
        %527 = vmatmul.mubr.bf16.gmra.mxu0 %v351
        %v528 = vpop.f32.mrf.mxu0
        %v529 = vadd.f32 %v276, %v528
        %v530 = vpop.f32.mrf.mxu0
        %v531 = vpop.f32.mrf.mxu0
        %v532 = vadd.f32 %v276, %v531
        %v533 = vpop.f32.mrf.mxu0
        %534 = vmatprep.mubr.bf16.mxu0 0
        %535 = vmatmul.mubr.bf16.gmra.mxu0 %v352
        %v536 = vpop.f32.mrf.mxu0
        %v537 = vadd.f32 %v276, %v536
        %v538 = vpop.f32.mrf.mxu0
        %v539 = vpop.f32.mrf.mxu0
        %v540 = vadd.f32 %v276, %v539
        %v541 = vpop.f32.mrf.mxu0
        %542 = vmatprep.mubr.bf16.mxu0 0
        %543 = vmatmul.mubr.bf16.gmra.mxu0 %v353
        %v544 = vpop.f32.mrf.mxu0
        %v545 = vadd.f32 %v276, %v544
        %v546 = vpop.f32.mrf.mxu0
        %v547 = vpop.f32.mrf.mxu0
        %v548 = vadd.f32 %v276, %v547
        %v549 = vpop.f32.mrf.mxu0
        %550 = vmatprep.mubr.bf16.mxu0 0
        %551 = vmatmul.mubr.bf16.gmra.mxu0 %v354
        %v552 = vpop.f32.mrf.mxu0
        %v553 = vadd.f32 %v276, %v552
        %v554 = vpop.f32.mrf.mxu0
        %v555 = vpop.f32.mrf.mxu0
        %v556 = vadd.f32 %v276, %v555
        %v557 = vpop.f32.mrf.mxu0
        %558 = vmatprep.mubr.bf16.mxu0 0
        %559 = vmatmul.mubr.bf16.gmra.mxu0 %v355
        %v560 = vpop.f32.mrf.mxu0
        %v561 = vadd.f32 %v276, %v560
        %v562 = vpop.f32.mrf.mxu0
        %v563 = vpop.f32.mrf.mxu0
        %v564 = vadd.f32 %v276, %v563
        %v565 = vpop.f32.mrf.mxu0
        %566 = vmatprep.mubr.bf16.mxu0 0
        %567 = vmatmul.mubr.bf16.gmra.mxu0 %v356
        %v568 = vpop.f32.mrf.mxu0
        %v569 = vadd.f32 %v276, %v568
        %v570 = vpop.f32.mrf.mxu0
        %v571 = vpop.f32.mrf.mxu0
        %v572 = vadd.f32 %v276, %v571
        %v573 = vpop.f32.mrf.mxu0
        %574 = vmatprep.mubr.bf16.mxu0 0
        %575 = vmatmul.mubr.bf16.gmra.mxu0 %v357
        %v576 = vpop.f32.mrf.mxu0
        %v577 = vadd.f32 %v276, %v576
        %v578 = vpop.f32.mrf.mxu0
        %v579 = vpop.f32.mrf.mxu0
        %v580 = vadd.f32 %v276, %v579
        %v581 = vpop.f32.mrf.mxu0
        %582 = vdwg.mxu0
        %v583 = vxor.u32 %v457, 2147483648
        %v584 = vxor.u32 %v460, 2147483648
        %v585 = vxor.u32 %v465, 2147483648
        %v586 = vxor.u32 %v468, 2147483648
        %v587 = vxor.u32 %v473, 2147483648
        %v588 = vxor.u32 %v476, 2147483648
        %v589 = vxor.u32 %v481, 2147483648
        %v590 = vxor.u32 %v484, 2147483648
        %v591 = vxor.u32 %v489, 2147483648
        %v592 = vxor.u32 %v492, 2147483648
        %v593 = vxor.u32 %v497, 2147483648
        %v594 = vxor.u32 %v500, 2147483648
        %v595 = vxor.u32 %v505, 2147483648
        %v596 = vxor.u32 %v508, 2147483648
        %v597 = vxor.u32 %v513, 2147483648
        %v598 = vxor.u32 %v516, 2147483648
        %v599 = vxor.u32 %v521, 2147483648
        %v600 = vxor.u32 %v524, 2147483648
        %v601 = vxor.u32 %v529, 2147483648
        %v602 = vxor.u32 %v532, 2147483648
        %v603 = vxor.u32 %v537, 2147483648
        %v604 = vxor.u32 %v540, 2147483648
        %v605 = vxor.u32 %v545, 2147483648
        %v606 = vxor.u32 %v548, 2147483648
        %v607 = vxor.u32 %v553, 2147483648
        %v608 = vxor.u32 %v556, 2147483648
        %v609 = vxor.u32 %v561, 2147483648
        %v610 = vxor.u32 %v564, 2147483648
        %v611 = vxor.u32 %v569, 2147483648
        %v612 = vxor.u32 %v572, 2147483648
        %v613 = vxor.u32 %v577, 2147483648
        %v614 = vxor.u32 %v580, 2147483648
        %v615 = vmul.f32 %v583, 1.442695
        %v616 = vpow.pop %v615
        %v617 = vmul.f32 %v584, 1.442695
        %v618 = vpow.pop %v617
        %v619 = vmul.f32 %v585, 1.442695
        %v620 = vpow.pop %v619
        %v621 = vmul.f32 %v586, 1.442695
        %v622 = vpow.pop %v621
        %v623 = vmul.f32 %v587, 1.442695
        %v624 = vpow.pop %v623
        %v625 = vmul.f32 %v588, 1.442695
        %v626 = vpow.pop %v625
        %v627 = vmul.f32 %v589, 1.442695
        %v628 = vpow.pop %v627
        %v629 = vmul.f32 %v590, 1.442695
        %v630 = vpow.pop %v629
        %v631 = vmul.f32 %v591, 1.442695
        %v632 = vpow.pop %v631
        %v633 = vmul.f32 %v592, 1.442695
        %v634 = vpow.pop %v633
        %v635 = vmul.f32 %v593, 1.442695
        %v636 = vpow.pop %v635
        %v637 = vmul.f32 %v594, 1.442695
        %v638 = vpow.pop %v637
        %v639 = vmul.f32 %v595, 1.442695
        %v640 = vpow.pop %v639
        %v641 = vmul.f32 %v596, 1.442695
        %v642 = vpow.pop %v641
        %v643 = vmul.f32 %v597, 1.442695
        %v644 = vpow.pop %v643
        %v645 = vmul.f32 %v598, 1.442695
        %v646 = vpow.pop %v645
        %v647 = vmul.f32 %v599, 1.442695
        %v648 = vpow.pop %v647
        %v649 = vmul.f32 %v600, 1.442695
        %v650 = vpow.pop %v649
        %v651 = vmul.f32 %v601, 1.442695
        %v652 = vpow.pop %v651
        %v653 = vmul.f32 %v602, 1.442695
        %v654 = vpow.pop %v653
        %v655 = vmul.f32 %v603, 1.442695
        %v656 = vpow.pop %v655
        %v657 = vmul.f32 %v604, 1.442695
        %v658 = vpow.pop %v657
        %v659 = vmul.f32 %v605, 1.442695
        %v660 = vpow.pop %v659
        %v661 = vmul.f32 %v606, 1.442695
        %v662 = vpow.pop %v661
        %v663 = vmul.f32 %v607, 1.442695
        %v664 = vpow.pop %v663
        %v665 = vmul.f32 %v608, 1.442695
        %v666 = vpow.pop %v665
        %v667 = vmul.f32 %v609, 1.442695
        %v668 = vpow.pop %v667
        %v669 = vmul.f32 %v610, 1.442695
        %v670 = vpow.pop %v669
        %v671 = vmul.f32 %v611, 1.442695
        %v672 = vpow.pop %v671
        %v673 = vmul.f32 %v612, 1.442695
        %v674 = vpow.pop %v673
        %v675 = vmul.f32 %v613, 1.442695
        %v676 = vpow.pop %v675
        %v677 = vmul.f32 %v614, 1.442695
        %v678 = vpow.pop %v677
        %v679 = vadd.f32 %v616, 1.0
        %v680 = vadd.f32 %v618, 1.0
        %v681 = vadd.f32 %v620, 1.0
        %v682 = vadd.f32 %v622, 1.0
        %v683 = vadd.f32 %v624, 1.0
        %v684 = vadd.f32 %v626, 1.0
        %v685 = vadd.f32 %v628, 1.0
        %v686 = vadd.f32 %v630, 1.0
        %v687 = vadd.f32 %v632, 1.0
        %v688 = vadd.f32 %v634, 1.0
        %v689 = vadd.f32 %v636, 1.0
        %v690 = vadd.f32 %v638, 1.0
        %v691 = vadd.f32 %v640, 1.0
        %v692 = vadd.f32 %v642, 1.0
        %v693 = vadd.f32 %v644, 1.0
        %v694 = vadd.f32 %v646, 1.0
        %v695 = vadd.f32 %v648, 1.0
        %v696 = vadd.f32 %v650, 1.0
        %v697 = vadd.f32 %v652, 1.0
        %v698 = vadd.f32 %v654, 1.0
        %v699 = vadd.f32 %v656, 1.0
        %v700 = vadd.f32 %v658, 1.0
        %v701 = vadd.f32 %v660, 1.0
        %v702 = vadd.f32 %v662, 1.0
        %v703 = vadd.f32 %v664, 1.0
        %v704 = vadd.f32 %v666, 1.0
        %v705 = vadd.f32 %v668, 1.0
        %v706 = vadd.f32 %v670, 1.0
        %v707 = vadd.f32 %v672, 1.0
        %v708 = vadd.f32 %v674, 1.0
        %v709 = vadd.f32 %v676, 1.0
        %v710 = vadd.f32 %v678, 1.0
        %v711 = vrcp.pop %v679
        %v712 = vmul.f32 1.0, %v711
        %v713 = vrcp.pop %v680
        %v714 = vmul.f32 1.0, %v713
        %v715 = vrcp.pop %v681
        %v716 = vmul.f32 1.0, %v715
        %v717 = vrcp.pop %v682
        %v718 = vmul.f32 1.0, %v717
        %v719 = vrcp.pop %v683
        %v720 = vmul.f32 1.0, %v719
        %v721 = vrcp.pop %v684
        %v722 = vmul.f32 1.0, %v721
        %v723 = vrcp.pop %v685
        %v724 = vmul.f32 1.0, %v723
        %v725 = vrcp.pop %v686
        %v726 = vmul.f32 1.0, %v725
        %v727 = vrcp.pop %v687
        %v728 = vmul.f32 1.0, %v727
        %v729 = vrcp.pop %v688
        %v730 = vmul.f32 1.0, %v729
        %v731 = vrcp.pop %v689
        %v732 = vmul.f32 1.0, %v731
        %v733 = vrcp.pop %v690
        %v734 = vmul.f32 1.0, %v733
        %v735 = vrcp.pop %v691
        %v736 = vmul.f32 1.0, %v735
        %v737 = vrcp.pop %v692
        %v738 = vmul.f32 1.0, %v737
        %v739 = vrcp.pop %v693
        %v740 = vmul.f32 1.0, %v739
        %v741 = vrcp.pop %v694
        %v742 = vmul.f32 1.0, %v741
        %v743 = vrcp.pop %v695
        %v744 = vmul.f32 1.0, %v743
        %v745 = vrcp.pop %v696
        %v746 = vmul.f32 1.0, %v745
        %v747 = vrcp.pop %v697
        %v748 = vmul.f32 1.0, %v747
        %v749 = vrcp.pop %v698
        %v750 = vmul.f32 1.0, %v749
        %v751 = vrcp.pop %v699
        %v752 = vmul.f32 1.0, %v751
        %v753 = vrcp.pop %v700
        %v754 = vmul.f32 1.0, %v753
        %v755 = vrcp.pop %v701
        %v756 = vmul.f32 1.0, %v755
        %v757 = vrcp.pop %v702
        %v758 = vmul.f32 1.0, %v757
        %v759 = vrcp.pop %v703
        %v760 = vmul.f32 1.0, %v759
        %v761 = vrcp.pop %v704
        %v762 = vmul.f32 1.0, %v761
        %v763 = vrcp.pop %v705
        %v764 = vmul.f32 1.0, %v763
        %v765 = vrcp.pop %v706
        %v766 = vmul.f32 1.0, %v765
        %v767 = vrcp.pop %v707
        %v768 = vmul.f32 1.0, %v767
        %v769 = vrcp.pop %v708
        %v770 = vmul.f32 1.0, %v769
        %v771 = vrcp.pop %v709
        %v772 = vmul.f32 1.0, %v771
        %v773 = vrcp.pop %v710
        %v774 = vmul.f32 1.0, %v773
        %v775 = vmul.f32 %v457, %v712
        %v776 = vmul.f32 %v460, %v714
        %v777 = vmul.f32 %v465, %v716
        %v778 = vmul.f32 %v468, %v718
        %v779 = vmul.f32 %v473, %v720
        %v780 = vmul.f32 %v476, %v722
        %v781 = vmul.f32 %v481, %v724
        %v782 = vmul.f32 %v484, %v726
        %v783 = vmul.f32 %v489, %v728
        %v784 = vmul.f32 %v492, %v730
        %v785 = vmul.f32 %v497, %v732
        %v786 = vmul.f32 %v500, %v734
        %v787 = vmul.f32 %v505, %v736
        %v788 = vmul.f32 %v508, %v738
        %v789 = vmul.f32 %v513, %v740
        %v790 = vmul.f32 %v516, %v742
        %v791 = vmul.f32 %v521, %v744
        %v792 = vmul.f32 %v524, %v746
        %v793 = vmul.f32 %v529, %v748
        %v794 = vmul.f32 %v532, %v750
        %v795 = vmul.f32 %v537, %v752
        %v796 = vmul.f32 %v540, %v754
        %v797 = vmul.f32 %v545, %v756
        %v798 = vmul.f32 %v548, %v758
        %v799 = vmul.f32 %v553, %v760
        %v800 = vmul.f32 %v556, %v762
        %v801 = vmul.f32 %v561, %v764
        %v802 = vmul.f32 %v564, %v766
        %v803 = vmul.f32 %v569, %v768
        %v804 = vmul.f32 %v572, %v770
        %v805 = vmul.f32 %v577, %v772
        %v806 = vmul.f32 %v580, %v774
        %v807 = vadd.f32 %v775, %v776
        %v808 = vadd.f32 %v807, %v777
        %v809 = vadd.f32 %v808, %v778
        %v810 = vadd.f32 %v809, %v779
        %v811 = vadd.f32 %v810, %v780
        %v812 = vadd.f32 %v811, %v781
        %v813 = vadd.f32 %v812, %v782
        %v814 = vadd.f32 %v813, %v783
        %v815 = vadd.f32 %v814, %v784
        %v816 = vadd.f32 %v815, %v785
        %v817 = vadd.f32 %v816, %v786
        %v818 = vadd.f32 %v817, %v787
        %v819 = vadd.f32 %v818, %v788
        %v820 = vadd.f32 %v819, %v789
        %v821 = vadd.f32 %v820, %v790
        %v822 = vadd.f32 %v821, %v791
        %v823 = vadd.f32 %v822, %v792
        %v824 = vadd.f32 %v823, %v793
        %v825 = vadd.f32 %v824, %v794
        %v826 = vadd.f32 %v825, %v795
        %v827 = vadd.f32 %v826, %v796
        %v828 = vadd.f32 %v827, %v797
        %v829 = vadd.f32 %v828, %v798
        %v830 = vadd.f32 %v829, %v799
        %v831 = vadd.f32 %v830, %v800
        %v832 = vadd.f32 %v831, %v801
        %v833 = vadd.f32 %v832, %v802
        %v834 = vadd.f32 %v833, %v803
        %v835 = vadd.f32 %v834, %v804
        %v836 = vadd.f32 %v835, %v805
        %v837 = vadd.f32 %v836, %v806
        %v838 = vrot.slane %v837, 4
        %v839 = vadd.f32 %v837, %v838
        %v840 = vrot.slane %v839, 2
        %v841 = vadd.f32 %v839, %v840
        %v842 = vrot.slane %v841, 1
        %v843 = vadd.f32 %v841, %v842
        %v844 = vrcp.pop 256.0
        %v845 = vmul.f32 %v843, %v844
        %v846 = vpack.c.bf16 %v845, %v845
        %v847 = vld [vmem:[%s3] sm:$0xf]
        %v848 = vld [vmem:[%s3 + $0x4] sm:$0xf]
        %v849 = vld [vmem:[%s3 + $0x8] sm:$0xf]
        %v850 = vld [vmem:[%s3 + $0xc] sm:$0xf]
        %v851 = vld [vmem:[%s3 + $0x10] sm:$0xf]
        %v852 = vld [vmem:[%s3 + $0x14] sm:$0xf]
        %v853 = vld [vmem:[%s3 + $0x18] sm:$0xf]
        %v854 = vld [vmem:[%s3 + $0x1c] sm:$0xf]
        %v855 = vld [vmem:[%s3 + $0x20] sm:$0xf]
        %v856 = vld [vmem:[%s3 + $0x24] sm:$0xf]
        %v857 = vld [vmem:[%s3 + $0x28] sm:$0xf]
        %v858 = vld [vmem:[%s3 + $0x2c] sm:$0xf]
        %v859 = vld [vmem:[%s3 + $0x30] sm:$0xf]
        %v860 = vld [vmem:[%s3 + $0x34] sm:$0xf]
        %v861 = vld [vmem:[%s3 + $0x38] sm:$0xf]
        %v862 = vld [vmem:[%s3 + $0x3c] sm:$0xf]
        %v863 = vld [vmem:[%s4] sm:$0x1]
        %v880 = vunpack.c.l.b16 %v847
        %v881 = vunpack.c.l.b16 %v848
        %v882 = vunpack.c.l.b16 %v849
        %v883 = vunpack.c.l.b16 %v850
        %v884 = vunpack.c.l.b16 %v851
        %v885 = vunpack.c.l.b16 %v852
        %v886 = vunpack.c.l.b16 %v853
        %v887 = vunpack.c.l.b16 %v854
        %v888 = vunpack.c.l.b16 %v855
        %v889 = vunpack.c.l.b16 %v856
        %v890 = vunpack.c.l.b16 %v857
        %v891 = vunpack.c.l.b16 %v858
        %v892 = vunpack.c.l.b16 %v859
        %v893 = vunpack.c.l.b16 %v860
        %v894 = vunpack.c.l.b16 %v861
        %v895 = vunpack.c.l.b16 %v862
        %v896 = vpack.c.b16 %v881, %v880
        %v897 = vpack.c.b16 %v883, %v882
        %v898 = vpack.c.b16 %v885, %v884
        %v899 = vpack.c.b16 %v887, %v886
        %v900 = vpack.c.b16 %v889, %v888
        %v901 = vpack.c.b16 %v891, %v890
        %v902 = vpack.c.b16 %v893, %v892
        %v903 = vpack.c.b16 %v895, %v894
        %912 = vmatprep.subr.bf16.mxu0 0
        %913 = vmatpush1.bf16.msra.mxu0 %v903
        %914 = vmatprep.subr.bf16.mxu0 0
        %915 = vmatpush1.bf16.msra.mxu0 %v902
        %916 = vmatprep.subr.bf16.mxu0 0
        %917 = vmatpush1.bf16.msra.mxu0 %v901
        %918 = vmatprep.subr.bf16.mxu0 0
        %919 = vmatpush1.bf16.msra.mxu0 %v900
        %920 = vmatprep.subr.bf16.mxu0 0
        %921 = vmatpush1.bf16.msra.mxu0 %v899
        %922 = vmatprep.subr.bf16.mxu0 0
        %923 = vmatpush1.bf16.msra.mxu0 %v898
        %924 = vmatprep.subr.bf16.mxu0 0
        %925 = vmatpush1.bf16.msra.mxu0 %v897
        %926 = vmatprep.subr.bf16.mxu0 0
        %927 = vmatpush1.bf16.msra.mxu0 %v896
        %928 = vmatprep.subr.bf16.mxu0 0
        %929 = vmatpush2.bf16.msra.mxu0 0
        %930 = vmatprep.subr.bf16.mxu0 0
        %931 = vmatpush2.bf16.msra.mxu0 0
        %932 = vmatprep.subr.bf16.mxu0 0
        %933 = vmatpush2.bf16.msra.mxu0 0
        %934 = vmatprep.subr.bf16.mxu0 0
        %935 = vmatpush2.bf16.msra.mxu0 0
        %936 = vmatprep.subr.bf16.mxu0 0
        %937 = vmatpush2.bf16.msra.mxu0 0
        %938 = vmatprep.subr.bf16.mxu0 0
        %939 = vmatpush2.bf16.msra.mxu0 0
        %940 = vmatprep.subr.bf16.mxu0 0
        %941 = vmatpush2.bf16.msra.mxu0 0
        %942 = vmatprep.subr.bf16.mxu0 0
        %943 = vmatpush2.bf16.msra.mxu0 0
        %944 = vmatprep.mubr.bf16.mxu0 0
        %945 = vmatmul.mubr.bf16.gmra.mxu0 %v846
        %v946 = vpop.f32.mrf.mxu0
        %v947 = vadd.f32 %v863, %v946
        %v948 = vpop.f32.mrf.mxu0
        %v949 = vpop.f32.mrf.mxu0
        %v950 = vpop.f32.mrf.mxu0
        %951 = vdwg.mxu0
        %952 = vst [vmem:[%s216] sm:$0x1] %v947
        %s953 = sand.u32 %s137, 1
        %s954 = scalar_lea.sflag [#allocation3], %s953
        %s955 = sand.u32 %s137, 1
        %s956 = scalar_lea.vmem [#allocation2], %s955
        // Predicated region
        $region41: #{detector_forward.5} parent=39 // pred_check
          %p957 = pneg %p147
        $region42: #{detector_forward.5} parent=39 // pred_check_branch
          %959 = sbr.rel (%p957) target = $region44
        $region43: #{detector_forward.5} parent=39 // pred_region
          %s961 = ssub.s32 16, 16
          %962 = vsyncadd %s954, %s961
          %s963 = smul.addr %s19, 16
          %s964 = scalar_lea.hbm %s5, %s963
          %s966 = sshll.u32 %s956, 4
          %s967 = int_to_ptr.vmem [resolvable:$true] %s966
          %969 = dma.vmem_to_hbm [thread:$0]  %s967, 16, %s964, %s954
        $region44: #{detector_forward.5} parent=39 // pred_fallthru
          _
      $region40: #{detector_forward.5} parent=5 // pred_fallthru
        _
      %p970 = scmp.le.s32.totalorder 2, %s14
      // Predicated region
      $region45: #{detector_forward.5} parent=5 // pred_check
        %p971 = pneg %p970
      $region46: #{detector_forward.5} parent=5 // pred_check_branch
        %973 = sbr.rel (%p971) target = $region48
      $region47: #{detector_forward.5} parent=5 // pred_region
        %s974 = ssub.s32 %s14, 2
        // Predicated region
        $region49: #{detector_forward.5} parent=47 // pred_check
          %p975 = pneg %p153
        $region50: #{detector_forward.5} parent=47 // pred_check_branch
          %977 = sbr.rel (%p975) target = $region52
        $region51: #{detector_forward.5} parent=47 // pred_region
          %s978 = sand.u32 %s138, 1
          %s979 = scalar_lea.sflag [#allocation3], %s978
          %s980 = sand.u32 %s138, 1
          %s981 = scalar_lea.vmem [#allocation2], %s980
          %982 = dma.done %s979, 16
        $region52: #{detector_forward.5} parent=47 // pred_fallthru
          _
      $region48: #{detector_forward.5} parent=5 // pred_fallthru
        _
    $region6: #{detector_forward.5} parent=1 // loop_footer
      %s18 = sadd.s32 1, %s14
    $region7: #{detector_forward.5} parent=1 // loop_footer_branch
      %13 = sbr.rel target = $region3
    $region8: #{detector_forward.5} parent=1 // loop_exit
      _
    %983 = vsyncpa [#allocation3], 1
    %s984 = scalar_lea.sflag [#allocation3], 1
    %985 = vsyncpa %s984, 1

// kernel: detector_forward.4
$region0: #{detector_forward.4}
  #allocation0 [shape = 'u32[]', space=smem, size = 0x4, offset = 0x4, fixed_abs, tag = 'smem constant byte address 0x4 - core index']
  #allocation1 [shape = 'u32[144,128]{1,0:T(1,128)}', space=vmem, size = 0x12000, scoped, tag = 'internal scratch']
  #allocation2 [shape = 'f32[288,256]{1,0:T(8,128)}', space=vmem, size = 0x48000, scoped, tag = 'scratch operand']
  %s0 = inlined_call_operand.vmem [shape: bf16[2,16,16,128], index: 0, kind: input, shape index: {}]
  %s1 = inlined_call_operand.vmem [shape: bf16[128,256], index: 1, kind: input, shape index: {}]
  %s2 = inlined_call_operand.vmem [shape: f32[1,256], index: 2, kind: input, shape index: {}]
  %s3 = inlined_call_operand.vmem [shape: f32[9,256], index: 3, kind: input, shape index: {}]
  %s4 = inlined_call_operand.vmem [shape: f32[1,256], index: 4, kind: input, shape index: {}]
  %s5 = inlined_call_operand.vmem [shape: f32[256,128], index: 5, kind: input, shape index: {}]
  %s6 = inlined_call_operand.vmem [shape: f32[1,128], index: 6, kind: input, shape index: {}]
  %s7 = inlined_call_operand.vmem [shape: f32[128,256], index: 7, kind: input, shape index: {}]
  %s8 = inlined_call_operand.vmem [shape: f32[1,256], index: 8, kind: input, shape index: {}]
  %s9 = inlined_call_operand.vmem [shape: bf16[256,128], index: 9, kind: input, shape index: {}]
  %s10 = inlined_call_operand.vmem [shape: f32[1,128], index: 10, kind: input, shape index: {}]
  %s11 = inlined_call_operand.vmem [shape: bf16[2,16,16,128], index: 11, kind: output, shape index: {}]
  %s12 = sld [smem:[#allocation0]]
  $region77: #{detector_forward.4} parent=0
    _
  %s14 = ssub.s32 1, %s12
  %s15 = scalar_select 0, %s14, %s12
  loop: start=0, step=1, limit=4
  $region2: #{detector_forward.4} parent=0 // loop_pre_header
    _
  $region3: #{detector_forward.4} parent=0 // loop_header
    %s17 = sphi 0, %s21
    %p18 = scmp.ge.s32.totalorder %s17, 4
    %s27 = sphi 0, %s29
    %s30 = sphi 0, %s27
    %s31 = sphi 0, %s30
    %s47 = sphi 0, %s31
    %s51 = sphi 0, %s51
    %s53 = sphi 0, %s51
    %s54 = sphi 0, %s53
    %s68 = sphi 0, %s54
    %s72 = sphi 0, %s72
    %s74 = sphi 0, %s72
    %s75 = sphi 0, %s74
    %s89 = sphi 0, %s75
    %s93 = sphi 0, %s93
    %s95 = sphi 0, %s93
    %s96 = sphi 0, %s95
    %s110 = sphi 0, %s96
    %s114 = sphi 0, %s114
    %s116 = sphi 0, %s114
    %s117 = sphi 0, %s116
    %s131 = sphi 0, %s117
    %s135 = sphi 0, %s135
    %s137 = sphi 0, %s135
    %s138 = sphi 0, %s137
    %s152 = sphi 0, %s138
    %s156 = sphi 0, %s156
    %s158 = sphi 0, %s156
    %s159 = sphi 0, %s158
    %s173 = sphi 0, %s159
    %s177 = sphi 0, %s177
    %s179 = sphi 0, %s177
    %s180 = sphi 0, %s179
    %s194 = sphi 0, %s180
    %s198 = sphi 0, %s198
    %s200 = sphi 0, %s198
    %s201 = sphi 0, %s200
    %s215 = sphi 0, %s201
    %s219 = sphi 0, %s219
    %s221 = sphi 0, %s219
    %s222 = sphi 0, %s221
    %s236 = sphi 0, %s222
    %s240 = sphi 0, %s240
    %s242 = sphi 0, %s240
    %s243 = sphi 0, %s242
    %s257 = sphi 0, %s243
    %s263 = sphi 0, %s265
    %s266 = sphi 0, %s263
    %s267 = sphi 0, %s266
    %s283 = sphi 0, %s267
  $region4: #{detector_forward.4} parent=0 // loop_header_branch
    %20 = sbr.rel (%p18) target = $region8
  $region5: #{detector_forward.4} parent=0 // loop_body
    %s22 = ssub.s32 %s17, 1
    %s23 = ssub.s32 %s17, 2
    %s24 = sadd.s32 %s17, 1
    %s25 = ssub.s32 %s17, %s24
    %p26 = scmp.eq.s32.totalorder %s25, 0
    %s28 = sadd.s32 %s27, 1
    %s29 = scalar_select %p26, %s27, %s28
    %p32 = pneg %p26
    %p33 = scmp.eq.s32.totalorder %s17, 1
    %p34 = por %p32, %p33
    %p35 = scmp.ne.s32.totalorder %s27, %s30
    %p36 = scmp.eq.s32.totalorder %s17, 0
    %p37 = por %p35, %p36
    %p38 = scmp.ne.s32.totalorder %s27, %s30
    %p39 = scmp.eq.s32.totalorder %s22, 1
    %p40 = por %p38, %p39
    %p41 = scmp.ne.s32.totalorder %s30, %s31
    %p42 = scmp.eq.s32.totalorder %s22, 0
    %p43 = por %p41, %p42
    %p44 = scmp.ne.s32.totalorder %s30, %s31
    %p45 = scmp.eq.s32.totalorder %s23, 1
    %p46 = por %p44, %p45
    %p48 = scmp.ne.s32.totalorder %s31, %s47
    %p49 = scmp.eq.s32.totalorder %s23, 0
    %p50 = por %p48, %p49
    %s52 = sadd.s32 %s51, 1
    %p55 = scmp.eq.s32.totalorder %s17, 1
    %p56 = scmp.ne.s32.totalorder %s51, %s53
    %p57 = scmp.eq.s32.totalorder %s17, 0
    %p58 = por %p56, %p57
    %p59 = scmp.ne.s32.totalorder %s51, %s53
    %p60 = scmp.eq.s32.totalorder %s22, 1
    %p61 = por %p59, %p60
    %p62 = scmp.ne.s32.totalorder %s53, %s54
    %p63 = scmp.eq.s32.totalorder %s22, 0
    %p64 = por %p62, %p63
    %p65 = scmp.ne.s32.totalorder %s53, %s54
    %p66 = scmp.eq.s32.totalorder %s23, 1
    %p67 = por %p65, %p66
    %p69 = scmp.ne.s32.totalorder %s54, %s68
    %p70 = scmp.eq.s32.totalorder %s23, 0
    %p71 = por %p69, %p70
    %s73 = sadd.s32 %s72, 1
    %p76 = scmp.eq.s32.totalorder %s17, 1
    %p77 = scmp.ne.s32.totalorder %s72, %s74
    %p78 = scmp.eq.s32.totalorder %s17, 0
    %p79 = por %p77, %p78
    %p80 = scmp.ne.s32.totalorder %s72, %s74
    %p81 = scmp.eq.s32.totalorder %s22, 1
    %p82 = por %p80, %p81
    %p83 = scmp.ne.s32.totalorder %s74, %s75
    %p84 = scmp.eq.s32.totalorder %s22, 0
    %p85 = por %p83, %p84
    %p86 = scmp.ne.s32.totalorder %s74, %s75
    %p87 = scmp.eq.s32.totalorder %s23, 1
    %p88 = por %p86, %p87
    %p90 = scmp.ne.s32.totalorder %s75, %s89
    %p91 = scmp.eq.s32.totalorder %s23, 0
    %p92 = por %p90, %p91
    %s94 = sadd.s32 %s93, 1
    %p97 = scmp.eq.s32.totalorder %s17, 1
    %p98 = scmp.ne.s32.totalorder %s93, %s95
    %p99 = scmp.eq.s32.totalorder %s17, 0
    %p100 = por %p98, %p99
    %p101 = scmp.ne.s32.totalorder %s93, %s95
    %p102 = scmp.eq.s32.totalorder %s22, 1
    %p103 = por %p101, %p102
    %p104 = scmp.ne.s32.totalorder %s95, %s96
    %p105 = scmp.eq.s32.totalorder %s22, 0
    %p106 = por %p104, %p105
    %p107 = scmp.ne.s32.totalorder %s95, %s96
    %p108 = scmp.eq.s32.totalorder %s23, 1
    %p109 = por %p107, %p108
    %p111 = scmp.ne.s32.totalorder %s96, %s110
    %p112 = scmp.eq.s32.totalorder %s23, 0
    %p113 = por %p111, %p112
    %s115 = sadd.s32 %s114, 1
    %p118 = scmp.eq.s32.totalorder %s17, 1
    %p119 = scmp.ne.s32.totalorder %s114, %s116
    %p120 = scmp.eq.s32.totalorder %s17, 0
    %p121 = por %p119, %p120
    %p122 = scmp.ne.s32.totalorder %s114, %s116
    %p123 = scmp.eq.s32.totalorder %s22, 1
    %p124 = por %p122, %p123
    %p125 = scmp.ne.s32.totalorder %s116, %s117
    %p126 = scmp.eq.s32.totalorder %s22, 0
    %p127 = por %p125, %p126
    %p128 = scmp.ne.s32.totalorder %s116, %s117
    %p129 = scmp.eq.s32.totalorder %s23, 1
    %p130 = por %p128, %p129
    %p132 = scmp.ne.s32.totalorder %s117, %s131
    %p133 = scmp.eq.s32.totalorder %s23, 0
    %p134 = por %p132, %p133
    %s136 = sadd.s32 %s135, 1
    %p139 = scmp.eq.s32.totalorder %s17, 1
    %p140 = scmp.ne.s32.totalorder %s135, %s137
    %p141 = scmp.eq.s32.totalorder %s17, 0
    %p142 = por %p140, %p141
    %p143 = scmp.ne.s32.totalorder %s135, %s137
    %p144 = scmp.eq.s32.totalorder %s22, 1
    %p145 = por %p143, %p144
    %p146 = scmp.ne.s32.totalorder %s137, %s138
    %p147 = scmp.eq.s32.totalorder %s22, 0
    %p148 = por %p146, %p147
    %p149 = scmp.ne.s32.totalorder %s137, %s138
    %p150 = scmp.eq.s32.totalorder %s23, 1
    %p151 = por %p149, %p150
    %p153 = scmp.ne.s32.totalorder %s138, %s152
    %p154 = scmp.eq.s32.totalorder %s23, 0
    %p155 = por %p153, %p154
    %s157 = sadd.s32 %s156, 1
    %p160 = scmp.eq.s32.totalorder %s17, 1
    %p161 = scmp.ne.s32.totalorder %s156, %s158
    %p162 = scmp.eq.s32.totalorder %s17, 0
    %p163 = por %p161, %p162
    %p164 = scmp.ne.s32.totalorder %s156, %s158
    %p165 = scmp.eq.s32.totalorder %s22, 1
    %p166 = por %p164, %p165
    %p167 = scmp.ne.s32.totalorder %s158, %s159
    %p168 = scmp.eq.s32.totalorder %s22, 0
    %p169 = por %p167, %p168
    %p170 = scmp.ne.s32.totalorder %s158, %s159
    %p171 = scmp.eq.s32.totalorder %s23, 1
    %p172 = por %p170, %p171
    %p174 = scmp.ne.s32.totalorder %s159, %s173
    %p175 = scmp.eq.s32.totalorder %s23, 0
    %p176 = por %p174, %p175
    %s178 = sadd.s32 %s177, 1
    %p181 = scmp.eq.s32.totalorder %s17, 1
    %p182 = scmp.ne.s32.totalorder %s177, %s179
    %p183 = scmp.eq.s32.totalorder %s17, 0
    %p184 = por %p182, %p183
    %p185 = scmp.ne.s32.totalorder %s177, %s179
    %p186 = scmp.eq.s32.totalorder %s22, 1
    %p187 = por %p185, %p186
    %p188 = scmp.ne.s32.totalorder %s179, %s180
    %p189 = scmp.eq.s32.totalorder %s22, 0
    %p190 = por %p188, %p189
    %p191 = scmp.ne.s32.totalorder %s179, %s180
    %p192 = scmp.eq.s32.totalorder %s23, 1
    %p193 = por %p191, %p192
    %p195 = scmp.ne.s32.totalorder %s180, %s194
    %p196 = scmp.eq.s32.totalorder %s23, 0
    %p197 = por %p195, %p196
    %s199 = sadd.s32 %s198, 1
    %p202 = scmp.eq.s32.totalorder %s17, 1
    %p203 = scmp.ne.s32.totalorder %s198, %s200
    %p204 = scmp.eq.s32.totalorder %s17, 0
    %p205 = por %p203, %p204
    %p206 = scmp.ne.s32.totalorder %s198, %s200
    %p207 = scmp.eq.s32.totalorder %s22, 1
    %p208 = por %p206, %p207
    %p209 = scmp.ne.s32.totalorder %s200, %s201
    %p210 = scmp.eq.s32.totalorder %s22, 0
    %p211 = por %p209, %p210
    %p212 = scmp.ne.s32.totalorder %s200, %s201
    %p213 = scmp.eq.s32.totalorder %s23, 1
    %p214 = por %p212, %p213
    %p216 = scmp.ne.s32.totalorder %s201, %s215
    %p217 = scmp.eq.s32.totalorder %s23, 0
    %p218 = por %p216, %p217
    %s220 = sadd.s32 %s219, 1
    %p223 = scmp.eq.s32.totalorder %s17, 1
    %p224 = scmp.ne.s32.totalorder %s219, %s221
    %p225 = scmp.eq.s32.totalorder %s17, 0
    %p226 = por %p224, %p225
    %p227 = scmp.ne.s32.totalorder %s219, %s221
    %p228 = scmp.eq.s32.totalorder %s22, 1
    %p229 = por %p227, %p228
    %p230 = scmp.ne.s32.totalorder %s221, %s222
    %p231 = scmp.eq.s32.totalorder %s22, 0
    %p232 = por %p230, %p231
    %p233 = scmp.ne.s32.totalorder %s221, %s222
    %p234 = scmp.eq.s32.totalorder %s23, 1
    %p235 = por %p233, %p234
    %p237 = scmp.ne.s32.totalorder %s222, %s236
    %p238 = scmp.eq.s32.totalorder %s23, 0
    %p239 = por %p237, %p238
    %s241 = sadd.s32 %s240, 1
    %p244 = scmp.eq.s32.totalorder %s17, 1
    %p245 = scmp.ne.s32.totalorder %s240, %s242
    %p246 = scmp.eq.s32.totalorder %s17, 0
    %p247 = por %p245, %p246
    %p248 = scmp.ne.s32.totalorder %s240, %s242
    %p249 = scmp.eq.s32.totalorder %s22, 1
    %p250 = por %p248, %p249
    %p251 = scmp.ne.s32.totalorder %s242, %s243
    %p252 = scmp.eq.s32.totalorder %s22, 0
    %p253 = por %p251, %p252
    %p254 = scmp.ne.s32.totalorder %s242, %s243
    %p255 = scmp.eq.s32.totalorder %s23, 1
    %p256 = por %p254, %p255
    %p258 = scmp.ne.s32.totalorder %s243, %s257
    %p259 = scmp.eq.s32.totalorder %s23, 0
    %p260 = por %p258, %p259
    %s261 = ssub.s32 %s17, %s24
    %p262 = scmp.eq.s32.totalorder %s261, 0
    %s264 = sadd.s32 %s263, 1
    %s265 = scalar_select %p262, %s263, %s264
    %p268 = pneg %p262
    %p269 = scmp.eq.s32.totalorder %s17, 1
    %p270 = por %p268, %p269
    %p271 = scmp.ne.s32.totalorder %s263, %s266
    %p272 = scmp.eq.s32.totalorder %s17, 0
    %p273 = por %p271, %p272
    %p274 = scmp.ne.s32.totalorder %s263, %s266
    %p275 = scmp.eq.s32.totalorder %s22, 1
    %p276 = por %p274, %p275
    %p277 = scmp.ne.s32.totalorder %s266, %s267
    %p278 = scmp.eq.s32.totalorder %s22, 0
    %p279 = por %p277, %p278
    %p280 = scmp.ne.s32.totalorder %s266, %s267
    %p281 = scmp.eq.s32.totalorder %s23, 1
    %p282 = por %p280, %p281
    %p284 = scmp.ne.s32.totalorder %s267, %s283
    %p285 = scmp.eq.s32.totalorder %s23, 0
    %p286 = por %p284, %p285
    %p287 = scmp.le.s32.totalorder 1, %s17
    %p288 = scmp.lt.s32.totalorder %s17, 3
    %p289 = pnand %p287, %p288
    %p290 = pneg %p289
    // Predicated region
    $region9: #{detector_forward.4} parent=5 // pred_check
      _
    $region10: #{detector_forward.4} parent=5 // pred_check_branch
      %292 = sbr.rel (%p289) target = $region12
    $region11: #{detector_forward.4} parent=5 // pred_region
      %s293 = ssub.s32 %s17, 1
      // Predicated region
      $region13: #{detector_forward.4} parent=11 // pred_check
        %p294 = pneg %p64
      $region14: #{detector_forward.4} parent=11 // pred_check_branch
        %296 = sbr.rel (%p294) target = $region16
      $region15: #{detector_forward.4} parent=11 // pred_region
        _
      $region16: #{detector_forward.4} parent=11 // pred_fallthru
        _
      // Predicated region
      $region17: #{detector_forward.4} parent=11 // pred_check
        %p297 = pneg %p85
      $region18: #{detector_forward.4} parent=11 // pred_check_branch
        %299 = sbr.rel (%p297) target = $region20
      $region19: #{detector_forward.4} parent=11 // pred_region
        _
      $region20: #{detector_forward.4} parent=11 // pred_fallthru
        _
      // Predicated region
      $region21: #{detector_forward.4} parent=11 // pred_check
        %p300 = pneg %p106
      $region22: #{detector_forward.4} parent=11 // pred_check_branch
        %302 = sbr.rel (%p300) target = $region24
      $region23: #{detector_forward.4} parent=11 // pred_region
        _
      $region24: #{detector_forward.4} parent=11 // pred_fallthru
        _
      // Predicated region
      $region25: #{detector_forward.4} parent=11 // pred_check
        %p303 = pneg %p127
      $region26: #{detector_forward.4} parent=11 // pred_check_branch
        %305 = sbr.rel (%p303) target = $region28
      $region27: #{detector_forward.4} parent=11 // pred_region
        _
      $region28: #{detector_forward.4} parent=11 // pred_fallthru
        _
      // Predicated region
      $region29: #{detector_forward.4} parent=11 // pred_check
        %p306 = pneg %p148
      $region30: #{detector_forward.4} parent=11 // pred_check_branch
        %308 = sbr.rel (%p306) target = $region32
      $region31: #{detector_forward.4} parent=11 // pred_region
        _
      $region32: #{detector_forward.4} parent=11 // pred_fallthru
        _
      // Predicated region
      $region33: #{detector_forward.4} parent=11 // pred_check
        %p309 = pneg %p169
      $region34: #{detector_forward.4} parent=11 // pred_check_branch
        %311 = sbr.rel (%p309) target = $region36
      $region35: #{detector_forward.4} parent=11 // pred_region
        _
      $region36: #{detector_forward.4} parent=11 // pred_fallthru
        _
      // Predicated region
      $region37: #{detector_forward.4} parent=11 // pred_check
        %p312 = pneg %p190
      $region38: #{detector_forward.4} parent=11 // pred_check_branch
        %314 = sbr.rel (%p312) target = $region40
      $region39: #{detector_forward.4} parent=11 // pred_region
        _
      $region40: #{detector_forward.4} parent=11 // pred_fallthru
        _
      // Predicated region
      $region41: #{detector_forward.4} parent=11 // pred_check
        %p315 = pneg %p211
      $region42: #{detector_forward.4} parent=11 // pred_check_branch
        %317 = sbr.rel (%p315) target = $region44
      $region43: #{detector_forward.4} parent=11 // pred_region
        _
      $region44: #{detector_forward.4} parent=11 // pred_fallthru
        _
      // Predicated region
      $region45: #{detector_forward.4} parent=11 // pred_check
        %p318 = pneg %p232
      $region46: #{detector_forward.4} parent=11 // pred_check_branch
        %320 = sbr.rel (%p318) target = $region48
      $region47: #{detector_forward.4} parent=11 // pred_region
        _
      $region48: #{detector_forward.4} parent=11 // pred_fallthru
        _
      // Predicated region
      $region49: #{detector_forward.4} parent=11 // pred_check
        %p321 = pneg %p253
      $region50: #{detector_forward.4} parent=11 // pred_check_branch
        %323 = sbr.rel (%p321) target = $region52
      $region51: #{detector_forward.4} parent=11 // pred_region
        _
      $region52: #{detector_forward.4} parent=11 // pred_fallthru
        _
    $region12: #{detector_forward.4} parent=5 // pred_fallthru
      _
    %p324 = scmp.lt.s32.totalorder %s17, 2
    // Predicated region
    $region53: #{detector_forward.4} parent=5 // pred_check
      %p325 = pneg %p324
    $region54: #{detector_forward.4} parent=5 // pred_check_branch
      %327 = sbr.rel (%p325) target = $region56
    $region55: #{detector_forward.4} parent=5 // pred_region
      // Predicated region
      $region57: #{detector_forward.4} parent=55 // pred_check
        %p328 = pneg %p37
      $region58: #{detector_forward.4} parent=55 // pred_check_branch
        %330 = sbr.rel (%p328) target = $region60
      $region59: #{detector_forward.4} parent=55 // pred_region
        %p331 = scmp.lt.s32.totalorder %s17, 1
        %s332 = scalar_select %p331, %s17, 1
        %s333 = smul.addr %s332, 32
        %s334 = smul.addr %s333, 4
        %s335 = scalar_lea.vmem %s0, %s334
      $region60: #{detector_forward.4} parent=55 // pred_fallthru
        _
    $region56: #{detector_forward.4} parent=5 // pred_fallthru
      _
    %p336 = scmp.le.s32.totalorder 1, %s17
    %p337 = scmp.lt.s32.totalorder %s17, 3
    %p338 = pnand %p336, %p337
    %p339 = pneg %p338
    // Predicated region
    $region61: #{detector_forward.4} parent=5 // pred_check
      _
    $region62: #{detector_forward.4} parent=5 // pred_check_branch
      %341 = sbr.rel (%p338) target = $region64
    $region63: #{detector_forward.4} parent=5 // pred_region
      %s342 = ssub.s32 %s17, 1
      %p343 = scmp.lt.s32.totalorder %s22, 1
      %s344 = scalar_select %p343, %s22, 1
      %s345 = smul.addr %s344, 32
      %s346 = smul.addr %s345, 4
      %s347 = scalar_lea.vmem %s0, %s346
      %p348 = pneg %p43
      %p349 = pneg %p40
      %p350 = pneg %p64
      %p351 = pneg %p61
      %p352 = pneg %p85
      %p353 = pneg %p82
      %p354 = pneg %p106
      %p355 = pneg %p103
      %p356 = pneg %p127
      %p357 = pneg %p124
      %p358 = pneg %p148
      %p359 = pneg %p145
      %p360 = pneg %p169
      %p361 = pneg %p166
      %p362 = pneg %p190
      %p363 = pneg %p187
      %p364 = pneg %p211
      %p365 = pneg %p208
      %p366 = pneg %p232
      %p367 = pneg %p229
      %p368 = pneg %p253
      %p369 = pneg %p250
      %p370 = pneg %p279
      %p371 = pneg %p276
      %p372 = scmp.lt.s32.totalorder %s22, 1
      %s373 = scalar_select %p372, %s22, 1
      %s374 = smul.addr %s373, 32
      %s375 = smul.addr %s374, 4
      %s376 = scalar_lea.vmem %s11, %s375
      %p377 = scmp.lt.s32.totalorder %s22, 1
      %s378 = scalar_select %p377, %s22, 1
      %s379 = smul.addr %s378, 32
      %s380 = smul.addr %s379, 4
      %s381 = scalar_lea.vmem %s0, %s380
      %p382 = scmp.lt.s32.totalorder %s22, 1
      %s383 = scalar_select %p382, %s22, 1
      %s384 = smul.addr %s383, 32
      %s385 = smul.addr %s384, 4
      %s386 = scalar_lea.vmem %s11, %s385
      %v388 = vld [vmem:[%s381] sm:$0xf]
      %v389 = vld [vmem:[%s381 + $0x4] sm:$0xf]
      %v390 = vld [vmem:[%s381 + $0x8] sm:$0xf]
      %v391 = vld [vmem:[%s381 + $0xc] sm:$0xf]
      %v392 = vld [vmem:[%s381 + $0x10] sm:$0xf]
      %v393 = vld [vmem:[%s381 + $0x14] sm:$0xf]
      %v394 = vld [vmem:[%s381 + $0x18] sm:$0xf]
      %v395 = vld [vmem:[%s381 + $0x1c] sm:$0xf]
      %v396 = vld [vmem:[%s381 + $0x20] sm:$0xf]
      %v397 = vld [vmem:[%s381 + $0x24] sm:$0xf]
      %v398 = vld [vmem:[%s381 + $0x28] sm:$0xf]
      %v399 = vld [vmem:[%s381 + $0x2c] sm:$0xf]
      %v400 = vld [vmem:[%s381 + $0x30] sm:$0xf]
      %v401 = vld [vmem:[%s381 + $0x34] sm:$0xf]
      %v402 = vld [vmem:[%s381 + $0x38] sm:$0xf]
      %v403 = vld [vmem:[%s381 + $0x3c] sm:$0xf]
      %v404 = vld [vmem:[%s381 + $0x40] sm:$0xf]
      %v405 = vld [vmem:[%s381 + $0x44] sm:$0xf]
      %v406 = vld [vmem:[%s381 + $0x48] sm:$0xf]
      %v407 = vld [vmem:[%s381 + $0x4c] sm:$0xf]
      %v408 = vld [vmem:[%s381 + $0x50] sm:$0xf]
      %v409 = vld [vmem:[%s381 + $0x54] sm:$0xf]
      %v410 = vld [vmem:[%s381 + $0x58] sm:$0xf]
      %v411 = vld [vmem:[%s381 + $0x5c] sm:$0xf]
      %v412 = vld [vmem:[%s381 + $0x60] sm:$0xf]
      %v413 = vld [vmem:[%s381 + $0x64] sm:$0xf]
      %v414 = vld [vmem:[%s381 + $0x68] sm:$0xf]
      %v415 = vld [vmem:[%s381 + $0x6c] sm:$0xf]
      %v416 = vld [vmem:[%s381 + $0x70] sm:$0xf]
      %v417 = vld [vmem:[%s381 + $0x74] sm:$0xf]
      %v418 = vld [vmem:[%s381 + $0x78] sm:$0xf]
      %v419 = vld [vmem:[%s381 + $0x7c] sm:$0xf]
      %v420 = vld [vmem:[%s1] sm:$0xff]
      %v421 = vld [vmem:[%s1 + $0x8] sm:$0xff]
      %v422 = vld [vmem:[%s1 + $0x10] sm:$0xff]
      %v423 = vld [vmem:[%s1 + $0x18] sm:$0xff]
      %v424 = vld [vmem:[%s1 + $0x20] sm:$0xff]
      %v425 = vld [vmem:[%s1 + $0x28] sm:$0xff]
      %v426 = vld [vmem:[%s1 + $0x30] sm:$0xff]
      %v427 = vld [vmem:[%s1 + $0x38] sm:$0xff]
      %v428 = vld [vmem:[%s1 + $0x40] sm:$0xff]
      %v429 = vld [vmem:[%s1 + $0x48] sm:$0xff]
      %v430 = vld [vmem:[%s1 + $0x50] sm:$0xff]
      %v431 = vld [vmem:[%s1 + $0x58] sm:$0xff]
      %v432 = vld [vmem:[%s1 + $0x60] sm:$0xff]
      %v433 = vld [vmem:[%s1 + $0x68] sm:$0xff]
      %v434 = vld [vmem:[%s1 + $0x70] sm:$0xff]
      %v435 = vld [vmem:[%s1 + $0x78] sm:$0xff]
      %v436 = vld [vmem:[%s2] sm:$0x3]
      %v438 = vlaneseq
      %v439 = vshrl.u32 %v438, 7
      %v440 = vsub.s32 0, %v439
      %v441 = vrot.slane %v436, %v440
      %v442 = vlaneseq
      %v443 = vshrl.u32 %v442, 7
      %v444 = vsub.s32 1, %v443
      %v445 = vrot.slane %v436, %v444
      %v480 = vunpack.c.l.b16 %v388
      %v481 = vunpack.c.l.b16 %v389
      %v482 = vunpack.c.l.b16 %v390
      %v483 = vunpack.c.l.b16 %v391
      %v484 = vunpack.c.l.b16 %v392
      %v485 = vunpack.c.l.b16 %v393
      %v486 = vunpack.c.l.b16 %v394
      %v487 = vunpack.c.l.b16 %v395
      %v488 = vunpack.c.l.b16 %v396
      %v489 = vunpack.c.l.b16 %v397
      %v490 = vunpack.c.l.b16 %v398
      %v491 = vunpack.c.l.b16 %v399
      %v492 = vunpack.c.l.b16 %v400
      %v493 = vunpack.c.l.b16 %v401
      %v494 = vunpack.c.l.b16 %v402
      %v495 = vunpack.c.l.b16 %v403
      %v496 = vunpack.c.l.b16 %v404
      %v497 = vunpack.c.l.b16 %v405
      %v498 = vunpack.c.l.b16 %v406
      %v499 = vunpack.c.l.b16 %v407
      %v500 = vunpack.c.l.b16 %v408
      %v501 = vunpack.c.l.b16 %v409
      %v502 = vunpack.c.l.b16 %v410
      %v503 = vunpack.c.l.b16 %v411
      %v504 = vunpack.c.l.b16 %v412
      %v505 = vunpack.c.l.b16 %v413
      %v506 = vunpack.c.l.b16 %v414
      %v507 = vunpack.c.l.b16 %v415
      %v508 = vunpack.c.l.b16 %v416
      %v509 = vunpack.c.l.b16 %v417
      %v510 = vunpack.c.l.b16 %v418
      %v511 = vunpack.c.l.b16 %v419
      %v512 = vpack.c.b16 %v481, %v480
      %v513 = vpack.c.b16 %v483, %v482
      %v514 = vpack.c.b16 %v485, %v484
      %v515 = vpack.c.b16 %v487, %v486
      %v516 = vpack.c.b16 %v489, %v488
      %v517 = vpack.c.b16 %v491, %v490
      %v518 = vpack.c.b16 %v493, %v492
      %v519 = vpack.c.b16 %v495, %v494
      %v520 = vpack.c.b16 %v497, %v496
      %v521 = vpack.c.b16 %v499, %v498
      %v522 = vpack.c.b16 %v501, %v500
      %v523 = vpack.c.b16 %v503, %v502
      %v524 = vpack.c.b16 %v505, %v504
      %v525 = vpack.c.b16 %v507, %v506
      %v526 = vpack.c.b16 %v509, %v508
      %v527 = vpack.c.b16 %v511, %v510
      %v560 = vunpack.c.l.b16 %v420
      %v561 = vunpack.c.h.b16 %v420
      %v562 = vunpack.c.l.b16 %v421
      %v563 = vunpack.c.h.b16 %v421
      %v564 = vunpack.c.l.b16 %v422
      %v565 = vunpack.c.h.b16 %v422
      %v566 = vunpack.c.l.b16 %v423
      %v567 = vunpack.c.h.b16 %v423
      %v568 = vunpack.c.l.b16 %v424
      %v569 = vunpack.c.h.b16 %v424
      %v570 = vunpack.c.l.b16 %v425
      %v571 = vunpack.c.h.b16 %v425
      %v572 = vunpack.c.l.b16 %v426
      %v573 = vunpack.c.h.b16 %v426
      %v574 = vunpack.c.l.b16 %v427
      %v575 = vunpack.c.h.b16 %v427
      %v576 = vunpack.c.l.b16 %v428
      %v577 = vunpack.c.h.b16 %v428
      %v578 = vunpack.c.l.b16 %v429
      %v579 = vunpack.c.h.b16 %v429
      %v580 = vunpack.c.l.b16 %v430
      %v581 = vunpack.c.h.b16 %v430
      %v582 = vunpack.c.l.b16 %v431
      %v583 = vunpack.c.h.b16 %v431
      %v584 = vunpack.c.l.b16 %v432
      %v585 = vunpack.c.h.b16 %v432
      %v586 = vunpack.c.l.b16 %v433
      %v587 = vunpack.c.h.b16 %v433
      %v588 = vunpack.c.l.b16 %v434
      %v589 = vunpack.c.h.b16 %v434
      %v590 = vunpack.c.l.b16 %v435
      %v591 = vunpack.c.h.b16 %v435
      %v592 = vpack.c.b16 %v562, %v560
      %v593 = vpack.c.b16 %v563, %v561
      %v594 = vpack.c.b16 %v566, %v564
      %v595 = vpack.c.b16 %v567, %v565
      %v596 = vpack.c.b16 %v570, %v568
      %v597 = vpack.c.b16 %v571, %v569
      %v598 = vpack.c.b16 %v574, %v572
      %v599 = vpack.c.b16 %v575, %v573
      %v600 = vpack.c.b16 %v578, %v576
      %v601 = vpack.c.b16 %v579, %v577
      %v602 = vpack.c.b16 %v582, %v580
      %v603 = vpack.c.b16 %v583, %v581
      %v604 = vpack.c.b16 %v586, %v584
      %v605 = vpack.c.b16 %v587, %v585
      %v606 = vpack.c.b16 %v590, %v588
      %v607 = vpack.c.b16 %v591, %v589
      %624 = vmatprep.subr.bf16.mxu0 %v607
      %625 = vmatpush1.bf16.msra.mxu0 %v606
      %626 = vmatprep.subr.bf16.mxu0 %v605
      %627 = vmatpush1.bf16.msra.mxu0 %v604
      %628 = vmatprep.subr.bf16.mxu0 %v603
      %629 = vmatpush1.bf16.msra.mxu0 %v602
      %630 = vmatprep.subr.bf16.mxu0 %v601
      %631 = vmatpush1.bf16.msra.mxu0 %v600
      %632 = vmatprep.subr.bf16.mxu0 %v599
      %633 = vmatpush1.bf16.msra.mxu0 %v598
      %634 = vmatprep.subr.bf16.mxu0 %v597
      %635 = vmatpush1.bf16.msra.mxu0 %v596
      %636 = vmatprep.subr.bf16.mxu0 %v595
      %637 = vmatpush1.bf16.msra.mxu0 %v594
      %638 = vmatprep.subr.bf16.mxu0 %v593
      %639 = vmatpush1.bf16.msra.mxu0 %v592
      %640 = vmatprep.subr.bf16.mxu0 0
      %641 = vmatpush2.bf16.msra.mxu0 0
      %642 = vmatprep.subr.bf16.mxu0 0
      %643 = vmatpush2.bf16.msra.mxu0 0
      %644 = vmatprep.subr.bf16.mxu0 0
      %645 = vmatpush2.bf16.msra.mxu0 0
      %646 = vmatprep.subr.bf16.mxu0 0
      %647 = vmatpush2.bf16.msra.mxu0 0
      %648 = vmatprep.subr.bf16.mxu0 0
      %649 = vmatpush2.bf16.msra.mxu0 0
      %650 = vmatprep.subr.bf16.mxu0 0
      %651 = vmatpush2.bf16.msra.mxu0 0
      %652 = vmatprep.subr.bf16.mxu0 0
      %653 = vmatpush2.bf16.msra.mxu0 0
      %654 = vmatprep.subr.bf16.mxu0 0
      %655 = vmatpush2.bf16.msra.mxu0 0
      %656 = vmatprep.mubr.bf16.mxu0 0
      %657 = vmatmul.mubr.bf16.gmra.mxu0 %v512
      %v658 = vpop.f32.mrf.mxu0
      %v659 = vadd.f32 %v441, %v658
      %v660 = vpop.f32.mrf.mxu0
      %v661 = vadd.f32 %v445, %v660
      %v662 = vpop.f32.mrf.mxu0
      %v663 = vadd.f32 %v441, %v662
      %v664 = vpop.f32.mrf.mxu0
      %v665 = vadd.f32 %v445, %v664
      %666 = vmatprep.mubr.bf16.mxu0 0
      %667 = vmatmul.mubr.bf16.gmra.mxu0 %v513
      %v668 = vpop.f32.mrf.mxu0
      %v669 = vadd.f32 %v441, %v668
      %v670 = vpop.f32.mrf.mxu0
      %v671 = vadd.f32 %v445, %v670
      %v672 = vpop.f32.mrf.mxu0
      %v673 = vadd.f32 %v441, %v672
      %v674 = vpop.f32.mrf.mxu0
      %v675 = vadd.f32 %v445, %v674
      %676 = vmatprep.mubr.bf16.mxu0 0
      %677 = vmatmul.mubr.bf16.gmra.mxu0 %v514
      %v678 = vpop.f32.mrf.mxu0
      %v679 = vadd.f32 %v441, %v678
      %v680 = vpop.f32.mrf.mxu0
      %v681 = vadd.f32 %v445, %v680
      %v682 = vpop.f32.mrf.mxu0
      %v683 = vadd.f32 %v441, %v682
      %v684 = vpop.f32.mrf.mxu0
      %v685 = vadd.f32 %v445, %v684
      %686 = vmatprep.mubr.bf16.mxu0 0
      %687 = vmatmul.mubr.bf16.gmra.mxu0 %v515
      %v688 = vpop.f32.mrf.mxu0
      %v689 = vadd.f32 %v441, %v688
      %v690 = vpop.f32.mrf.mxu0
      %v691 = vadd.f32 %v445, %v690
      %v692 = vpop.f32.mrf.mxu0
      %v693 = vadd.f32 %v441, %v692
      %v694 = vpop.f32.mrf.mxu0
      %v695 = vadd.f32 %v445, %v694
      %696 = vmatprep.mubr.bf16.mxu0 0
      %697 = vmatmul.mubr.bf16.gmra.mxu0 %v516
      %v698 = vpop.f32.mrf.mxu0
      %v699 = vadd.f32 %v441, %v698
      %v700 = vpop.f32.mrf.mxu0
      %v701 = vadd.f32 %v445, %v700
      %v702 = vpop.f32.mrf.mxu0
      %v703 = vadd.f32 %v441, %v702
      %v704 = vpop.f32.mrf.mxu0
      %v705 = vadd.f32 %v445, %v704
      %706 = vmatprep.mubr.bf16.mxu0 0
      %707 = vmatmul.mubr.bf16.gmra.mxu0 %v517
      %v708 = vpop.f32.mrf.mxu0
      %v709 = vadd.f32 %v441, %v708
      %v710 = vpop.f32.mrf.mxu0
      %v711 = vadd.f32 %v445, %v710
      %v712 = vpop.f32.mrf.mxu0
      %v713 = vadd.f32 %v441, %v712
      %v714 = vpop.f32.mrf.mxu0
      %v715 = vadd.f32 %v445, %v714
      %716 = vmatprep.mubr.bf16.mxu0 0
      %717 = vmatmul.mubr.bf16.gmra.mxu0 %v518
      %v718 = vpop.f32.mrf.mxu0
      %v719 = vadd.f32 %v441, %v718
      %v720 = vpop.f32.mrf.mxu0
      %v721 = vadd.f32 %v445, %v720
      %v722 = vpop.f32.mrf.mxu0
      %v723 = vadd.f32 %v441, %v722
      %v724 = vpop.f32.mrf.mxu0
      %v725 = vadd.f32 %v445, %v724
      %726 = vmatprep.mubr.bf16.mxu0 0
      %727 = vmatmul.mubr.bf16.gmra.mxu0 %v519
      %v728 = vpop.f32.mrf.mxu0
      %v729 = vadd.f32 %v441, %v728
      %v730 = vpop.f32.mrf.mxu0
      %v731 = vadd.f32 %v445, %v730
      %v732 = vpop.f32.mrf.mxu0
      %v733 = vadd.f32 %v441, %v732
      %v734 = vpop.f32.mrf.mxu0
      %v735 = vadd.f32 %v445, %v734
      %736 = vmatprep.mubr.bf16.mxu0 0
      %737 = vmatmul.mubr.bf16.gmra.mxu0 %v520
      %v738 = vpop.f32.mrf.mxu0
      %v739 = vadd.f32 %v441, %v738
      %v740 = vpop.f32.mrf.mxu0
      %v741 = vadd.f32 %v445, %v740
      %v742 = vpop.f32.mrf.mxu0
      %v743 = vadd.f32 %v441, %v742
      %v744 = vpop.f32.mrf.mxu0
      %v745 = vadd.f32 %v445, %v744
      %746 = vmatprep.mubr.bf16.mxu0 0
      %747 = vmatmul.mubr.bf16.gmra.mxu0 %v521
      %v748 = vpop.f32.mrf.mxu0
      %v749 = vadd.f32 %v441, %v748
      %v750 = vpop.f32.mrf.mxu0
      %v751 = vadd.f32 %v445, %v750
      %v752 = vpop.f32.mrf.mxu0
      %v753 = vadd.f32 %v441, %v752
      %v754 = vpop.f32.mrf.mxu0
      %v755 = vadd.f32 %v445, %v754
      %756 = vmatprep.mubr.bf16.mxu0 0
      %757 = vmatmul.mubr.bf16.gmra.mxu0 %v522
      %v758 = vpop.f32.mrf.mxu0
      %v759 = vadd.f32 %v441, %v758
      %v760 = vpop.f32.mrf.mxu0
      %v761 = vadd.f32 %v445, %v760
      %v762 = vpop.f32.mrf.mxu0
      %v763 = vadd.f32 %v441, %v762
      %v764 = vpop.f32.mrf.mxu0
      %v765 = vadd.f32 %v445, %v764
      %766 = vmatprep.mubr.bf16.mxu0 0
      %767 = vmatmul.mubr.bf16.gmra.mxu0 %v523
      %v768 = vpop.f32.mrf.mxu0
      %v769 = vadd.f32 %v441, %v768
      %v770 = vpop.f32.mrf.mxu0
      %v771 = vadd.f32 %v445, %v770
      %v772 = vpop.f32.mrf.mxu0
      %v773 = vadd.f32 %v441, %v772
      %v774 = vpop.f32.mrf.mxu0
      %v775 = vadd.f32 %v445, %v774
      %776 = vmatprep.mubr.bf16.mxu0 0
      %777 = vmatmul.mubr.bf16.gmra.mxu0 %v524
      %v778 = vpop.f32.mrf.mxu0
      %v779 = vadd.f32 %v441, %v778
      %v780 = vpop.f32.mrf.mxu0
      %v781 = vadd.f32 %v445, %v780
      %v782 = vpop.f32.mrf.mxu0
      %v783 = vadd.f32 %v441, %v782
      %v784 = vpop.f32.mrf.mxu0
      %v785 = vadd.f32 %v445, %v784
      %786 = vmatprep.mubr.bf16.mxu0 0
      %787 = vmatmul.mubr.bf16.gmra.mxu0 %v525
      %v788 = vpop.f32.mrf.mxu0
      %v789 = vadd.f32 %v441, %v788
      %v790 = vpop.f32.mrf.mxu0
      %v791 = vadd.f32 %v445, %v790
      %v792 = vpop.f32.mrf.mxu0
      %v793 = vadd.f32 %v441, %v792
      %v794 = vpop.f32.mrf.mxu0
      %v795 = vadd.f32 %v445, %v794
      %796 = vmatprep.mubr.bf16.mxu0 0
      %797 = vmatmul.mubr.bf16.gmra.mxu0 %v526
      %v798 = vpop.f32.mrf.mxu0
      %v799 = vadd.f32 %v441, %v798
      %v800 = vpop.f32.mrf.mxu0
      %v801 = vadd.f32 %v445, %v800
      %v802 = vpop.f32.mrf.mxu0
      %v803 = vadd.f32 %v441, %v802
      %v804 = vpop.f32.mrf.mxu0
      %v805 = vadd.f32 %v445, %v804
      %806 = vmatprep.mubr.bf16.mxu0 0
      %807 = vmatmul.mubr.bf16.gmra.mxu0 %v527
      %v808 = vpop.f32.mrf.mxu0
      %v809 = vadd.f32 %v441, %v808
      %v810 = vpop.f32.mrf.mxu0
      %v811 = vadd.f32 %v445, %v810
      %v812 = vpop.f32.mrf.mxu0
      %v813 = vadd.f32 %v441, %v812
      %v814 = vpop.f32.mrf.mxu0
      %v815 = vadd.f32 %v445, %v814
      %816 = vdwg.mxu0
      %v817 = vxor.u32 %v659, 2147483648
      %v818 = vxor.u32 %v661, 2147483648
      %v819 = vxor.u32 %v663, 2147483648
      %v820 = vxor.u32 %v665, 2147483648
      %v821 = vxor.u32 %v669, 2147483648
      %v822 = vxor.u32 %v671, 2147483648
      %v823 = vxor.u32 %v673, 2147483648
      %v824 = vxor.u32 %v675, 2147483648
      %v825 = vxor.u32 %v679, 2147483648
      %v826 = vxor.u32 %v681, 2147483648
      %v827 = vxor.u32 %v683, 2147483648
      %v828 = vxor.u32 %v685, 2147483648
      %v829 = vxor.u32 %v689, 2147483648
      %v830 = vxor.u32 %v691, 2147483648
      %v831 = vxor.u32 %v693, 2147483648
      %v832 = vxor.u32 %v695, 2147483648
      %v833 = vxor.u32 %v699, 2147483648
      %v834 = vxor.u32 %v701, 2147483648
      %v835 = vxor.u32 %v703, 2147483648
      %v836 = vxor.u32 %v705, 2147483648
      %v837 = vxor.u32 %v709, 2147483648
      %v838 = vxor.u32 %v711, 2147483648
      %v839 = vxor.u32 %v713, 2147483648
      %v840 = vxor.u32 %v715, 2147483648
      %v841 = vxor.u32 %v719, 2147483648
      %v842 = vxor.u32 %v721, 2147483648
      %v843 = vxor.u32 %v723, 2147483648
      %v844 = vxor.u32 %v725, 2147483648
      %v845 = vxor.u32 %v729, 2147483648
      %v846 = vxor.u32 %v731, 2147483648
      %v847 = vxor.u32 %v733, 2147483648
      %v848 = vxor.u32 %v735, 2147483648
      %v849 = vxor.u32 %v739, 2147483648
      %v850 = vxor.u32 %v741, 2147483648
      %v851 = vxor.u32 %v743, 2147483648
      %v852 = vxor.u32 %v745, 2147483648
      %v853 = vxor.u32 %v749, 2147483648
      %v854 = vxor.u32 %v751, 2147483648
      %v855 = vxor.u32 %v753, 2147483648
      %v856 = vxor.u32 %v755, 2147483648
      %v857 = vxor.u32 %v759, 2147483648
      %v858 = vxor.u32 %v761, 2147483648
      %v859 = vxor.u32 %v763, 2147483648
      %v860 = vxor.u32 %v765, 2147483648
      %v861 = vxor.u32 %v769, 2147483648
      %v862 = vxor.u32 %v771, 2147483648
      %v863 = vxor.u32 %v773, 2147483648
      %v864 = vxor.u32 %v775, 2147483648
      %v865 = vxor.u32 %v779, 2147483648
      %v866 = vxor.u32 %v781, 2147483648
      %v867 = vxor.u32 %v783, 2147483648
      %v868 = vxor.u32 %v785, 2147483648
      %v869 = vxor.u32 %v789, 2147483648
      %v870 = vxor.u32 %v791, 2147483648
      %v871 = vxor.u32 %v793, 2147483648
      %v872 = vxor.u32 %v795, 2147483648
      %v873 = vxor.u32 %v799, 2147483648
      %v874 = vxor.u32 %v801, 2147483648
      %v875 = vxor.u32 %v803, 2147483648
      %v876 = vxor.u32 %v805, 2147483648
      %v877 = vxor.u32 %v809, 2147483648
      %v878 = vxor.u32 %v811, 2147483648
      %v879 = vxor.u32 %v813, 2147483648
      %v880 = vxor.u32 %v815, 2147483648
      %v881 = vmul.f32 %v817, 1.442695
      %v882 = vpow.pop %v881
      %v883 = vmul.f32 %v818, 1.442695
      %v884 = vpow.pop %v883
      %v885 = vmul.f32 %v819, 1.442695
      %v886 = vpow.pop %v885
      %v887 = vmul.f32 %v820, 1.442695
      %v888 = vpow.pop %v887
      %v889 = vmul.f32 %v821, 1.442695
      %v890 = vpow.pop %v889
      %v891 = vmul.f32 %v822, 1.442695
      %v892 = vpow.pop %v891
      %v893 = vmul.f32 %v823, 1.442695
      %v894 = vpow.pop %v893
      %v895 = vmul.f32 %v824, 1.442695
      %v896 = vpow.pop %v895
      %v897 = vmul.f32 %v825, 1.442695
      %v898 = vpow.pop %v897
      %v899 = vmul.f32 %v826, 1.442695
      %v900 = vpow.pop %v899
      %v901 = vmul.f32 %v827, 1.442695
      %v902 = vpow.pop %v901
      %v903 = vmul.f32 %v828, 1.442695
      %v904 = vpow.pop %v903
      %v905 = vmul.f32 %v829, 1.442695
      %v906 = vpow.pop %v905
      %v907 = vmul.f32 %v830, 1.442695
      %v908 = vpow.pop %v907
      %v909 = vmul.f32 %v831, 1.442695
      %v910 = vpow.pop %v909
      %v911 = vmul.f32 %v832, 1.442695
      %v912 = vpow.pop %v911
      %v913 = vmul.f32 %v833, 1.442695
      %v914 = vpow.pop %v913
      %v915 = vmul.f32 %v834, 1.442695
      %v916 = vpow.pop %v915
      %v917 = vmul.f32 %v835, 1.442695
      %v918 = vpow.pop %v917
      %v919 = vmul.f32 %v836, 1.442695
      %v920 = vpow.pop %v919
      %v921 = vmul.f32 %v837, 1.442695
      %v922 = vpow.pop %v921
      %v923 = vmul.f32 %v838, 1.442695
      %v924 = vpow.pop %v923
      %v925 = vmul.f32 %v839, 1.442695
      %v926 = vpow.pop %v925
      %v927 = vmul.f32 %v840, 1.442695
      %v928 = vpow.pop %v927
      %v929 = vmul.f32 %v841, 1.442695
      %v930 = vpow.pop %v929
      %v931 = vmul.f32 %v842, 1.442695
      %v932 = vpow.pop %v931
      %v933 = vmul.f32 %v843, 1.442695
      %v934 = vpow.pop %v933
      %v935 = vmul.f32 %v844, 1.442695
      %v936 = vpow.pop %v935
      %v937 = vmul.f32 %v845, 1.442695
      %v938 = vpow.pop %v937
      %v939 = vmul.f32 %v846, 1.442695
      %v940 = vpow.pop %v939
      %v941 = vmul.f32 %v847, 1.442695
      %v942 = vpow.pop %v941
      %v943 = vmul.f32 %v848, 1.442695
      %v944 = vpow.pop %v943
      %v945 = vmul.f32 %v849, 1.442695
      %v946 = vpow.pop %v945
      %v947 = vmul.f32 %v850, 1.442695
      %v948 = vpow.pop %v947
      %v949 = vmul.f32 %v851, 1.442695
      %v950 = vpow.pop %v949
      %v951 = vmul.f32 %v852, 1.442695
      %v952 = vpow.pop %v951
      %v953 = vmul.f32 %v853, 1.442695
      %v954 = vpow.pop %v953
      %v955 = vmul.f32 %v854, 1.442695
      %v956 = vpow.pop %v955
      %v957 = vmul.f32 %v855, 1.442695
      %v958 = vpow.pop %v957
      %v959 = vmul.f32 %v856, 1.442695
      %v960 = vpow.pop %v959
      %v961 = vmul.f32 %v857, 1.442695
      %v962 = vpow.pop %v961
      %v963 = vmul.f32 %v858, 1.442695
      %v964 = vpow.pop %v963
      %v965 = vmul.f32 %v859, 1.442695
      %v966 = vpow.pop %v965
      %v967 = vmul.f32 %v860, 1.442695
      %v968 = vpow.pop %v967
      %v969 = vmul.f32 %v861, 1.442695
      %v970 = vpow.pop %v969
      %v971 = vmul.f32 %v862, 1.442695
      %v972 = vpow.pop %v971
      %v973 = vmul.f32 %v863, 1.442695
      %v974 = vpow.pop %v973
      %v975 = vmul.f32 %v864, 1.442695
      %v976 = vpow.pop %v975
      %v977 = vmul.f32 %v865, 1.442695
      %v978 = vpow.pop %v977
      %v979 = vmul.f32 %v866, 1.442695
      %v980 = vpow.pop %v979
      %v981 = vmul.f32 %v867, 1.442695
      %v982 = vpow.pop %v981
      %v983 = vmul.f32 %v868, 1.442695
      %v984 = vpow.pop %v983
      %v985 = vmul.f32 %v869, 1.442695
      %v986 = vpow.pop %v985
      %v987 = vmul.f32 %v870, 1.442695
      %v988 = vpow.pop %v987
      %v989 = vmul.f32 %v871, 1.442695
      %v990 = vpow.pop %v989
      %v991 = vmul.f32 %v872, 1.442695
      %v992 = vpow.pop %v991
      %v993 = vmul.f32 %v873, 1.442695
      %v994 = vpow.pop %v993
      %v995 = vmul.f32 %v874, 1.442695
      %v996 = vpow.pop %v995
      %v997 = vmul.f32 %v875, 1.442695
      %v998 = vpow.pop %v997
      %v999 = vmul.f32 %v876, 1.442695
      %v1000 = vpow.pop %v999
      %v1001 = vmul.f32 %v877, 1.442695
      %v1002 = vpow.pop %v1001
      %v1003 = vmul.f32 %v878, 1.442695
      %v1004 = vpow.pop %v1003
      %v1005 = vmul.f32 %v879, 1.442695
      %v1006 = vpow.pop %v1005
      %v1007 = vmul.f32 %v880, 1.442695
      %v1008 = vpow.pop %v1007
      %v1009 = vadd.f32 %v882, 1.0
      %v1010 = vadd.f32 %v884, 1.0
      %v1011 = vadd.f32 %v886, 1.0
      %v1012 = vadd.f32 %v888, 1.0
      %v1013 = vadd.f32 %v890, 1.0
      %v1014 = vadd.f32 %v892, 1.0
      %v1015 = vadd.f32 %v894, 1.0
      %v1016 = vadd.f32 %v896, 1.0
      %v1017 = vadd.f32 %v898, 1.0
      %v1018 = vadd.f32 %v900, 1.0
      %v1019 = vadd.f32 %v902, 1.0
      %v1020 = vadd.f32 %v904, 1.0
      %v1021 = vadd.f32 %v906, 1.0
      %v1022 = vadd.f32 %v908, 1.0
      %v1023 = vadd.f32 %v910, 1.0
      %v1024 = vadd.f32 %v912, 1.0
      %v1025 = vadd.f32 %v914, 1.0
      %v1026 = vadd.f32 %v916, 1.0
      %v1027 = vadd.f32 %v918, 1.0
      %v1028 = vadd.f32 %v920, 1.0
      %v1029 = vadd.f32 %v922, 1.0
      %v1030 = vadd.f32 %v924, 1.0
      %v1031 = vadd.f32 %v926, 1.0
      %v1032 = vadd.f32 %v928, 1.0
      %v1033 = vadd.f32 %v930, 1.0
      %v1034 = vadd.f32 %v932, 1.0
      %v1035 = vadd.f32 %v934, 1.0
      %v1036 = vadd.f32 %v936, 1.0
      %v1037 = vadd.f32 %v938, 1.0
      %v1038 = vadd.f32 %v940, 1.0
      %v1039 = vadd.f32 %v942, 1.0
      %v1040 = vadd.f32 %v944, 1.0
      %v1041 = vadd.f32 %v946, 1.0
      %v1042 = vadd.f32 %v948, 1.0
      %v1043 = vadd.f32 %v950, 1.0
      %v1044 = vadd.f32 %v952, 1.0
      %v1045 = vadd.f32 %v954, 1.0
      %v1046 = vadd.f32 %v956, 1.0
      %v1047 = vadd.f32 %v958, 1.0
      %v1048 = vadd.f32 %v960, 1.0
      %v1049 = vadd.f32 %v962, 1.0
      %v1050 = vadd.f32 %v964, 1.0
      %v1051 = vadd.f32 %v966, 1.0
      %v1052 = vadd.f32 %v968, 1.0
      %v1053 = vadd.f32 %v970, 1.0
      %v1054 = vadd.f32 %v972, 1.0
      %v1055 = vadd.f32 %v974, 1.0
      %v1056 = vadd.f32 %v976, 1.0
      %v1057 = vadd.f32 %v978, 1.0
      %v1058 = vadd.f32 %v980, 1.0
      %v1059 = vadd.f32 %v982, 1.0
      %v1060 = vadd.f32 %v984, 1.0
      %v1061 = vadd.f32 %v986, 1.0
      %v1062 = vadd.f32 %v988, 1.0
      %v1063 = vadd.f32 %v990, 1.0
      %v1064 = vadd.f32 %v992, 1.0
      %v1065 = vadd.f32 %v994, 1.0
      %v1066 = vadd.f32 %v996, 1.0
      %v1067 = vadd.f32 %v998, 1.0
      %v1068 = vadd.f32 %v1000, 1.0
      %v1069 = vadd.f32 %v1002, 1.0
      %v1070 = vadd.f32 %v1004, 1.0
      %v1071 = vadd.f32 %v1006, 1.0
      %v1072 = vadd.f32 %v1008, 1.0
      %v1073 = vrcp.pop %v1009
      %v1074 = vmul.f32 1.0, %v1073
      %v1075 = vrcp.pop %v1010
      %v1076 = vmul.f32 1.0, %v1075
      %v1077 = vrcp.pop %v1011
      %v1078 = vmul.f32 1.0, %v1077
      %v1079 = vrcp.pop %v1012
      %v1080 = vmul.f32 1.0, %v1079
      %v1081 = vrcp.pop %v1013
      %v1082 = vmul.f32 1.0, %v1081
      %v1083 = vrcp.pop %v1014
      %v1084 = vmul.f32 1.0, %v1083
      %v1085 = vrcp.pop %v1015
      %v1086 = vmul.f32 1.0, %v1085
      %v1087 = vrcp.pop %v1016
      %v1088 = vmul.f32 1.0, %v1087
      %v1089 = vrcp.pop %v1017
      %v1090 = vmul.f32 1.0, %v1089
      %v1091 = vrcp.pop %v1018
      %v1092 = vmul.f32 1.0, %v1091
      %v1093 = vrcp.pop %v1019
      %v1094 = vmul.f32 1.0, %v1093
      %v1095 = vrcp.pop %v1020
      %v1096 = vmul.f32 1.0, %v1095
      %v1097 = vrcp.pop %v1021
      %v1098 = vmul.f32 1.0, %v1097
      %v1099 = vrcp.pop %v1022
      %v1100 = vmul.f32 1.0, %v1099
      %v1101 = vrcp.pop %v1023
      %v1102 = vmul.f32 1.0, %v1101
      %v1103 = vrcp.pop %v1024
      %v1104 = vmul.f32 1.0, %v1103
      %v1105 = vrcp.pop %v1025
      %v1106 = vmul.f32 1.0, %v1105
      %v1107 = vrcp.pop %v1026
      %v1108 = vmul.f32 1.0, %v1107
      %v1109 = vrcp.pop %v1027
      %v1110 = vmul.f32 1.0, %v1109
      %v1111 = vrcp.pop %v1028
      %v1112 = vmul.f32 1.0, %v1111
      %v1113 = vrcp.pop %v1029
      %v1114 = vmul.f32 1.0, %v1113
      %v1115 = vrcp.pop %v1030
      %v1116 = vmul.f32 1.0, %v1115
      %v1117 = vrcp.pop %v1031
      %v1118 = vmul.f32 1.0, %v1117
      %v1119 = vrcp.pop %v1032
      %v1120 = vmul.f32 1.0, %v1119
      %v1121 = vrcp.pop %v1033
      %v1122 = vmul.f32 1.0, %v1121
      %v1123 = vrcp.pop %v1034
      %v1124 = vmul.f32 1.0, %v1123
      %v1125 = vrcp.pop %v1035
      %v1126 = vmul.f32 1.0, %v1125
      %v1127 = vrcp.pop %v1036
      %v1128 = vmul.f32 1.0, %v1127
      %v1129 = vrcp.pop %v1037
      %v1130 = vmul.f32 1.0, %v1129
      %v1131 = vrcp.pop %v1038
      %v1132 = vmul.f32 1.0, %v1131
      %v1133 = vrcp.pop %v1039
      %v1134 = vmul.f32 1.0, %v1133
      %v1135 = vrcp.pop %v1040
      %v1136 = vmul.f32 1.0, %v1135
      %v1137 = vrcp.pop %v1041
      %v1138 = vmul.f32 1.0, %v1137
      %v1139 = vrcp.pop %v1042
      %v1140 = vmul.f32 1.0, %v1139
      %v1141 = vrcp.pop %v1043
      %v1142 = vmul.f32 1.0, %v1141
      %v1143 = vrcp.pop %v1044
      %v1144 = vmul.f32 1.0, %v1143
      %v1145 = vrcp.pop %v1045
      %v1146 = vmul.f32 1.0, %v1145
      %v1147 = vrcp.pop %v1046
      %v1148 = vmul.f32 1.0, %v1147
      %v1149 = vrcp.pop %v1047
      %v1150 = vmul.f32 1.0, %v1149
      %v1151 = vrcp.pop %v1048
      %v1152 = vmul.f32 1.0, %v1151
      %v1153 = vrcp.pop %v1049
      %v1154 = vmul.f32 1.0, %v1153
      %v1155 = vrcp.pop %v1050
      %v1156 = vmul.f32 1.0, %v1155
      %v1157 = vrcp.pop %v1051
      %v1158 = vmul.f32 1.0, %v1157
      %v1159 = vrcp.pop %v1052
      %v1160 = vmul.f32 1.0, %v1159
      %v1161 = vrcp.pop %v1053
      %v1162 = vmul.f32 1.0, %v1161
      %v1163 = vrcp.pop %v1054
      %v1164 = vmul.f32 1.0, %v1163
      %v1165 = vrcp.pop %v1055
      %v1166 = vmul.f32 1.0, %v1165
      %v1167 = vrcp.pop %v1056
      %v1168 = vmul.f32 1.0, %v1167
      %v1169 = vrcp.pop %v1057
      %v1170 = vmul.f32 1.0, %v1169
      %v1171 = vrcp.pop %v1058
      %v1172 = vmul.f32 1.0, %v1171
      %v1173 = vrcp.pop %v1059
      %v1174 = vmul.f32 1.0, %v1173
      %v1175 = vrcp.pop %v1060
      %v1176 = vmul.f32 1.0, %v1175
      %v1177 = vrcp.pop %v1061
      %v1178 = vmul.f32 1.0, %v1177
      %v1179 = vrcp.pop %v1062
      %v1180 = vmul.f32 1.0, %v1179
      %v1181 = vrcp.pop %v1063
      %v1182 = vmul.f32 1.0, %v1181
      %v1183 = vrcp.pop %v1064
      %v1184 = vmul.f32 1.0, %v1183
      %v1185 = vrcp.pop %v1065
      %v1186 = vmul.f32 1.0, %v1185
      %v1187 = vrcp.pop %v1066
      %v1188 = vmul.f32 1.0, %v1187
      %v1189 = vrcp.pop %v1067
      %v1190 = vmul.f32 1.0, %v1189
      %v1191 = vrcp.pop %v1068
      %v1192 = vmul.f32 1.0, %v1191
      %v1193 = vrcp.pop %v1069
      %v1194 = vmul.f32 1.0, %v1193
      %v1195 = vrcp.pop %v1070
      %v1196 = vmul.f32 1.0, %v1195
      %v1197 = vrcp.pop %v1071
      %v1198 = vmul.f32 1.0, %v1197
      %v1199 = vrcp.pop %v1072
      %v1200 = vmul.f32 1.0, %v1199
      %v1201 = vmul.f32 %v659, %v1074
      %v1202 = vmul.f32 %v661, %v1076
      %v1203 = vmul.f32 %v663, %v1078
      %v1204 = vmul.f32 %v665, %v1080
      %v1205 = vmul.f32 %v669, %v1082
      %v1206 = vmul.f32 %v671, %v1084
      %v1207 = vmul.f32 %v673, %v1086
      %v1208 = vmul.f32 %v675, %v1088
      %v1209 = vmul.f32 %v679, %v1090
      %v1210 = vmul.f32 %v681, %v1092
      %v1211 = vmul.f32 %v683, %v1094
      %v1212 = vmul.f32 %v685, %v1096
      %v1213 = vmul.f32 %v689, %v1098
      %v1214 = vmul.f32 %v691, %v1100
      %v1215 = vmul.f32 %v693, %v1102
      %v1216 = vmul.f32 %v695, %v1104
      %v1217 = vmul.f32 %v699, %v1106
      %v1218 = vmul.f32 %v701, %v1108
      %v1219 = vmul.f32 %v703, %v1110
      %v1220 = vmul.f32 %v705, %v1112
      %v1221 = vmul.f32 %v709, %v1114
      %v1222 = vmul.f32 %v711, %v1116
      %v1223 = vmul.f32 %v713, %v1118
      %v1224 = vmul.f32 %v715, %v1120
      %v1225 = vmul.f32 %v719, %v1122
      %v1226 = vmul.f32 %v721, %v1124
      %v1227 = vmul.f32 %v723, %v1126
      %v1228 = vmul.f32 %v725, %v1128
      %v1229 = vmul.f32 %v729, %v1130
      %v1230 = vmul.f32 %v731, %v1132
      %v1231 = vmul.f32 %v733, %v1134
      %v1232 = vmul.f32 %v735, %v1136
      %v1233 = vmul.f32 %v739, %v1138
      %v1234 = vmul.f32 %v741, %v1140
      %v1235 = vmul.f32 %v743, %v1142
      %v1236 = vmul.f32 %v745, %v1144
      %v1237 = vmul.f32 %v749, %v1146
      %v1238 = vmul.f32 %v751, %v1148
      %v1239 = vmul.f32 %v753, %v1150
      %v1240 = vmul.f32 %v755, %v1152
      %v1241 = vmul.f32 %v759, %v1154
      %v1242 = vmul.f32 %v761, %v1156
      %v1243 = vmul.f32 %v763, %v1158
      %v1244 = vmul.f32 %v765, %v1160
      %v1245 = vmul.f32 %v769, %v1162
      %v1246 = vmul.f32 %v771, %v1164
      %v1247 = vmul.f32 %v773, %v1166
      %v1248 = vmul.f32 %v775, %v1168
      %v1249 = vmul.f32 %v779, %v1170
      %v1250 = vmul.f32 %v781, %v1172
      %v1251 = vmul.f32 %v783, %v1174
      %v1252 = vmul.f32 %v785, %v1176
      %v1253 = vmul.f32 %v789, %v1178
      %v1254 = vmul.f32 %v791, %v1180
      %v1255 = vmul.f32 %v793, %v1182
      %v1256 = vmul.f32 %v795, %v1184
      %v1257 = vmul.f32 %v799, %v1186
      %v1258 = vmul.f32 %v801, %v1188
      %v1259 = vmul.f32 %v803, %v1190
      %v1260 = vmul.f32 %v805, %v1192
      %v1261 = vmul.f32 %v809, %v1194
      %v1262 = vmul.f32 %v811, %v1196
      %v1263 = vmul.f32 %v813, %v1198
      %v1264 = vmul.f32 %v815, %v1200
      %1265 = vst [vmem:[#allocation2] sm:$0xff] 0.0
      %1266 = vst [vmem:[#allocation2 + $0x8] sm:$0xff] 0.0
      %1267 = vst [vmem:[#allocation2 + $0x10] sm:$0xff] 0.0
      %1268 = vst [vmem:[#allocation2 + $0x18] sm:$0xff] 0.0
      %1269 = vst [vmem:[#allocation2 + $0x220] sm:$0xff] 0.0
      %1270 = vst [vmem:[#allocation2 + $0x228] sm:$0xff] 0.0
      %1271 = vst [vmem:[#allocation2 + $0x230] sm:$0xff] 0.0
      %1272 = vst [vmem:[#allocation2 + $0x238] sm:$0xff] 0.0
      %1273 = vst [vmem:[#allocation2 + $0x20] sm:$0xff] %v1201
      %1274 = vst [vmem:[#allocation2 + $0x28] sm:$0xff] %v1202
      %1275 = vst [vmem:[#allocation2 + $0x30] sm:$0xff] %v1203
      %1276 = vst [vmem:[#allocation2 + $0x38] sm:$0xff] %v1204
      %1277 = vst [vmem:[#allocation2 + $0x40] sm:$0xff] %v1205
      %1278 = vst [vmem:[#allocation2 + $0x48] sm:$0xff] %v1206
      %1279 = vst [vmem:[#allocation2 + $0x50] sm:$0xff] %v1207
      %1280 = vst [vmem:[#allocation2 + $0x58] sm:$0xff] %v1208
      %1281 = vst [vmem:[#allocation2 + $0x60] sm:$0xff] %v1209
      %1282 = vst [vmem:[#allocation2 + $0x68] sm:$0xff] %v1210
      %1283 = vst [vmem:[#allocation2 + $0x70] sm:$0xff] %v1211
      %1284 = vst [vmem:[#allocation2 + $0x78] sm:$0xff] %v1212
      %1285 = vst [vmem:[#allocation2 + $0x80] sm:$0xff] %v1213
      %1286 = vst [vmem:[#allocation2 + $0x88] sm:$0xff] %v1214
      %1287 = vst [vmem:[#allocation2 + $0x90] sm:$0xff] %v1215
      %1288 = vst [vmem:[#allocation2 + $0x98] sm:$0xff] %v1216
      %1289 = vst [vmem:[#allocation2 + $0xa0] sm:$0xff] %v1217
      %1290 = vst [vmem:[#allocation2 + $0xa8] sm:$0xff] %v1218
      %1291 = vst [vmem:[#allocation2 + $0xb0] sm:$0xff] %v1219
      %1292 = vst [vmem:[#allocation2 + $0xb8] sm:$0xff] %v1220
      %1293 = vst [vmem:[#allocation2 + $0xc0] sm:$0xff] %v1221
      %1294 = vst [vmem:[#allocation2 + $0xc8] sm:$0xff] %v1222
      %1295 = vst [vmem:[#allocation2 + $0xd0] sm:$0xff] %v1223
      %1296 = vst [vmem:[#allocation2 + $0xd8] sm:$0xff] %v1224
      %1297 = vst [vmem:[#allocation2 + $0xe0] sm:$0xff] %v1225
      %1298 = vst [vmem:[#allocation2 + $0xe8] sm:$0xff] %v1226
      %1299 = vst [vmem:[#allocation2 + $0xf0] sm:$0xff] %v1227
      %1300 = vst [vmem:[#allocation2 + $0xf8] sm:$0xff] %v1228
      %1301 = vst [vmem:[#allocation2 + $0x100] sm:$0xff] %v1229
      %1302 = vst [vmem:[#allocation2 + $0x108] sm:$0xff] %v1230
      %1303 = vst [vmem:[#allocation2 + $0x110] sm:$0xff] %v1231
      %1304 = vst [vmem:[#allocation2 + $0x118] sm:$0xff] %v1232
      %1305 = vst [vmem:[#allocation2 + $0x120] sm:$0xff] %v1233
      %1306 = vst [vmem:[#allocation2 + $0x128] sm:$0xff] %v1234
      %1307 = vst [vmem:[#allocation2 + $0x130] sm:$0xff] %v1235
      %1308 = vst [vmem:[#allocation2 + $0x138] sm:$0xff] %v1236
      %1309 = vst [vmem:[#allocation2 + $0x140] sm:$0xff] %v1237
      %1310 = vst [vmem:[#allocation2 + $0x148] sm:$0xff] %v1238
      %1311 = vst [vmem:[#allocation2 + $0x150] sm:$0xff] %v1239
      %1312 = vst [vmem:[#allocation2 + $0x158] sm:$0xff] %v1240
      %1313 = vst [vmem:[#allocation2 + $0x160] sm:$0xff] %v1241
      %1314 = vst [vmem:[#allocation2 + $0x168] sm:$0xff] %v1242
      %1315 = vst [vmem:[#allocation2 + $0x170] sm:$0xff] %v1243
      %1316 = vst [vmem:[#allocation2 + $0x178] sm:$0xff] %v1244
      %1317 = vst [vmem:[#allocation2 + $0x180] sm:$0xff] %v1245
      %1318 = vst [vmem:[#allocation2 + $0x188] sm:$0xff] %v1246
      %1319 = vst [vmem:[#allocation2 + $0x190] sm:$0xff] %v1247
      %1320 = vst [vmem:[#allocation2 + $0x198] sm:$0xff] %v1248
      %1321 = vst [vmem:[#allocation2 + $0x1a0] sm:$0xff] %v1249
      %1322 = vst [vmem:[#allocation2 + $0x1a8] sm:$0xff] %v1250
      %1323 = vst [vmem:[#allocation2 + $0x1b0] sm:$0xff] %v1251
      %1324 = vst [vmem:[#allocation2 + $0x1b8] sm:$0xff] %v1252
      %1325 = vst [vmem:[#allocation2 + $0x1c0] sm:$0xff] %v1253
      %1326 = vst [vmem:[#allocation2 + $0x1c8] sm:$0xff] %v1254
      %1327 = vst [vmem:[#allocation2 + $0x1d0] sm:$0xff] %v1255
      %1328 = vst [vmem:[#allocation2 + $0x1d8] sm:$0xff] %v1256
      %1329 = vst [vmem:[#allocation2 + $0x1e0] sm:$0xff] %v1257
      %1330 = vst [vmem:[#allocation2 + $0x1e8] sm:$0xff] %v1258
      %1331 = vst [vmem:[#allocation2 + $0x1f0] sm:$0xff] %v1259
      %1332 = vst [vmem:[#allocation2 + $0x1f8] sm:$0xff] %v1260
      %1333 = vst [vmem:[#allocation2 + $0x200] sm:$0xff] %v1261
      %1334 = vst [vmem:[#allocation2 + $0x208] sm:$0xff] %v1262
      %1335 = vst [vmem:[#allocation2 + $0x210] sm:$0xff] %v1263
      %1336 = vst [vmem:[#allocation2 + $0x218] sm:$0xff] %v1264
      %v1337 = vld [vmem:[%s3] sm:$0xff]
      %v1338 = vld [vmem:[%s3 + $0x8] sm:$0xff]
      %v1339 = vld [vmem:[%s3 + $0x10] sm:$0x1]
      %v1340 = vld [vmem:[%s3 + $0x18] sm:$0x1]
      %v1341 = vld [vmem:[#allocation2] sm:$0xff]
      %v1342 = vld [vmem:[#allocation2 + $0x8] sm:$0xff]
      %v1343 = vld [vmem:[#allocation2 + $0x10] sm:$0xff]
      %v1344 = vld [vmem:[#allocation2 + $0x18] sm:$0xff]
      %v1345 = vld [vmem:[#allocation2 + $0x20] sm:$0xff]
      %v1346 = vld [vmem:[#allocation2 + $0x28] sm:$0xff]
      %v1347 = vld [vmem:[#allocation2 + $0x30] sm:$0xff]
      %v1348 = vld [vmem:[#allocation2 + $0x38] sm:$0xff]
      %v1349 = vld [vmem:[#allocation2 + $0x40] sm:$0xff]
      %v1350 = vld [vmem:[#allocation2 + $0x48] sm:$0xff]
      %v1351 = vld [vmem:[#allocation2 + $0x50] sm:$0xff]
      %v1352 = vld [vmem:[#allocation2 + $0x58] sm:$0xff]
      %v1353 = vld [vmem:[#allocation2 + $0x60] sm:$0xff]
      %v1354 = vld [vmem:[#allocation2 + $0x68] sm:$0xff]
      %v1355 = vld [vmem:[#allocation2 + $0x70] sm:$0xff]
      %v1356 = vld [vmem:[#allocation2 + $0x78] sm:$0xff]
      %v1357 = vld [vmem:[#allocation2 + $0x80] sm:$0xff]
      %v1358 = vld [vmem:[#allocation2 + $0x88] sm:$0xff]
      %v1359 = vld [vmem:[#allocation2 + $0x90] sm:$0xff]
      %v1360 = vld [vmem:[#allocation2 + $0x98] sm:$0xff]
      %v1361 = vld [vmem:[#allocation2 + $0xa0] sm:$0xff]
      %v1362 = vld [vmem:[#allocation2 + $0xa8] sm:$0xff]
      %v1363 = vld [vmem:[#allocation2 + $0xb0] sm:$0xff]
      %v1364 = vld [vmem:[#allocation2 + $0xb8] sm:$0xff]
      %v1365 = vld [vmem:[#allocation2 + $0xc0] sm:$0xff]
      %v1366 = vld [vmem:[#allocation2 + $0xc8] sm:$0xff]
      %v1367 = vld [vmem:[#allocation2 + $0xd0] sm:$0xff]
      %v1368 = vld [vmem:[#allocation2 + $0xd8] sm:$0xff]
      %v1369 = vld [vmem:[#allocation2 + $0xe0] sm:$0xff]
      %v1370 = vld [vmem:[#allocation2 + $0xe8] sm:$0xff]
      %v1371 = vld [vmem:[#allocation2 + $0xf0] sm:$0xff]
      %v1372 = vld [vmem:[#allocation2 + $0xf8] sm:$0xff]
      %v1373 = vld [vmem:[#allocation2 + $0x100] sm:$0xff]
      %v1374 = vld [vmem:[#allocation2 + $0x108] sm:$0xff]
      %v1375 = vld [vmem:[#allocation2 + $0x110] sm:$0xff]
      %v1376 = vld [vmem:[#allocation2 + $0x118] sm:$0xff]
      %v1377 = vld [vmem:[#allocation2 + $0x120] sm:$0xff]
      %v1378 = vld [vmem:[#allocation2 + $0x128] sm:$0xff]
      %v1379 = vld [vmem:[#allocation2 + $0x130] sm:$0xff]
      %v1380 = vld [vmem:[#allocation2 + $0x138] sm:$0xff]
      %v1381 = vld [vmem:[#allocation2 + $0x140] sm:$0xff]
      %v1382 = vld [vmem:[#allocation2 + $0x148] sm:$0xff]
      %v1383 = vld [vmem:[#allocation2 + $0x150] sm:$0xff]
      %v1384 = vld [vmem:[#allocation2 + $0x158] sm:$0xff]
      %v1385 = vld [vmem:[#allocation2 + $0x160] sm:$0xff]
      %v1386 = vld [vmem:[#allocation2 + $0x168] sm:$0xff]
      %v1387 = vld [vmem:[#allocation2 + $0x170] sm:$0xff]
      %v1388 = vld [vmem:[#allocation2 + $0x178] sm:$0xff]
      %v1389 = vld [vmem:[#allocation2 + $0x180] sm:$0xff]
      %v1390 = vld [vmem:[#allocation2 + $0x188] sm:$0xff]
      %v1391 = vld [vmem:[#allocation2 + $0x190] sm:$0xff]
      %v1392 = vld [vmem:[#allocation2 + $0x198] sm:$0xff]
      %v1393 = vld [vmem:[#allocation2 + $0x1a0] sm:$0xff]
      %v1394 = vld [vmem:[#allocation2 + $0x1a8] sm:$0xff]
      %v1395 = vld [vmem:[#allocation2 + $0x1b0] sm:$0xff]
      %v1396 = vld [vmem:[#allocation2 + $0x1b8] sm:$0xff]
      %v1397 = vld [vmem:[#allocation2 + $0x1c0] sm:$0xff]
      %v1398 = vld [vmem:[#allocation2 + $0x1c8] sm:$0xff]
      %v1399 = vld [vmem:[#allocation2 + $0x1d0] sm:$0xff]
      %v1400 = vld [vmem:[#allocation2 + $0x1d8] sm:$0xff]
      %v1401 = vld [vmem:[#allocation2 + $0x1e0] sm:$0xff]
      %v1402 = vld [vmem:[#allocation2 + $0x1e8] sm:$0xff]
      %v1403 = vld [vmem:[#allocation2 + $0x1f0] sm:$0xff]
      %v1404 = vld [vmem:[#allocation2 + $0x1f8] sm:$0xff]
      %v1405 = vlaneseq
      %v1406 = vshrl.u32 %v1405, 7
      %v1407 = vsub.s32 0, %v1406
      %v1408 = vrot.slane %v1337, %v1407
      %v1409 = vlaneseq
      %v1410 = vshrl.u32 %v1409, 7
      %v1411 = vsub.s32 0, %v1410
      %v1412 = vrot.slane %v1338, %v1411
      %v1413 = vmul.f32 %v1341, %v1408
      %v1414 = vmul.f32 %v1342, %v1412
      %v1415 = vmul.f32 %v1343, %v1408
      %v1416 = vmul.f32 %v1344, %v1412
      %v1417 = vmul.f32 %v1345, %v1408
      %v1418 = vmul.f32 %v1346, %v1412
      %v1419 = vmul.f32 %v1347, %v1408
      %v1420 = vmul.f32 %v1348, %v1412
      %v1421 = vmul.f32 %v1349, %v1408
      %v1422 = vmul.f32 %v1350, %v1412
      %v1423 = vmul.f32 %v1351, %v1408
      %v1424 = vmul.f32 %v1352, %v1412
      %v1425 = vmul.f32 %v1353, %v1408
      %v1426 = vmul.f32 %v1354, %v1412
      %v1427 = vmul.f32 %v1355, %v1408
      %v1428 = vmul.f32 %v1356, %v1412
      %v1429 = vmul.f32 %v1357, %v1408
      %v1430 = vmul.f32 %v1358, %v1412
      %v1431 = vmul.f32 %v1359, %v1408
      %v1432 = vmul.f32 %v1360, %v1412
      %v1433 = vmul.f32 %v1361, %v1408
      %v1434 = vmul.f32 %v1362, %v1412
      %v1435 = vmul.f32 %v1363, %v1408
      %v1436 = vmul.f32 %v1364, %v1412
      %v1437 = vmul.f32 %v1365, %v1408
      %v1438 = vmul.f32 %v1366, %v1412
      %v1439 = vmul.f32 %v1367, %v1408
      %v1440 = vmul.f32 %v1368, %v1412
      %v1441 = vmul.f32 %v1369, %v1408
      %v1442 = vmul.f32 %v1370, %v1412
      %v1443 = vmul.f32 %v1371, %v1408
      %v1444 = vmul.f32 %v1372, %v1412
      %v1445 = vmul.f32 %v1373, %v1408
      %v1446 = vmul.f32 %v1374, %v1412
      %v1447 = vmul.f32 %v1375, %v1408
      %v1448 = vmul.f32 %v1376, %v1412
      %v1449 = vmul.f32 %v1377, %v1408
      %v1450 = vmul.f32 %v1378, %v1412
      %v1451 = vmul.f32 %v1379, %v1408
      %v1452 = vmul.f32 %v1380, %v1412
      %v1453 = vmul.f32 %v1381, %v1408
      %v1454 = vmul.f32 %v1382, %v1412
      %v1455 = vmul.f32 %v1383, %v1408
      %v1456 = vmul.f32 %v1384, %v1412
      %v1457 = vmul.f32 %v1385, %v1408
      %v1458 = vmul.f32 %v1386, %v1412
      %v1459 = vmul.f32 %v1387, %v1408
      %v1460 = vmul.f32 %v1388, %v1412
      %v1461 = vmul.f32 %v1389, %v1408
      %v1462 = vmul.f32 %v1390, %v1412
      %v1463 = vmul.f32 %v1391, %v1408
      %v1464 = vmul.f32 %v1392, %v1412
      %v1465 = vmul.f32 %v1393, %v1408
      %v1466 = vmul.f32 %v1394, %v1412
      %v1467 = vmul.f32 %v1395, %v1408
      %v1468 = vmul.f32 %v1396, %v1412
      %v1469 = vmul.f32 %v1397, %v1408
      %v1470 = vmul.f32 %v1398, %v1412
      %v1471 = vmul.f32 %v1399, %v1408
      %v1472 = vmul.f32 %v1400, %v1412
      %v1473 = vmul.f32 %v1401, %v1408
      %v1474 = vmul.f32 %v1402, %v1412
      %v1475 = vmul.f32 %v1403, %v1408
      %v1476 = vmul.f32 %v1404, %v1412
      %v1477 = vlaneseq
      %v1478 = vshrl.u32 %v1477, 7
      %v1479 = vsub.s32 1, %v1478
      %v1480 = vrot.slane %v1337, %v1479
      %v1481 = vlaneseq
      %v1482 = vshrl.u32 %v1481, 7
      %v1483 = vsub.s32 1, %v1482
      %v1484 = vrot.slane %v1338, %v1483
      %v1485 = vmul.f32 %v1341, %v1480
      %v1486 = vmul.f32 %v1342, %v1484
      %v1487 = vmul.f32 %v1343, %v1480
      %v1488 = vmul.f32 %v1344, %v1484
      %v1489 = vmul.f32 %v1345, %v1480
      %v1490 = vmul.f32 %v1346, %v1484
      %v1491 = vmul.f32 %v1347, %v1480
      %v1492 = vmul.f32 %v1348, %v1484
      %v1493 = vmul.f32 %v1349, %v1480
      %v1494 = vmul.f32 %v1350, %v1484
      %v1495 = vmul.f32 %v1351, %v1480
      %v1496 = vmul.f32 %v1352, %v1484
      %v1497 = vmul.f32 %v1353, %v1480
      %v1498 = vmul.f32 %v1354, %v1484
      %v1499 = vmul.f32 %v1355, %v1480
      %v1500 = vmul.f32 %v1356, %v1484
      %v1501 = vmul.f32 %v1357, %v1480
      %v1502 = vmul.f32 %v1358, %v1484
      %v1503 = vmul.f32 %v1359, %v1480
      %v1504 = vmul.f32 %v1360, %v1484
      %v1505 = vmul.f32 %v1361, %v1480
      %v1506 = vmul.f32 %v1362, %v1484
      %v1507 = vmul.f32 %v1363, %v1480
      %v1508 = vmul.f32 %v1364, %v1484
      %v1509 = vmul.f32 %v1365, %v1480
      %v1510 = vmul.f32 %v1366, %v1484
      %v1511 = vmul.f32 %v1367, %v1480
      %v1512 = vmul.f32 %v1368, %v1484
      %v1513 = vmul.f32 %v1369, %v1480
      %v1514 = vmul.f32 %v1370, %v1484
      %v1515 = vmul.f32 %v1371, %v1480
      %v1516 = vmul.f32 %v1372, %v1484
      %v1517 = vmul.f32 %v1373, %v1480
      %v1518 = vmul.f32 %v1374, %v1484
      %v1519 = vmul.f32 %v1375, %v1480
      %v1520 = vmul.f32 %v1376, %v1484
      %v1521 = vmul.f32 %v1377, %v1480
      %v1522 = vmul.f32 %v1378, %v1484
      %v1523 = vmul.f32 %v1379, %v1480
      %v1524 = vmul.f32 %v1380, %v1484
      %v1525 = vmul.f32 %v1381, %v1480
      %v1526 = vmul.f32 %v1382, %v1484
      %v1527 = vmul.f32 %v1383, %v1480
      %v1528 = vmul.f32 %v1384, %v1484
      %v1529 = vmul.f32 %v1385, %v1480
      %v1530 = vmul.f32 %v1386, %v1484
      %v1531 = vmul.f32 %v1387, %v1480
      %v1532 = vmul.f32 %v1388, %v1484
      %v1533 = vmul.f32 %v1389, %v1480
      %v1534 = vmul.f32 %v1390, %v1484
      %v1535 = vmul.f32 %v1391, %v1480
      %v1536 = vmul.f32 %v1392, %v1484
      %v1537 = vmul.f32 %v1393, %v1480
      %v1538 = vmul.f32 %v1394, %v1484
      %v1539 = vmul.f32 %v1395, %v1480
      %v1540 = vmul.f32 %v1396, %v1484
      %v1541 = vmul.f32 %v1397, %v1480
      %v1542 = vmul.f32 %v1398, %v1484
      %v1543 = vmul.f32 %v1399, %v1480
      %v1544 = vmul.f32 %v1400, %v1484
      %v1545 = vmul.f32 %v1401, %v1480
      %v1546 = vmul.f32 %v1402, %v1484
      %v1547 = vmul.f32 %v1403, %v1480
      %v1548 = vmul.f32 %v1404, %v1484
      %v1549 = vlaneseq
      %v1550 = vshrl.u32 %v1549, 7
      %v1551 = vsub.s32 2, %v1550
      %v1552 = vrot.slane %v1337, %v1551
      %v1553 = vlaneseq
      %v1554 = vshrl.u32 %v1553, 7
      %v1555 = vsub.s32 2, %v1554
      %v1556 = vrot.slane %v1338, %v1555
      %v1557 = vmul.f32 %v1341, %v1552
      %v1558 = vmul.f32 %v1342, %v1556
      %v1559 = vmul.f32 %v1343, %v1552
      %v1560 = vmul.f32 %v1344, %v1556
      %v1561 = vmul.f32 %v1345, %v1552
      %v1562 = vmul.f32 %v1346, %v1556
      %v1563 = vmul.f32 %v1347, %v1552
      %v1564 = vmul.f32 %v1348, %v1556
      %v1565 = vmul.f32 %v1349, %v1552
      %v1566 = vmul.f32 %v1350, %v1556
      %v1567 = vmul.f32 %v1351, %v1552
      %v1568 = vmul.f32 %v1352, %v1556
      %v1569 = vmul.f32 %v1353, %v1552
      %v1570 = vmul.f32 %v1354, %v1556
      %v1571 = vmul.f32 %v1355, %v1552
      %v1572 = vmul.f32 %v1356, %v1556
      %v1573 = vmul.f32 %v1357, %v1552
      %v1574 = vmul.f32 %v1358, %v1556
      %v1575 = vmul.f32 %v1359, %v1552
      %v1576 = vmul.f32 %v1360, %v1556
      %v1577 = vmul.f32 %v1361, %v1552
      %v1578 = vmul.f32 %v1362, %v1556
      %v1579 = vmul.f32 %v1363, %v1552
      %v1580 = vmul.f32 %v1364, %v1556
      %v1581 = vmul.f32 %v1365, %v1552
      %v1582 = vmul.f32 %v1366, %v1556
      %v1583 = vmul.f32 %v1367, %v1552
      %v1584 = vmul.f32 %v1368, %v1556
      %v1585 = vmul.f32 %v1369, %v1552
      %v1586 = vmul.f32 %v1370, %v1556
      %v1587 = vmul.f32 %v1371, %v1552
      %v1588 = vmul.f32 %v1372, %v1556
      %v1589 = vmul.f32 %v1373, %v1552
      %v1590 = vmul.f32 %v1374, %v1556
      %v1591 = vmul.f32 %v1375, %v1552
      %v1592 = vmul.f32 %v1376, %v1556
      %v1593 = vmul.f32 %v1377, %v1552
      %v1594 = vmul.f32 %v1378, %v1556
      %v1595 = vmul.f32 %v1379, %v1552
      %v1596 = vmul.f32 %v1380, %v1556
      %v1597 = vmul.f32 %v1381, %v1552
      %v1598 = vmul.f32 %v1382, %v1556
      %v1599 = vmul.f32 %v1383, %v1552
      %v1600 = vmul.f32 %v1384, %v1556
      %v1601 = vmul.f32 %v1385, %v1552
      %v1602 = vmul.f32 %v1386, %v1556
      %v1603 = vmul.f32 %v1387, %v1552
      %v1604 = vmul.f32 %v1388, %v1556
      %v1605 = vmul.f32 %v1389, %v1552
      %v1606 = vmul.f32 %v1390, %v1556
      %v1607 = vmul.f32 %v1391, %v1552
      %v1608 = vmul.f32 %v1392, %v1556
      %v1609 = vmul.f32 %v1393, %v1552
      %v1610 = vmul.f32 %v1394, %v1556
      %v1611 = vmul.f32 %v1395, %v1552
      %v1612 = vmul.f32 %v1396, %v1556
      %v1613 = vmul.f32 %v1397, %v1552
      %v1614 = vmul.f32 %v1398, %v1556
      %v1615 = vmul.f32 %v1399, %v1552
      %v1616 = vmul.f32 %v1400, %v1556
      %v1617 = vmul.f32 %v1401, %v1552
      %v1618 = vmul.f32 %v1402, %v1556
      %v1619 = vmul.f32 %v1403, %v1552
      %v1620 = vmul.f32 %v1404, %v1556
      %v1621 = vld [vmem:[#allocation2 + $0x200] sm:$0xff]
      %v1622 = vld [vmem:[#allocation2 + $0x208] sm:$0xff]
      %v1623 = vld [vmem:[#allocation2 + $0x210] sm:$0xff]
      %v1624 = vld [vmem:[#allocation2 + $0x218] sm:$0xff]
      %v1625 = vlaneseq
      %v1626 = vshrl.u32 %v1625, 7
      %v1627 = vsub.s32 3, %v1626
      %v1628 = vrot.slane %v1337, %v1627
      %v1629 = vlaneseq
      %v1630 = vshrl.u32 %v1629, 7
      %v1631 = vsub.s32 3, %v1630
      %v1632 = vrot.slane %v1338, %v1631
      %v1633 = vmul.f32 %v1345, %v1628
      %v1634 = vmul.f32 %v1346, %v1632
      %v1635 = vmul.f32 %v1347, %v1628
      %v1636 = vmul.f32 %v1348, %v1632
      %v1637 = vmul.f32 %v1349, %v1628
      %v1638 = vmul.f32 %v1350, %v1632
      %v1639 = vmul.f32 %v1351, %v1628
      %v1640 = vmul.f32 %v1352, %v1632
      %v1641 = vmul.f32 %v1353, %v1628
      %v1642 = vmul.f32 %v1354, %v1632
      %v1643 = vmul.f32 %v1355, %v1628
      %v1644 = vmul.f32 %v1356, %v1632
      %v1645 = vmul.f32 %v1357, %v1628
      %v1646 = vmul.f32 %v1358, %v1632
      %v1647 = vmul.f32 %v1359, %v1628
      %v1648 = vmul.f32 %v1360, %v1632
      %v1649 = vmul.f32 %v1361, %v1628
      %v1650 = vmul.f32 %v1362, %v1632
      %v1651 = vmul.f32 %v1363, %v1628
      %v1652 = vmul.f32 %v1364, %v1632
      %v1653 = vmul.f32 %v1365, %v1628
      %v1654 = vmul.f32 %v1366, %v1632
      %v1655 = vmul.f32 %v1367, %v1628
      %v1656 = vmul.f32 %v1368, %v1632
      %v1657 = vmul.f32 %v1369, %v1628
      %v1658 = vmul.f32 %v1370, %v1632
      %v1659 = vmul.f32 %v1371, %v1628
      %v1660 = vmul.f32 %v1372, %v1632
      %v1661 = vmul.f32 %v1373, %v1628
      %v1662 = vmul.f32 %v1374, %v1632
      %v1663 = vmul.f32 %v1375, %v1628
      %v1664 = vmul.f32 %v1376, %v1632
      %v1665 = vmul.f32 %v1377, %v1628
      %v1666 = vmul.f32 %v1378, %v1632
      %v1667 = vmul.f32 %v1379, %v1628
      %v1668 = vmul.f32 %v1380, %v1632
      %v1669 = vmul.f32 %v1381, %v1628
      %v1670 = vmul.f32 %v1382, %v1632
      %v1671 = vmul.f32 %v1383, %v1628
      %v1672 = vmul.f32 %v1384, %v1632
      %v1673 = vmul.f32 %v1385, %v1628
      %v1674 = vmul.f32 %v1386, %v1632
      %v1675 = vmul.f32 %v1387, %v1628
      %v1676 = vmul.f32 %v1388, %v1632
      %v1677 = vmul.f32 %v1389, %v1628
      %v1678 = vmul.f32 %v1390, %v1632
      %v1679 = vmul.f32 %v1391, %v1628
      %v1680 = vmul.f32 %v1392, %v1632
      %v1681 = vmul.f32 %v1393, %v1628
      %v1682 = vmul.f32 %v1394, %v1632
      %v1683 = vmul.f32 %v1395, %v1628
      %v1684 = vmul.f32 %v1396, %v1632
      %v1685 = vmul.f32 %v1397, %v1628
      %v1686 = vmul.f32 %v1398, %v1632
      %v1687 = vmul.f32 %v1399, %v1628
      %v1688 = vmul.f32 %v1400, %v1632
      %v1689 = vmul.f32 %v1401, %v1628
      %v1690 = vmul.f32 %v1402, %v1632
      %v1691 = vmul.f32 %v1403, %v1628
      %v1692 = vmul.f32 %v1404, %v1632
      %v1693 = vmul.f32 %v1621, %v1628
      %v1694 = vmul.f32 %v1622, %v1632
      %v1695 = vmul.f32 %v1623, %v1628
      %v1696 = vmul.f32 %v1624, %v1632
      %v1697 = vlaneseq
      %v1698 = vshrl.u32 %v1697, 7
      %v1699 = vsub.s32 4, %v1698
      %v1700 = vrot.slane %v1337, %v1699
      %v1701 = vlaneseq
      %v1702 = vshrl.u32 %v1701, 7
      %v1703 = vsub.s32 4, %v1702
      %v1704 = vrot.slane %v1338, %v1703
      %v1705 = vmul.f32 %v1345, %v1700
      %v1706 = vmul.f32 %v1346, %v1704
      %v1707 = vmul.f32 %v1347, %v1700
      %v1708 = vmul.f32 %v1348, %v1704
      %v1709 = vmul.f32 %v1349, %v1700
      %v1710 = vmul.f32 %v1350, %v1704
      %v1711 = vmul.f32 %v1351, %v1700
      %v1712 = vmul.f32 %v1352, %v1704
      %v1713 = vmul.f32 %v1353, %v1700
      %v1714 = vmul.f32 %v1354, %v1704
      %v1715 = vmul.f32 %v1355, %v1700
      %v1716 = vmul.f32 %v1356, %v1704
      %v1717 = vmul.f32 %v1357, %v1700
      %v1718 = vmul.f32 %v1358, %v1704
      %v1719 = vmul.f32 %v1359, %v1700
      %v1720 = vmul.f32 %v1360, %v1704
      %v1721 = vmul.f32 %v1361, %v1700
      %v1722 = vmul.f32 %v1362, %v1704
      %v1723 = vmul.f32 %v1363, %v1700
      %v1724 = vmul.f32 %v1364, %v1704
      %v1725 = vmul.f32 %v1365, %v1700
      %v1726 = vmul.f32 %v1366, %v1704
      %v1727 = vmul.f32 %v1367, %v1700
      %v1728 = vmul.f32 %v1368, %v1704
      %v1729 = vmul.f32 %v1369, %v1700
      %v1730 = vmul.f32 %v1370, %v1704
      %v1731 = vmul.f32 %v1371, %v1700
      %v1732 = vmul.f32 %v1372, %v1704
      %v1733 = vmul.f32 %v1373, %v1700
      %v1734 = vmul.f32 %v1374, %v1704
      %v1735 = vmul.f32 %v1375, %v1700
      %v1736 = vmul.f32 %v1376, %v1704
      %v1737 = vmul.f32 %v1377, %v1700
      %v1738 = vmul.f32 %v1378, %v1704
      %v1739 = vmul.f32 %v1379, %v1700
      %v1740 = vmul.f32 %v1380, %v1704
      %v1741 = vmul.f32 %v1381, %v1700
      %v1742 = vmul.f32 %v1382, %v1704
      %v1743 = vmul.f32 %v1383, %v1700
      %v1744 = vmul.f32 %v1384, %v1704
      %v1745 = vmul.f32 %v1385, %v1700
      %v1746 = vmul.f32 %v1386, %v1704
      %v1747 = vmul.f32 %v1387, %v1700
      %v1748 = vmul.f32 %v1388, %v1704
      %v1749 = vmul.f32 %v1389, %v1700
      %v1750 = vmul.f32 %v1390, %v1704
      %v1751 = vmul.f32 %v1391, %v1700
      %v1752 = vmul.f32 %v1392, %v1704
      %v1753 = vmul.f32 %v1393, %v1700
      %v1754 = vmul.f32 %v1394, %v1704
      %v1755 = vmul.f32 %v1395, %v1700
      %v1756 = vmul.f32 %v1396, %v1704
      %v1757 = vmul.f32 %v1397, %v1700
      %v1758 = vmul.f32 %v1398, %v1704
      %v1759 = vmul.f32 %v1399, %v1700
      %v1760 = vmul.f32 %v1400, %v1704
      %v1761 = vmul.f32 %v1401, %v1700
      %v1762 = vmul.f32 %v1402, %v1704
      %v1763 = vmul.f32 %v1403, %v1700
      %v1764 = vmul.f32 %v1404, %v1704
      %v1765 = vmul.f32 %v1621, %v1700
      %v1766 = vmul.f32 %v1622, %v1704
      %v1767 = vmul.f32 %v1623, %v1700
      %v1768 = vmul.f32 %v1624, %v1704
      %v1769 = vlaneseq
      %v1770 = vshrl.u32 %v1769, 7
      %v1771 = vsub.s32 5, %v1770
      %v1772 = vrot.slane %v1337, %v1771
      %v1773 = vlaneseq
      %v1774 = vshrl.u32 %v1773, 7
      %v1775 = vsub.s32 5, %v1774
      %v1776 = vrot.slane %v1338, %v1775
      %v1777 = vmul.f32 %v1345, %v1772
      %v1778 = vmul.f32 %v1346, %v1776
      %v1779 = vmul.f32 %v1347, %v1772
      %v1780 = vmul.f32 %v1348, %v1776
      %v1781 = vmul.f32 %v1349, %v1772
      %v1782 = vmul.f32 %v1350, %v1776
      %v1783 = vmul.f32 %v1351, %v1772
      %v1784 = vmul.f32 %v1352, %v1776
      %v1785 = vmul.f32 %v1353, %v1772
      %v1786 = vmul.f32 %v1354, %v1776
      %v1787 = vmul.f32 %v1355, %v1772
      %v1788 = vmul.f32 %v1356, %v1776
      %v1789 = vmul.f32 %v1357, %v1772
      %v1790 = vmul.f32 %v1358, %v1776
      %v1791 = vmul.f32 %v1359, %v1772
      %v1792 = vmul.f32 %v1360, %v1776
      %v1793 = vmul.f32 %v1361, %v1772
      %v1794 = vmul.f32 %v1362, %v1776
      %v1795 = vmul.f32 %v1363, %v1772
      %v1796 = vmul.f32 %v1364, %v1776
      %v1797 = vmul.f32 %v1365, %v1772
      %v1798 = vmul.f32 %v1366, %v1776
      %v1799 = vmul.f32 %v1367, %v1772
      %v1800 = vmul.f32 %v1368, %v1776
      %v1801 = vmul.f32 %v1369, %v1772
      %v1802 = vmul.f32 %v1370, %v1776
      %v1803 = vmul.f32 %v1371, %v1772
      %v1804 = vmul.f32 %v1372, %v1776
      %v1805 = vmul.f32 %v1373, %v1772
      %v1806 = vmul.f32 %v1374, %v1776
      %v1807 = vmul.f32 %v1375, %v1772
      %v1808 = vmul.f32 %v1376, %v1776
      %v1809 = vmul.f32 %v1377, %v1772
      %v1810 = vmul.f32 %v1378, %v1776
      %v1811 = vmul.f32 %v1379, %v1772
      %v1812 = vmul.f32 %v1380, %v1776
      %v1813 = vmul.f32 %v1381, %v1772
      %v1814 = vmul.f32 %v1382, %v1776
      %v1815 = vmul.f32 %v1383, %v1772
      %v1816 = vmul.f32 %v1384, %v1776
      %v1817 = vmul.f32 %v1385, %v1772
      %v1818 = vmul.f32 %v1386, %v1776
      %v1819 = vmul.f32 %v1387, %v1772
      %v1820 = vmul.f32 %v1388, %v1776
      %v1821 = vmul.f32 %v1389, %v1772
      %v1822 = vmul.f32 %v1390, %v1776
      %v1823 = vmul.f32 %v1391, %v1772
      %v1824 = vmul.f32 %v1392, %v1776
      %v1825 = vmul.f32 %v1393, %v1772
      %v1826 = vmul.f32 %v1394, %v1776
      %v1827 = vmul.f32 %v1395, %v1772
      %v1828 = vmul.f32 %v1396, %v1776
      %v1829 = vmul.f32 %v1397, %v1772
      %v1830 = vmul.f32 %v1398, %v1776
      %v1831 = vmul.f32 %v1399, %v1772
      %v1832 = vmul.f32 %v1400, %v1776
      %v1833 = vmul.f32 %v1401, %v1772
      %v1834 = vmul.f32 %v1402, %v1776
      %v1835 = vmul.f32 %v1403, %v1772
      %v1836 = vmul.f32 %v1404, %v1776
      %v1837 = vmul.f32 %v1621, %v1772
      %v1838 = vmul.f32 %v1622, %v1776
      %v1839 = vmul.f32 %v1623, %v1772
      %v1840 = vmul.f32 %v1624, %v1776
      %v1841 = vadd.f32 %v1413, %v1633
      %v1842 = vadd.f32 %v1414, %v1634
      %v1843 = vadd.f32 %v1415, %v1635
      %v1844 = vadd.f32 %v1416, %v1636
      %v1845 = vadd.f32 %v1417, %v1637
      %v1846 = vadd.f32 %v1418, %v1638
      %v1847 = vadd.f32 %v1419, %v1639
      %v1848 = vadd.f32 %v1420, %v1640
      %v1849 = vadd.f32 %v1421, %v1641
      %v1850 = vadd.f32 %v1422, %v1642
      %v1851 = vadd.f32 %v1423, %v1643
      %v1852 = vadd.f32 %v1424, %v1644
      %v1853 = vadd.f32 %v1425, %v1645
      %v1854 = vadd.f32 %v1426, %v1646
      %v1855 = vadd.f32 %v1427, %v1647
      %v1856 = vadd.f32 %v1428, %v1648
      %v1857 = vadd.f32 %v1429, %v1649
      %v1858 = vadd.f32 %v1430, %v1650
      %v1859 = vadd.f32 %v1431, %v1651
      %v1860 = vadd.f32 %v1432, %v1652
      %v1861 = vadd.f32 %v1433, %v1653
      %v1862 = vadd.f32 %v1434, %v1654
      %v1863 = vadd.f32 %v1435, %v1655
      %v1864 = vadd.f32 %v1436, %v1656
      %v1865 = vadd.f32 %v1437, %v1657
      %v1866 = vadd.f32 %v1438, %v1658
      %v1867 = vadd.f32 %v1439, %v1659
      %v1868 = vadd.f32 %v1440, %v1660
      %v1869 = vadd.f32 %v1441, %v1661
      %v1870 = vadd.f32 %v1442, %v1662
      %v1871 = vadd.f32 %v1443, %v1663
      %v1872 = vadd.f32 %v1444, %v1664
      %v1873 = vadd.f32 %v1445, %v1665
      %v1874 = vadd.f32 %v1446, %v1666
      %v1875 = vadd.f32 %v1447, %v1667
      %v1876 = vadd.f32 %v1448, %v1668
      %v1877 = vadd.f32 %v1449, %v1669
      %v1878 = vadd.f32 %v1450, %v1670
      %v1879 = vadd.f32 %v1451, %v1671
      %v1880 = vadd.f32 %v1452, %v1672
      %v1881 = vadd.f32 %v1453, %v1673
      %v1882 = vadd.f32 %v1454, %v1674
      %v1883 = vadd.f32 %v1455, %v1675
      %v1884 = vadd.f32 %v1456, %v1676
      %v1885 = vadd.f32 %v1457, %v1677
      %v1886 = vadd.f32 %v1458, %v1678
      %v1887 = vadd.f32 %v1459, %v1679
      %v1888 = vadd.f32 %v1460, %v1680
      %v1889 = vadd.f32 %v1461, %v1681
      %v1890 = vadd.f32 %v1462, %v1682
      %v1891 = vadd.f32 %v1463, %v1683
      %v1892 = vadd.f32 %v1464, %v1684
      %v1893 = vadd.f32 %v1465, %v1685
      %v1894 = vadd.f32 %v1466, %v1686
      %v1895 = vadd.f32 %v1467, %v1687
      %v1896 = vadd.f32 %v1468, %v1688
      %v1897 = vadd.f32 %v1469, %v1689
      %v1898 = vadd.f32 %v1470, %v1690
      %v1899 = vadd.f32 %v1471, %v1691
      %v1900 = vadd.f32 %v1472, %v1692
      %v1901 = vadd.f32 %v1473, %v1693
      %v1902 = vadd.f32 %v1474, %v1694
      %v1903 = vadd.f32 %v1475, %v1695
      %v1904 = vadd.f32 %v1476, %v1696
      %v1905 = vadd.f32 %v1485, %v1705
      %v1906 = vadd.f32 %v1486, %v1706
      %v1907 = vadd.f32 %v1487, %v1707
      %v1908 = vadd.f32 %v1488, %v1708
      %v1909 = vadd.f32 %v1489, %v1709
      %v1910 = vadd.f32 %v1490, %v1710
      %v1911 = vadd.f32 %v1491, %v1711
      %v1912 = vadd.f32 %v1492, %v1712
      %v1913 = vadd.f32 %v1493, %v1713
      %v1914 = vadd.f32 %v1494, %v1714
      %v1915 = vadd.f32 %v1495, %v1715
      %v1916 = vadd.f32 %v1496, %v1716
      %v1917 = vadd.f32 %v1497, %v1717
      %v1918 = vadd.f32 %v1498, %v1718
      %v1919 = vadd.f32 %v1499, %v1719
      %v1920 = vadd.f32 %v1500, %v1720
      %v1921 = vadd.f32 %v1501, %v1721
      %v1922 = vadd.f32 %v1502, %v1722
      %v1923 = vadd.f32 %v1503, %v1723
      %v1924 = vadd.f32 %v1504, %v1724
      %v1925 = vadd.f32 %v1505, %v1725
      %v1926 = vadd.f32 %v1506, %v1726
      %v1927 = vadd.f32 %v1507, %v1727
      %v1928 = vadd.f32 %v1508, %v1728
      %v1929 = vadd.f32 %v1509, %v1729
      %v1930 = vadd.f32 %v1510, %v1730
      %v1931 = vadd.f32 %v1511, %v1731
      %v1932 = vadd.f32 %v1512, %v1732
      %v1933 = vadd.f32 %v1513, %v1733
      %v1934 = vadd.f32 %v1514, %v1734
      %v1935 = vadd.f32 %v1515, %v1735
      %v1936 = vadd.f32 %v1516, %v1736
      %v1937 = vadd.f32 %v1517, %v1737
      %v1938 = vadd.f32 %v1518, %v1738
      %v1939 = vadd.f32 %v1519, %v1739
      %v1940 = vadd.f32 %v1520, %v1740
      %v1941 = vadd.f32 %v1521, %v1741
      %v1942 = vadd.f32 %v1522, %v1742
      %v1943 = vadd.f32 %v1523, %v1743
      %v1944 = vadd.f32 %v1524, %v1744
      %v1945 = vadd.f32 %v1525, %v1745
      %v1946 = vadd.f32 %v1526, %v1746
      %v1947 = vadd.f32 %v1527, %v1747
      %v1948 = vadd.f32 %v1528, %v1748
      %v1949 = vadd.f32 %v1529, %v1749
      %v1950 = vadd.f32 %v1530, %v1750
      %v1951 = vadd.f32 %v1531, %v1751
      %v1952 = vadd.f32 %v1532, %v1752
      %v1953 = vadd.f32 %v1533, %v1753
      %v1954 = vadd.f32 %v1534, %v1754
      %v1955 = vadd.f32 %v1535, %v1755
      %v1956 = vadd.f32 %v1536, %v1756
      %v1957 = vadd.f32 %v1537, %v1757
      %v1958 = vadd.f32 %v1538, %v1758
      %v1959 = vadd.f32 %v1539, %v1759
      %v1960 = vadd.f32 %v1540, %v1760
      %v1961 = vadd.f32 %v1541, %v1761
      %v1962 = vadd.f32 %v1542, %v1762
      %v1963 = vadd.f32 %v1543, %v1763
      %v1964 = vadd.f32 %v1544, %v1764
      %v1965 = vadd.f32 %v1545, %v1765
      %v1966 = vadd.f32 %v1546, %v1766
      %v1967 = vadd.f32 %v1547, %v1767
      %v1968 = vadd.f32 %v1548, %v1768
      %v1969 = vadd.f32 %v1557, %v1777
      %v1970 = vadd.f32 %v1558, %v1778
      %v1971 = vadd.f32 %v1559, %v1779
      %v1972 = vadd.f32 %v1560, %v1780
      %v1973 = vadd.f32 %v1561, %v1781
      %v1974 = vadd.f32 %v1562, %v1782
      %v1975 = vadd.f32 %v1563, %v1783
      %v1976 = vadd.f32 %v1564, %v1784
      %v1977 = vadd.f32 %v1565, %v1785
      %v1978 = vadd.f32 %v1566, %v1786
      %v1979 = vadd.f32 %v1567, %v1787
      %v1980 = vadd.f32 %v1568, %v1788
      %v1981 = vadd.f32 %v1569, %v1789
      %v1982 = vadd.f32 %v1570, %v1790
      %v1983 = vadd.f32 %v1571, %v1791
      %v1984 = vadd.f32 %v1572, %v1792
      %v1985 = vadd.f32 %v1573, %v1793
      %v1986 = vadd.f32 %v1574, %v1794
      %v1987 = vadd.f32 %v1575, %v1795
      %v1988 = vadd.f32 %v1576, %v1796
      %v1989 = vadd.f32 %v1577, %v1797
      %v1990 = vadd.f32 %v1578, %v1798
      %v1991 = vadd.f32 %v1579, %v1799
      %v1992 = vadd.f32 %v1580, %v1800
      %v1993 = vadd.f32 %v1581, %v1801
      %v1994 = vadd.f32 %v1582, %v1802
      %v1995 = vadd.f32 %v1583, %v1803
      %v1996 = vadd.f32 %v1584, %v1804
      %v1997 = vadd.f32 %v1585, %v1805
      %v1998 = vadd.f32 %v1586, %v1806
      %v1999 = vadd.f32 %v1587, %v1807
      %v2000 = vadd.f32 %v1588, %v1808
      %v2001 = vadd.f32 %v1589, %v1809
      %v2002 = vadd.f32 %v1590, %v1810
      %v2003 = vadd.f32 %v1591, %v1811
      %v2004 = vadd.f32 %v1592, %v1812
      %v2005 = vadd.f32 %v1593, %v1813
      %v2006 = vadd.f32 %v1594, %v1814
      %v2007 = vadd.f32 %v1595, %v1815
      %v2008 = vadd.f32 %v1596, %v1816
      %v2009 = vadd.f32 %v1597, %v1817
      %v2010 = vadd.f32 %v1598, %v1818
      %v2011 = vadd.f32 %v1599, %v1819
      %v2012 = vadd.f32 %v1600, %v1820
      %v2013 = vadd.f32 %v1601, %v1821
      %v2014 = vadd.f32 %v1602, %v1822
      %v2015 = vadd.f32 %v1603, %v1823
      %v2016 = vadd.f32 %v1604, %v1824
      %v2017 = vadd.f32 %v1605, %v1825
      %v2018 = vadd.f32 %v1606, %v1826
      %v2019 = vadd.f32 %v1607, %v1827
      %v2020 = vadd.f32 %v1608, %v1828
      %v2021 = vadd.f32 %v1609, %v1829
      %v2022 = vadd.f32 %v1610, %v1830
      %v2023 = vadd.f32 %v1611, %v1831
      %v2024 = vadd.f32 %v1612, %v1832
      %v2025 = vadd.f32 %v1613, %v1833
      %v2026 = vadd.f32 %v1614, %v1834
      %v2027 = vadd.f32 %v1615, %v1835
      %v2028 = vadd.f32 %v1616, %v1836
      %v2029 = vadd.f32 %v1617, %v1837
      %v2030 = vadd.f32 %v1618, %v1838
      %v2031 = vadd.f32 %v1619, %v1839
      %v2032 = vadd.f32 %v1620, %v1840
      %v2033 = vld [vmem:[#allocation2 + $0x40] sm:$0xff]
      %v2034 = vld [vmem:[#allocation2 + $0x48] sm:$0xff]
      %v2035 = vld [vmem:[#allocation2 + $0x50] sm:$0xff]
      %v2036 = vld [vmem:[#allocation2 + $0x58] sm:$0xff]
      %v2037 = vld [vmem:[#allocation2 + $0x60] sm:$0xff]
      %v2038 = vld [vmem:[#allocation2 + $0x68] sm:$0xff]
      %v2039 = vld [vmem:[#allocation2 + $0x70] sm:$0xff]
      %v2040 = vld [vmem:[#allocation2 + $0x78] sm:$0xff]
      %v2041 = vld [vmem:[#allocation2 + $0x80] sm:$0xff]
      %v2042 = vld [vmem:[#allocation2 + $0x88] sm:$0xff]
      %v2043 = vld [vmem:[#allocation2 + $0x90] sm:$0xff]
      %v2044 = vld [vmem:[#allocation2 + $0x98] sm:$0xff]
      %v2045 = vld [vmem:[#allocation2 + $0xa0] sm:$0xff]
      %v2046 = vld [vmem:[#allocation2 + $0xa8] sm:$0xff]
      %v2047 = vld [vmem:[#allocation2 + $0xb0] sm:$0xff]
      %v2048 = vld [vmem:[#allocation2 + $0xb8] sm:$0xff]
      %v2049 = vld [vmem:[#allocation2 + $0xc0] sm:$0xff]
      %v2050 = vld [vmem:[#allocation2 + $0xc8] sm:$0xff]
      %v2051 = vld [vmem:[#allocation2 + $0xd0] sm:$0xff]
      %v2052 = vld [vmem:[#allocation2 + $0xd8] sm:$0xff]
      %v2053 = vld [vmem:[#allocation2 + $0xe0] sm:$0xff]
      %v2054 = vld [vmem:[#allocation2 + $0xe8] sm:$0xff]
      %v2055 = vld [vmem:[#allocation2 + $0xf0] sm:$0xff]
      %v2056 = vld [vmem:[#allocation2 + $0xf8] sm:$0xff]
      %v2057 = vld [vmem:[#allocation2 + $0x100] sm:$0xff]
      %v2058 = vld [vmem:[#allocation2 + $0x108] sm:$0xff]
      %v2059 = vld [vmem:[#allocation2 + $0x110] sm:$0xff]
      %v2060 = vld [vmem:[#allocation2 + $0x118] sm:$0xff]
      %v2061 = vld [vmem:[#allocation2 + $0x120] sm:$0xff]
      %v2062 = vld [vmem:[#allocation2 + $0x128] sm:$0xff]
      %v2063 = vld [vmem:[#allocation2 + $0x130] sm:$0xff]
      %v2064 = vld [vmem:[#allocation2 + $0x138] sm:$0xff]
      %v2065 = vld [vmem:[#allocation2 + $0x140] sm:$0xff]
      %v2066 = vld [vmem:[#allocation2 + $0x148] sm:$0xff]
      %v2067 = vld [vmem:[#allocation2 + $0x150] sm:$0xff]
      %v2068 = vld [vmem:[#allocation2 + $0x158] sm:$0xff]
      %v2069 = vld [vmem:[#allocation2 + $0x160] sm:$0xff]
      %v2070 = vld [vmem:[#allocation2 + $0x168] sm:$0xff]
      %v2071 = vld [vmem:[#allocation2 + $0x170] sm:$0xff]
      %v2072 = vld [vmem:[#allocation2 + $0x178] sm:$0xff]
      %v2073 = vld [vmem:[#allocation2 + $0x180] sm:$0xff]
      %v2074 = vld [vmem:[#allocation2 + $0x188] sm:$0xff]
      %v2075 = vld [vmem:[#allocation2 + $0x190] sm:$0xff]
      %v2076 = vld [vmem:[#allocation2 + $0x198] sm:$0xff]
      %v2077 = vld [vmem:[#allocation2 + $0x1a0] sm:$0xff]
      %v2078 = vld [vmem:[#allocation2 + $0x1a8] sm:$0xff]
      %v2079 = vld [vmem:[#allocation2 + $0x1b0] sm:$0xff]
      %v2080 = vld [vmem:[#allocation2 + $0x1b8] sm:$0xff]
      %v2081 = vld [vmem:[#allocation2 + $0x1c0] sm:$0xff]
      %v2082 = vld [vmem:[#allocation2 + $0x1c8] sm:$0xff]
      %v2083 = vld [vmem:[#allocation2 + $0x1d0] sm:$0xff]
      %v2084 = vld [vmem:[#allocation2 + $0x1d8] sm:$0xff]
      %v2085 = vld [vmem:[#allocation2 + $0x1e0] sm:$0xff]
      %v2086 = vld [vmem:[#allocation2 + $0x1e8] sm:$0xff]
      %v2087 = vld [vmem:[#allocation2 + $0x1f0] sm:$0xff]
      %v2088 = vld [vmem:[#allocation2 + $0x1f8] sm:$0xff]
      %v2089 = vld [vmem:[#allocation2 + $0x200] sm:$0xff]
      %v2090 = vld [vmem:[#allocation2 + $0x208] sm:$0xff]
      %v2091 = vld [vmem:[#allocation2 + $0x210] sm:$0xff]
      %v2092 = vld [vmem:[#allocation2 + $0x218] sm:$0xff]
      %v2093 = vld [vmem:[#allocation2 + $0x220] sm:$0xff]
      %v2094 = vld [vmem:[#allocation2 + $0x228] sm:$0xff]
      %v2095 = vld [vmem:[#allocation2 + $0x230] sm:$0xff]
      %v2096 = vld [vmem:[#allocation2 + $0x238] sm:$0xff]
      %v2097 = vlaneseq
      %v2098 = vshrl.u32 %v2097, 7
      %v2099 = vsub.s32 6, %v2098
      %v2100 = vrot.slane %v1337, %v2099
      %v2101 = vlaneseq
      %v2102 = vshrl.u32 %v2101, 7
      %v2103 = vsub.s32 6, %v2102
      %v2104 = vrot.slane %v1338, %v2103
      %v2105 = vmul.f32 %v2033, %v2100
      %v2106 = vmul.f32 %v2034, %v2104
      %v2107 = vmul.f32 %v2035, %v2100
      %v2108 = vmul.f32 %v2036, %v2104
      %v2109 = vmul.f32 %v2037, %v2100
      %v2110 = vmul.f32 %v2038, %v2104
      %v2111 = vmul.f32 %v2039, %v2100
      %v2112 = vmul.f32 %v2040, %v2104
      %v2113 = vmul.f32 %v2041, %v2100
      %v2114 = vmul.f32 %v2042, %v2104
      %v2115 = vmul.f32 %v2043, %v2100
      %v2116 = vmul.f32 %v2044, %v2104
      %v2117 = vmul.f32 %v2045, %v2100
      %v2118 = vmul.f32 %v2046, %v2104
      %v2119 = vmul.f32 %v2047, %v2100
      %v2120 = vmul.f32 %v2048, %v2104
      %v2121 = vmul.f32 %v2049, %v2100
      %v2122 = vmul.f32 %v2050, %v2104
      %v2123 = vmul.f32 %v2051, %v2100
      %v2124 = vmul.f32 %v2052, %v2104
      %v2125 = vmul.f32 %v2053, %v2100
      %v2126 = vmul.f32 %v2054, %v2104
      %v2127 = vmul.f32 %v2055, %v2100
      %v2128 = vmul.f32 %v2056, %v2104
      %v2129 = vmul.f32 %v2057, %v2100
      %v2130 = vmul.f32 %v2058, %v2104
      %v2131 = vmul.f32 %v2059, %v2100
      %v2132 = vmul.f32 %v2060, %v2104
      %v2133 = vmul.f32 %v2061, %v2100
      %v2134 = vmul.f32 %v2062, %v2104
      %v2135 = vmul.f32 %v2063, %v2100
      %v2136 = vmul.f32 %v2064, %v2104
      %v2137 = vmul.f32 %v2065, %v2100
      %v2138 = vmul.f32 %v2066, %v2104
      %v2139 = vmul.f32 %v2067, %v2100
      %v2140 = vmul.f32 %v2068, %v2104
      %v2141 = vmul.f32 %v2069, %v2100
      %v2142 = vmul.f32 %v2070, %v2104
      %v2143 = vmul.f32 %v2071, %v2100
      %v2144 = vmul.f32 %v2072, %v2104
      %v2145 = vmul.f32 %v2073, %v2100
      %v2146 = vmul.f32 %v2074, %v2104
      %v2147 = vmul.f32 %v2075, %v2100
      %v2148 = vmul.f32 %v2076, %v2104
      %v2149 = vmul.f32 %v2077, %v2100
      %v2150 = vmul.f32 %v2078, %v2104
      %v2151 = vmul.f32 %v2079, %v2100
      %v2152 = vmul.f32 %v2080, %v2104
      %v2153 = vmul.f32 %v2081, %v2100
      %v2154 = vmul.f32 %v2082, %v2104
      %v2155 = vmul.f32 %v2083, %v2100
      %v2156 = vmul.f32 %v2084, %v2104
      %v2157 = vmul.f32 %v2085, %v2100
      %v2158 = vmul.f32 %v2086, %v2104
      %v2159 = vmul.f32 %v2087, %v2100
      %v2160 = vmul.f32 %v2088, %v2104
      %v2161 = vmul.f32 %v2089, %v2100
      %v2162 = vmul.f32 %v2090, %v2104
      %v2163 = vmul.f32 %v2091, %v2100
      %v2164 = vmul.f32 %v2092, %v2104
      %v2165 = vmul.f32 %v2093, %v2100
      %v2166 = vmul.f32 %v2094, %v2104
      %v2167 = vmul.f32 %v2095, %v2100
      %v2168 = vmul.f32 %v2096, %v2104
      %v2169 = vlaneseq
      %v2170 = vshrl.u32 %v2169, 7
      %v2171 = vsub.s32 7, %v2170
      %v2172 = vrot.slane %v1337, %v2171
      %v2173 = vlaneseq
      %v2174 = vshrl.u32 %v2173, 7
      %v2175 = vsub.s32 7, %v2174
      %v2176 = vrot.slane %v1338, %v2175
      %v2177 = vmul.f32 %v2033, %v2172
      %v2178 = vmul.f32 %v2034, %v2176
      %v2179 = vmul.f32 %v2035, %v2172
      %v2180 = vmul.f32 %v2036, %v2176
      %v2181 = vmul.f32 %v2037, %v2172
      %v2182 = vmul.f32 %v2038, %v2176
      %v2183 = vmul.f32 %v2039, %v2172
      %v2184 = vmul.f32 %v2040, %v2176
      %v2185 = vmul.f32 %v2041, %v2172
      %v2186 = vmul.f32 %v2042, %v2176
      %v2187 = vmul.f32 %v2043, %v2172
      %v2188 = vmul.f32 %v2044, %v2176
      %v2189 = vmul.f32 %v2045, %v2172
      %v2190 = vmul.f32 %v2046, %v2176
      %v2191 = vmul.f32 %v2047, %v2172
      %v2192 = vmul.f32 %v2048, %v2176
      %v2193 = vmul.f32 %v2049, %v2172
      %v2194 = vmul.f32 %v2050, %v2176
      %v2195 = vmul.f32 %v2051, %v2172
      %v2196 = vmul.f32 %v2052, %v2176
      %v2197 = vmul.f32 %v2053, %v2172
      %v2198 = vmul.f32 %v2054, %v2176
      %v2199 = vmul.f32 %v2055, %v2172
      %v2200 = vmul.f32 %v2056, %v2176
      %v2201 = vmul.f32 %v2057, %v2172
      %v2202 = vmul.f32 %v2058, %v2176
      %v2203 = vmul.f32 %v2059, %v2172
      %v2204 = vmul.f32 %v2060, %v2176
      %v2205 = vmul.f32 %v2061, %v2172
      %v2206 = vmul.f32 %v2062, %v2176
      %v2207 = vmul.f32 %v2063, %v2172
      %v2208 = vmul.f32 %v2064, %v2176
      %v2209 = vmul.f32 %v2065, %v2172
      %v2210 = vmul.f32 %v2066, %v2176
      %v2211 = vmul.f32 %v2067, %v2172
      %v2212 = vmul.f32 %v2068, %v2176
      %v2213 = vmul.f32 %v2069, %v2172
      %v2214 = vmul.f32 %v2070, %v2176
      %v2215 = vmul.f32 %v2071, %v2172
      %v2216 = vmul.f32 %v2072, %v2176
      %v2217 = vmul.f32 %v2073, %v2172
      %v2218 = vmul.f32 %v2074, %v2176
      %v2219 = vmul.f32 %v2075, %v2172
      %v2220 = vmul.f32 %v2076, %v2176
      %v2221 = vmul.f32 %v2077, %v2172
      %v2222 = vmul.f32 %v2078, %v2176
      %v2223 = vmul.f32 %v2079, %v2172
      %v2224 = vmul.f32 %v2080, %v2176
      %v2225 = vmul.f32 %v2081, %v2172
      %v2226 = vmul.f32 %v2082, %v2176
      %v2227 = vmul.f32 %v2083, %v2172
      %v2228 = vmul.f32 %v2084, %v2176
      %v2229 = vmul.f32 %v2085, %v2172
      %v2230 = vmul.f32 %v2086, %v2176
      %v2231 = vmul.f32 %v2087, %v2172
      %v2232 = vmul.f32 %v2088, %v2176
      %v2233 = vmul.f32 %v2089, %v2172
      %v2234 = vmul.f32 %v2090, %v2176
      %v2235 = vmul.f32 %v2091, %v2172
      %v2236 = vmul.f32 %v2092, %v2176
      %v2237 = vmul.f32 %v2093, %v2172
      %v2238 = vmul.f32 %v2094, %v2176
      %v2239 = vmul.f32 %v2095, %v2172
      %v2240 = vmul.f32 %v2096, %v2176
      %v2241 = vlaneseq
      %v2242 = vshrl.u32 %v2241, 7
      %v2243 = vsub.s32 0, %v2242
      %v2244 = vrot.slane %v1339, %v2243
      %v2245 = vlaneseq
      %v2246 = vshrl.u32 %v2245, 7
      %v2247 = vsub.s32 0, %v2246
      %v2248 = vrot.slane %v1340, %v2247
      %v2249 = vmul.f32 %v2033, %v2244
      %v2250 = vmul.f32 %v2034, %v2248
      %v2251 = vmul.f32 %v2035, %v2244
      %v2252 = vmul.f32 %v2036, %v2248
      %v2253 = vmul.f32 %v2037, %v2244
      %v2254 = vmul.f32 %v2038, %v2248
      %v2255 = vmul.f32 %v2039, %v2244
      %v2256 = vmul.f32 %v2040, %v2248
      %v2257 = vmul.f32 %v2041, %v2244
      %v2258 = vmul.f32 %v2042, %v2248
      %v2259 = vmul.f32 %v2043, %v2244
      %v2260 = vmul.f32 %v2044, %v2248
      %v2261 = vmul.f32 %v2045, %v2244
      %v2262 = vmul.f32 %v2046, %v2248
      %v2263 = vmul.f32 %v2047, %v2244
      %v2264 = vmul.f32 %v2048, %v2248
      %v2265 = vmul.f32 %v2049, %v2244
      %v2266 = vmul.f32 %v2050, %v2248
      %v2267 = vmul.f32 %v2051, %v2244
      %v2268 = vmul.f32 %v2052, %v2248
      %v2269 = vmul.f32 %v2053, %v2244
      %v2270 = vmul.f32 %v2054, %v2248
      %v2271 = vmul.f32 %v2055, %v2244
      %v2272 = vmul.f32 %v2056, %v2248
      %v2273 = vmul.f32 %v2057, %v2244
      %v2274 = vmul.f32 %v2058, %v2248
      %v2275 = vmul.f32 %v2059, %v2244
      %v2276 = vmul.f32 %v2060, %v2248
      %v2277 = vmul.f32 %v2061, %v2244
      %v2278 = vmul.f32 %v2062, %v2248
      %v2279 = vmul.f32 %v2063, %v2244
      %v2280 = vmul.f32 %v2064, %v2248
      %v2281 = vmul.f32 %v2065, %v2244
      %v2282 = vmul.f32 %v2066, %v2248
      %v2283 = vmul.f32 %v2067, %v2244
      %v2284 = vmul.f32 %v2068, %v2248
      %v2285 = vmul.f32 %v2069, %v2244
      %v2286 = vmul.f32 %v2070, %v2248
      %v2287 = vmul.f32 %v2071, %v2244
      %v2288 = vmul.f32 %v2072, %v2248
      %v2289 = vmul.f32 %v2073, %v2244
      %v2290 = vmul.f32 %v2074, %v2248
      %v2291 = vmul.f32 %v2075, %v2244
      %v2292 = vmul.f32 %v2076, %v2248
      %v2293 = vmul.f32 %v2077, %v2244
      %v2294 = vmul.f32 %v2078, %v2248
      %v2295 = vmul.f32 %v2079, %v2244
      %v2296 = vmul.f32 %v2080, %v2248
      %v2297 = vmul.f32 %v2081, %v2244
      %v2298 = vmul.f32 %v2082, %v2248
      %v2299 = vmul.f32 %v2083, %v2244
      %v2300 = vmul.f32 %v2084, %v2248
      %v2301 = vmul.f32 %v2085, %v2244
      %v2302 = vmul.f32 %v2086, %v2248
      %v2303 = vmul.f32 %v2087, %v2244
      %v2304 = vmul.f32 %v2088, %v2248
      %v2305 = vmul.f32 %v2089, %v2244
      %v2306 = vmul.f32 %v2090, %v2248
      %v2307 = vmul.f32 %v2091, %v2244
      %v2308 = vmul.f32 %v2092, %v2248
      %v2309 = vmul.f32 %v2093, %v2244
      %v2310 = vmul.f32 %v2094, %v2248
      %v2311 = vmul.f32 %v2095, %v2244
      %v2312 = vmul.f32 %v2096, %v2248
      %v2313 = vadd.f32 %v1841, %v2105
      %v2314 = vadd.f32 %v1842, %v2106
      %v2315 = vadd.f32 %v1843, %v2107
      %v2316 = vadd.f32 %v1844, %v2108
      %v2317 = vadd.f32 %v1845, %v2109
      %v2318 = vadd.f32 %v1846, %v2110
      %v2319 = vadd.f32 %v1847, %v2111
      %v2320 = vadd.f32 %v1848, %v2112
      %v2321 = vadd.f32 %v1849, %v2113
      %v2322 = vadd.f32 %v1850, %v2114
      %v2323 = vadd.f32 %v1851, %v2115
      %v2324 = vadd.f32 %v1852, %v2116
      %v2325 = vadd.f32 %v1853, %v2117
      %v2326 = vadd.f32 %v1854, %v2118
      %v2327 = vadd.f32 %v1855, %v2119
      %v2328 = vadd.f32 %v1856, %v2120
      %v2329 = vadd.f32 %v1857, %v2121
      %v2330 = vadd.f32 %v1858, %v2122
      %v2331 = vadd.f32 %v1859, %v2123
      %v2332 = vadd.f32 %v1860, %v2124
      %v2333 = vadd.f32 %v1861, %v2125
      %v2334 = vadd.f32 %v1862, %v2126
      %v2335 = vadd.f32 %v1863, %v2127
      %v2336 = vadd.f32 %v1864, %v2128
      %v2337 = vadd.f32 %v1865, %v2129
      %v2338 = vadd.f32 %v1866, %v2130
      %v2339 = vadd.f32 %v1867, %v2131
      %v2340 = vadd.f32 %v1868, %v2132
      %v2341 = vadd.f32 %v1869, %v2133
      %v2342 = vadd.f32 %v1870, %v2134
      %v2343 = vadd.f32 %v1871, %v2135
      %v2344 = vadd.f32 %v1872, %v2136
      %v2345 = vadd.f32 %v1873, %v2137
      %v2346 = vadd.f32 %v1874, %v2138
      %v2347 = vadd.f32 %v1875, %v2139
      %v2348 = vadd.f32 %v1876, %v2140
      %v2349 = vadd.f32 %v1877, %v2141
      %v2350 = vadd.f32 %v1878, %v2142
      %v2351 = vadd.f32 %v1879, %v2143
      %v2352 = vadd.f32 %v1880, %v2144
      %v2353 = vadd.f32 %v1881, %v2145
      %v2354 = vadd.f32 %v1882, %v2146
      %v2355 = vadd.f32 %v1883, %v2147
      %v2356 = vadd.f32 %v1884, %v2148
      %v2357 = vadd.f32 %v1885, %v2149
      %v2358 = vadd.f32 %v1886, %v2150
      %v2359 = vadd.f32 %v1887, %v2151
      %v2360 = vadd.f32 %v1888, %v2152
      %v2361 = vadd.f32 %v1889, %v2153
      %v2362 = vadd.f32 %v1890, %v2154
      %v2363 = vadd.f32 %v1891, %v2155
      %v2364 = vadd.f32 %v1892, %v2156
      %v2365 = vadd.f32 %v1893, %v2157
      %v2366 = vadd.f32 %v1894, %v2158
      %v2367 = vadd.f32 %v1895, %v2159
      %v2368 = vadd.f32 %v1896, %v2160
      %v2369 = vadd.f32 %v1897, %v2161
      %v2370 = vadd.f32 %v1898, %v2162
      %v2371 = vadd.f32 %v1899, %v2163
      %v2372 = vadd.f32 %v1900, %v2164
      %v2373 = vadd.f32 %v1901, %v2165
      %v2374 = vadd.f32 %v1902, %v2166
      %v2375 = vadd.f32 %v1903, %v2167
      %v2376 = vadd.f32 %v1904, %v2168
      %v2377 = vadd.f32 %v1905, %v2177
      %v2378 = vadd.f32 %v1906, %v2178
      %v2379 = vadd.f32 %v1907, %v2179
      %v2380 = vadd.f32 %v1908, %v2180
      %v2381 = vadd.f32 %v1909, %v2181
      %v2382 = vadd.f32 %v1910, %v2182
      %v2383 = vadd.f32 %v1911, %v2183
      %v2384 = vadd.f32 %v1912, %v2184
      %v2385 = vadd.f32 %v1913, %v2185
      %v2386 = vadd.f32 %v1914, %v2186
      %v2387 = vadd.f32 %v1915, %v2187
      %v2388 = vadd.f32 %v1916, %v2188
      %v2389 = vadd.f32 %v1917, %v2189
      %v2390 = vadd.f32 %v1918, %v2190
      %v2391 = vadd.f32 %v1919, %v2191
      %v2392 = vadd.f32 %v1920, %v2192
      %v2393 = vadd.f32 %v1921, %v2193
      %v2394 = vadd.f32 %v1922, %v2194
      %v2395 = vadd.f32 %v1923, %v2195
      %v2396 = vadd.f32 %v1924, %v2196
      %v2397 = vadd.f32 %v1925, %v2197
      %v2398 = vadd.f32 %v1926, %v2198
      %v2399 = vadd.f32 %v1927, %v2199
      %v2400 = vadd.f32 %v1928, %v2200
      %v2401 = vadd.f32 %v1929, %v2201
      %v2402 = vadd.f32 %v1930, %v2202
      %v2403 = vadd.f32 %v1931, %v2203
      %v2404 = vadd.f32 %v1932, %v2204
      %v2405 = vadd.f32 %v1933, %v2205
      %v2406 = vadd.f32 %v1934, %v2206
      %v2407 = vadd.f32 %v1935, %v2207
      %v2408 = vadd.f32 %v1936, %v2208
      %v2409 = vadd.f32 %v1937, %v2209
      %v2410 = vadd.f32 %v1938, %v2210
      %v2411 = vadd.f32 %v1939, %v2211
      %v2412 = vadd.f32 %v1940, %v2212
      %v2413 = vadd.f32 %v1941, %v2213
      %v2414 = vadd.f32 %v1942, %v2214
      %v2415 = vadd.f32 %v1943, %v2215
      %v2416 = vadd.f32 %v1944, %v2216
      %v2417 = vadd.f32 %v1945, %v2217
      %v2418 = vadd.f32 %v1946, %v2218
      %v2419 = vadd.f32 %v1947, %v2219
      %v2420 = vadd.f32 %v1948, %v2220
      %v2421 = vadd.f32 %v1949, %v2221
      %v2422 = vadd.f32 %v1950, %v2222
      %v2423 = vadd.f32 %v1951, %v2223
      %v2424 = vadd.f32 %v1952, %v2224
      %v2425 = vadd.f32 %v1953, %v2225
      %v2426 = vadd.f32 %v1954, %v2226
      %v2427 = vadd.f32 %v1955, %v2227
      %v2428 = vadd.f32 %v1956, %v2228
      %v2429 = vadd.f32 %v1957, %v2229
      %v2430 = vadd.f32 %v1958, %v2230
      %v2431 = vadd.f32 %v1959, %v2231
      %v2432 = vadd.f32 %v1960, %v2232
      %v2433 = vadd.f32 %v1961, %v2233
      %v2434 = vadd.f32 %v1962, %v2234
      %v2435 = vadd.f32 %v1963, %v2235
      %v2436 = vadd.f32 %v1964, %v2236
      %v2437 = vadd.f32 %v1965, %v2237
      %v2438 = vadd.f32 %v1966, %v2238
      %v2439 = vadd.f32 %v1967, %v2239
      %v2440 = vadd.f32 %v1968, %v2240
      %v2441 = vadd.f32 %v1969, %v2249
      %v2442 = vadd.f32 %v1970, %v2250
      %v2443 = vadd.f32 %v1971, %v2251
      %v2444 = vadd.f32 %v1972, %v2252
      %v2445 = vadd.f32 %v1973, %v2253
      %v2446 = vadd.f32 %v1974, %v2254
      %v2447 = vadd.f32 %v1975, %v2255
      %v2448 = vadd.f32 %v1976, %v2256
      %v2449 = vadd.f32 %v1977, %v2257
      %v2450 = vadd.f32 %v1978, %v2258
      %v2451 = vadd.f32 %v1979, %v2259
      %v2452 = vadd.f32 %v1980, %v2260
      %v2453 = vadd.f32 %v1981, %v2261
      %v2454 = vadd.f32 %v1982, %v2262
      %v2455 = vadd.f32 %v1983, %v2263
      %v2456 = vadd.f32 %v1984, %v2264
      %v2457 = vadd.f32 %v1985, %v2265
      %v2458 = vadd.f32 %v1986, %v2266
      %v2459 = vadd.f32 %v1987, %v2267
      %v2460 = vadd.f32 %v1988, %v2268
      %v2461 = vadd.f32 %v1989, %v2269
      %v2462 = vadd.f32 %v1990, %v2270
      %v2463 = vadd.f32 %v1991, %v2271
      %v2464 = vadd.f32 %v1992, %v2272
      %v2465 = vadd.f32 %v1993, %v2273
      %v2466 = vadd.f32 %v1994, %v2274
      %v2467 = vadd.f32 %v1995, %v2275
      %v2468 = vadd.f32 %v1996, %v2276
      %v2469 = vadd.f32 %v1997, %v2277
      %v2470 = vadd.f32 %v1998, %v2278
      %v2471 = vadd.f32 %v1999, %v2279
      %v2472 = vadd.f32 %v2000, %v2280
      %v2473 = vadd.f32 %v2001, %v2281
      %v2474 = vadd.f32 %v2002, %v2282
      %v2475 = vadd.f32 %v2003, %v2283
      %v2476 = vadd.f32 %v2004, %v2284
      %v2477 = vadd.f32 %v2005, %v2285
      %v2478 = vadd.f32 %v2006, %v2286
      %v2479 = vadd.f32 %v2007, %v2287
      %v2480 = vadd.f32 %v2008, %v2288
      %v2481 = vadd.f32 %v2009, %v2289
      %v2482 = vadd.f32 %v2010, %v2290
      %v2483 = vadd.f32 %v2011, %v2291
      %v2484 = vadd.f32 %v2012, %v2292
      %v2485 = vadd.f32 %v2013, %v2293
      %v2486 = vadd.f32 %v2014, %v2294
      %v2487 = vadd.f32 %v2015, %v2295
      %v2488 = vadd.f32 %v2016, %v2296
      %v2489 = vadd.f32 %v2017, %v2297
      %v2490 = vadd.f32 %v2018, %v2298
      %v2491 = vadd.f32 %v2019, %v2299
      %v2492 = vadd.f32 %v2020, %v2300
      %v2493 = vadd.f32 %v2021, %v2301
      %v2494 = vadd.f32 %v2022, %v2302
      %v2495 = vadd.f32 %v2023, %v2303
      %v2496 = vadd.f32 %v2024, %v2304
      %v2497 = vadd.f32 %v2025, %v2305
      %v2498 = vadd.f32 %v2026, %v2306
      %v2499 = vadd.f32 %v2027, %v2307
      %v2500 = vadd.f32 %v2028, %v2308
      %v2501 = vadd.f32 %v2029, %v2309
      %v2502 = vadd.f32 %v2030, %v2310
      %v2503 = vadd.f32 %v2031, %v2311
      %v2504 = vadd.f32 %v2032, %v2312
      %v2505 = vlaneseq
      %v2506 = vshrl.u32 %v2505, 7
      %v2507 = vadd.s32 %v2506, 8
      %v2508 = vadd.s32 %v2506, 16
      %v2509 = vadd.s32 %v2506, 24
      %v2510 = vadd.s32 %v2506, 32
      %v2511 = vadd.s32 %v2506, 40
      %v2512 = vadd.s32 %v2506, 48
      %v2513 = vadd.s32 %v2506, 56
      %v2514 = vadd.s32 %v2506, 64
      %v2515 = vadd.s32 %v2506, 72
      %v2516 = vadd.s32 %v2506, 80
      %v2517 = vadd.s32 %v2506, 88
      %v2518 = vadd.s32 %v2506, 96
      %v2519 = vadd.s32 %v2506, 104
      %v2520 = vadd.s32 %v2506, 112
      %v2521 = vadd.s32 %v2506, 120
      %v2522 = vadd.s32 %v2506, 128
      %v2523 = vadd.s32 %v2506, 136
      %v2524 = vadd.s32 %v2506, 144
      %v2525 = vadd.s32 %v2506, 152
      %v2526 = vadd.s32 %v2506, 160
      %v2527 = vadd.s32 %v2506, 168
      %v2528 = vadd.s32 %v2506, 176
      %v2529 = vadd.s32 %v2506, 184
      %v2530 = vadd.s32 %v2506, 192
      %v2531 = vadd.s32 %v2506, 200
      %v2532 = vadd.s32 %v2506, 208
      %v2533 = vadd.s32 %v2506, 216
      %v2534 = vadd.s32 %v2506, 224
      %v2535 = vadd.s32 %v2506, 232
      %v2536 = vadd.s32 %v2506, 240
      %v2537 = vadd.s32 %v2506, 248
      %vm2538 = vcmp.lt.s32.totalorder %v2506, 0
      %v2539 = vsub.s32 0, %v2506
      %v2540 = vsel %vm2538, %v2539, %v2506
      %v2541 = vshrl.u32 %v2540, 4
      %v2542 = vand.u32 %v2540, 15
      %v2543 = vsub.s32 0, %v2542
      %v2544 = vsel %vm2538, %v2543, %v2542
      %vm2545 = vcmp.lt.s32.totalorder %v2507, 0
      %v2546 = vsub.s32 0, %v2507
      %v2547 = vsel %vm2545, %v2546, %v2507
      %v2548 = vshrl.u32 %v2547, 4
      %v2549 = vand.u32 %v2547, 15
      %v2550 = vsub.s32 0, %v2549
      %v2551 = vsel %vm2545, %v2550, %v2549
      %vm2552 = vcmp.lt.s32.totalorder %v2508, 0
      %v2553 = vsub.s32 0, %v2508
      %v2554 = vsel %vm2552, %v2553, %v2508
      %v2555 = vshrl.u32 %v2554, 4
      %v2556 = vand.u32 %v2554, 15
      %v2557 = vsub.s32 0, %v2556
      %v2558 = vsel %vm2552, %v2557, %v2556
      %vm2559 = vcmp.lt.s32.totalorder %v2509, 0
      %v2560 = vsub.s32 0, %v2509
      %v2561 = vsel %vm2559, %v2560, %v2509
      %v2562 = vshrl.u32 %v2561, 4
      %v2563 = vand.u32 %v2561, 15
      %v2564 = vsub.s32 0, %v2563
      %v2565 = vsel %vm2559, %v2564, %v2563
      %vm2566 = vcmp.lt.s32.totalorder %v2510, 0
      %v2567 = vsub.s32 0, %v2510
      %v2568 = vsel %vm2566, %v2567, %v2510
      %v2569 = vshrl.u32 %v2568, 4
      %v2570 = vand.u32 %v2568, 15
      %v2571 = vsub.s32 0, %v2570
      %v2572 = vsel %vm2566, %v2571, %v2570
      %vm2573 = vcmp.lt.s32.totalorder %v2511, 0
      %v2574 = vsub.s32 0, %v2511
      %v2575 = vsel %vm2573, %v2574, %v2511
      %v2576 = vshrl.u32 %v2575, 4
      %v2577 = vand.u32 %v2575, 15
      %v2578 = vsub.s32 0, %v2577
      %v2579 = vsel %vm2573, %v2578, %v2577
      %vm2580 = vcmp.lt.s32.totalorder %v2512, 0
      %v2581 = vsub.s32 0, %v2512
      %v2582 = vsel %vm2580, %v2581, %v2512
      %v2583 = vshrl.u32 %v2582, 4
      %v2584 = vand.u32 %v2582, 15
      %v2585 = vsub.s32 0, %v2584
      %v2586 = vsel %vm2580, %v2585, %v2584
      %vm2587 = vcmp.lt.s32.totalorder %v2513, 0
      %v2588 = vsub.s32 0, %v2513
      %v2589 = vsel %vm2587, %v2588, %v2513
      %v2590 = vshrl.u32 %v2589, 4
      %v2591 = vand.u32 %v2589, 15
      %v2592 = vsub.s32 0, %v2591
      %v2593 = vsel %vm2587, %v2592, %v2591
      %vm2594 = vcmp.lt.s32.totalorder %v2514, 0
      %v2595 = vsub.s32 0, %v2514
      %v2596 = vsel %vm2594, %v2595, %v2514
      %v2597 = vshrl.u32 %v2596, 4
      %v2598 = vand.u32 %v2596, 15
      %v2599 = vsub.s32 0, %v2598
      %v2600 = vsel %vm2594, %v2599, %v2598
      %vm2601 = vcmp.lt.s32.totalorder %v2515, 0
      %v2602 = vsub.s32 0, %v2515
      %v2603 = vsel %vm2601, %v2602, %v2515
      %v2604 = vshrl.u32 %v2603, 4
      %v2605 = vand.u32 %v2603, 15
      %v2606 = vsub.s32 0, %v2605
      %v2607 = vsel %vm2601, %v2606, %v2605
      %vm2608 = vcmp.lt.s32.totalorder %v2516, 0
      %v2609 = vsub.s32 0, %v2516
      %v2610 = vsel %vm2608, %v2609, %v2516
      %v2611 = vshrl.u32 %v2610, 4
      %v2612 = vand.u32 %v2610, 15
      %v2613 = vsub.s32 0, %v2612
      %v2614 = vsel %vm2608, %v2613, %v2612
      %vm2615 = vcmp.lt.s32.totalorder %v2517, 0
      %v2616 = vsub.s32 0, %v2517
      %v2617 = vsel %vm2615, %v2616, %v2517
      %v2618 = vshrl.u32 %v2617, 4
      %v2619 = vand.u32 %v2617, 15
      %v2620 = vsub.s32 0, %v2619
      %v2621 = vsel %vm2615, %v2620, %v2619
      %vm2622 = vcmp.lt.s32.totalorder %v2518, 0
      %v2623 = vsub.s32 0, %v2518
      %v2624 = vsel %vm2622, %v2623, %v2518
      %v2625 = vshrl.u32 %v2624, 4
      %v2626 = vand.u32 %v2624, 15
      %v2627 = vsub.s32 0, %v2626
      %v2628 = vsel %vm2622, %v2627, %v2626
      %vm2629 = vcmp.lt.s32.totalorder %v2519, 0
      %v2630 = vsub.s32 0, %v2519
      %v2631 = vsel %vm2629, %v2630, %v2519
      %v2632 = vshrl.u32 %v2631, 4
      %v2633 = vand.u32 %v2631, 15
      %v2634 = vsub.s32 0, %v2633
      %v2635 = vsel %vm2629, %v2634, %v2633
      %vm2636 = vcmp.lt.s32.totalorder %v2520, 0
      %v2637 = vsub.s32 0, %v2520
      %v2638 = vsel %vm2636, %v2637, %v2520
      %v2639 = vshrl.u32 %v2638, 4
      %v2640 = vand.u32 %v2638, 15
      %v2641 = vsub.s32 0, %v2640
      %v2642 = vsel %vm2636, %v2641, %v2640
      %vm2643 = vcmp.lt.s32.totalorder %v2521, 0
      %v2644 = vsub.s32 0, %v2521
      %v2645 = vsel %vm2643, %v2644, %v2521
      %v2646 = vshrl.u32 %v2645, 4
      %v2647 = vand.u32 %v2645, 15
      %v2648 = vsub.s32 0, %v2647
      %v2649 = vsel %vm2643, %v2648, %v2647
      %vm2650 = vcmp.lt.s32.totalorder %v2522, 0
      %v2651 = vsub.s32 0, %v2522
      %v2652 = vsel %vm2650, %v2651, %v2522
      %v2653 = vshrl.u32 %v2652, 4
      %v2654 = vand.u32 %v2652, 15
      %v2655 = vsub.s32 0, %v2654
      %v2656 = vsel %vm2650, %v2655, %v2654
      %vm2657 = vcmp.lt.s32.totalorder %v2523, 0
      %v2658 = vsub.s32 0, %v2523
      %v2659 = vsel %vm2657, %v2658, %v2523
      %v2660 = vshrl.u32 %v2659, 4
      %v2661 = vand.u32 %v2659, 15
      %v2662 = vsub.s32 0, %v2661
      %v2663 = vsel %vm2657, %v2662, %v2661
      %vm2664 = vcmp.lt.s32.totalorder %v2524, 0
      %v2665 = vsub.s32 0, %v2524
      %v2666 = vsel %vm2664, %v2665, %v2524
      %v2667 = vshrl.u32 %v2666, 4
      %v2668 = vand.u32 %v2666, 15
      %v2669 = vsub.s32 0, %v2668
      %v2670 = vsel %vm2664, %v2669, %v2668
      %vm2671 = vcmp.lt.s32.totalorder %v2525, 0
      %v2672 = vsub.s32 0, %v2525
      %v2673 = vsel %vm2671, %v2672, %v2525
      %v2674 = vshrl.u32 %v2673, 4
      %v2675 = vand.u32 %v2673, 15
      %v2676 = vsub.s32 0, %v2675
      %v2677 = vsel %vm2671, %v2676, %v2675
      %vm2678 = vcmp.lt.s32.totalorder %v2526, 0
      %v2679 = vsub.s32 0, %v2526
      %v2680 = vsel %vm2678, %v2679, %v2526
      %v2681 = vshrl.u32 %v2680, 4
      %v2682 = vand.u32 %v2680, 15
      %v2683 = vsub.s32 0, %v2682
      %v2684 = vsel %vm2678, %v2683, %v2682
      %vm2685 = vcmp.lt.s32.totalorder %v2527, 0
      %v2686 = vsub.s32 0, %v2527
      %v2687 = vsel %vm2685, %v2686, %v2527
      %v2688 = vshrl.u32 %v2687, 4
      %v2689 = vand.u32 %v2687, 15
      %v2690 = vsub.s32 0, %v2689
      %v2691 = vsel %vm2685, %v2690, %v2689
      %vm2692 = vcmp.lt.s32.totalorder %v2528, 0
      %v2693 = vsub.s32 0, %v2528
      %v2694 = vsel %vm2692, %v2693, %v2528
      %v2695 = vshrl.u32 %v2694, 4
      %v2696 = vand.u32 %v2694, 15
      %v2697 = vsub.s32 0, %v2696
      %v2698 = vsel %vm2692, %v2697, %v2696
      %vm2699 = vcmp.lt.s32.totalorder %v2529, 0
      %v2700 = vsub.s32 0, %v2529
      %v2701 = vsel %vm2699, %v2700, %v2529
      %v2702 = vshrl.u32 %v2701, 4
      %v2703 = vand.u32 %v2701, 15
      %v2704 = vsub.s32 0, %v2703
      %v2705 = vsel %vm2699, %v2704, %v2703
      %vm2706 = vcmp.lt.s32.totalorder %v2530, 0
      %v2707 = vsub.s32 0, %v2530
      %v2708 = vsel %vm2706, %v2707, %v2530
      %v2709 = vshrl.u32 %v2708, 4
      %v2710 = vand.u32 %v2708, 15
      %v2711 = vsub.s32 0, %v2710
      %v2712 = vsel %vm2706, %v2711, %v2710
      %vm2713 = vcmp.lt.s32.totalorder %v2531, 0
      %v2714 = vsub.s32 0, %v2531
      %v2715 = vsel %vm2713, %v2714, %v2531
      %v2716 = vshrl.u32 %v2715, 4
      %v2717 = vand.u32 %v2715, 15
      %v2718 = vsub.s32 0, %v2717
      %v2719 = vsel %vm2713, %v2718, %v2717
      %vm2720 = vcmp.lt.s32.totalorder %v2532, 0
      %v2721 = vsub.s32 0, %v2532
      %v2722 = vsel %vm2720, %v2721, %v2532
      %v2723 = vshrl.u32 %v2722, 4
      %v2724 = vand.u32 %v2722, 15
      %v2725 = vsub.s32 0, %v2724
      %v2726 = vsel %vm2720, %v2725, %v2724
      %vm2727 = vcmp.lt.s32.totalorder %v2533, 0
      %v2728 = vsub.s32 0, %v2533
      %v2729 = vsel %vm2727, %v2728, %v2533
      %v2730 = vshrl.u32 %v2729, 4
      %v2731 = vand.u32 %v2729, 15
      %v2732 = vsub.s32 0, %v2731
      %v2733 = vsel %vm2727, %v2732, %v2731
      %vm2734 = vcmp.lt.s32.totalorder %v2534, 0
      %v2735 = vsub.s32 0, %v2534
      %v2736 = vsel %vm2734, %v2735, %v2534
      %v2737 = vshrl.u32 %v2736, 4
      %v2738 = vand.u32 %v2736, 15
      %v2739 = vsub.s32 0, %v2738
      %v2740 = vsel %vm2734, %v2739, %v2738
      %vm2741 = vcmp.lt.s32.totalorder %v2535, 0
      %v2742 = vsub.s32 0, %v2535
      %v2743 = vsel %vm2741, %v2742, %v2535
      %v2744 = vshrl.u32 %v2743, 4
      %v2745 = vand.u32 %v2743, 15
      %v2746 = vsub.s32 0, %v2745
      %v2747 = vsel %vm2741, %v2746, %v2745
      %vm2748 = vcmp.lt.s32.totalorder %v2536, 0
      %v2749 = vsub.s32 0, %v2536
      %v2750 = vsel %vm2748, %v2749, %v2536
      %v2751 = vshrl.u32 %v2750, 4
      %v2752 = vand.u32 %v2750, 15
      %v2753 = vsub.s32 0, %v2752
      %v2754 = vsel %vm2748, %v2753, %v2752
      %vm2755 = vcmp.lt.s32.totalorder %v2537, 0
      %v2756 = vsub.s32 0, %v2537
      %v2757 = vsel %vm2755, %v2756, %v2537
      %v2758 = vshrl.u32 %v2757, 4
      %v2759 = vand.u32 %v2757, 15
      %v2760 = vsub.s32 0, %v2759
      %v2761 = vsel %vm2755, %v2760, %v2759
      %vm2762 = vcmp.ne.s32.totalorder %v2544, 0
      %vm2763 = vcmp.ne.s32.totalorder %v2551, 0
      %vm2764 = vcmp.ne.s32.totalorder %v2558, 0
      %vm2765 = vcmp.ne.s32.totalorder %v2565, 0
      %vm2766 = vcmp.ne.s32.totalorder %v2572, 0
      %vm2767 = vcmp.ne.s32.totalorder %v2579, 0
      %vm2768 = vcmp.ne.s32.totalorder %v2586, 0
      %vm2769 = vcmp.ne.s32.totalorder %v2593, 0
      %vm2770 = vcmp.ne.s32.totalorder %v2600, 0
      %vm2771 = vcmp.ne.s32.totalorder %v2607, 0
      %vm2772 = vcmp.ne.s32.totalorder %v2614, 0
      %vm2773 = vcmp.ne.s32.totalorder %v2621, 0
      %vm2774 = vcmp.ne.s32.totalorder %v2628, 0
      %vm2775 = vcmp.ne.s32.totalorder %v2635, 0
      %vm2776 = vcmp.ne.s32.totalorder %v2642, 0
      %vm2777 = vcmp.ne.s32.totalorder %v2649, 0
      %vm2778 = vcmp.ne.s32.totalorder %v2656, 0
      %vm2779 = vcmp.ne.s32.totalorder %v2663, 0
      %vm2780 = vcmp.ne.s32.totalorder %v2670, 0
      %vm2781 = vcmp.ne.s32.totalorder %v2677, 0
      %vm2782 = vcmp.ne.s32.totalorder %v2684, 0
      %vm2783 = vcmp.ne.s32.totalorder %v2691, 0
      %vm2784 = vcmp.ne.s32.totalorder %v2698, 0
      %vm2785 = vcmp.ne.s32.totalorder %v2705, 0
      %vm2786 = vcmp.ne.s32.totalorder %v2712, 0
      %vm2787 = vcmp.ne.s32.totalorder %v2719, 0
      %vm2788 = vcmp.ne.s32.totalorder %v2726, 0
      %vm2789 = vcmp.ne.s32.totalorder %v2733, 0
      %vm2790 = vcmp.ne.s32.totalorder %v2740, 0
      %vm2791 = vcmp.ne.s32.totalorder %v2747, 0
      %vm2792 = vcmp.ne.s32.totalorder %v2754, 0
      %vm2793 = vcmp.ne.s32.totalorder %v2761, 0
      %vm2794 = vcmp.lt.s32.totalorder %v2544, 0
      %vm2795 = vcmp.lt.s32.totalorder %v2551, 0
      %vm2796 = vcmp.lt.s32.totalorder %v2558, 0
      %vm2797 = vcmp.lt.s32.totalorder %v2565, 0
      %vm2798 = vcmp.lt.s32.totalorder %v2572, 0
      %vm2799 = vcmp.lt.s32.totalorder %v2579, 0
      %vm2800 = vcmp.lt.s32.totalorder %v2586, 0
      %vm2801 = vcmp.lt.s32.totalorder %v2593, 0
      %vm2802 = vcmp.lt.s32.totalorder %v2600, 0
      %vm2803 = vcmp.lt.s32.totalorder %v2607, 0
      %vm2804 = vcmp.lt.s32.totalorder %v2614, 0
      %vm2805 = vcmp.lt.s32.totalorder %v2621, 0
      %vm2806 = vcmp.lt.s32.totalorder %v2628, 0
      %vm2807 = vcmp.lt.s32.totalorder %v2635, 0
      %vm2808 = vcmp.lt.s32.totalorder %v2642, 0
      %vm2809 = vcmp.lt.s32.totalorder %v2649, 0
      %vm2810 = vcmp.lt.s32.totalorder %v2656, 0
      %vm2811 = vcmp.lt.s32.totalorder %v2663, 0
      %vm2812 = vcmp.lt.s32.totalorder %v2670, 0
      %vm2813 = vcmp.lt.s32.totalorder %v2677, 0
      %vm2814 = vcmp.lt.s32.totalorder %v2684, 0
      %vm2815 = vcmp.lt.s32.totalorder %v2691, 0
      %vm2816 = vcmp.lt.s32.totalorder %v2698, 0
      %vm2817 = vcmp.lt.s32.totalorder %v2705, 0
      %vm2818 = vcmp.lt.s32.totalorder %v2712, 0
      %vm2819 = vcmp.lt.s32.totalorder %v2719, 0
      %vm2820 = vcmp.lt.s32.totalorder %v2726, 0
      %vm2821 = vcmp.lt.s32.totalorder %v2733, 0
      %vm2822 = vcmp.lt.s32.totalorder %v2740, 0
      %vm2823 = vcmp.lt.s32.totalorder %v2747, 0
      %vm2824 = vcmp.lt.s32.totalorder %v2754, 0
      %vm2825 = vcmp.lt.s32.totalorder %v2761, 0
      %vm2826 = vmand %vm2794, %vm2762
      %vm2827 = vmand %vm2795, %vm2763
      %vm2828 = vmand %vm2796, %vm2764
      %vm2829 = vmand %vm2797, %vm2765
      %vm2830 = vmand %vm2798, %vm2766
      %vm2831 = vmand %vm2799, %vm2767
      %vm2832 = vmand %vm2800, %vm2768
      %vm2833 = vmand %vm2801, %vm2769
      %vm2834 = vmand %vm2802, %vm2770
      %vm2835 = vmand %vm2803, %vm2771
      %vm2836 = vmand %vm2804, %vm2772
      %vm2837 = vmand %vm2805, %vm2773
      %vm2838 = vmand %vm2806, %vm2774
      %vm2839 = vmand %vm2807, %vm2775
      %vm2840 = vmand %vm2808, %vm2776
      %vm2841 = vmand %vm2809, %vm2777
      %vm2842 = vmand %vm2810, %vm2778
      %vm2843 = vmand %vm2811, %vm2779
      %vm2844 = vmand %vm2812, %vm2780
      %vm2845 = vmand %vm2813, %vm2781
      %vm2846 = vmand %vm2814, %vm2782
      %vm2847 = vmand %vm2815, %vm2783
      %vm2848 = vmand %vm2816, %vm2784
      %vm2849 = vmand %vm2817, %vm2785
      %vm2850 = vmand %vm2818, %vm2786
      %vm2851 = vmand %vm2819, %vm2787
      %vm2852 = vmand %vm2820, %vm2788
      %vm2853 = vmand %vm2821, %vm2789
      %vm2854 = vmand %vm2822, %vm2790
      %vm2855 = vmand %vm2823, %vm2791
      %vm2856 = vmand %vm2824, %vm2792
      %vm2857 = vmand %vm2825, %vm2793
      %v2858 = vadd.s32 %v2544, 16
      %v2859 = vadd.s32 %v2551, 16
      %v2860 = vadd.s32 %v2558, 16
      %v2861 = vadd.s32 %v2565, 16
      %v2862 = vadd.s32 %v2572, 16
      %v2863 = vadd.s32 %v2579, 16
      %v2864 = vadd.s32 %v2586, 16
      %v2865 = vadd.s32 %v2593, 16
      %v2866 = vadd.s32 %v2600, 16
      %v2867 = vadd.s32 %v2607, 16
      %v2868 = vadd.s32 %v2614, 16
      %v2869 = vadd.s32 %v2621, 16
      %v2870 = vadd.s32 %v2628, 16
      %v2871 = vadd.s32 %v2635, 16
      %v2872 = vadd.s32 %v2642, 16
      %v2873 = vadd.s32 %v2649, 16
      %v2874 = vadd.s32 %v2656, 16
      %v2875 = vadd.s32 %v2663, 16
      %v2876 = vadd.s32 %v2670, 16
      %v2877 = vadd.s32 %v2677, 16
      %v2878 = vadd.s32 %v2684, 16
      %v2879 = vadd.s32 %v2691, 16
      %v2880 = vadd.s32 %v2698, 16
      %v2881 = vadd.s32 %v2705, 16
      %v2882 = vadd.s32 %v2712, 16
      %v2883 = vadd.s32 %v2719, 16
      %v2884 = vadd.s32 %v2726, 16
      %v2885 = vadd.s32 %v2733, 16
      %v2886 = vadd.s32 %v2740, 16
      %v2887 = vadd.s32 %v2747, 16
      %v2888 = vadd.s32 %v2754, 16
      %v2889 = vadd.s32 %v2761, 16
      %v2890 = vsel %vm2826, %v2858, %v2544
      %v2891 = vsel %vm2827, %v2859, %v2551
      %v2892 = vsel %vm2828, %v2860, %v2558
      %v2893 = vsel %vm2829, %v2861, %v2565
      %v2894 = vsel %vm2830, %v2862, %v2572
      %v2895 = vsel %vm2831, %v2863, %v2579
      %v2896 = vsel %vm2832, %v2864, %v2586
      %v2897 = vsel %vm2833, %v2865, %v2593
      %v2898 = vsel %vm2834, %v2866, %v2600
      %v2899 = vsel %vm2835, %v2867, %v2607
      %v2900 = vsel %vm2836, %v2868, %v2614
      %v2901 = vsel %vm2837, %v2869, %v2621
      %v2902 = vsel %vm2838, %v2870, %v2628
      %v2903 = vsel %vm2839, %v2871, %v2635
      %v2904 = vsel %vm2840, %v2872, %v2642
      %v2905 = vsel %vm2841, %v2873, %v2649
      %v2906 = vsel %vm2842, %v2874, %v2656
      %v2907 = vsel %vm2843, %v2875, %v2663
      %v2908 = vsel %vm2844, %v2876, %v2670
      %v2909 = vsel %vm2845, %v2877, %v2677
      %v2910 = vsel %vm2846, %v2878, %v2684
      %v2911 = vsel %vm2847, %v2879, %v2691
      %v2912 = vsel %vm2848, %v2880, %v2698
      %v2913 = vsel %vm2849, %v2881, %v2705
      %v2914 = vsel %vm2850, %v2882, %v2712
      %v2915 = vsel %vm2851, %v2883, %v2719
      %v2916 = vsel %vm2852, %v2884, %v2726
      %v2917 = vsel %vm2853, %v2885, %v2733
      %v2918 = vsel %vm2854, %v2886, %v2740
      %v2919 = vsel %vm2855, %v2887, %v2747
      %v2920 = vsel %vm2856, %v2888, %v2754
      %v2921 = vsel %vm2857, %v2889, %v2761
      %vm2922 = vcmp.ge.s32.totalorder %v2890, 1
      %vm2923 = vcmp.ge.s32.totalorder %v2891, 1
      %vm2924 = vcmp.ge.s32.totalorder %v2892, 1
      %vm2925 = vcmp.ge.s32.totalorder %v2893, 1
      %vm2926 = vcmp.ge.s32.totalorder %v2894, 1
      %vm2927 = vcmp.ge.s32.totalorder %v2895, 1
      %vm2928 = vcmp.ge.s32.totalorder %v2896, 1
      %vm2929 = vcmp.ge.s32.totalorder %v2897, 1
      %vm2930 = vcmp.ge.s32.totalorder %v2898, 1
      %vm2931 = vcmp.ge.s32.totalorder %v2899, 1
      %vm2932 = vcmp.ge.s32.totalorder %v2900, 1
      %vm2933 = vcmp.ge.s32.totalorder %v2901, 1
      %vm2934 = vcmp.ge.s32.totalorder %v2902, 1
      %vm2935 = vcmp.ge.s32.totalorder %v2903, 1
      %vm2936 = vcmp.ge.s32.totalorder %v2904, 1
      %vm2937 = vcmp.ge.s32.totalorder %v2905, 1
      %vm2938 = vcmp.ge.s32.totalorder %v2906, 1
      %vm2939 = vcmp.ge.s32.totalorder %v2907, 1
      %vm2940 = vcmp.ge.s32.totalorder %v2908, 1
      %vm2941 = vcmp.ge.s32.totalorder %v2909, 1
      %vm2942 = vcmp.ge.s32.totalorder %v2910, 1
      %vm2943 = vcmp.ge.s32.totalorder %v2911, 1
      %vm2944 = vcmp.ge.s32.totalorder %v2912, 1
      %vm2945 = vcmp.ge.s32.totalorder %v2913, 1
      %vm2946 = vcmp.ge.s32.totalorder %v2914, 1
      %vm2947 = vcmp.ge.s32.totalorder %v2915, 1
      %vm2948 = vcmp.ge.s32.totalorder %v2916, 1
      %vm2949 = vcmp.ge.s32.totalorder %v2917, 1
      %vm2950 = vcmp.ge.s32.totalorder %v2918, 1
      %vm2951 = vcmp.ge.s32.totalorder %v2919, 1
      %vm2952 = vcmp.ge.s32.totalorder %v2920, 1
      %vm2953 = vcmp.ge.s32.totalorder %v2921, 1
      %vm2954 = vcmp.le.s32.totalorder %v2890, 14
      %vm2955 = vcmp.le.s32.totalorder %v2891, 14
      %vm2956 = vcmp.le.s32.totalorder %v2892, 14
      %vm2957 = vcmp.le.s32.totalorder %v2893, 14
      %vm2958 = vcmp.le.s32.totalorder %v2894, 14
      %vm2959 = vcmp.le.s32.totalorder %v2895, 14
      %vm2960 = vcmp.le.s32.totalorder %v2896, 14
      %vm2961 = vcmp.le.s32.totalorder %v2897, 14
      %vm2962 = vcmp.le.s32.totalorder %v2898, 14
      %vm2963 = vcmp.le.s32.totalorder %v2899, 14
      %vm2964 = vcmp.le.s32.totalorder %v2900, 14
      %vm2965 = vcmp.le.s32.totalorder %v2901, 14
      %vm2966 = vcmp.le.s32.totalorder %v2902, 14
      %vm2967 = vcmp.le.s32.totalorder %v2903, 14
      %vm2968 = vcmp.le.s32.totalorder %v2904, 14
      %vm2969 = vcmp.le.s32.totalorder %v2905, 14
      %vm2970 = vcmp.le.s32.totalorder %v2906, 14
      %vm2971 = vcmp.le.s32.totalorder %v2907, 14
      %vm2972 = vcmp.le.s32.totalorder %v2908, 14
      %vm2973 = vcmp.le.s32.totalorder %v2909, 14
      %vm2974 = vcmp.le.s32.totalorder %v2910, 14
      %vm2975 = vcmp.le.s32.totalorder %v2911, 14
      %vm2976 = vcmp.le.s32.totalorder %v2912, 14
      %vm2977 = vcmp.le.s32.totalorder %v2913, 14
      %vm2978 = vcmp.le.s32.totalorder %v2914, 14
      %vm2979 = vcmp.le.s32.totalorder %v2915, 14
      %vm2980 = vcmp.le.s32.totalorder %v2916, 14
      %vm2981 = vcmp.le.s32.totalorder %v2917, 14
      %vm2982 = vcmp.le.s32.totalorder %v2918, 14
      %vm2983 = vcmp.le.s32.totalorder %v2919, 14
      %vm2984 = vcmp.le.s32.totalorder %v2920, 14
      %vm2985 = vcmp.le.s32.totalorder %v2921, 14
      %v2986 = vrot.slane %v2313, 7
      %v2987 = vrot.slane %v2314, 7
      %v2988 = vrot.slane %v2315, 7
      %v2989 = vrot.slane %v2316, 7
      %v2990 = vrot.slane %v2317, 7
      %v2991 = vrot.slane %v2318, 7
      %v2992 = vrot.slane %v2319, 7
      %v2993 = vrot.slane %v2320, 7
      %v2994 = vrot.slane %v2321, 7
      %v2995 = vrot.slane %v2322, 7
      %v2996 = vrot.slane %v2323, 7
      %v2997 = vrot.slane %v2324, 7
      %v2998 = vrot.slane %v2325, 7
      %v2999 = vrot.slane %v2326, 7
      %v3000 = vrot.slane %v2327, 7
      %v3001 = vrot.slane %v2328, 7
      %v3002 = vrot.slane %v2329, 7
      %v3003 = vrot.slane %v2330, 7
      %v3004 = vrot.slane %v2331, 7
      %v3005 = vrot.slane %v2332, 7
      %v3006 = vrot.slane %v2333, 7
      %v3007 = vrot.slane %v2334, 7
      %v3008 = vrot.slane %v2335, 7
      %v3009 = vrot.slane %v2336, 7
      %v3010 = vrot.slane %v2337, 7
      %v3011 = vrot.slane %v2338, 7
      %v3012 = vrot.slane %v2339, 7
      %v3013 = vrot.slane %v2340, 7
      %v3014 = vrot.slane %v2341, 7
      %v3015 = vrot.slane %v2342, 7
      %v3016 = vrot.slane %v2343, 7
      %v3017 = vrot.slane %v2344, 7
      %v3018 = vrot.slane %v2345, 7
      %v3019 = vrot.slane %v2346, 7
      %v3020 = vrot.slane %v2347, 7
      %v3021 = vrot.slane %v2348, 7
      %v3022 = vrot.slane %v2349, 7
      %v3023 = vrot.slane %v2350, 7
      %v3024 = vrot.slane %v2351, 7
      %v3025 = vrot.slane %v2352, 7
      %v3026 = vrot.slane %v2353, 7
      %v3027 = vrot.slane %v2354, 7
      %v3028 = vrot.slane %v2355, 7
      %v3029 = vrot.slane %v2356, 7
      %v3030 = vrot.slane %v2357, 7
      %v3031 = vrot.slane %v2358, 7
      %v3032 = vrot.slane %v2359, 7
      %v3033 = vrot.slane %v2360, 7
      %v3034 = vrot.slane %v2361, 7
      %v3035 = vrot.slane %v2362, 7
      %v3036 = vrot.slane %v2363, 7
      %v3037 = vrot.slane %v2364, 7
      %v3038 = vrot.slane %v2365, 7
      %v3039 = vrot.slane %v2366, 7
      %v3040 = vrot.slane %v2367, 7
      %v3041 = vrot.slane %v2368, 7
      %v3042 = vrot.slane %v2369, 7
      %v3043 = vrot.slane %v2370, 7
      %v3044 = vrot.slane %v2371, 7
      %v3045 = vrot.slane %v2372, 7
      %v3046 = vrot.slane %v2373, 7
      %v3047 = vrot.slane %v2374, 7
      %v3048 = vrot.slane %v2375, 7
      %v3049 = vrot.slane %v2376, 7
      %vm3050 = vcmp.lt.s32.totalorder %v2506, 1
      %v3051 = vsel %vm3050, %v3046, %v3048
      %v3052 = vsel %vm3050, %v3047, %v3049
      %v3053 = vsel %vm3050, %v3044, %v3046
      %v3054 = vsel %vm3050, %v3045, %v3047
      %v3055 = vsel %vm3050, %v3042, %v3044
      %v3056 = vsel %vm3050, %v3043, %v3045
      %v3057 = vsel %vm3050, %v3040, %v3042
      %v3058 = vsel %vm3050, %v3041, %v3043
      %v3059 = vsel %vm3050, %v3038, %v3040
      %v3060 = vsel %vm3050, %v3039, %v3041
      %v3061 = vsel %vm3050, %v3036, %v3038
      %v3062 = vsel %vm3050, %v3037, %v3039
      %v3063 = vsel %vm3050, %v3034, %v3036
      %v3064 = vsel %vm3050, %v3035, %v3037
      %v3065 = vsel %vm3050, %v3032, %v3034
      %v3066 = vsel %vm3050, %v3033, %v3035
      %v3067 = vsel %vm3050, %v3030, %v3032
      %v3068 = vsel %vm3050, %v3031, %v3033
      %v3069 = vsel %vm3050, %v3028, %v3030
      %v3070 = vsel %vm3050, %v3029, %v3031
      %v3071 = vsel %vm3050, %v3026, %v3028
      %v3072 = vsel %vm3050, %v3027, %v3029
      %v3073 = vsel %vm3050, %v3024, %v3026
      %v3074 = vsel %vm3050, %v3025, %v3027
      %v3075 = vsel %vm3050, %v3022, %v3024
      %v3076 = vsel %vm3050, %v3023, %v3025
      %v3077 = vsel %vm3050, %v3020, %v3022
      %v3078 = vsel %vm3050, %v3021, %v3023
      %v3079 = vsel %vm3050, %v3018, %v3020
      %v3080 = vsel %vm3050, %v3019, %v3021
      %v3081 = vsel %vm3050, %v3016, %v3018
      %v3082 = vsel %vm3050, %v3017, %v3019
      %v3083 = vsel %vm3050, %v3014, %v3016
      %v3084 = vsel %vm3050, %v3015, %v3017
      %v3085 = vsel %vm3050, %v3012, %v3014
      %v3086 = vsel %vm3050, %v3013, %v3015
      %v3087 = vsel %vm3050, %v3010, %v3012
      %v3088 = vsel %vm3050, %v3011, %v3013
      %v3089 = vsel %vm3050, %v3008, %v3010
      %v3090 = vsel %vm3050, %v3009, %v3011
      %v3091 = vsel %vm3050, %v3006, %v3008
      %v3092 = vsel %vm3050, %v3007, %v3009
      %v3093 = vsel %vm3050, %v3004, %v3006
      %v3094 = vsel %vm3050, %v3005, %v3007
      %v3095 = vsel %vm3050, %v3002, %v3004
      %v3096 = vsel %vm3050, %v3003, %v3005
      %v3097 = vsel %vm3050, %v3000, %v3002
      %v3098 = vsel %vm3050, %v3001, %v3003
      %v3099 = vsel %vm3050, %v2998, %v3000
      %v3100 = vsel %vm3050, %v2999, %v3001
      %v3101 = vsel %vm3050, %v2996, %v2998
      %v3102 = vsel %vm3050, %v2997, %v2999
      %v3103 = vsel %vm3050, %v2994, %v2996
      %v3104 = vsel %vm3050, %v2995, %v2997
      %v3105 = vsel %vm3050, %v2992, %v2994
      %v3106 = vsel %vm3050, %v2993, %v2995
      %v3107 = vsel %vm3050, %v2990, %v2992
      %v3108 = vsel %vm3050, %v2991, %v2993
      %v3109 = vsel %vm3050, %v2988, %v2990
      %v3110 = vsel %vm3050, %v2989, %v2991
      %v3111 = vsel %vm3050, %v2986, %v2988
      %v3112 = vsel %vm3050, %v2987, %v2989
      %v3113 = vsel %vm3050, %v3048, %v2986
      %v3114 = vsel %vm3050, %v3049, %v2987
      %v3115 = vsel %vm2922, %v3113, 0.0
      %v3116 = vsel %vm2922, %v3114, 0.0
      %v3117 = vsel %vm2923, %v3111, 0.0
      %v3118 = vsel %vm2923, %v3112, 0.0
      %v3119 = vsel %vm2924, %v3109, 0.0
      %v3120 = vsel %vm2924, %v3110, 0.0
      %v3121 = vsel %vm2925, %v3107, 0.0
      %v3122 = vsel %vm2925, %v3108, 0.0
      %v3123 = vsel %vm2926, %v3105, 0.0
      %v3124 = vsel %vm2926, %v3106, 0.0
      %v3125 = vsel %vm2927, %v3103, 0.0
      %v3126 = vsel %vm2927, %v3104, 0.0
      %v3127 = vsel %vm2928, %v3101, 0.0
      %v3128 = vsel %vm2928, %v3102, 0.0
      %v3129 = vsel %vm2929, %v3099, 0.0
      %v3130 = vsel %vm2929, %v3100, 0.0
      %v3131 = vsel %vm2930, %v3097, 0.0
      %v3132 = vsel %vm2930, %v3098, 0.0
      %v3133 = vsel %vm2931, %v3095, 0.0
      %v3134 = vsel %vm2931, %v3096, 0.0
      %v3135 = vsel %vm2932, %v3093, 0.0
      %v3136 = vsel %vm2932, %v3094, 0.0
      %v3137 = vsel %vm2933, %v3091, 0.0
      %v3138 = vsel %vm2933, %v3092, 0.0
      %v3139 = vsel %vm2934, %v3089, 0.0
      %v3140 = vsel %vm2934, %v3090, 0.0
      %v3141 = vsel %vm2935, %v3087, 0.0
      %v3142 = vsel %vm2935, %v3088, 0.0
      %v3143 = vsel %vm2936, %v3085, 0.0
      %v3144 = vsel %vm2936, %v3086, 0.0
      %v3145 = vsel %vm2937, %v3083, 0.0
      %v3146 = vsel %vm2937, %v3084, 0.0
      %v3147 = vsel %vm2938, %v3081, 0.0
      %v3148 = vsel %vm2938, %v3082, 0.0
      %v3149 = vsel %vm2939, %v3079, 0.0
      %v3150 = vsel %vm2939, %v3080, 0.0
      %v3151 = vsel %vm2940, %v3077, 0.0
      %v3152 = vsel %vm2940, %v3078, 0.0
      %v3153 = vsel %vm2941, %v3075, 0.0
      %v3154 = vsel %vm2941, %v3076, 0.0
      %v3155 = vsel %vm2942, %v3073, 0.0
      %v3156 = vsel %vm2942, %v3074, 0.0
      %v3157 = vsel %vm2943, %v3071, 0.0
      %v3158 = vsel %vm2943, %v3072, 0.0
      %v3159 = vsel %vm2944, %v3069, 0.0
      %v3160 = vsel %vm2944, %v3070, 0.0
      %v3161 = vsel %vm2945, %v3067, 0.0
      %v3162 = vsel %vm2945, %v3068, 0.0
      %v3163 = vsel %vm2946, %v3065, 0.0
      %v3164 = vsel %vm2946, %v3066, 0.0
      %v3165 = vsel %vm2947, %v3063, 0.0
      %v3166 = vsel %vm2947, %v3064, 0.0
      %v3167 = vsel %vm2948, %v3061, 0.0
      %v3168 = vsel %vm2948, %v3062, 0.0
      %v3169 = vsel %vm2949, %v3059, 0.0
      %v3170 = vsel %vm2949, %v3060, 0.0
      %v3171 = vsel %vm2950, %v3057, 0.0
      %v3172 = vsel %vm2950, %v3058, 0.0
      %v3173 = vsel %vm2951, %v3055, 0.0
      %v3174 = vsel %vm2951, %v3056, 0.0
      %v3175 = vsel %vm2952, %v3053, 0.0
      %v3176 = vsel %vm2952, %v3054, 0.0
      %v3177 = vsel %vm2953, %v3051, 0.0
      %v3178 = vsel %vm2953, %v3052, 0.0
      %v3179 = vadd.f32 %v2377, %v3115
      %v3180 = vadd.f32 %v2378, %v3116
      %v3181 = vadd.f32 %v2379, %v3117
      %v3182 = vadd.f32 %v2380, %v3118
      %v3183 = vadd.f32 %v2381, %v3119
      %v3184 = vadd.f32 %v2382, %v3120
      %v3185 = vadd.f32 %v2383, %v3121
      %v3186 = vadd.f32 %v2384, %v3122
      %v3187 = vadd.f32 %v2385, %v3123
      %v3188 = vadd.f32 %v2386, %v3124
      %v3189 = vadd.f32 %v2387, %v3125
      %v3190 = vadd.f32 %v2388, %v3126
      %v3191 = vadd.f32 %v2389, %v3127
      %v3192 = vadd.f32 %v2390, %v3128
      %v3193 = vadd.f32 %v2391, %v3129
      %v3194 = vadd.f32 %v2392, %v3130
      %v3195 = vadd.f32 %v2393, %v3131
      %v3196 = vadd.f32 %v2394, %v3132
      %v3197 = vadd.f32 %v2395, %v3133
      %v3198 = vadd.f32 %v2396, %v3134
      %v3199 = vadd.f32 %v2397, %v3135
      %v3200 = vadd.f32 %v2398, %v3136
      %v3201 = vadd.f32 %v2399, %v3137
      %v3202 = vadd.f32 %v2400, %v3138
      %v3203 = vadd.f32 %v2401, %v3139
      %v3204 = vadd.f32 %v2402, %v3140
      %v3205 = vadd.f32 %v2403, %v3141
      %v3206 = vadd.f32 %v2404, %v3142
      %v3207 = vadd.f32 %v2405, %v3143
      %v3208 = vadd.f32 %v2406, %v3144
      %v3209 = vadd.f32 %v2407, %v3145
      %v3210 = vadd.f32 %v2408, %v3146
      %v3211 = vadd.f32 %v2409, %v3147
      %v3212 = vadd.f32 %v2410, %v3148
      %v3213 = vadd.f32 %v2411, %v3149
      %v3214 = vadd.f32 %v2412, %v3150
      %v3215 = vadd.f32 %v2413, %v3151
      %v3216 = vadd.f32 %v2414, %v3152
      %v3217 = vadd.f32 %v2415, %v3153
      %v3218 = vadd.f32 %v2416, %v3154
      %v3219 = vadd.f32 %v2417, %v3155
      %v3220 = vadd.f32 %v2418, %v3156
      %v3221 = vadd.f32 %v2419, %v3157
      %v3222 = vadd.f32 %v2420, %v3158
      %v3223 = vadd.f32 %v2421, %v3159
      %v3224 = vadd.f32 %v2422, %v3160
      %v3225 = vadd.f32 %v2423, %v3161
      %v3226 = vadd.f32 %v2424, %v3162
      %v3227 = vadd.f32 %v2425, %v3163
      %v3228 = vadd.f32 %v2426, %v3164
      %v3229 = vadd.f32 %v2427, %v3165
      %v3230 = vadd.f32 %v2428, %v3166
      %v3231 = vadd.f32 %v2429, %v3167
      %v3232 = vadd.f32 %v2430, %v3168
      %v3233 = vadd.f32 %v2431, %v3169
      %v3234 = vadd.f32 %v2432, %v3170
      %v3235 = vadd.f32 %v2433, %v3171
      %v3236 = vadd.f32 %v2434, %v3172
      %v3237 = vadd.f32 %v2435, %v3173
      %v3238 = vadd.f32 %v2436, %v3174
      %v3239 = vadd.f32 %v2437, %v3175
      %v3240 = vadd.f32 %v2438, %v3176
      %v3241 = vadd.f32 %v2439, %v3177
      %v3242 = vadd.f32 %v2440, %v3178
      %v3243 = vrot.slane %v2441, 1
      %v3244 = vrot.slane %v2442, 1
      %v3245 = vrot.slane %v2443, 1
      %v3246 = vrot.slane %v2444, 1
      %v3247 = vrot.slane %v2445, 1
      %v3248 = vrot.slane %v2446, 1
      %v3249 = vrot.slane %v2447, 1
      %v3250 = vrot.slane %v2448, 1
      %v3251 = vrot.slane %v2449, 1
      %v3252 = vrot.slane %v2450, 1
      %v3253 = vrot.slane %v2451, 1
      %v3254 = vrot.slane %v2452, 1
      %v3255 = vrot.slane %v2453, 1
      %v3256 = vrot.slane %v2454, 1
      %v3257 = vrot.slane %v2455, 1
      %v3258 = vrot.slane %v2456, 1
      %v3259 = vrot.slane %v2457, 1
      %v3260 = vrot.slane %v2458, 1
      %v3261 = vrot.slane %v2459, 1
      %v3262 = vrot.slane %v2460, 1
      %v3263 = vrot.slane %v2461, 1
      %v3264 = vrot.slane %v2462, 1
      %v3265 = vrot.slane %v2463, 1
      %v3266 = vrot.slane %v2464, 1
      %v3267 = vrot.slane %v2465, 1
      %v3268 = vrot.slane %v2466, 1
      %v3269 = vrot.slane %v2467, 1
      %v3270 = vrot.slane %v2468, 1
      %v3271 = vrot.slane %v2469, 1
      %v3272 = vrot.slane %v2470, 1
      %v3273 = vrot.slane %v2471, 1
      %v3274 = vrot.slane %v2472, 1
      %v3275 = vrot.slane %v2473, 1
      %v3276 = vrot.slane %v2474, 1
      %v3277 = vrot.slane %v2475, 1
      %v3278 = vrot.slane %v2476, 1
      %v3279 = vrot.slane %v2477, 1
      %v3280 = vrot.slane %v2478, 1
      %v3281 = vrot.slane %v2479, 1
      %v3282 = vrot.slane %v2480, 1
      %v3283 = vrot.slane %v2481, 1
      %v3284 = vrot.slane %v2482, 1
      %v3285 = vrot.slane %v2483, 1
      %v3286 = vrot.slane %v2484, 1
      %v3287 = vrot.slane %v2485, 1
      %v3288 = vrot.slane %v2486, 1
      %v3289 = vrot.slane %v2487, 1
      %v3290 = vrot.slane %v2488, 1
      %v3291 = vrot.slane %v2489, 1
      %v3292 = vrot.slane %v2490, 1
      %v3293 = vrot.slane %v2491, 1
      %v3294 = vrot.slane %v2492, 1
      %v3295 = vrot.slane %v2493, 1
      %v3296 = vrot.slane %v2494, 1
      %v3297 = vrot.slane %v2495, 1
      %v3298 = vrot.slane %v2496, 1
      %v3299 = vrot.slane %v2497, 1
      %v3300 = vrot.slane %v2498, 1
      %v3301 = vrot.slane %v2499, 1
      %v3302 = vrot.slane %v2500, 1
      %v3303 = vrot.slane %v2501, 1
      %v3304 = vrot.slane %v2502, 1
      %v3305 = vrot.slane %v2503, 1
      %v3306 = vrot.slane %v2504, 1
      %vm3307 = vcmp.lt.s32.totalorder %v2506, 7
      %v3308 = vsel %vm3307, %v3303, %v3305
      %v3309 = vsel %vm3307, %v3304, %v3306
      %v3310 = vsel %vm3307, %v3301, %v3303
      %v3311 = vsel %vm3307, %v3302, %v3304
      %v3312 = vsel %vm3307, %v3299, %v3301
      %v3313 = vsel %vm3307, %v3300, %v3302
      %v3314 = vsel %vm3307, %v3297, %v3299
      %v3315 = vsel %vm3307, %v3298, %v3300
      %v3316 = vsel %vm3307, %v3295, %v3297
      %v3317 = vsel %vm3307, %v3296, %v3298
      %v3318 = vsel %vm3307, %v3293, %v3295
      %v3319 = vsel %vm3307, %v3294, %v3296
      %v3320 = vsel %vm3307, %v3291, %v3293
      %v3321 = vsel %vm3307, %v3292, %v3294
      %v3322 = vsel %vm3307, %v3289, %v3291
      %v3323 = vsel %vm3307, %v3290, %v3292
      %v3324 = vsel %vm3307, %v3287, %v3289
      %v3325 = vsel %vm3307, %v3288, %v3290
      %v3326 = vsel %vm3307, %v3285, %v3287
      %v3327 = vsel %vm3307, %v3286, %v3288
      %v3328 = vsel %vm3307, %v3283, %v3285
      %v3329 = vsel %vm3307, %v3284, %v3286
      %v3330 = vsel %vm3307, %v3281, %v3283
      %v3331 = vsel %vm3307, %v3282, %v3284
      %v3332 = vsel %vm3307, %v3279, %v3281
      %v3333 = vsel %vm3307, %v3280, %v3282
      %v3334 = vsel %vm3307, %v3277, %v3279
      %v3335 = vsel %vm3307, %v3278, %v3280
      %v3336 = vsel %vm3307, %v3275, %v3277
      %v3337 = vsel %vm3307, %v3276, %v3278
      %v3338 = vsel %vm3307, %v3273, %v3275
      %v3339 = vsel %vm3307, %v3274, %v3276
      %v3340 = vsel %vm3307, %v3271, %v3273
      %v3341 = vsel %vm3307, %v3272, %v3274
      %v3342 = vsel %vm3307, %v3269, %v3271
      %v3343 = vsel %vm3307, %v3270, %v3272
      %v3344 = vsel %vm3307, %v3267, %v3269
      %v3345 = vsel %vm3307, %v3268, %v3270
      %v3346 = vsel %vm3307, %v3265, %v3267
      %v3347 = vsel %vm3307, %v3266, %v3268
      %v3348 = vsel %vm3307, %v3263, %v3265
      %v3349 = vsel %vm3307, %v3264, %v3266
      %v3350 = vsel %vm3307, %v3261, %v3263
      %v3351 = vsel %vm3307, %v3262, %v3264
      %v3352 = vsel %vm3307, %v3259, %v3261
      %v3353 = vsel %vm3307, %v3260, %v3262
      %v3354 = vsel %vm3307, %v3257, %v3259
      %v3355 = vsel %vm3307, %v3258, %v3260
      %v3356 = vsel %vm3307, %v3255, %v3257
      %v3357 = vsel %vm3307, %v3256, %v3258
      %v3358 = vsel %vm3307, %v3253, %v3255
      %v3359 = vsel %vm3307, %v3254, %v3256
      %v3360 = vsel %vm3307, %v3251, %v3253
      %v3361 = vsel %vm3307, %v3252, %v3254
      %v3362 = vsel %vm3307, %v3249, %v3251
      %v3363 = vsel %vm3307, %v3250, %v3252
      %v3364 = vsel %vm3307, %v3247, %v3249
      %v3365 = vsel %vm3307, %v3248, %v3250
      %v3366 = vsel %vm3307, %v3245, %v3247
      %v3367 = vsel %vm3307, %v3246, %v3248
      %v3368 = vsel %vm3307, %v3243, %v3245
      %v3369 = vsel %vm3307, %v3244, %v3246
      %v3370 = vsel %vm3307, %v3305, %v3243
      %v3371 = vsel %vm3307, %v3306, %v3244
      %v3372 = vsel %vm2954, %v3368, 0.0
      %v3373 = vsel %vm2954, %v3369, 0.0
      %v3374 = vsel %vm2955, %v3366, 0.0
      %v3375 = vsel %vm2955, %v3367, 0.0
      %v3376 = vsel %vm2956, %v3364, 0.0
      %v3377 = vsel %vm2956, %v3365, 0.0
      %v3378 = vsel %vm2957, %v3362, 0.0
      %v3379 = vsel %vm2957, %v3363, 0.0
      %v3380 = vsel %vm2958, %v3360, 0.0
      %v3381 = vsel %vm2958, %v3361, 0.0
      %v3382 = vsel %vm2959, %v3358, 0.0
      %v3383 = vsel %vm2959, %v3359, 0.0
      %v3384 = vsel %vm2960, %v3356, 0.0
      %v3385 = vsel %vm2960, %v3357, 0.0
      %v3386 = vsel %vm2961, %v3354, 0.0
      %v3387 = vsel %vm2961, %v3355, 0.0
      %v3388 = vsel %vm2962, %v3352, 0.0
      %v3389 = vsel %vm2962, %v3353, 0.0
      %v3390 = vsel %vm2963, %v3350, 0.0
      %v3391 = vsel %vm2963, %v3351, 0.0
      %v3392 = vsel %vm2964, %v3348, 0.0
      %v3393 = vsel %vm2964, %v3349, 0.0
      %v3394 = vsel %vm2965, %v3346, 0.0
      %v3395 = vsel %vm2965, %v3347, 0.0
      %v3396 = vsel %vm2966, %v3344, 0.0
      %v3397 = vsel %vm2966, %v3345, 0.0
      %v3398 = vsel %vm2967, %v3342, 0.0
      %v3399 = vsel %vm2967, %v3343, 0.0
      %v3400 = vsel %vm2968, %v3340, 0.0
      %v3401 = vsel %vm2968, %v3341, 0.0
      %v3402 = vsel %vm2969, %v3338, 0.0
      %v3403 = vsel %vm2969, %v3339, 0.0
      %v3404 = vsel %vm2970, %v3336, 0.0
      %v3405 = vsel %vm2970, %v3337, 0.0
      %v3406 = vsel %vm2971, %v3334, 0.0
      %v3407 = vsel %vm2971, %v3335, 0.0
      %v3408 = vsel %vm2972, %v3332, 0.0
      %v3409 = vsel %vm2972, %v3333, 0.0
      %v3410 = vsel %vm2973, %v3330, 0.0
      %v3411 = vsel %vm2973, %v3331, 0.0
      %v3412 = vsel %vm2974, %v3328, 0.0
      %v3413 = vsel %vm2974, %v3329, 0.0
      %v3414 = vsel %vm2975, %v3326, 0.0
      %v3415 = vsel %vm2975, %v3327, 0.0
      %v3416 = vsel %vm2976, %v3324, 0.0
      %v3417 = vsel %vm2976, %v3325, 0.0
      %v3418 = vsel %vm2977, %v3322, 0.0
      %v3419 = vsel %vm2977, %v3323, 0.0
      %v3420 = vsel %vm2978, %v3320, 0.0
      %v3421 = vsel %vm2978, %v3321, 0.0
      %v3422 = vsel %vm2979, %v3318, 0.0
      %v3423 = vsel %vm2979, %v3319, 0.0
      %v3424 = vsel %vm2980, %v3316, 0.0
      %v3425 = vsel %vm2980, %v3317, 0.0
      %v3426 = vsel %vm2981, %v3314, 0.0
      %v3427 = vsel %vm2981, %v3315, 0.0
      %v3428 = vsel %vm2982, %v3312, 0.0
      %v3429 = vsel %vm2982, %v3313, 0.0
      %v3430 = vsel %vm2983, %v3310, 0.0
      %v3431 = vsel %vm2983, %v3311, 0.0
      %v3432 = vsel %vm2984, %v3308, 0.0
      %v3433 = vsel %vm2984, %v3309, 0.0
      %v3434 = vsel %vm2985, %v3370, 0.0
      %v3435 = vsel %vm2985, %v3371, 0.0
      %v3436 = vadd.f32 %v3179, %v3372
      %v3437 = vadd.f32 %v3180, %v3373
      %v3438 = vadd.f32 %v3181, %v3374
      %v3439 = vadd.f32 %v3182, %v3375
      %v3440 = vadd.f32 %v3183, %v3376
      %v3441 = vadd.f32 %v3184, %v3377
      %v3442 = vadd.f32 %v3185, %v3378
      %v3443 = vadd.f32 %v3186, %v3379
      %v3444 = vadd.f32 %v3187, %v3380
      %v3445 = vadd.f32 %v3188, %v3381
      %v3446 = vadd.f32 %v3189, %v3382
      %v3447 = vadd.f32 %v3190, %v3383
      %v3448 = vadd.f32 %v3191, %v3384
      %v3449 = vadd.f32 %v3192, %v3385
      %v3450 = vadd.f32 %v3193, %v3386
      %v3451 = vadd.f32 %v3194, %v3387
      %v3452 = vadd.f32 %v3195, %v3388
      %v3453 = vadd.f32 %v3196, %v3389
      %v3454 = vadd.f32 %v3197, %v3390
      %v3455 = vadd.f32 %v3198, %v3391
      %v3456 = vadd.f32 %v3199, %v3392
      %v3457 = vadd.f32 %v3200, %v3393
      %v3458 = vadd.f32 %v3201, %v3394
      %v3459 = vadd.f32 %v3202, %v3395
      %v3460 = vadd.f32 %v3203, %v3396
      %v3461 = vadd.f32 %v3204, %v3397
      %v3462 = vadd.f32 %v3205, %v3398
      %v3463 = vadd.f32 %v3206, %v3399
      %v3464 = vadd.f32 %v3207, %v3400
      %v3465 = vadd.f32 %v3208, %v3401
      %v3466 = vadd.f32 %v3209, %v3402
      %v3467 = vadd.f32 %v3210, %v3403
      %v3468 = vadd.f32 %v3211, %v3404
      %v3469 = vadd.f32 %v3212, %v3405
      %v3470 = vadd.f32 %v3213, %v3406
      %v3471 = vadd.f32 %v3214, %v3407
      %v3472 = vadd.f32 %v3215, %v3408
      %v3473 = vadd.f32 %v3216, %v3409
      %v3474 = vadd.f32 %v3217, %v3410
      %v3475 = vadd.f32 %v3218, %v3411
      %v3476 = vadd.f32 %v3219, %v3412
      %v3477 = vadd.f32 %v3220, %v3413
      %v3478 = vadd.f32 %v3221, %v3414
      %v3479 = vadd.f32 %v3222, %v3415
      %v3480 = vadd.f32 %v3223, %v3416
      %v3481 = vadd.f32 %v3224, %v3417
      %v3482 = vadd.f32 %v3225, %v3418
      %v3483 = vadd.f32 %v3226, %v3419
      %v3484 = vadd.f32 %v3227, %v3420
      %v3485 = vadd.f32 %v3228, %v3421
      %v3486 = vadd.f32 %v3229, %v3422
      %v3487 = vadd.f32 %v3230, %v3423
      %v3488 = vadd.f32 %v3231, %v3424
      %v3489 = vadd.f32 %v3232, %v3425
      %v3490 = vadd.f32 %v3233, %v3426
      %v3491 = vadd.f32 %v3234, %v3427
      %v3492 = vadd.f32 %v3235, %v3428
      %v3493 = vadd.f32 %v3236, %v3429
      %v3494 = vadd.f32 %v3237, %v3430
      %v3495 = vadd.f32 %v3238, %v3431
      %v3496 = vadd.f32 %v3239, %v3432
      %v3497 = vadd.f32 %v3240, %v3433
      %v3498 = vadd.f32 %v3241, %v3434
      %v3499 = vadd.f32 %v3242, %v3435
      %v3500 = vld [vmem:[%s4] sm:$0x3]
      %v3502 = vlaneseq
      %v3503 = vshrl.u32 %v3502, 7
      %v3504 = vsub.s32 0, %v3503
      %v3505 = vrot.slane %v3500, %v3504
      %v3506 = vlaneseq
      %v3507 = vshrl.u32 %v3506, 7
      %v3508 = vsub.s32 1, %v3507
      %v3509 = vrot.slane %v3500, %v3508
      %v3512 = vadd.f32 %v3436, %v3505
      %v3513 = vadd.f32 %v3437, %v3509
      %v3514 = vadd.f32 %v3438, %v3505
      %v3515 = vadd.f32 %v3439, %v3509
      %v3516 = vadd.f32 %v3440, %v3505
      %v3517 = vadd.f32 %v3441, %v3509
      %v3518 = vadd.f32 %v3442, %v3505
      %v3519 = vadd.f32 %v3443, %v3509
      %v3520 = vadd.f32 %v3444, %v3505
      %v3521 = vadd.f32 %v3445, %v3509
      %v3522 = vadd.f32 %v3446, %v3505
      %v3523 = vadd.f32 %v3447, %v3509
      %v3524 = vadd.f32 %v3448, %v3505
      %v3525 = vadd.f32 %v3449, %v3509
      %v3526 = vadd.f32 %v3450, %v3505
      %v3527 = vadd.f32 %v3451, %v3509
      %v3528 = vadd.f32 %v3452, %v3505
      %v3529 = vadd.f32 %v3453, %v3509
      %v3530 = vadd.f32 %v3454, %v3505
      %v3531 = vadd.f32 %v3455, %v3509
      %v3532 = vadd.f32 %v3456, %v3505
      %v3533 = vadd.f32 %v3457, %v3509
      %v3534 = vadd.f32 %v3458, %v3505
      %v3535 = vadd.f32 %v3459, %v3509
      %v3536 = vadd.f32 %v3460, %v3505
      %v3537 = vadd.f32 %v3461, %v3509
      %v3538 = vadd.f32 %v3462, %v3505
      %v3539 = vadd.f32 %v3463, %v3509
      %v3540 = vadd.f32 %v3464, %v3505
      %v3541 = vadd.f32 %v3465, %v3509
      %v3542 = vadd.f32 %v3466, %v3505
      %v3543 = vadd.f32 %v3467, %v3509
      %v3544 = vadd.f32 %v3468, %v3505
      %v3545 = vadd.f32 %v3469, %v3509
      %v3546 = vadd.f32 %v3470, %v3505
      %v3547 = vadd.f32 %v3471, %v3509
      %v3548 = vadd.f32 %v3472, %v3505
      %v3549 = vadd.f32 %v3473, %v3509
      %v3550 = vadd.f32 %v3474, %v3505
      %v3551 = vadd.f32 %v3475, %v3509
      %v3552 = vadd.f32 %v3476, %v3505
      %v3553 = vadd.f32 %v3477, %v3509
      %v3554 = vadd.f32 %v3478, %v3505
      %v3555 = vadd.f32 %v3479, %v3509
      %v3556 = vadd.f32 %v3480, %v3505
      %v3557 = vadd.f32 %v3481, %v3509
      %v3558 = vadd.f32 %v3482, %v3505
      %v3559 = vadd.f32 %v3483, %v3509
      %v3560 = vadd.f32 %v3484, %v3505
      %v3561 = vadd.f32 %v3485, %v3509
      %v3562 = vadd.f32 %v3486, %v3505
      %v3563 = vadd.f32 %v3487, %v3509
      %v3564 = vadd.f32 %v3488, %v3505
      %v3565 = vadd.f32 %v3489, %v3509
      %v3566 = vadd.f32 %v3490, %v3505
      %v3567 = vadd.f32 %v3491, %v3509
      %v3568 = vadd.f32 %v3492, %v3505
      %v3569 = vadd.f32 %v3493, %v3509
      %v3570 = vadd.f32 %v3494, %v3505
      %v3571 = vadd.f32 %v3495, %v3509
      %v3572 = vadd.f32 %v3496, %v3505
      %v3573 = vadd.f32 %v3497, %v3509
      %v3574 = vadd.f32 %v3498, %v3505
      %v3575 = vadd.f32 %v3499, %v3509
      %v3576 = vxor.u32 %v3512, 2147483648
      %v3577 = vxor.u32 %v3513, 2147483648
      %v3578 = vxor.u32 %v3514, 2147483648
      %v3579 = vxor.u32 %v3515, 2147483648
      %v3580 = vxor.u32 %v3516, 2147483648
      %v3581 = vxor.u32 %v3517, 2147483648
      %v3582 = vxor.u32 %v3518, 2147483648
      %v3583 = vxor.u32 %v3519, 2147483648
      %v3584 = vxor.u32 %v3520, 2147483648
      %v3585 = vxor.u32 %v3521, 2147483648
      %v3586 = vxor.u32 %v3522, 2147483648
      %v3587 = vxor.u32 %v3523, 2147483648
      %v3588 = vxor.u32 %v3524, 2147483648
      %v3589 = vxor.u32 %v3525, 2147483648
      %v3590 = vxor.u32 %v3526, 2147483648
      %v3591 = vxor.u32 %v3527, 2147483648
      %v3592 = vxor.u32 %v3528, 2147483648
      %v3593 = vxor.u32 %v3529, 2147483648
      %v3594 = vxor.u32 %v3530, 2147483648
      %v3595 = vxor.u32 %v3531, 2147483648
      %v3596 = vxor.u32 %v3532, 2147483648
      %v3597 = vxor.u32 %v3533, 2147483648
      %v3598 = vxor.u32 %v3534, 2147483648
      %v3599 = vxor.u32 %v3535, 2147483648
      %v3600 = vxor.u32 %v3536, 2147483648
      %v3601 = vxor.u32 %v3537, 2147483648
      %v3602 = vxor.u32 %v3538, 2147483648
      %v3603 = vxor.u32 %v3539, 2147483648
      %v3604 = vxor.u32 %v3540, 2147483648
      %v3605 = vxor.u32 %v3541, 2147483648
      %v3606 = vxor.u32 %v3542, 2147483648
      %v3607 = vxor.u32 %v3543, 2147483648
      %v3608 = vxor.u32 %v3544, 2147483648
      %v3609 = vxor.u32 %v3545, 2147483648
      %v3610 = vxor.u32 %v3546, 2147483648
      %v3611 = vxor.u32 %v3547, 2147483648
      %v3612 = vxor.u32 %v3548, 2147483648
      %v3613 = vxor.u32 %v3549, 2147483648
      %v3614 = vxor.u32 %v3550, 2147483648
      %v3615 = vxor.u32 %v3551, 2147483648
      %v3616 = vxor.u32 %v3552, 2147483648
      %v3617 = vxor.u32 %v3553, 2147483648
      %v3618 = vxor.u32 %v3554, 2147483648
      %v3619 = vxor.u32 %v3555, 2147483648
      %v3620 = vxor.u32 %v3556, 2147483648
      %v3621 = vxor.u32 %v3557, 2147483648
      %v3622 = vxor.u32 %v3558, 2147483648
      %v3623 = vxor.u32 %v3559, 2147483648
      %v3624 = vxor.u32 %v3560, 2147483648
      %v3625 = vxor.u32 %v3561, 2147483648
      %v3626 = vxor.u32 %v3562, 2147483648
      %v3627 = vxor.u32 %v3563, 2147483648
      %v3628 = vxor.u32 %v3564, 2147483648
      %v3629 = vxor.u32 %v3565, 2147483648
      %v3630 = vxor.u32 %v3566, 2147483648
      %v3631 = vxor.u32 %v3567, 2147483648
      %v3632 = vxor.u32 %v3568, 2147483648
      %v3633 = vxor.u32 %v3569, 2147483648
      %v3634 = vxor.u32 %v3570, 2147483648
      %v3635 = vxor.u32 %v3571, 2147483648
      %v3636 = vxor.u32 %v3572, 2147483648
      %v3637 = vxor.u32 %v3573, 2147483648
      %v3638 = vxor.u32 %v3574, 2147483648
      %v3639 = vxor.u32 %v3575, 2147483648
      %v3640 = vmul.f32 %v3576, 1.442695
      %v3641 = vpow.pop %v3640
      %v3642 = vmul.f32 %v3577, 1.442695
      %v3643 = vpow.pop %v3642
      %v3644 = vmul.f32 %v3578, 1.442695
      %v3645 = vpow.pop %v3644
      %v3646 = vmul.f32 %v3579, 1.442695
      %v3647 = vpow.pop %v3646
      %v3648 = vmul.f32 %v3580, 1.442695
      %v3649 = vpow.pop %v3648
      %v3650 = vmul.f32 %v3581, 1.442695
      %v3651 = vpow.pop %v3650
      %v3652 = vmul.f32 %v3582, 1.442695
      %v3653 = vpow.pop %v3652
      %v3654 = vmul.f32 %v3583, 1.442695
      %v3655 = vpow.pop %v3654
      %v3656 = vmul.f32 %v3584, 1.442695
      %v3657 = vpow.pop %v3656
      %v3658 = vmul.f32 %v3585, 1.442695
      %v3659 = vpow.pop %v3658
      %v3660 = vmul.f32 %v3586, 1.442695
      %v3661 = vpow.pop %v3660
      %v3662 = vmul.f32 %v3587, 1.442695
      %v3663 = vpow.pop %v3662
      %v3664 = vmul.f32 %v3588, 1.442695
      %v3665 = vpow.pop %v3664
      %v3666 = vmul.f32 %v3589, 1.442695
      %v3667 = vpow.pop %v3666
      %v3668 = vmul.f32 %v3590, 1.442695
      %v3669 = vpow.pop %v3668
      %v3670 = vmul.f32 %v3591, 1.442695
      %v3671 = vpow.pop %v3670
      %v3672 = vmul.f32 %v3592, 1.442695
      %v3673 = vpow.pop %v3672
      %v3674 = vmul.f32 %v3593, 1.442695
      %v3675 = vpow.pop %v3674
      %v3676 = vmul.f32 %v3594, 1.442695
      %v3677 = vpow.pop %v3676
      %v3678 = vmul.f32 %v3595, 1.442695
      %v3679 = vpow.pop %v3678
      %v3680 = vmul.f32 %v3596, 1.442695
      %v3681 = vpow.pop %v3680
      %v3682 = vmul.f32 %v3597, 1.442695
      %v3683 = vpow.pop %v3682
      %v3684 = vmul.f32 %v3598, 1.442695
      %v3685 = vpow.pop %v3684
      %v3686 = vmul.f32 %v3599, 1.442695
      %v3687 = vpow.pop %v3686
      %v3688 = vmul.f32 %v3600, 1.442695
      %v3689 = vpow.pop %v3688
      %v3690 = vmul.f32 %v3601, 1.442695
      %v3691 = vpow.pop %v3690
      %v3692 = vmul.f32 %v3602, 1.442695
      %v3693 = vpow.pop %v3692
      %v3694 = vmul.f32 %v3603, 1.442695
      %v3695 = vpow.pop %v3694
      %v3696 = vmul.f32 %v3604, 1.442695
      %v3697 = vpow.pop %v3696
      %v3698 = vmul.f32 %v3605, 1.442695
      %v3699 = vpow.pop %v3698
      %v3700 = vmul.f32 %v3606, 1.442695
      %v3701 = vpow.pop %v3700
      %v3702 = vmul.f32 %v3607, 1.442695
      %v3703 = vpow.pop %v3702
      %v3704 = vmul.f32 %v3608, 1.442695
      %v3705 = vpow.pop %v3704
      %v3706 = vmul.f32 %v3609, 1.442695
      %v3707 = vpow.pop %v3706
      %v3708 = vmul.f32 %v3610, 1.442695
      %v3709 = vpow.pop %v3708
      %v3710 = vmul.f32 %v3611, 1.442695
      %v3711 = vpow.pop %v3710
      %v3712 = vmul.f32 %v3612, 1.442695
      %v3713 = vpow.pop %v3712
      %v3714 = vmul.f32 %v3613, 1.442695
      %v3715 = vpow.pop %v3714
      %v3716 = vmul.f32 %v3614, 1.442695
      %v3717 = vpow.pop %v3716
      %v3718 = vmul.f32 %v3615, 1.442695
      %v3719 = vpow.pop %v3718
      %v3720 = vmul.f32 %v3616, 1.442695
      %v3721 = vpow.pop %v3720
      %v3722 = vmul.f32 %v3617, 1.442695
      %v3723 = vpow.pop %v3722
      %v3724 = vmul.f32 %v3618, 1.442695
      %v3725 = vpow.pop %v3724
      %v3726 = vmul.f32 %v3619, 1.442695
      %v3727 = vpow.pop %v3726
      %v3728 = vmul.f32 %v3620, 1.442695
      %v3729 = vpow.pop %v3728
      %v3730 = vmul.f32 %v3621, 1.442695
      %v3731 = vpow.pop %v3730
      %v3732 = vmul.f32 %v3622, 1.442695
      %v3733 = vpow.pop %v3732
      %v3734 = vmul.f32 %v3623, 1.442695
      %v3735 = vpow.pop %v3734
      %v3736 = vmul.f32 %v3624, 1.442695
      %v3737 = vpow.pop %v3736
      %v3738 = vmul.f32 %v3625, 1.442695
      %v3739 = vpow.pop %v3738
      %v3740 = vmul.f32 %v3626, 1.442695
      %v3741 = vpow.pop %v3740
      %v3742 = vmul.f32 %v3627, 1.442695
      %v3743 = vpow.pop %v3742
      %v3744 = vmul.f32 %v3628, 1.442695
      %v3745 = vpow.pop %v3744
      %v3746 = vmul.f32 %v3629, 1.442695
      %v3747 = vpow.pop %v3746
      %v3748 = vmul.f32 %v3630, 1.442695
      %v3749 = vpow.pop %v3748
      %v3750 = vmul.f32 %v3631, 1.442695
      %v3751 = vpow.pop %v3750
      %v3752 = vmul.f32 %v3632, 1.442695
      %v3753 = vpow.pop %v3752
      %v3754 = vmul.f32 %v3633, 1.442695
      %v3755 = vpow.pop %v3754
      %v3756 = vmul.f32 %v3634, 1.442695
      %v3757 = vpow.pop %v3756
      %v3758 = vmul.f32 %v3635, 1.442695
      %v3759 = vpow.pop %v3758
      %v3760 = vmul.f32 %v3636, 1.442695
      %v3761 = vpow.pop %v3760
      %v3762 = vmul.f32 %v3637, 1.442695
      %v3763 = vpow.pop %v3762
      %v3764 = vmul.f32 %v3638, 1.442695
      %v3765 = vpow.pop %v3764
      %v3766 = vmul.f32 %v3639, 1.442695
      %v3767 = vpow.pop %v3766
      %v3768 = vadd.f32 %v3641, 1.0
      %v3769 = vadd.f32 %v3643, 1.0
      %v3770 = vadd.f32 %v3645, 1.0
      %v3771 = vadd.f32 %v3647, 1.0
      %v3772 = vadd.f32 %v3649, 1.0
      %v3773 = vadd.f32 %v3651, 1.0
      %v3774 = vadd.f32 %v3653, 1.0
      %v3775 = vadd.f32 %v3655, 1.0
      %v3776 = vadd.f32 %v3657, 1.0
      %v3777 = vadd.f32 %v3659, 1.0
      %v3778 = vadd.f32 %v3661, 1.0
      %v3779 = vadd.f32 %v3663, 1.0
      %v3780 = vadd.f32 %v3665, 1.0
      %v3781 = vadd.f32 %v3667, 1.0
      %v3782 = vadd.f32 %v3669, 1.0
      %v3783 = vadd.f32 %v3671, 1.0
      %v3784 = vadd.f32 %v3673, 1.0
      %v3785 = vadd.f32 %v3675, 1.0
      %v3786 = vadd.f32 %v3677, 1.0
      %v3787 = vadd.f32 %v3679, 1.0
      %v3788 = vadd.f32 %v3681, 1.0
      %v3789 = vadd.f32 %v3683, 1.0
      %v3790 = vadd.f32 %v3685, 1.0
      %v3791 = vadd.f32 %v3687, 1.0
      %v3792 = vadd.f32 %v3689, 1.0
      %v3793 = vadd.f32 %v3691, 1.0
      %v3794 = vadd.f32 %v3693, 1.0
      %v3795 = vadd.f32 %v3695, 1.0
      %v3796 = vadd.f32 %v3697, 1.0
      %v3797 = vadd.f32 %v3699, 1.0
      %v3798 = vadd.f32 %v3701, 1.0
      %v3799 = vadd.f32 %v3703, 1.0
      %v3800 = vadd.f32 %v3705, 1.0
      %v3801 = vadd.f32 %v3707, 1.0
      %v3802 = vadd.f32 %v3709, 1.0
      %v3803 = vadd.f32 %v3711, 1.0
      %v3804 = vadd.f32 %v3713, 1.0
      %v3805 = vadd.f32 %v3715, 1.0
      %v3806 = vadd.f32 %v3717, 1.0
      %v3807 = vadd.f32 %v3719, 1.0
      %v3808 = vadd.f32 %v3721, 1.0
      %v3809 = vadd.f32 %v3723, 1.0
      %v3810 = vadd.f32 %v3725, 1.0
      %v3811 = vadd.f32 %v3727, 1.0
      %v3812 = vadd.f32 %v3729, 1.0
      %v3813 = vadd.f32 %v3731, 1.0
      %v3814 = vadd.f32 %v3733, 1.0
      %v3815 = vadd.f32 %v3735, 1.0
      %v3816 = vadd.f32 %v3737, 1.0
      %v3817 = vadd.f32 %v3739, 1.0
      %v3818 = vadd.f32 %v3741, 1.0
      %v3819 = vadd.f32 %v3743, 1.0
      %v3820 = vadd.f32 %v3745, 1.0
      %v3821 = vadd.f32 %v3747, 1.0
      %v3822 = vadd.f32 %v3749, 1.0
      %v3823 = vadd.f32 %v3751, 1.0
      %v3824 = vadd.f32 %v3753, 1.0
      %v3825 = vadd.f32 %v3755, 1.0
      %v3826 = vadd.f32 %v3757, 1.0
      %v3827 = vadd.f32 %v3759, 1.0
      %v3828 = vadd.f32 %v3761, 1.0
      %v3829 = vadd.f32 %v3763, 1.0
      %v3830 = vadd.f32 %v3765, 1.0
      %v3831 = vadd.f32 %v3767, 1.0
      %v3832 = vrcp.pop %v3768
      %v3833 = vmul.f32 1.0, %v3832
      %v3834 = vrcp.pop %v3769
      %v3835 = vmul.f32 1.0, %v3834
      %v3836 = vrcp.pop %v3770
      %v3837 = vmul.f32 1.0, %v3836
      %v3838 = vrcp.pop %v3771
      %v3839 = vmul.f32 1.0, %v3838
      %v3840 = vrcp.pop %v3772
      %v3841 = vmul.f32 1.0, %v3840
      %v3842 = vrcp.pop %v3773
      %v3843 = vmul.f32 1.0, %v3842
      %v3844 = vrcp.pop %v3774
      %v3845 = vmul.f32 1.0, %v3844
      %v3846 = vrcp.pop %v3775
      %v3847 = vmul.f32 1.0, %v3846
      %v3848 = vrcp.pop %v3776
      %v3849 = vmul.f32 1.0, %v3848
      %v3850 = vrcp.pop %v3777
      %v3851 = vmul.f32 1.0, %v3850
      %v3852 = vrcp.pop %v3778
      %v3853 = vmul.f32 1.0, %v3852
      %v3854 = vrcp.pop %v3779
      %v3855 = vmul.f32 1.0, %v3854
      %v3856 = vrcp.pop %v3780
      %v3857 = vmul.f32 1.0, %v3856
      %v3858 = vrcp.pop %v3781
      %v3859 = vmul.f32 1.0, %v3858
      %v3860 = vrcp.pop %v3782
      %v3861 = vmul.f32 1.0, %v3860
      %v3862 = vrcp.pop %v3783
      %v3863 = vmul.f32 1.0, %v3862
      %v3864 = vrcp.pop %v3784
      %v3865 = vmul.f32 1.0, %v3864
      %v3866 = vrcp.pop %v3785
      %v3867 = vmul.f32 1.0, %v3866
      %v3868 = vrcp.pop %v3786
      %v3869 = vmul.f32 1.0, %v3868
      %v3870 = vrcp.pop %v3787
      %v3871 = vmul.f32 1.0, %v3870
      %v3872 = vrcp.pop %v3788
      %v3873 = vmul.f32 1.0, %v3872
      %v3874 = vrcp.pop %v3789
      %v3875 = vmul.f32 1.0, %v3874
      %v3876 = vrcp.pop %v3790
      %v3877 = vmul.f32 1.0, %v3876
      %v3878 = vrcp.pop %v3791
      %v3879 = vmul.f32 1.0, %v3878
      %v3880 = vrcp.pop %v3792
      %v3881 = vmul.f32 1.0, %v3880
      %v3882 = vrcp.pop %v3793
      %v3883 = vmul.f32 1.0, %v3882
      %v3884 = vrcp.pop %v3794
      %v3885 = vmul.f32 1.0, %v3884
      %v3886 = vrcp.pop %v3795
      %v3887 = vmul.f32 1.0, %v3886
      %v3888 = vrcp.pop %v3796
      %v3889 = vmul.f32 1.0, %v3888
      %v3890 = vrcp.pop %v3797
      %v3891 = vmul.f32 1.0, %v3890
      %v3892 = vrcp.pop %v3798
      %v3893 = vmul.f32 1.0, %v3892
      %v3894 = vrcp.pop %v3799
      %v3895 = vmul.f32 1.0, %v3894
      %v3896 = vrcp.pop %v3800
      %v3897 = vmul.f32 1.0, %v3896
      %v3898 = vrcp.pop %v3801
      %v3899 = vmul.f32 1.0, %v3898
      %v3900 = vrcp.pop %v3802
      %v3901 = vmul.f32 1.0, %v3900
      %v3902 = vrcp.pop %v3803
      %v3903 = vmul.f32 1.0, %v3902
      %v3904 = vrcp.pop %v3804
      %v3905 = vmul.f32 1.0, %v3904
      %v3906 = vrcp.pop %v3805
      %v3907 = vmul.f32 1.0, %v3906
      %v3908 = vrcp.pop %v3806
      %v3909 = vmul.f32 1.0, %v3908
      %v3910 = vrcp.pop %v3807
      %v3911 = vmul.f32 1.0, %v3910
      %v3912 = vrcp.pop %v3808
      %v3913 = vmul.f32 1.0, %v3912
      %v3914 = vrcp.pop %v3809
      %v3915 = vmul.f32 1.0, %v3914
      %v3916 = vrcp.pop %v3810
      %v3917 = vmul.f32 1.0, %v3916
      %v3918 = vrcp.pop %v3811
      %v3919 = vmul.f32 1.0, %v3918
      %v3920 = vrcp.pop %v3812
      %v3921 = vmul.f32 1.0, %v3920
      %v3922 = vrcp.pop %v3813
      %v3923 = vmul.f32 1.0, %v3922
      %v3924 = vrcp.pop %v3814
      %v3925 = vmul.f32 1.0, %v3924
      %v3926 = vrcp.pop %v3815
      %v3927 = vmul.f32 1.0, %v3926
      %v3928 = vrcp.pop %v3816
      %v3929 = vmul.f32 1.0, %v3928
      %v3930 = vrcp.pop %v3817
      %v3931 = vmul.f32 1.0, %v3930
      %v3932 = vrcp.pop %v3818
      %v3933 = vmul.f32 1.0, %v3932
      %v3934 = vrcp.pop %v3819
      %v3935 = vmul.f32 1.0, %v3934
      %v3936 = vrcp.pop %v3820
      %v3937 = vmul.f32 1.0, %v3936
      %v3938 = vrcp.pop %v3821
      %v3939 = vmul.f32 1.0, %v3938
      %v3940 = vrcp.pop %v3822
      %v3941 = vmul.f32 1.0, %v3940
      %v3942 = vrcp.pop %v3823
      %v3943 = vmul.f32 1.0, %v3942
      %v3944 = vrcp.pop %v3824
      %v3945 = vmul.f32 1.0, %v3944
      %v3946 = vrcp.pop %v3825
      %v3947 = vmul.f32 1.0, %v3946
      %v3948 = vrcp.pop %v3826
      %v3949 = vmul.f32 1.0, %v3948
      %v3950 = vrcp.pop %v3827
      %v3951 = vmul.f32 1.0, %v3950
      %v3952 = vrcp.pop %v3828
      %v3953 = vmul.f32 1.0, %v3952
      %v3954 = vrcp.pop %v3829
      %v3955 = vmul.f32 1.0, %v3954
      %v3956 = vrcp.pop %v3830
      %v3957 = vmul.f32 1.0, %v3956
      %v3958 = vrcp.pop %v3831
      %v3959 = vmul.f32 1.0, %v3958
      %v3960 = vmul.f32 %v3512, %v3833
      %v3961 = vmul.f32 %v3513, %v3835
      %v3962 = vmul.f32 %v3514, %v3837
      %v3963 = vmul.f32 %v3515, %v3839
      %v3964 = vmul.f32 %v3516, %v3841
      %v3965 = vmul.f32 %v3517, %v3843
      %v3966 = vmul.f32 %v3518, %v3845
      %v3967 = vmul.f32 %v3519, %v3847
      %v3968 = vmul.f32 %v3520, %v3849
      %v3969 = vmul.f32 %v3521, %v3851
      %v3970 = vmul.f32 %v3522, %v3853
      %v3971 = vmul.f32 %v3523, %v3855
      %v3972 = vmul.f32 %v3524, %v3857
      %v3973 = vmul.f32 %v3525, %v3859
      %v3974 = vmul.f32 %v3526, %v3861
      %v3975 = vmul.f32 %v3527, %v3863
      %v3976 = vmul.f32 %v3528, %v3865
      %v3977 = vmul.f32 %v3529, %v3867
      %v3978 = vmul.f32 %v3530, %v3869
      %v3979 = vmul.f32 %v3531, %v3871
      %v3980 = vmul.f32 %v3532, %v3873
      %v3981 = vmul.f32 %v3533, %v3875
      %v3982 = vmul.f32 %v3534, %v3877
      %v3983 = vmul.f32 %v3535, %v3879
      %v3984 = vmul.f32 %v3536, %v3881
      %v3985 = vmul.f32 %v3537, %v3883
      %v3986 = vmul.f32 %v3538, %v3885
      %v3987 = vmul.f32 %v3539, %v3887
      %v3988 = vmul.f32 %v3540, %v3889
      %v3989 = vmul.f32 %v3541, %v3891
      %v3990 = vmul.f32 %v3542, %v3893
      %v3991 = vmul.f32 %v3543, %v3895
      %v3992 = vmul.f32 %v3544, %v3897
      %v3993 = vmul.f32 %v3545, %v3899
      %v3994 = vmul.f32 %v3546, %v3901
      %v3995 = vmul.f32 %v3547, %v3903
      %v3996 = vmul.f32 %v3548, %v3905
      %v3997 = vmul.f32 %v3549, %v3907
      %v3998 = vmul.f32 %v3550, %v3909
      %v3999 = vmul.f32 %v3551, %v3911
      %v4000 = vmul.f32 %v3552, %v3913
      %v4001 = vmul.f32 %v3553, %v3915
      %v4002 = vmul.f32 %v3554, %v3917
      %v4003 = vmul.f32 %v3555, %v3919
      %v4004 = vmul.f32 %v3556, %v3921
      %v4005 = vmul.f32 %v3557, %v3923
      %v4006 = vmul.f32 %v3558, %v3925
      %v4007 = vmul.f32 %v3559, %v3927
      %v4008 = vmul.f32 %v3560, %v3929
      %v4009 = vmul.f32 %v3561, %v3931
      %v4010 = vmul.f32 %v3562, %v3933
      %v4011 = vmul.f32 %v3563, %v3935
      %v4012 = vmul.f32 %v3564, %v3937
      %v4013 = vmul.f32 %v3565, %v3939
      %v4014 = vmul.f32 %v3566, %v3941
      %v4015 = vmul.f32 %v3567, %v3943
      %v4016 = vmul.f32 %v3568, %v3945
      %v4017 = vmul.f32 %v3569, %v3947
      %v4018 = vmul.f32 %v3570, %v3949
      %v4019 = vmul.f32 %v3571, %v3951
      %v4020 = vmul.f32 %v3572, %v3953
      %v4021 = vmul.f32 %v3573, %v3955
      %v4022 = vmul.f32 %v3574, %v3957
      %v4023 = vmul.f32 %v3575, %v3959
      %v4024 = vadd.f32 %v3960, %v3962
      %v4025 = vadd.f32 %v4024, %v3964
      %v4026 = vadd.f32 %v4025, %v3966
      %v4027 = vadd.f32 %v4026, %v3968
      %v4028 = vadd.f32 %v4027, %v3970
      %v4029 = vadd.f32 %v4028, %v3972
      %v4030 = vadd.f32 %v4029, %v3974
      %v4031 = vadd.f32 %v4030, %v3976
      %v4032 = vadd.f32 %v4031, %v3978
      %v4033 = vadd.f32 %v4032, %v3980
      %v4034 = vadd.f32 %v4033, %v3982
      %v4035 = vadd.f32 %v4034, %v3984
      %v4036 = vadd.f32 %v4035, %v3986
      %v4037 = vadd.f32 %v4036, %v3988
      %v4038 = vadd.f32 %v4037, %v3990
      %v4039 = vadd.f32 %v4038, %v3992
      %v4040 = vadd.f32 %v4039, %v3994
      %v4041 = vadd.f32 %v4040, %v3996
      %v4042 = vadd.f32 %v4041, %v3998
      %v4043 = vadd.f32 %v4042, %v4000
      %v4044 = vadd.f32 %v4043, %v4002
      %v4045 = vadd.f32 %v4044, %v4004
      %v4046 = vadd.f32 %v4045, %v4006
      %v4047 = vadd.f32 %v4046, %v4008
      %v4048 = vadd.f32 %v4047, %v4010
      %v4049 = vadd.f32 %v4048, %v4012
      %v4050 = vadd.f32 %v4049, %v4014
      %v4051 = vadd.f32 %v4050, %v4016
      %v4052 = vadd.f32 %v4051, %v4018
      %v4053 = vadd.f32 %v4052, %v4020
      %v4054 = vadd.f32 %v4053, %v4022
      %v4055 = vrot.slane %v4054, 4
      %v4056 = vadd.f32 %v4054, %v4055
      %v4057 = vrot.slane %v4056, 2
      %v4058 = vadd.f32 %v4056, %v4057
      %v4059 = vrot.slane %v4058, 1
      %v4060 = vadd.f32 %v4058, %v4059
      %v4061 = vadd.f32 %v3961, %v3963
      %v4062 = vadd.f32 %v4061, %v3965
      %v4063 = vadd.f32 %v4062, %v3967
      %v4064 = vadd.f32 %v4063, %v3969
      %v4065 = vadd.f32 %v4064, %v3971
      %v4066 = vadd.f32 %v4065, %v3973
      %v4067 = vadd.f32 %v4066, %v3975
      %v4068 = vadd.f32 %v4067, %v3977
      %v4069 = vadd.f32 %v4068, %v3979
      %v4070 = vadd.f32 %v4069, %v3981
      %v4071 = vadd.f32 %v4070, %v3983
      %v4072 = vadd.f32 %v4071, %v3985
      %v4073 = vadd.f32 %v4072, %v3987
      %v4074 = vadd.f32 %v4073, %v3989
      %v4075 = vadd.f32 %v4074, %v3991
      %v4076 = vadd.f32 %v4075, %v3993
      %v4077 = vadd.f32 %v4076, %v3995
      %v4078 = vadd.f32 %v4077, %v3997
      %v4079 = vadd.f32 %v4078, %v3999
      %v4080 = vadd.f32 %v4079, %v4001
      %v4081 = vadd.f32 %v4080, %v4003
      %v4082 = vadd.f32 %v4081, %v4005
      %v4083 = vadd.f32 %v4082, %v4007
      %v4084 = vadd.f32 %v4083, %v4009
      %v4085 = vadd.f32 %v4084, %v4011
      %v4086 = vadd.f32 %v4085, %v4013
      %v4087 = vadd.f32 %v4086, %v4015
      %v4088 = vadd.f32 %v4087, %v4017
      %v4089 = vadd.f32 %v4088, %v4019
      %v4090 = vadd.f32 %v4089, %v4021
      %v4091 = vadd.f32 %v4090, %v4023
      %v4092 = vrot.slane %v4091, 4
      %v4093 = vadd.f32 %v4091, %v4092
      %v4094 = vrot.slane %v4093, 2
      %v4095 = vadd.f32 %v4093, %v4094
      %v4096 = vrot.slane %v4095, 1
      %v4097 = vadd.f32 %v4095, %v4096
      %v4098 = vrcp.pop 256.0
      %v4099 = vmul.f32 %v4060, %v4098
      %v4100 = vmul.f32 %v4097, %v4098
      %v4101 = vld [vmem:[%s5] sm:$0xff]
      %v4102 = vld [vmem:[%s5 + $0x8] sm:$0xff]
      %v4103 = vld [vmem:[%s5 + $0x10] sm:$0xff]
      %v4104 = vld [vmem:[%s5 + $0x18] sm:$0xff]
      %v4105 = vld [vmem:[%s5 + $0x20] sm:$0xff]
      %v4106 = vld [vmem:[%s5 + $0x28] sm:$0xff]
      %v4107 = vld [vmem:[%s5 + $0x30] sm:$0xff]
      %v4108 = vld [vmem:[%s5 + $0x38] sm:$0xff]
      %v4109 = vld [vmem:[%s5 + $0x40] sm:$0xff]
      %v4110 = vld [vmem:[%s5 + $0x48] sm:$0xff]
      %v4111 = vld [vmem:[%s5 + $0x50] sm:$0xff]
      %v4112 = vld [vmem:[%s5 + $0x58] sm:$0xff]
      %v4113 = vld [vmem:[%s5 + $0x60] sm:$0xff]
      %v4114 = vld [vmem:[%s5 + $0x68] sm:$0xff]
      %v4115 = vld [vmem:[%s5 + $0x70] sm:$0xff]
      %v4116 = vld [vmem:[%s5 + $0x78] sm:$0xff]
      %v4117 = vld [vmem:[%s5 + $0x80] sm:$0xff]
      %v4118 = vld [vmem:[%s5 + $0x88] sm:$0xff]
      %v4119 = vld [vmem:[%s5 + $0x90] sm:$0xff]
      %v4120 = vld [vmem:[%s5 + $0x98] sm:$0xff]
      %v4121 = vld [vmem:[%s5 + $0xa0] sm:$0xff]
      %v4122 = vld [vmem:[%s5 + $0xa8] sm:$0xff]
      %v4123 = vld [vmem:[%s5 + $0xb0] sm:$0xff]
      %v4124 = vld [vmem:[%s5 + $0xb8] sm:$0xff]
      %v4125 = vld [vmem:[%s5 + $0xc0] sm:$0xff]
      %v4126 = vld [vmem:[%s5 + $0xc8] sm:$0xff]
      %v4127 = vld [vmem:[%s5 + $0xd0] sm:$0xff]
      %v4128 = vld [vmem:[%s5 + $0xd8] sm:$0xff]
      %v4129 = vld [vmem:[%s5 + $0xe0] sm:$0xff]
      %v4130 = vld [vmem:[%s5 + $0xe8] sm:$0xff]
      %v4131 = vld [vmem:[%s5 + $0xf0] sm:$0xff]
      %v4132 = vld [vmem:[%s5 + $0xf8] sm:$0xff]
      %v4133 = vld [vmem:[%s6] sm:$0x1]
      %4134 = vmatprep.subr.mxu0 0.0
      %4135 = vmatpush1.msra.mxu0 %v4116
      %4136 = vmatprep.subr.mxu0 0.0
      %4137 = vmatpush1.msra.mxu0 %v4115
      %4138 = vmatprep.subr.mxu0 0.0
      %4139 = vmatpush1.msra.mxu0 %v4114
      %4140 = vmatprep.subr.mxu0 0.0
      %4141 = vmatpush1.msra.mxu0 %v4113
      %4142 = vmatprep.subr.mxu0 0.0
      %4143 = vmatpush1.msra.mxu0 %v4112
      %4144 = vmatprep.subr.mxu0 0.0
      %4145 = vmatpush1.msra.mxu0 %v4111
      %4146 = vmatprep.subr.mxu0 0.0
      %4147 = vmatpush1.msra.mxu0 %v4110
      %4148 = vmatprep.subr.mxu0 0.0
      %4149 = vmatpush1.msra.mxu0 %v4109
      %4150 = vmatprep.subr.mxu0 0.0
      %4151 = vmatpush1.msra.mxu0 %v4108
      %4152 = vmatprep.subr.mxu0 0.0
      %4153 = vmatpush1.msra.mxu0 %v4107
      %4154 = vmatprep.subr.mxu0 0.0
      %4155 = vmatpush1.msra.mxu0 %v4106
      %4156 = vmatprep.subr.mxu0 0.0
      %4157 = vmatpush1.msra.mxu0 %v4105
      %4158 = vmatprep.subr.mxu0 0.0
      %4159 = vmatpush1.msra.mxu0 %v4104
      %4160 = vmatprep.subr.mxu0 0.0
      %4161 = vmatpush1.msra.mxu0 %v4103
      %4162 = vmatprep.subr.mxu0 0.0
      %4163 = vmatpush1.msra.mxu0 %v4102
      %4164 = vmatprep.subr.mxu0 0.0
      %4165 = vmatpush1.msra.mxu0 %v4101
      %4166 = vmatprep.subr.mxu0 0.0
      %4167 = vmatpush2.msra.mxu0 %v4132
      %4168 = vmatprep.subr.mxu0 0.0
      %4169 = vmatpush2.msra.mxu0 %v4131
      %4170 = vmatprep.subr.mxu0 0.0
      %4171 = vmatpush2.msra.mxu0 %v4130
      %4172 = vmatprep.subr.mxu0 0.0
      %4173 = vmatpush2.msra.mxu0 %v4129
      %4174 = vmatprep.subr.mxu0 0.0
      %4175 = vmatpush2.msra.mxu0 %v4128
      %4176 = vmatprep.subr.mxu0 0.0
      %4177 = vmatpush2.msra.mxu0 %v4127
      %4178 = vmatprep.subr.mxu0 0.0
      %4179 = vmatpush2.msra.mxu0 %v4126
      %4180 = vmatprep.subr.mxu0 0.0
      %4181 = vmatpush2.msra.mxu0 %v4125
      %4182 = vmatprep.subr.mxu0 0.0
      %4183 = vmatpush2.msra.mxu0 %v4124
      %4184 = vmatprep.subr.mxu0 0.0
      %4185 = vmatpush2.msra.mxu0 %v4123
      %4186 = vmatprep.subr.mxu0 0.0
      %4187 = vmatpush2.msra.mxu0 %v4122
      %4188 = vmatprep.subr.mxu0 0.0
      %4189 = vmatpush2.msra.mxu0 %v4121
      %4190 = vmatprep.subr.mxu0 0.0
      %4191 = vmatpush2.msra.mxu0 %v4120
      %4192 = vmatprep.subr.mxu0 0.0
      %4193 = vmatpush2.msra.mxu0 %v4119
      %4194 = vmatprep.subr.mxu0 0.0
      %4195 = vmatpush2.msra.mxu0 %v4118
      %4196 = vmatprep.subr.mxu0 0.0
      %4197 = vmatpush2.msra.mxu0 %v4117
      %4198 = vmatprep.mubr.f32.mxu0 %v4100
      %4199 = vmatmul.mubr.f32.gmra.mxu0 %v4099
      %v4200 = vpop.f32.mrf.mxu0
      %v4201 = vadd.f32 %v4133, %v4200
      %v4202 = vpop.f32.mrf.mxu0
      %4203 = vdwg.mxu0
      %v4204 = vxor.u32 %v4201, 2147483648
      %v4205 = vmul.f32 %v4204, 1.442695
      %v4206 = vpow.pop %v4205
      %v4207 = vadd.f32 %v4206, 1.0
      %v4208 = vrcp.pop %v4207
      %v4209 = vmul.f32 1.0, %v4208
      %v4210 = vmul.f32 %v4201, %v4209
      %v4211 = vld [vmem:[%s7] sm:$0xff]
      %v4212 = vld [vmem:[%s7 + $0x8] sm:$0xff]
      %v4213 = vld [vmem:[%s7 + $0x10] sm:$0xff]
      %v4214 = vld [vmem:[%s7 + $0x18] sm:$0xff]
      %v4215 = vld [vmem:[%s7 + $0x20] sm:$0xff]
      %v4216 = vld [vmem:[%s7 + $0x28] sm:$0xff]
      %v4217 = vld [vmem:[%s7 + $0x30] sm:$0xff]
      %v4218 = vld [vmem:[%s7 + $0x38] sm:$0xff]
      %v4219 = vld [vmem:[%s7 + $0x40] sm:$0xff]
      %v4220 = vld [vmem:[%s7 + $0x48] sm:$0xff]
      %v4221 = vld [vmem:[%s7 + $0x50] sm:$0xff]
      %v4222 = vld [vmem:[%s7 + $0x58] sm:$0xff]
      %v4223 = vld [vmem:[%s7 + $0x60] sm:$0xff]
      %v4224 = vld [vmem:[%s7 + $0x68] sm:$0xff]
      %v4225 = vld [vmem:[%s7 + $0x70] sm:$0xff]
      %v4226 = vld [vmem:[%s7 + $0x78] sm:$0xff]
      %v4227 = vld [vmem:[%s7 + $0x80] sm:$0xff]
      %v4228 = vld [vmem:[%s7 + $0x88] sm:$0xff]
      %v4229 = vld [vmem:[%s7 + $0x90] sm:$0xff]
      %v4230 = vld [vmem:[%s7 + $0x98] sm:$0xff]
      %v4231 = vld [vmem:[%s7 + $0xa0] sm:$0xff]
      %v4232 = vld [vmem:[%s7 + $0xa8] sm:$0xff]
      %v4233 = vld [vmem:[%s7 + $0xb0] sm:$0xff]
      %v4234 = vld [vmem:[%s7 + $0xb8] sm:$0xff]
      %v4235 = vld [vmem:[%s7 + $0xc0] sm:$0xff]
      %v4236 = vld [vmem:[%s7 + $0xc8] sm:$0xff]
      %v4237 = vld [vmem:[%s7 + $0xd0] sm:$0xff]
      %v4238 = vld [vmem:[%s7 + $0xd8] sm:$0xff]
      %v4239 = vld [vmem:[%s7 + $0xe0] sm:$0xff]
      %v4240 = vld [vmem:[%s7 + $0xe8] sm:$0xff]
      %v4241 = vld [vmem:[%s7 + $0xf0] sm:$0xff]
      %v4242 = vld [vmem:[%s7 + $0xf8] sm:$0xff]
      %v4243 = vld [vmem:[%s8] sm:$0x3]
      %v4245 = vlaneseq
      %v4246 = vshrl.u32 %v4245, 7
      %v4247 = vsub.s32 0, %v4246
      %v4248 = vrot.slane %v4243, %v4247
      %v4249 = vlaneseq
      %v4250 = vshrl.u32 %v4249, 7
      %v4251 = vsub.s32 1, %v4250
      %v4252 = vrot.slane %v4243, %v4251
      %4255 = vmatprep.subr.mxu0 %v4242
      %4256 = vmatpush1.msra.mxu0 %v4241
      %4257 = vmatprep.subr.mxu0 %v4240
      %4258 = vmatpush1.msra.mxu0 %v4239
      %4259 = vmatprep.subr.mxu0 %v4238
      %4260 = vmatpush1.msra.mxu0 %v4237
      %4261 = vmatprep.subr.mxu0 %v4236
      %4262 = vmatpush1.msra.mxu0 %v4235
      %4263 = vmatprep.subr.mxu0 %v4234
      %4264 = vmatpush1.msra.mxu0 %v4233
      %4265 = vmatprep.subr.mxu0 %v4232
      %4266 = vmatpush1.msra.mxu0 %v4231
      %4267 = vmatprep.subr.mxu0 %v4230
      %4268 = vmatpush1.msra.mxu0 %v4229
      %4269 = vmatprep.subr.mxu0 %v4228
      %4270 = vmatpush1.msra.mxu0 %v4227
      %4271 = vmatprep.subr.mxu0 %v4226
      %4272 = vmatpush1.msra.mxu0 %v4225
      %4273 = vmatprep.subr.mxu0 %v4224
      %4274 = vmatpush1.msra.mxu0 %v4223
      %4275 = vmatprep.subr.mxu0 %v4222
      %4276 = vmatpush1.msra.mxu0 %v4221
      %4277 = vmatprep.subr.mxu0 %v4220
      %4278 = vmatpush1.msra.mxu0 %v4219
      %4279 = vmatprep.subr.mxu0 %v4218
      %4280 = vmatpush1.msra.mxu0 %v4217
      %4281 = vmatprep.subr.mxu0 %v4216
      %4282 = vmatpush1.msra.mxu0 %v4215
      %4283 = vmatprep.subr.mxu0 %v4214
      %4284 = vmatpush1.msra.mxu0 %v4213
      %4285 = vmatprep.subr.mxu0 %v4212
      %4286 = vmatpush1.msra.mxu0 %v4211
      %4287 = vmatprep.subr.mxu0 0.0
      %4288 = vmatpush2.msra.mxu0 0.0
      %4289 = vmatprep.subr.mxu0 0.0
      %4290 = vmatpush2.msra.mxu0 0.0
      %4291 = vmatprep.subr.mxu0 0.0
      %4292 = vmatpush2.msra.mxu0 0.0
      %4293 = vmatprep.subr.mxu0 0.0
      %4294 = vmatpush2.msra.mxu0 0.0
      %4295 = vmatprep.subr.mxu0 0.0
      %4296 = vmatpush2.msra.mxu0 0.0
      %4297 = vmatprep.subr.mxu0 0.0
      %4298 = vmatpush2.msra.mxu0 0.0
      %4299 = vmatprep.subr.mxu0 0.0
      %4300 = vmatpush2.msra.mxu0 0.0
      %4301 = vmatprep.subr.mxu0 0.0
      %4302 = vmatpush2.msra.mxu0 0.0
      %4303 = vmatprep.subr.mxu0 0.0
      %4304 = vmatpush2.msra.mxu0 0.0
      %4305 = vmatprep.subr.mxu0 0.0
      %4306 = vmatpush2.msra.mxu0 0.0
      %4307 = vmatprep.subr.mxu0 0.0
      %4308 = vmatpush2.msra.mxu0 0.0
      %4309 = vmatprep.subr.mxu0 0.0
      %4310 = vmatpush2.msra.mxu0 0.0
      %4311 = vmatprep.subr.mxu0 0.0
      %4312 = vmatpush2.msra.mxu0 0.0
      %4313 = vmatprep.subr.mxu0 0.0
      %4314 = vmatpush2.msra.mxu0 0.0
      %4315 = vmatprep.subr.mxu0 0.0
      %4316 = vmatpush2.msra.mxu0 0.0
      %4317 = vmatprep.subr.mxu0 0.0
      %4318 = vmatpush2.msra.mxu0 0.0
      %4319 = vmatprep.mubr.f32.mxu0 0.0
      %4320 = vmatmul.mubr.f32.gmra.mxu0 %v4210
      %v4321 = vpop.f32.mrf.mxu0
      %v4322 = vadd.f32 %v4248, %v4321
      %v4323 = vpop.f32.mrf.mxu0
      %v4324 = vadd.f32 %v4252, %v4323
      %4325 = vdwg.mxu0
      %v4326 = vxor.u32 %v4322, 2147483648
      %v4327 = vxor.u32 %v4324, 2147483648
      %v4328 = vmul.f32 %v4326, 1.442695
      %v4329 = vpow.pop %v4328
      %v4330 = vmul.f32 %v4327, 1.442695
      %v4331 = vpow.pop %v4330
      %v4332 = vadd.f32 %v4329, 1.0
      %v4333 = vadd.f32 %v4331, 1.0
      %v4334 = vrcp.pop %v4332
      %v4335 = vmul.f32 1.0, %v4334
      %v4336 = vrcp.pop %v4333
      %v4337 = vmul.f32 1.0, %v4336
      %v4338 = vlaneseq
      %v4339 = vshrl.u32 %v4338, 7
      %v4340 = vsub.s32 0, %v4339
      %v4341 = vrot.slane %v4335, %v4340
      %v4342 = vlaneseq
      %v4343 = vshrl.u32 %v4342, 7
      %v4344 = vsub.s32 0, %v4343
      %v4345 = vrot.slane %v4337, %v4344
      %v4346 = vmul.f32 %v3960, %v4341
      %v4347 = vmul.f32 %v3961, %v4345
      %v4348 = vmul.f32 %v3962, %v4341
      %v4349 = vmul.f32 %v3963, %v4345
      %v4350 = vmul.f32 %v3964, %v4341
      %v4351 = vmul.f32 %v3965, %v4345
      %v4352 = vmul.f32 %v3966, %v4341
      %v4353 = vmul.f32 %v3967, %v4345
      %v4354 = vmul.f32 %v3968, %v4341
      %v4355 = vmul.f32 %v3969, %v4345
      %v4356 = vmul.f32 %v3970, %v4341
      %v4357 = vmul.f32 %v3971, %v4345
      %v4358 = vmul.f32 %v3972, %v4341
      %v4359 = vmul.f32 %v3973, %v4345
      %v4360 = vmul.f32 %v3974, %v4341
      %v4361 = vmul.f32 %v3975, %v4345
      %v4362 = vmul.f32 %v3976, %v4341
      %v4363 = vmul.f32 %v3977, %v4345
      %v4364 = vmul.f32 %v3978, %v4341
      %v4365 = vmul.f32 %v3979, %v4345
      %v4366 = vmul.f32 %v3980, %v4341
      %v4367 = vmul.f32 %v3981, %v4345
      %v4368 = vmul.f32 %v3982, %v4341
      %v4369 = vmul.f32 %v3983, %v4345
      %v4370 = vmul.f32 %v3984, %v4341
      %v4371 = vmul.f32 %v3985, %v4345
      %v4372 = vmul.f32 %v3986, %v4341
      %v4373 = vmul.f32 %v3987, %v4345
      %v4374 = vmul.f32 %v3988, %v4341
      %v4375 = vmul.f32 %v3989, %v4345
      %v4376 = vmul.f32 %v3990, %v4341
      %v4377 = vmul.f32 %v3991, %v4345
      %v4378 = vmul.f32 %v3992, %v4341
      %v4379 = vmul.f32 %v3993, %v4345
      %v4380 = vmul.f32 %v3994, %v4341
      %v4381 = vmul.f32 %v3995, %v4345
      %v4382 = vmul.f32 %v3996, %v4341
      %v4383 = vmul.f32 %v3997, %v4345
      %v4384 = vmul.f32 %v3998, %v4341
      %v4385 = vmul.f32 %v3999, %v4345
      %v4386 = vmul.f32 %v4000, %v4341
      %v4387 = vmul.f32 %v4001, %v4345
      %v4388 = vmul.f32 %v4002, %v4341
      %v4389 = vmul.f32 %v4003, %v4345
      %v4390 = vmul.f32 %v4004, %v4341
      %v4391 = vmul.f32 %v4005, %v4345
      %v4392 = vmul.f32 %v4006, %v4341
      %v4393 = vmul.f32 %v4007, %v4345
      %v4394 = vmul.f32 %v4008, %v4341
      %v4395 = vmul.f32 %v4009, %v4345
      %v4396 = vmul.f32 %v4010, %v4341
      %v4397 = vmul.f32 %v4011, %v4345
      %v4398 = vmul.f32 %v4012, %v4341
      %v4399 = vmul.f32 %v4013, %v4345
      %v4400 = vmul.f32 %v4014, %v4341
      %v4401 = vmul.f32 %v4015, %v4345
      %v4402 = vmul.f32 %v4016, %v4341
      %v4403 = vmul.f32 %v4017, %v4345
      %v4404 = vmul.f32 %v4018, %v4341
      %v4405 = vmul.f32 %v4019, %v4345
      %v4406 = vmul.f32 %v4020, %v4341
      %v4407 = vmul.f32 %v4021, %v4345
      %v4408 = vmul.f32 %v4022, %v4341
      %v4409 = vmul.f32 %v4023, %v4345
      %v4410 = vpack.c.bf16 %v4348, %v4346
      %v4411 = vpack.c.bf16 %v4349, %v4347
      %v4412 = vpack.c.bf16 %v4352, %v4350
      %v4413 = vpack.c.bf16 %v4353, %v4351
      %v4414 = vpack.c.bf16 %v4356, %v4354
      %v4415 = vpack.c.bf16 %v4357, %v4355
      %v4416 = vpack.c.bf16 %v4360, %v4358
      %v4417 = vpack.c.bf16 %v4361, %v4359
      %v4418 = vpack.c.bf16 %v4364, %v4362
      %v4419 = vpack.c.bf16 %v4365, %v4363
      %v4420 = vpack.c.bf16 %v4368, %v4366
      %v4421 = vpack.c.bf16 %v4369, %v4367
      %v4422 = vpack.c.bf16 %v4372, %v4370
      %v4423 = vpack.c.bf16 %v4373, %v4371
      %v4424 = vpack.c.bf16 %v4376, %v4374
      %v4425 = vpack.c.bf16 %v4377, %v4375
      %v4426 = vpack.c.bf16 %v4380, %v4378
      %v4427 = vpack.c.bf16 %v4381, %v4379
      %v4428 = vpack.c.bf16 %v4384, %v4382
      %v4429 = vpack.c.bf16 %v4385, %v4383
      %v4430 = vpack.c.bf16 %v4388, %v4386
      %v4431 = vpack.c.bf16 %v4389, %v4387
      %v4432 = vpack.c.bf16 %v4392, %v4390
      %v4433 = vpack.c.bf16 %v4393, %v4391
      %v4434 = vpack.c.bf16 %v4396, %v4394
      %v4435 = vpack.c.bf16 %v4397, %v4395
      %v4436 = vpack.c.bf16 %v4400, %v4398
      %v4437 = vpack.c.bf16 %v4401, %v4399
      %v4438 = vpack.c.bf16 %v4404, %v4402
      %v4439 = vpack.c.bf16 %v4405, %v4403
      %v4440 = vpack.c.bf16 %v4408, %v4406
      %v4441 = vpack.c.bf16 %v4409, %v4407
      %v4442 = vld [vmem:[%s9] sm:$0xf]
      %v4443 = vld [vmem:[%s9 + $0x4] sm:$0xf]
      %v4444 = vld [vmem:[%s9 + $0x8] sm:$0xf]
      %v4445 = vld [vmem:[%s9 + $0xc] sm:$0xf]
      %v4446 = vld [vmem:[%s9 + $0x10] sm:$0xf]
      %v4447 = vld [vmem:[%s9 + $0x14] sm:$0xf]
      %v4448 = vld [vmem:[%s9 + $0x18] sm:$0xf]
      %v4449 = vld [vmem:[%s9 + $0x1c] sm:$0xf]
      %v4450 = vld [vmem:[%s9 + $0x20] sm:$0xf]
      %v4451 = vld [vmem:[%s9 + $0x24] sm:$0xf]
      %v4452 = vld [vmem:[%s9 + $0x28] sm:$0xf]
      %v4453 = vld [vmem:[%s9 + $0x2c] sm:$0xf]
      %v4454 = vld [vmem:[%s9 + $0x30] sm:$0xf]
      %v4455 = vld [vmem:[%s9 + $0x34] sm:$0xf]
      %v4456 = vld [vmem:[%s9 + $0x38] sm:$0xf]
      %v4457 = vld [vmem:[%s9 + $0x3c] sm:$0xf]
      %v4458 = vld [vmem:[%s9 + $0x40] sm:$0xf]
      %v4459 = vld [vmem:[%s9 + $0x44] sm:$0xf]
      %v4460 = vld [vmem:[%s9 + $0x48] sm:$0xf]
      %v4461 = vld [vmem:[%s9 + $0x4c] sm:$0xf]
      %v4462 = vld [vmem:[%s9 + $0x50] sm:$0xf]
      %v4463 = vld [vmem:[%s9 + $0x54] sm:$0xf]
      %v4464 = vld [vmem:[%s9 + $0x58] sm:$0xf]
      %v4465 = vld [vmem:[%s9 + $0x5c] sm:$0xf]
      %v4466 = vld [vmem:[%s9 + $0x60] sm:$0xf]
      %v4467 = vld [vmem:[%s9 + $0x64] sm:$0xf]
      %v4468 = vld [vmem:[%s9 + $0x68] sm:$0xf]
      %v4469 = vld [vmem:[%s9 + $0x6c] sm:$0xf]
      %v4470 = vld [vmem:[%s9 + $0x70] sm:$0xf]
      %v4471 = vld [vmem:[%s9 + $0x74] sm:$0xf]
      %v4472 = vld [vmem:[%s9 + $0x78] sm:$0xf]
      %v4473 = vld [vmem:[%s9 + $0x7c] sm:$0xf]
      %v4474 = vld [vmem:[%s10] sm:$0x1]
      %v4476 = vlaneseq
      %v4477 = vshrl.u32 %v4476, 7
      %v4478 = vsub.s32 0, %v4477
      %v4479 = vrot.slane %v4474, %v4478
      %v4513 = vunpack.c.l.b16 %v4442
      %v4514 = vunpack.c.l.b16 %v4443
      %v4515 = vunpack.c.l.b16 %v4444
      %v4516 = vunpack.c.l.b16 %v4445
      %v4517 = vunpack.c.l.b16 %v4446
      %v4518 = vunpack.c.l.b16 %v4447
      %v4519 = vunpack.c.l.b16 %v4448
      %v4520 = vunpack.c.l.b16 %v4449
      %v4521 = vunpack.c.l.b16 %v4450
      %v4522 = vunpack.c.l.b16 %v4451
      %v4523 = vunpack.c.l.b16 %v4452
      %v4524 = vunpack.c.l.b16 %v4453
      %v4525 = vunpack.c.l.b16 %v4454
      %v4526 = vunpack.c.l.b16 %v4455
      %v4527 = vunpack.c.l.b16 %v4456
      %v4528 = vunpack.c.l.b16 %v4457
      %v4529 = vunpack.c.l.b16 %v4458
      %v4530 = vunpack.c.l.b16 %v4459
      %v4531 = vunpack.c.l.b16 %v4460
      %v4532 = vunpack.c.l.b16 %v4461
      %v4533 = vunpack.c.l.b16 %v4462
      %v4534 = vunpack.c.l.b16 %v4463
      %v4535 = vunpack.c.l.b16 %v4464
      %v4536 = vunpack.c.l.b16 %v4465
      %v4537 = vunpack.c.l.b16 %v4466
      %v4538 = vunpack.c.l.b16 %v4467
      %v4539 = vunpack.c.l.b16 %v4468
      %v4540 = vunpack.c.l.b16 %v4469
      %v4541 = vunpack.c.l.b16 %v4470
      %v4542 = vunpack.c.l.b16 %v4471
      %v4543 = vunpack.c.l.b16 %v4472
      %v4544 = vunpack.c.l.b16 %v4473
      %v4545 = vpack.c.b16 %v4514, %v4513
      %v4546 = vpack.c.b16 %v4516, %v4515
      %v4547 = vpack.c.b16 %v4518, %v4517
      %v4548 = vpack.c.b16 %v4520, %v4519
      %v4549 = vpack.c.b16 %v4522, %v4521
      %v4550 = vpack.c.b16 %v4524, %v4523
      %v4551 = vpack.c.b16 %v4526, %v4525
      %v4552 = vpack.c.b16 %v4528, %v4527
      %v4553 = vpack.c.b16 %v4530, %v4529
      %v4554 = vpack.c.b16 %v4532, %v4531
      %v4555 = vpack.c.b16 %v4534, %v4533
      %v4556 = vpack.c.b16 %v4536, %v4535
      %v4557 = vpack.c.b16 %v4538, %v4537
      %v4558 = vpack.c.b16 %v4540, %v4539
      %v4559 = vpack.c.b16 %v4542, %v4541
      %v4560 = vpack.c.b16 %v4544, %v4543
      %4577 = vmatprep.subr.bf16.mxu0 0
      %4578 = vmatpush1.bf16.msra.mxu0 %v4552
      %4579 = vmatprep.subr.bf16.mxu0 0
      %4580 = vmatpush1.bf16.msra.mxu0 %v4551
      %4581 = vmatprep.subr.bf16.mxu0 0
      %4582 = vmatpush1.bf16.msra.mxu0 %v4550
      %4583 = vmatprep.subr.bf16.mxu0 0
      %4584 = vmatpush1.bf16.msra.mxu0 %v4549
      %4585 = vmatprep.subr.bf16.mxu0 0
      %4586 = vmatpush1.bf16.msra.mxu0 %v4548
      %4587 = vmatprep.subr.bf16.mxu0 0
      %4588 = vmatpush1.bf16.msra.mxu0 %v4547
      %4589 = vmatprep.subr.bf16.mxu0 0
      %4590 = vmatpush1.bf16.msra.mxu0 %v4546
      %4591 = vmatprep.subr.bf16.mxu0 0
      %4592 = vmatpush1.bf16.msra.mxu0 %v4545
      %4593 = vmatprep.subr.bf16.mxu0 0
      %4594 = vmatpush2.bf16.msra.mxu0 %v4560
      %4595 = vmatprep.subr.bf16.mxu0 0
      %4596 = vmatpush2.bf16.msra.mxu0 %v4559
      %4597 = vmatprep.subr.bf16.mxu0 0
      %4598 = vmatpush2.bf16.msra.mxu0 %v4558
      %4599 = vmatprep.subr.bf16.mxu0 0
      %4600 = vmatpush2.bf16.msra.mxu0 %v4557
      %4601 = vmatprep.subr.bf16.mxu0 0
      %4602 = vmatpush2.bf16.msra.mxu0 %v4556
      %4603 = vmatprep.subr.bf16.mxu0 0
      %4604 = vmatpush2.bf16.msra.mxu0 %v4555
      %4605 = vmatprep.subr.bf16.mxu0 0
      %4606 = vmatpush2.bf16.msra.mxu0 %v4554
      %4607 = vmatprep.subr.bf16.mxu0 0
      %4608 = vmatpush2.bf16.msra.mxu0 %v4553
      %4609 = vmatprep.mubr.bf16.mxu0 %v4411
      %4610 = vmatmul.mubr.bf16.gmra.mxu0 %v4410
      %v4611 = vpop.f32.mrf.mxu0
      %v4612 = vadd.f32 %v4479, %v4611
      %v4613 = vpop.f32.mrf.mxu0
      %v4614 = vpop.f32.mrf.mxu0
      %v4615 = vadd.f32 %v4479, %v4614
      %v4616 = vpop.f32.mrf.mxu0
      %4617 = vmatprep.mubr.bf16.mxu0 %v4413
      %4618 = vmatmul.mubr.bf16.gmra.mxu0 %v4412
      %v4619 = vpop.f32.mrf.mxu0
      %v4620 = vadd.f32 %v4479, %v4619
      %v4621 = vpop.f32.mrf.mxu0
      %v4622 = vpop.f32.mrf.mxu0
      %v4623 = vadd.f32 %v4479, %v4622
      %v4624 = vpop.f32.mrf.mxu0
      %4625 = vmatprep.mubr.bf16.mxu0 %v4415
      %4626 = vmatmul.mubr.bf16.gmra.mxu0 %v4414
      %v4627 = vpop.f32.mrf.mxu0
      %v4628 = vadd.f32 %v4479, %v4627
      %v4629 = vpop.f32.mrf.mxu0
      %v4630 = vpop.f32.mrf.mxu0
      %v4631 = vadd.f32 %v4479, %v4630
      %v4632 = vpop.f32.mrf.mxu0
      %4633 = vmatprep.mubr.bf16.mxu0 %v4417
      %4634 = vmatmul.mubr.bf16.gmra.mxu0 %v4416
      %v4635 = vpop.f32.mrf.mxu0
      %v4636 = vadd.f32 %v4479, %v4635
      %v4637 = vpop.f32.mrf.mxu0
      %v4638 = vpop.f32.mrf.mxu0
      %v4639 = vadd.f32 %v4479, %v4638
      %v4640 = vpop.f32.mrf.mxu0
      %4641 = vmatprep.mubr.bf16.mxu0 %v4419
      %4642 = vmatmul.mubr.bf16.gmra.mxu0 %v4418
      %v4643 = vpop.f32.mrf.mxu0
      %v4644 = vadd.f32 %v4479, %v4643
      %v4645 = vpop.f32.mrf.mxu0
      %v4646 = vpop.f32.mrf.mxu0
      %v4647 = vadd.f32 %v4479, %v4646
      %v4648 = vpop.f32.mrf.mxu0
      %4649 = vmatprep.mubr.bf16.mxu0 %v4421
      %4650 = vmatmul.mubr.bf16.gmra.mxu0 %v4420
      %v4651 = vpop.f32.mrf.mxu0
      %v4652 = vadd.f32 %v4479, %v4651
      %v4653 = vpop.f32.mrf.mxu0
      %v4654 = vpop.f32.mrf.mxu0
      %v4655 = vadd.f32 %v4479, %v4654
      %v4656 = vpop.f32.mrf.mxu0
      %4657 = vmatprep.mubr.bf16.mxu0 %v4423
      %4658 = vmatmul.mubr.bf16.gmra.mxu0 %v4422
      %v4659 = vpop.f32.mrf.mxu0
      %v4660 = vadd.f32 %v4479, %v4659
      %v4661 = vpop.f32.mrf.mxu0
      %v4662 = vpop.f32.mrf.mxu0
      %v4663 = vadd.f32 %v4479, %v4662
      %v4664 = vpop.f32.mrf.mxu0
      %4665 = vmatprep.mubr.bf16.mxu0 %v4425
      %4666 = vmatmul.mubr.bf16.gmra.mxu0 %v4424
      %v4667 = vpop.f32.mrf.mxu0
      %v4668 = vadd.f32 %v4479, %v4667
      %v4669 = vpop.f32.mrf.mxu0
      %v4670 = vpop.f32.mrf.mxu0
      %v4671 = vadd.f32 %v4479, %v4670
      %v4672 = vpop.f32.mrf.mxu0
      %4673 = vmatprep.mubr.bf16.mxu0 %v4427
      %4674 = vmatmul.mubr.bf16.gmra.mxu0 %v4426
      %v4675 = vpop.f32.mrf.mxu0
      %v4676 = vadd.f32 %v4479, %v4675
      %v4677 = vpop.f32.mrf.mxu0
      %v4678 = vpop.f32.mrf.mxu0
      %v4679 = vadd.f32 %v4479, %v4678
      %v4680 = vpop.f32.mrf.mxu0
      %4681 = vmatprep.mubr.bf16.mxu0 %v4429
      %4682 = vmatmul.mubr.bf16.gmra.mxu0 %v4428
      %v4683 = vpop.f32.mrf.mxu0
      %v4684 = vadd.f32 %v4479, %v4683
      %v4685 = vpop.f32.mrf.mxu0
      %v4686 = vpop.f32.mrf.mxu0
      %v4687 = vadd.f32 %v4479, %v4686
      %v4688 = vpop.f32.mrf.mxu0
      %4689 = vmatprep.mubr.bf16.mxu0 %v4431
      %4690 = vmatmul.mubr.bf16.gmra.mxu0 %v4430
      %v4691 = vpop.f32.mrf.mxu0
      %v4692 = vadd.f32 %v4479, %v4691
      %v4693 = vpop.f32.mrf.mxu0
      %v4694 = vpop.f32.mrf.mxu0
      %v4695 = vadd.f32 %v4479, %v4694
      %v4696 = vpop.f32.mrf.mxu0
      %4697 = vmatprep.mubr.bf16.mxu0 %v4433
      %4698 = vmatmul.mubr.bf16.gmra.mxu0 %v4432
      %v4699 = vpop.f32.mrf.mxu0
      %v4700 = vadd.f32 %v4479, %v4699
      %v4701 = vpop.f32.mrf.mxu0
      %v4702 = vpop.f32.mrf.mxu0
      %v4703 = vadd.f32 %v4479, %v4702
      %v4704 = vpop.f32.mrf.mxu0
      %4705 = vmatprep.mubr.bf16.mxu0 %v4435
      %4706 = vmatmul.mubr.bf16.gmra.mxu0 %v4434
      %v4707 = vpop.f32.mrf.mxu0
      %v4708 = vadd.f32 %v4479, %v4707
      %v4709 = vpop.f32.mrf.mxu0
      %v4710 = vpop.f32.mrf.mxu0
      %v4711 = vadd.f32 %v4479, %v4710
      %v4712 = vpop.f32.mrf.mxu0
      %4713 = vmatprep.mubr.bf16.mxu0 %v4437
      %4714 = vmatmul.mubr.bf16.gmra.mxu0 %v4436
      %v4715 = vpop.f32.mrf.mxu0
      %v4716 = vadd.f32 %v4479, %v4715
      %v4717 = vpop.f32.mrf.mxu0
      %v4718 = vpop.f32.mrf.mxu0
      %v4719 = vadd.f32 %v4479, %v4718
      %v4720 = vpop.f32.mrf.mxu0
      %4721 = vmatprep.mubr.bf16.mxu0 %v4439
      %4722 = vmatmul.mubr.bf16.gmra.mxu0 %v4438
      %v4723 = vpop.f32.mrf.mxu0
      %v4724 = vadd.f32 %v4479, %v4723
      %v4725 = vpop.f32.mrf.mxu0
      %v4726 = vpop.f32.mrf.mxu0
      %v4727 = vadd.f32 %v4479, %v4726
      %v4728 = vpop.f32.mrf.mxu0
      %4729 = vmatprep.mubr.bf16.mxu0 %v4441
      %4730 = vmatmul.mubr.bf16.gmra.mxu0 %v4440
      %v4731 = vpop.f32.mrf.mxu0
      %v4732 = vadd.f32 %v4479, %v4731
      %v4733 = vpop.f32.mrf.mxu0
      %v4734 = vpop.f32.mrf.mxu0
      %v4735 = vadd.f32 %v4479, %v4734
      %v4736 = vpop.f32.mrf.mxu0
      %4737 = vdwg.mxu0
      %v4738 = vunpack.c.l.bf16 %v388
      %v4739 = vunpack.c.l.bf16 %v389
      %v4740 = vunpack.c.l.bf16 %v390
      %v4741 = vunpack.c.l.bf16 %v391
      %v4742 = vunpack.c.l.bf16 %v392
      %v4743 = vunpack.c.l.bf16 %v393
      %v4744 = vunpack.c.l.bf16 %v394
      %v4745 = vunpack.c.l.bf16 %v395
      %v4746 = vunpack.c.l.bf16 %v396
      %v4747 = vunpack.c.l.bf16 %v397
      %v4748 = vunpack.c.l.bf16 %v398
      %v4749 = vunpack.c.l.bf16 %v399
      %v4750 = vunpack.c.l.bf16 %v400
      %v4751 = vunpack.c.l.bf16 %v401
      %v4752 = vunpack.c.l.bf16 %v402
      %v4753 = vunpack.c.l.bf16 %v403
      %v4754 = vunpack.c.l.bf16 %v404
      %v4755 = vunpack.c.l.bf16 %v405
      %v4756 = vunpack.c.l.bf16 %v406
      %v4757 = vunpack.c.l.bf16 %v407
      %v4758 = vunpack.c.l.bf16 %v408
      %v4759 = vunpack.c.l.bf16 %v409
      %v4760 = vunpack.c.l.bf16 %v410
      %v4761 = vunpack.c.l.bf16 %v411
      %v4762 = vunpack.c.l.bf16 %v412
      %v4763 = vunpack.c.l.bf16 %v413
      %v4764 = vunpack.c.l.bf16 %v414
      %v4765 = vunpack.c.l.bf16 %v415
      %v4766 = vunpack.c.l.bf16 %v416
      %v4767 = vunpack.c.l.bf16 %v417
      %v4768 = vunpack.c.l.bf16 %v418
      %v4769 = vunpack.c.l.bf16 %v419
      %v4770 = vadd.f32 %v4612, %v4738
      %v4771 = vadd.f32 %v4615, %v4739
      %v4772 = vadd.f32 %v4620, %v4740
      %v4773 = vadd.f32 %v4623, %v4741
      %v4774 = vadd.f32 %v4628, %v4742
      %v4775 = vadd.f32 %v4631, %v4743
      %v4776 = vadd.f32 %v4636, %v4744
      %v4777 = vadd.f32 %v4639, %v4745
      %v4778 = vadd.f32 %v4644, %v4746
      %v4779 = vadd.f32 %v4647, %v4747
      %v4780 = vadd.f32 %v4652, %v4748
      %v4781 = vadd.f32 %v4655, %v4749
      %v4782 = vadd.f32 %v4660, %v4750
      %v4783 = vadd.f32 %v4663, %v4751
      %v4784 = vadd.f32 %v4668, %v4752
      %v4785 = vadd.f32 %v4671, %v4753
      %v4786 = vadd.f32 %v4676, %v4754
      %v4787 = vadd.f32 %v4679, %v4755
      %v4788 = vadd.f32 %v4684, %v4756
      %v4789 = vadd.f32 %v4687, %v4757
      %v4790 = vadd.f32 %v4692, %v4758
      %v4791 = vadd.f32 %v4695, %v4759
      %v4792 = vadd.f32 %v4700, %v4760
      %v4793 = vadd.f32 %v4703, %v4761
      %v4794 = vadd.f32 %v4708, %v4762
      %v4795 = vadd.f32 %v4711, %v4763
      %v4796 = vadd.f32 %v4716, %v4764
      %v4797 = vadd.f32 %v4719, %v4765
      %v4798 = vadd.f32 %v4724, %v4766
      %v4799 = vadd.f32 %v4727, %v4767
      %v4800 = vadd.f32 %v4732, %v4768
      %v4801 = vadd.f32 %v4735, %v4769
      %v4802 = vpack.c.bf16 %v4771, %v4770
      %v4803 = vpack.c.bf16 %v4773, %v4772
      %v4804 = vpack.c.bf16 %v4775, %v4774
      %v4805 = vpack.c.bf16 %v4777, %v4776
      %v4806 = vpack.c.bf16 %v4779, %v4778
      %v4807 = vpack.c.bf16 %v4781, %v4780
      %v4808 = vpack.c.bf16 %v4783, %v4782
      %v4809 = vpack.c.bf16 %v4785, %v4784
      %v4810 = vpack.c.bf16 %v4787, %v4786
      %v4811 = vpack.c.bf16 %v4789, %v4788
      %v4812 = vpack.c.bf16 %v4791, %v4790
      %v4813 = vpack.c.bf16 %v4793, %v4792
      %v4814 = vpack.c.bf16 %v4795, %v4794
      %v4815 = vpack.c.bf16 %v4797, %v4796
      %v4816 = vpack.c.bf16 %v4799, %v4798
      %v4817 = vpack.c.bf16 %v4801, %v4800
      %v4834 = vunpack.c.l.b16 %v4802
      %v4835 = vunpack.c.h.b16 %v4802
      %v4836 = vunpack.c.l.b16 %v4803
      %v4837 = vunpack.c.h.b16 %v4803
      %v4838 = vunpack.c.l.b16 %v4804
      %v4839 = vunpack.c.h.b16 %v4804
      %v4840 = vunpack.c.l.b16 %v4805
      %v4841 = vunpack.c.h.b16 %v4805
      %v4842 = vunpack.c.l.b16 %v4806
      %v4843 = vunpack.c.h.b16 %v4806
      %v4844 = vunpack.c.l.b16 %v4807
      %v4845 = vunpack.c.h.b16 %v4807
      %v4846 = vunpack.c.l.b16 %v4808
      %v4847 = vunpack.c.h.b16 %v4808
      %v4848 = vunpack.c.l.b16 %v4809
      %v4849 = vunpack.c.h.b16 %v4809
      %v4850 = vunpack.c.l.b16 %v4810
      %v4851 = vunpack.c.h.b16 %v4810
      %v4852 = vunpack.c.l.b16 %v4811
      %v4853 = vunpack.c.h.b16 %v4811
      %v4854 = vunpack.c.l.b16 %v4812
      %v4855 = vunpack.c.h.b16 %v4812
      %v4856 = vunpack.c.l.b16 %v4813
      %v4857 = vunpack.c.h.b16 %v4813
      %v4858 = vunpack.c.l.b16 %v4814
      %v4859 = vunpack.c.h.b16 %v4814
      %v4860 = vunpack.c.l.b16 %v4815
      %v4861 = vunpack.c.h.b16 %v4815
      %v4862 = vunpack.c.l.b16 %v4816
      %v4863 = vunpack.c.h.b16 %v4816
      %v4864 = vunpack.c.l.b16 %v4817
      %v4865 = vunpack.c.h.b16 %v4817
      %v4866 = vpack.c.b16 %v4834, %v4834
      %v4867 = vpack.c.b16 %v4835, %v4835
      %v4868 = vpack.c.b16 %v4836, %v4836
      %v4869 = vpack.c.b16 %v4837, %v4837
      %v4870 = vpack.c.b16 %v4838, %v4838
      %v4871 = vpack.c.b16 %v4839, %v4839
      %v4872 = vpack.c.b16 %v4840, %v4840
      %v4873 = vpack.c.b16 %v4841, %v4841
      %v4874 = vpack.c.b16 %v4842, %v4842
      %v4875 = vpack.c.b16 %v4843, %v4843
      %v4876 = vpack.c.b16 %v4844, %v4844
      %v4877 = vpack.c.b16 %v4845, %v4845
      %v4878 = vpack.c.b16 %v4846, %v4846
      %v4879 = vpack.c.b16 %v4847, %v4847
      %v4880 = vpack.c.b16 %v4848, %v4848
      %v4881 = vpack.c.b16 %v4849, %v4849
      %v4882 = vpack.c.b16 %v4850, %v4850
      %v4883 = vpack.c.b16 %v4851, %v4851
      %v4884 = vpack.c.b16 %v4852, %v4852
      %v4885 = vpack.c.b16 %v4853, %v4853
      %v4886 = vpack.c.b16 %v4854, %v4854
      %v4887 = vpack.c.b16 %v4855, %v4855
      %v4888 = vpack.c.b16 %v4856, %v4856
      %v4889 = vpack.c.b16 %v4857, %v4857
      %v4890 = vpack.c.b16 %v4858, %v4858
      %v4891 = vpack.c.b16 %v4859, %v4859
      %v4892 = vpack.c.b16 %v4860, %v4860
      %v4893 = vpack.c.b16 %v4861, %v4861
      %v4894 = vpack.c.b16 %v4862, %v4862
      %v4895 = vpack.c.b16 %v4863, %v4863
      %v4896 = vpack.c.b16 %v4864, %v4864
      %v4897 = vpack.c.b16 %v4865, %v4865
      %4930 = vst [vmem:[%s386] sm:$0xf] %v4866
      %4931 = vst [vmem:[%s386 + $0x4] sm:$0xf] %v4867
      %4932 = vst [vmem:[%s386 + $0x8] sm:$0xf] %v4868
      %4933 = vst [vmem:[%s386 + $0xc] sm:$0xf] %v4869
      %4934 = vst [vmem:[%s386 + $0x10] sm:$0xf] %v4870
      %4935 = vst [vmem:[%s386 + $0x14] sm:$0xf] %v4871
      %4936 = vst [vmem:[%s386 + $0x18] sm:$0xf] %v4872
      %4937 = vst [vmem:[%s386 + $0x1c] sm:$0xf] %v4873
      %4938 = vst [vmem:[%s386 + $0x20] sm:$0xf] %v4874
      %4939 = vst [vmem:[%s386 + $0x24] sm:$0xf] %v4875
      %4940 = vst [vmem:[%s386 + $0x28] sm:$0xf] %v4876
      %4941 = vst [vmem:[%s386 + $0x2c] sm:$0xf] %v4877
      %4942 = vst [vmem:[%s386 + $0x30] sm:$0xf] %v4878
      %4943 = vst [vmem:[%s386 + $0x34] sm:$0xf] %v4879
      %4944 = vst [vmem:[%s386 + $0x38] sm:$0xf] %v4880
      %4945 = vst [vmem:[%s386 + $0x3c] sm:$0xf] %v4881
      %4946 = vst [vmem:[%s386 + $0x40] sm:$0xf] %v4882
      %4947 = vst [vmem:[%s386 + $0x44] sm:$0xf] %v4883
      %4948 = vst [vmem:[%s386 + $0x48] sm:$0xf] %v4884
      %4949 = vst [vmem:[%s386 + $0x4c] sm:$0xf] %v4885
      %4950 = vst [vmem:[%s386 + $0x50] sm:$0xf] %v4886
      %4951 = vst [vmem:[%s386 + $0x54] sm:$0xf] %v4887
      %4952 = vst [vmem:[%s386 + $0x58] sm:$0xf] %v4888
      %4953 = vst [vmem:[%s386 + $0x5c] sm:$0xf] %v4889
      %4954 = vst [vmem:[%s386 + $0x60] sm:$0xf] %v4890
      %4955 = vst [vmem:[%s386 + $0x64] sm:$0xf] %v4891
      %4956 = vst [vmem:[%s386 + $0x68] sm:$0xf] %v4892
      %4957 = vst [vmem:[%s386 + $0x6c] sm:$0xf] %v4893
      %4958 = vst [vmem:[%s386 + $0x70] sm:$0xf] %v4894
      %4959 = vst [vmem:[%s386 + $0x74] sm:$0xf] %v4895
      %4960 = vst [vmem:[%s386 + $0x78] sm:$0xf] %v4896
      %4961 = vst [vmem:[%s386 + $0x7c] sm:$0xf] %v4897
      %p4962 = scmp.lt.s32.totalorder %s22, 1
      %s4963 = scalar_select %p4962, %s22, 1
      %s4964 = smul.addr %s4963, 32
      %s4965 = smul.addr %s4964, 4
      %s4966 = scalar_lea.vmem %s11, %s4965
      // Predicated region
      $region65: #{detector_forward.4} parent=63 // pred_check
        %p4967 = pneg %p276
      $region66: #{detector_forward.4} parent=63 // pred_check_branch
        %4969 = sbr.rel (%p4967) target = $region68
      $region67: #{detector_forward.4} parent=63 // pred_region
        _
      $region68: #{detector_forward.4} parent=63 // pred_fallthru
        _
    $region64: #{detector_forward.4} parent=5 // pred_fallthru
      _
    %p4970 = scmp.le.s32.totalorder 2, %s17
    // Predicated region
    $region69: #{detector_forward.4} parent=5 // pred_check
      %p4971 = pneg %p4970
    $region70: #{detector_forward.4} parent=5 // pred_check_branch
      %4973 = sbr.rel (%p4971) target = $region72
    $region71: #{detector_forward.4} parent=5 // pred_region
      %s4974 = ssub.s32 %s17, 2
      // Predicated region
      $region73: #{detector_forward.4} parent=71 // pred_check
        %p4975 = pneg %p282
      $region74: #{detector_forward.4} parent=71 // pred_check_branch
        %4977 = sbr.rel (%p4975) target = $region76
      $region75: #{detector_forward.4} parent=71 // pred_region
        %p4978 = scmp.lt.s32.totalorder %s23, 1
        %s4979 = scalar_select %p4978, %s23, 1
        %s4980 = smul.addr %s4979, 32
        %s4981 = smul.addr %s4980, 4
        %s4982 = scalar_lea.vmem %s11, %s4981
      $region76: #{detector_forward.4} parent=71 // pred_fallthru
        _
    $region72: #{detector_forward.4} parent=5 // pred_fallthru
      _
  $region6: #{detector_forward.4} parent=0 // loop_footer
    %s21 = sadd.s32 1, %s17
  $region7: #{detector_forward.4} parent=0 // loop_footer_branch
    %16 = sbr.rel target = $region3
  $region8: #{detector_forward.4} parent=0 // loop_exit
    _

</llo_original>
